<compile_context>
chip_gen: v6e
topology: v6e:2x2x1
jax: 0.10.0
libtpu: 0.0.40
codegen_flags: <defaults>
</compile_context>

<pallas_src>
import functools

import jax
import jax.numpy as jnp
from jax.experimental import pallas as pl
from jax.experimental.pallas import tpu as pltpu


def _round_up(x, m):
    return ((x + m - 1) // m) * m


# --------------------------------------------------------------------------------------
# LSTM layer kernel: one grid step = one block of TB time steps for the whole batch.
# --------------------------------------------------------------------------------------
def _lstm_layer_kernel(x_ref, wih_hbm, whh_hbm, b_hbm, out_ref,
                       wih_sc, whh_sc, b_sc, gx_sc, h_sc, c_sc, dma_sem):
    # x_ref:   (TB*Bp, D)    time-block of inputs, rows ordered (t, b)
    # wih_hbm: (D, 4Hp)      input->gates weights (ANY/HBM, fetched once)
    # whh_hbm: (Hp, 4Hp)     hidden->gates weights (ANY/HBM, fetched once)
    # b_hbm:   (1, 4Hp)      combined bias b_ih + b_hh (ANY/HBM, fetched once)
    # out_ref: (TB*Bp, Hp)   hidden-state outputs for this time block
    # scratch: weight copies, gates_x buffer, recurrent h/c state, DMA semaphores
    blk = pl.program_id(0)

    @pl.when(blk == 0)
    def _init():
        # Single-buffered weights: DMA'd into VMEM scratch exactly once and reused
        # for every time block of the sequence (no double-buffered weight pipeline).
        cw = pltpu.make_async_copy(wih_hbm, wih_sc, dma_sem.at[0])
        ch = pltpu.make_async_copy(whh_hbm, whh_sc, dma_sem.at[1])
        cb = pltpu.make_async_copy(b_hbm, b_sc, dma_sem.at[2])
        cw.start()
        ch.start()
        cb.start()
        h_sc[...] = jnp.zeros_like(h_sc)
        c_sc[...] = jnp.zeros_like(c_sc)
        cw.wait()
        ch.wait()
        cb.wait()

    bp, hp = h_sc.shape
    n_steps = x_ref.shape[0] // bp

    # Hoisted input projection: one big MXU matmul for the whole time block,
    # bias folded in, off the serial recurrence path.
    gx_sc[...] = (
        jnp.dot(x_ref[...].astype(jnp.float32), wih_sc[...],
                preferred_element_type=jnp.float32)
        + b_sc[...])

    # Serial recurrence: only h_{t-1} @ W_hh^T remains per step.  Fully unrolled
    # (static trip count) so indices/stores are static and scheduling is straight-line.
    h = h_sc[...]
    c = c_sc[...]
    for t in range(n_steps):
        rows = slice(t * bp, (t + 1) * bp)
        gates = gx_sc[rows, :] + jnp.dot(h, whh_sc[...],
                                         preferred_element_type=jnp.float32)
        # PyTorch gate order: i, f, g, o  (each gate block is 128-lane aligned).
        i = jax.nn.sigmoid(gates[:, 0 * hp:1 * hp])
        f = jax.nn.sigmoid(gates[:, 1 * hp:2 * hp])
        g = jnp.tanh(gates[:, 2 * hp:3 * hp])
        o = jax.nn.sigmoid(gates[:, 3 * hp:4 * hp])
        c = f * c + i * g
        h = o * jnp.tanh(c)
        out_ref[rows, :] = h.astype(out_ref.dtype)
    h_sc[...] = h
    c_sc[...] = c


def _lstm_layer(x_2d, wih_t, whh_t, bias, *, bp, tb):
    """One LSTM layer over the full (padded) sequence. x_2d: (Tp*Bp, D) -> (Tp*Bp, Hp)."""
    m, d_in = x_2d.shape
    hp = whh_t.shape[0]
    g4 = whh_t.shape[1]
    block_rows = bp * tb
    num_blocks = m // block_rows

    return pl.pallas_call(
        _lstm_layer_kernel,
        out_shape=jax.ShapeDtypeStruct((m, hp), jnp.float32),
        grid_spec=pltpu.PrefetchScalarGridSpec(
            num_scalar_prefetch=0,
            grid=(num_blocks,),
            in_specs=[
                pl.BlockSpec((block_rows, d_in), lambda i: (i, 0)),
                pl.BlockSpec(memory_space=pl.ANY),   # W_ih^T (fetched once)
                pl.BlockSpec(memory_space=pl.ANY),   # W_hh^T (fetched once)
                pl.BlockSpec(memory_space=pl.ANY),   # bias   (fetched once)
            ],
            out_specs=pl.BlockSpec((block_rows, hp), lambda i: (i, 0)),
            scratch_shapes=[
                pltpu.VMEM((d_in, g4), jnp.float32),        # W_ih^T copy
                pltpu.VMEM((hp, g4), jnp.float32),          # W_hh^T copy
                pltpu.VMEM((1, g4), jnp.float32),           # bias copy
                pltpu.VMEM((block_rows, g4), jnp.float32),  # gates_x buffer
                pltpu.VMEM((bp, hp), jnp.float32),          # h state
                pltpu.VMEM((bp, hp), jnp.float32),          # c state
                pltpu.SemaphoreType.DMA((3,)),
            ],
        ),
        compiler_params=pltpu.CompilerParams(
            dimension_semantics=("arbitrary",)),   # recurrence: sequential over time
    )(x_2d, wih_t, whh_t, bias)


# --------------------------------------------------------------------------------------
# Fused Linear + ReLU kernel (the Embedder's fc head).
# --------------------------------------------------------------------------------------
def _linear_relu_kernel(x_ref, w_ref, b_ref, o_ref):
    y = jnp.dot(x_ref[...], w_ref[...], preferred_element_type=jnp.float32) + b_ref[...]
    o_ref[...] = jnp.maximum(y, 0.0).astype(o_ref.dtype)


def _linear_relu(x_2d, w_t, b_2d, *, block_rows):
    m, d_in = x_2d.shape
    n = w_t.shape[1]
    return pl.pallas_call(
        _linear_relu_kernel,
        out_shape=jax.ShapeDtypeStruct((m, n), jnp.float32),
        grid_spec=pltpu.PrefetchScalarGridSpec(
            num_scalar_prefetch=0,
            grid=(m // block_rows,),
            in_specs=[
                pl.BlockSpec((block_rows, d_in), lambda i: (i, 0)),
                pl.BlockSpec((d_in, n), lambda i: (0, 0)),
                pl.BlockSpec((1, n), lambda i: (0, 0)),
            ],
            out_specs=pl.BlockSpec((block_rows, n), lambda i: (i, 0)),
        ),
        compiler_params=pltpu.CompilerParams(
            dimension_semantics=("parallel",)),
    )(x_2d, w_t, b_2d)


# --------------------------------------------------------------------------------------
# Weight packing / padding to (8, 128)-friendly layouts.
# --------------------------------------------------------------------------------------
def _pack_lstm_weights(w_ih, w_hh, b, hp, d_target):
    """Pad per-gate H -> Hp (lane dim) and the input dim D -> d_target; transpose for x@W^T."""
    h = w_hh.shape[1]
    d = w_ih.shape[1]
    wih = jnp.pad(w_ih.reshape(4, h, d),
                  ((0, 0), (0, hp - h), (0, d_target - d)))       # (4, Hp, Dp)
    wih_t = jnp.transpose(wih.reshape(4 * hp, d_target))          # (Dp, 4Hp)
    whh = jnp.pad(w_hh.reshape(4, h, h),
                  ((0, 0), (0, hp - h), (0, hp - h)))             # (4, Hp, Hp)
    whh_t = jnp.transpose(whh.reshape(4 * hp, hp))                # (Hp, 4Hp)
    bias = jnp.pad(b.reshape(4, h), ((0, 0), (0, hp - h))).reshape(1, 4 * hp)
    return wih_t, whh_t, bias


# --------------------------------------------------------------------------------------
# Embedder forward (LSTM stack + fc + relu).
# --------------------------------------------------------------------------------------
@functools.partial(jax.jit, static_argnames=("time_block",))
def embedder_forward(x_btf, lstm_params, fc_w, fc_b, *, time_block=8):
    """Embedder.forward: x (B, T, feature_dim) -> (B, T, hidden_dim)."""
    B, T, F = x_btf.shape
    H = fc_w.shape[0]
    bp = _round_up(B, 8)            # sublane-dense batch
    hp = _round_up(H, 128)          # lane-dense hidden / gate blocks
    tp = _round_up(T, time_block)   # time padded to a whole number of blocks

    # (B, T, F) -> time-major, pad batch/time with zeros, flatten rows to (t, b).
    x = jnp.transpose(x_btf.astype(jnp.float32), (1, 0, 2))       # (T, B, F)
    x = jnp.pad(x, ((0, tp - T), (0, bp - B), (0, 0)))            # (Tp, Bp, F)
    h = x.reshape(tp * bp, F)

    for w_ih, w_hh, b in lstm_params:
        d_in = h.shape[1]
        wih_t, whh_t, bias = _pack_lstm_weights(w_ih, w_hh, b, hp, d_in)
        h = _lstm_layer(h, wih_t, whh_t, bias, bp=bp, tb=time_block)

    # fc + relu (padded weight columns/rows are zero, so padded lanes stay inert).
    wfc_t = jnp.pad(fc_w, ((0, hp - H), (0, hp - H))).T           # (Hp, Hp) for x @ W^T
    bfc = jnp.pad(fc_b, (0, hp - H)).reshape(1, hp)
    y = _linear_relu(h, wfc_t, bfc, block_rows=bp * time_block)

    y = y.reshape(tp, bp, hp)[:T, :B, :H]                         # strip all padding
    return jnp.transpose(y, (1, 0, 2))                            # (B, T, H)


# --------------------------------------------------------------------------------------
# Parameter init (matches nn.LSTM / nn.Linear shapes; uniform +-1/sqrt(H)).
# --------------------------------------------------------------------------------------
def init_embedder_params(key, feature_dim, hidden_dim, num_layers):
    bound = float(hidden_dim) ** -0.5
    lstm_params = []
    for layer in range(num_layers):
        in_dim = feature_dim if layer == 0 else hidden_dim
        key, k1, k2, k3, k4 = jax.random.split(key, 5)
        w_ih = jax.random.uniform(k1, (4 * hidden_dim, in_dim), jnp.float32, -bound, bound)
        w_hh = jax.random.uniform(k2, (4 * hidden_dim, hidden_dim), jnp.float32, -bound, bound)
        b_ih = jax.random.uniform(k3, (4 * hidden_dim,), jnp.float32, -bound, bound)
        b_hh = jax.random.uniform(k4, (4 * hidden_dim,), jnp.float32, -bound, bound)
        lstm_params.append((w_ih, w_hh, b_ih + b_hh))
    key, k5, k6 = jax.random.split(key, 3)
    fc_w = jax.random.uniform(k5, (hidden_dim, hidden_dim), jnp.float32, -bound, bound)
    fc_b = jax.random.uniform(k6, (hidden_dim,), jnp.float32, -bound, bound)
    return lstm_params, fc_w, fc_b


# --------------------------------------------------------------------------------------
# Pure-JAX reference with identical PyTorch semantics.
# --------------------------------------------------------------------------------------
def embedder_reference(x_btf, lstm_params, fc_w, fc_b):
    h_seq = x_btf.astype(jnp.float32)
    for w_ih, w_hh, b in lstm_params:
        H = w_hh.shape[1]
        B = h_seq.shape[0]

        def step(carry, x_t, w_ih=w_ih, w_hh=w_hh, b=b, H=H):
            h_prev, c_prev = carry
            gates = x_t @ w_ih.T + h_prev @ w_hh.T + b
            i = jax.nn.sigmoid(gates[:, 0:H])
            f = jax.nn.sigmoid(gates[:, H:2 * H])
            g = jnp.tanh(gates[:, 2 * H:3 * H])
            o = jax.nn.sigmoid(gates[:, 3 * H:4 * H])
            c = f * c_prev + i * g
            h = o * jnp.tanh(c)
            return (h, c), h

        init = (jnp.zeros((B, H), jnp.float32), jnp.zeros((B, H), jnp.float32))
        _, out_tbh = jax.lax.scan(step, init, jnp.transpose(h_seq, (1, 0, 2)))
        h_seq = jnp.transpose(out_tbh, (1, 0, 2))
    return jax.nn.relu(h_seq @ fc_w.T + fc_b)


if __name__ == "__main__":
    B, T, feature_dim, hidden_dim, num_layers = 2, 8, 4, 32, 2

    key = jax.random.PRNGKey(0)
    kx, kp = jax.random.split(key)
    x = jax.random.normal(kx, (B, T, feature_dim), jnp.float32)
    lstm_params, fc_w, fc_b = init_embedder_params(kp, feature_dim, hidden_dim, num_layers)

    out = jax.block_until_ready(embedder_forward(x, lstm_params, fc_w, fc_b))
    ref = jax.block_until_ready(embedder_reference(x, lstm_params, fc_w, fc_b))

    assert out.shape == (B, T, hidden_dim), out.shape
    assert jnp.allclose(out, ref, rtol=1e-3, atol=1e-3), (
        "max abs diff: %g" % float(jnp.max(jnp.abs(out - ref))))

    print("KERNEL_OK")
</pallas_src>

<mosaic_0001>
module attributes {stable_mosaic.version = 11 : i64} {
  func.func @_linear_relu_kernel(%arg0: i32, %arg1: memref<64x128xf32, #tpu.memory_space<vmem>>, %arg2: memref<128x128xf32, #tpu.memory_space<vmem>>, %arg3: memref<1x128xf32, #tpu.memory_space<vmem>>, %arg4: memref<64x128xf32, #tpu.memory_space<vmem>>) attributes {dimension_semantics = [#tpu.dimension_semantics<parallel>], iteration_bounds = array<i64: 1>, scalar_prefetch = 0 : i64, scratch_operands = 0 : i64, tpu.core_type = #tpu.core_type<tc>, window_params = [{transform_indices = @transform_0, window_bounds = array<i64: 64, 128>}, {pipeline_mode = #tpu.pipeline_mode<synchronous>, transform_indices = @transform_1, window_bounds = array<i64: 128, 128>}, {pipeline_mode = #tpu.pipeline_mode<synchronous>, transform_indices = @transform_2, window_bounds = array<i64: 1, 128>}, {transform_indices = @transform_3, window_bounds = array<i64: 64, 128>}]} {
    %c0 = arith.constant 0 : index
    %c0_0 = arith.constant 0 : index
    %0 = vector.load %arg1[%c0, %c0_0] : memref<64x128xf32, #tpu.memory_space<vmem>>, vector<64x128xf32>
    %c0_1 = arith.constant 0 : index
    %c0_2 = arith.constant 0 : index
    %1 = vector.load %arg2[%c0_1, %c0_2] : memref<128x128xf32, #tpu.memory_space<vmem>>, vector<128x128xf32>
    %cst = arith.constant dense<0.000000e+00> : vector<64x128xf32>
    %2 = tpu.matmul %0, %1, %cst {dimension_numbers = #tpu.dot_dimension_numbers<[1], [0], [0], [1], [0, 0, 1, 1], [], []>} : vector<64x128xf32>, vector<128x128xf32>, vector<64x128xf32> -> vector<64x128xf32>
    %c0_3 = arith.constant 0 : index
    %c0_4 = arith.constant 0 : index
    %3 = vector.load %arg3[%c0_3, %c0_4] : memref<1x128xf32, #tpu.memory_space<vmem>>, vector<1x128xf32>
    %4 = vector.broadcast %3 : vector<1x128xf32> to vector<64x128xf32>
    %5 = arith.addf %2, %4 : vector<64x128xf32>
    %cst_5 = arith.constant 0.000000e+00 : f32
    %6 = vector.broadcast %cst_5 : f32 to vector<64x128xf32>
    %7 = arith.maximumf %5, %6 : vector<64x128xf32>
    %c0_6 = arith.constant 0 : index
    %c0_7 = arith.constant 0 : index
    %8 = vector.load %arg4[%c0_6, %c0_7] : memref<64x128xf32, #tpu.memory_space<vmem>>, vector<64x128xf32>
    tpu.vector_store %arg4[%c0_6, %c0_7], %7 {strides = array<i32>} : memref<64x128xf32, #tpu.memory_space<vmem>>, vector<64x128xf32>,
    return
  }
  func.func @transform_0(%arg0: i32) -> (i32, i32) {
    %c0_i32 = arith.constant 0 : i32
    %c0_i32_0 = arith.constant 0 : i32
    return %arg0, %c0_i32 : i32, i32
  }
  func.func @transform_1(%arg0: i32) -> (i32, i32) {
    %c0_i32 = arith.constant 0 : i32
    %c0_i32_0 = arith.constant 0 : i32
    %c0_i32_1 = arith.constant 0 : i32
    return %c0_i32, %c0_i32_0 : i32, i32
  }
  func.func @transform_2(%arg0: i32) -> (i32, i32) {
    %c0_i32 = arith.constant 0 : i32
    %c0_i32_0 = arith.constant 0 : i32
    %c0_i32_1 = arith.constant 0 : i32
    return %c0_i32, %c0_i32_0 : i32, i32
  }
  func.func @transform_3(%arg0: i32) -> (i32, i32) {
    %c0_i32 = arith.constant 0 : i32
    %c0_i32_0 = arith.constant 0 : i32
    return %arg0, %c0_i32 : i32, i32
  }
}

module attributes {stable_mosaic.version = 11 : i64} {
  func.func @_lstm_layer_kernel(%arg0: i32, %arg1: memref<64x4xf32, #tpu.memory_space<vmem>>, %arg2: memref<4x512xf32, #tpu.memory_space<any>>, %arg3: memref<128x512xf32, #tpu.memory_space<any>>, %arg4: memref<1x512xf32, #tpu.memory_space<any>>, %arg5: memref<64x128xf32, #tpu.memory_space<vmem>>, %arg6: memref<4x512xf32, #tpu.memory_space<vmem>>, %arg7: memref<128x512xf32, #tpu.memory_space<vmem>>, %arg8: memref<1x512xf32, #tpu.memory_space<vmem>>, %arg9: memref<64x512xf32, #tpu.memory_space<vmem>>, %arg10: memref<8x128xf32, #tpu.memory_space<vmem>>, %arg11: memref<8x128xf32, #tpu.memory_space<vmem>>, %arg12: memref<3x!tpu.dma_semaphore, #tpu.memory_space<semaphore_mem>>) attributes {dimension_semantics = [#tpu.dimension_semantics<arbitrary>], iteration_bounds = array<i64: 1>, scalar_prefetch = 0 : i64, scratch_operands = 7 : i64, tpu.core_type = #tpu.core_type<tc>, window_params = [{transform_indices = @transform_0, window_bounds = array<i64: 64, 4>}, {}, {}, {}, {transform_indices = @transform_4, window_bounds = array<i64: 64, 128>}]} {
    %c0_i32 = arith.constant 0 : i32
    %0 = arith.cmpi eq, %arg0, %c0_i32 : i32
    %1 = arith.extui %0 : i1 to i32
    %c0_i32_0 = arith.constant 0 : i32
    %2 = arith.cmpi ne, %1, %c0_i32_0 : i32
    scf.if %2 {
      %c0_i32_89 = arith.constant 0 : i32
      %254 = tpu.memref_slice %arg12[%c0_i32_89] : memref<3x!tpu.dma_semaphore, #tpu.memory_space<semaphore_mem>> -> memref<1x!tpu.dma_semaphore, #tpu.memory_space<semaphore_mem>>
      %255 = tpu.memref_squeeze %254 : memref<1x!tpu.dma_semaphore, #tpu.memory_space<semaphore_mem>> -> memref<!tpu.dma_semaphore, #tpu.memory_space<semaphore_mem>>
      tpu.enqueue_dma source(%arg2 : memref<4x512xf32, #tpu.memory_space<any>>) target(%arg6 : memref<4x512xf32, #tpu.memory_space<vmem>>) target_semaphore(%255 : memref<!tpu.dma_semaphore, #tpu.memory_space<semaphore_mem>>)
      %c1_i32 = arith.constant 1 : i32
      %256 = tpu.memref_slice %arg12[%c1_i32] : memref<3x!tpu.dma_semaphore, #tpu.memory_space<semaphore_mem>> -> memref<1x!tpu.dma_semaphore, #tpu.memory_space<semaphore_mem>>
      %257 = tpu.memref_squeeze %256 : memref<1x!tpu.dma_semaphore, #tpu.memory_space<semaphore_mem>> -> memref<!tpu.dma_semaphore, #tpu.memory_space<semaphore_mem>>
      tpu.enqueue_dma source(%arg3 : memref<128x512xf32, #tpu.memory_space<any>>) target(%arg7 : memref<128x512xf32, #tpu.memory_space<vmem>>) target_semaphore(%257 : memref<!tpu.dma_semaphore, #tpu.memory_space<semaphore_mem>>)
      %c2_i32 = arith.constant 2 : i32
      %258 = tpu.memref_slice %arg12[%c2_i32] : memref<3x!tpu.dma_semaphore, #tpu.memory_space<semaphore_mem>> -> memref<1x!tpu.dma_semaphore, #tpu.memory_space<semaphore_mem>>
      %259 = tpu.memref_squeeze %258 : memref<1x!tpu.dma_semaphore, #tpu.memory_space<semaphore_mem>> -> memref<!tpu.dma_semaphore, #tpu.memory_space<semaphore_mem>>
      tpu.enqueue_dma source(%arg4 : memref<1x512xf32, #tpu.memory_space<any>>) target(%arg8 : memref<1x512xf32, #tpu.memory_space<vmem>>) target_semaphore(%259 : memref<!tpu.dma_semaphore, #tpu.memory_space<semaphore_mem>>)
      %cst_90 = arith.constant 0.000000e+00 : f32
      %260 = vector.broadcast %cst_90 : f32 to vector<8x128xf32>
      %c0_91 = arith.constant 0 : index
      %c0_92 = arith.constant 0 : index
      %261 = vector.load %arg10[%c0_91, %c0_92] : memref<8x128xf32, #tpu.memory_space<vmem>>, vector<8x128xf32>
      tpu.vector_store %arg10[%c0_91, %c0_92], %260 {strides = array<i32>} : memref<8x128xf32, #tpu.memory_space<vmem>>, vector<8x128xf32>,
      %cst_93 = arith.constant 0.000000e+00 : f32
      %262 = vector.broadcast %cst_93 : f32 to vector<8x128xf32>
      %c0_94 = arith.constant 0 : index
      %c0_95 = arith.constant 0 : index
      %263 = vector.load %arg11[%c0_94, %c0_95] : memref<8x128xf32, #tpu.memory_space<vmem>>, vector<8x128xf32>
      tpu.vector_store %arg11[%c0_94, %c0_95], %262 {strides = array<i32>} : memref<8x128xf32, #tpu.memory_space<vmem>>, vector<8x128xf32>,
      %c0_i32_96 = arith.constant 0 : i32
      %264 = tpu.memref_slice %arg12[%c0_i32_96] : memref<3x!tpu.dma_semaphore, #tpu.memory_space<semaphore_mem>> -> memref<1x!tpu.dma_semaphore, #tpu.memory_space<semaphore_mem>>
      %265 = tpu.memref_squeeze %264 : memref<1x!tpu.dma_semaphore, #tpu.memory_space<semaphore_mem>> -> memref<!tpu.dma_semaphore, #tpu.memory_space<semaphore_mem>>
      tpu.wait_dma2 semaphore(%265 : memref<!tpu.dma_semaphore, #tpu.memory_space<semaphore_mem>>) src(%arg2 : memref<4x512xf32, #tpu.memory_space<any>>) dst(%arg6 : memref<4x512xf32, #tpu.memory_space<vmem>>)
      %c1_i32_97 = arith.constant 1 : i32
      %266 = tpu.memref_slice %arg12[%c1_i32_97] : memref<3x!tpu.dma_semaphore, #tpu.memory_space<semaphore_mem>> -> memref<1x!tpu.dma_semaphore, #tpu.memory_space<semaphore_mem>>
      %267 = tpu.memref_squeeze %266 : memref<1x!tpu.dma_semaphore, #tpu.memory_space<semaphore_mem>> -> memref<!tpu.dma_semaphore, #tpu.memory_space<semaphore_mem>>
      tpu.wait_dma2 semaphore(%267 : memref<!tpu.dma_semaphore, #tpu.memory_space<semaphore_mem>>) src(%arg3 : memref<128x512xf32, #tpu.memory_space<any>>) dst(%arg7 : memref<128x512xf32, #tpu.memory_space<vmem>>)
      %c2_i32_98 = arith.constant 2 : i32
      %268 = tpu.memref_slice %arg12[%c2_i32_98] : memref<3x!tpu.dma_semaphore, #tpu.memory_space<semaphore_mem>> -> memref<1x!tpu.dma_semaphore, #tpu.memory_space<semaphore_mem>>
      %269 = tpu.memref_squeeze %268 : memref<1x!tpu.dma_semaphore, #tpu.memory_space<semaphore_mem>> -> memref<!tpu.dma_semaphore, #tpu.memory_space<semaphore_mem>>
      tpu.wait_dma2 semaphore(%269 : memref<!tpu.dma_semaphore, #tpu.memory_space<semaphore_mem>>) src(%arg4 : memref<1x512xf32, #tpu.memory_space<any>>) dst(%arg8 : memref<1x512xf32, #tpu.memory_space<vmem>>)
    } else {
    }
    %c0 = arith.constant 0 : index
    %c0_1 = arith.constant 0 : index
    %3 = vector.load %arg1[%c0, %c0_1] : memref<64x4xf32, #tpu.memory_space<vmem>>, vector<64x4xf32>
    %c0_2 = arith.constant 0 : index
    %c0_3 = arith.constant 0 : index
    %4 = vector.load %arg6[%c0_2, %c0_3] : memref<4x512xf32, #tpu.memory_space<vmem>>, vector<4x512xf32>
    %cst = arith.constant dense<0.000000e+00> : vector<64x512xf32>
    %5 = tpu.matmul %3, %4, %cst {dimension_numbers = #tpu.dot_dimension_numbers<[1], [0], [0], [1], [0, 0, 1, 1], [], []>} : vector<64x4xf32>, vector<4x512xf32>, vector<64x512xf32> -> vector<64x512xf32>
    %c0_4 = arith.constant 0 : index
    %c0_5 = arith.constant 0 : index
    %6 = vector.load %arg8[%c0_4, %c0_5] : memref<1x512xf32, #tpu.memory_space<vmem>>, vector<1x512xf32>
    %7 = vector.broadcast %6 : vector<1x512xf32> to vector<64x512xf32>
    %8 = arith.addf %5, %7 : vector<64x512xf32>
    %c0_6 = arith.constant 0 : index
    %c0_7 = arith.constant 0 : index
    %9 = vector.load %arg9[%c0_6, %c0_7] : memref<64x512xf32, #tpu.memory_space<vmem>>, vector<64x512xf32>
    tpu.vector_store %arg9[%c0_6, %c0_7], %8 {strides = array<i32>} : memref<64x512xf32, #tpu.memory_space<vmem>>, vector<64x512xf32>,
    %c0_8 = arith.constant 0 : index
    %c0_9 = arith.constant 0 : index
    %10 = vector.load %arg10[%c0_8, %c0_9] : memref<8x128xf32, #tpu.memory_space<vmem>>, vector<8x128xf32>
    %c0_10 = arith.constant 0 : index
    %c0_11 = arith.constant 0 : index
    %11 = vector.load %arg11[%c0_10, %c0_11] : memref<8x128xf32, #tpu.memory_space<vmem>>, vector<8x128xf32>
    %c0_12 = arith.constant 0 : index
    %c0_13 = arith.constant 0 : index
    %12 = vector.load %arg9[%c0_12, %c0_13] : memref<64x512xf32, #tpu.memory_space<vmem>>, vector<8x512xf32>
    %c0_14 = arith.constant 0 : index
    %c0_15 = arith.constant 0 : index
    %13 = vector.load %arg7[%c0_14, %c0_15] : memref<128x512xf32, #tpu.memory_space<vmem>>, vector<128x512xf32>
    %cst_16 = arith.constant dense<0.000000e+00> : vector<8x512xf32>
    %14 = tpu.matmul %10, %13, %cst_16 {dimension_numbers = #tpu.dot_dimension_numbers<[1], [0], [0], [1], [0, 0, 1, 1], [], []>} : vector<8x128xf32>, vector<128x512xf32>, vector<8x512xf32> -> vector<8x512xf32>
    %15 = arith.addf %12, %14 : vector<8x512xf32>
    %16 = vector.extract_strided_slice %15 {offsets = [0, 0], sizes = [8, 128], strides = [1, 1]} : vector<8x512xf32> to vector<8x128xf32>
    %17 = arith.negf %16 : vector<8x128xf32>
    %18 = math.exp %17 : vector<8x128xf32>
    %cst_17 = arith.constant 1.000000e+00 : f32
    %19 = vector.broadcast %cst_17 : f32 to vector<8x128xf32>
    %20 = arith.addf %19, %18 : vector<8x128xf32>
    %21 = arith.divf %19, %20 : vector<8x128xf32>
    %22 = vector.extract_strided_slice %15 {offsets = [0, 128], sizes = [8, 128], strides = [1, 1]} : vector<8x512xf32> to vector<8x128xf32>
    %23 = arith.negf %22 : vector<8x128xf32>
    %24 = math.exp %23 : vector<8x128xf32>
    %cst_18 = arith.constant 1.000000e+00 : f32
    %25 = vector.broadcast %cst_18 : f32 to vector<8x128xf32>
    %26 = arith.addf %25, %24 : vector<8x128xf32>
    %27 = arith.divf %25, %26 : vector<8x128xf32>
    %28 = vector.extract_strided_slice %15 {offsets = [0, 256], sizes = [8, 128], strides = [1, 1]} : vector<8x512xf32> to vector<8x128xf32>
    %29 = math.tanh %28 : vector<8x128xf32>
    %30 = vector.extract_strided_slice %15 {offsets = [0, 384], sizes = [8, 128], strides = [1, 1]} : vector<8x512xf32> to vector<8x128xf32>
    %31 = arith.negf %30 : vector<8x128xf32>
    %32 = math.exp %31 : vector<8x128xf32>
    %cst_19 = arith.constant 1.000000e+00 : f32
    %33 = vector.broadcast %cst_19 : f32 to vector<8x128xf32>
    %34 = arith.addf %33, %32 : vector<8x128xf32>
    %35 = arith.divf %33, %34 : vector<8x128xf32>
    %36 = arith.mulf %27, %11 : vector<8x128xf32>
    %37 = arith.mulf %21, %29 : vector<8x128xf32>
    %38 = arith.addf %36, %37 : vector<8x128xf32>
    %39 = math.tanh %38 : vector<8x128xf32>
    %40 = arith.mulf %35, %39 : vector<8x128xf32>
    %c0_20 = arith.constant 0 : index
    %c0_21 = arith.constant 0 : index
    %41 = vector.load %arg5[%c0_20, %c0_21] : memref<64x128xf32, #tpu.memory_space<vmem>>, vector<8x128xf32>
    tpu.vector_store %arg5[%c0_20, %c0_21], %40 {strides = array<i32>} : memref<64x128xf32, #tpu.memory_space<vmem>>, vector<8x128xf32>,
    %c8 = arith.constant 8 : index
    %c0_22 = arith.constant 0 : index
    %42 = vector.load %arg9[%c8, %c0_22] : memref<64x512xf32, #tpu.memory_space<vmem>>, vector<8x512xf32>
    %c0_23 = arith.constant 0 : index
    %c0_24 = arith.constant 0 : index
    %43 = vector.load %arg7[%c0_23, %c0_24] : memref<128x512xf32, #tpu.memory_space<vmem>>, vector<128x512xf32>
    %cst_25 = arith.constant dense<0.000000e+00> : vector<8x512xf32>
    %44 = tpu.matmul %40, %43, %cst_25 {dimension_numbers = #tpu.dot_dimension_numbers<[1], [0], [0], [1], [0, 0, 1, 1], [], []>} : vector<8x128xf32>, vector<128x512xf32>, vector<8x512xf32> -> vector<8x512xf32>
    %45 = arith.addf %42, %44 : vector<8x512xf32>
    %46 = vector.extract_strided_slice %45 {offsets = [0, 0], sizes = [8, 128], strides = [1, 1]} : vector<8x512xf32> to vector<8x128xf32>
    %47 = arith.negf %46 : vector<8x128xf32>
    %48 = math.exp %47 : vector<8x128xf32>
    %cst_26 = arith.constant 1.000000e+00 : f32
    %49 = vector.broadcast %cst_26 : f32 to vector<8x128xf32>
    %50 = arith.addf %49, %48 : vector<8x128xf32>
    %51 = arith.divf %49, %50 : vector<8x128xf32>
    %52 = vector.extract_strided_slice %45 {offsets = [0, 128], sizes = [8, 128], strides = [1, 1]} : vector<8x512xf32> to vector<8x128xf32>
    %53 = arith.negf %52 : vector<8x128xf32>
    %54 = math.exp %53 : vector<8x128xf32>
    %cst_27 = arith.constant 1.000000e+00 : f32
    %55 = vector.broadcast %cst_27 : f32 to vector<8x128xf32>
    %56 = arith.addf %55, %54 : vector<8x128xf32>
    %57 = arith.divf %55, %56 : vector<8x128xf32>
    %58 = vector.extract_strided_slice %45 {offsets = [0, 256], sizes = [8, 128], strides = [1, 1]} : vector<8x512xf32> to vector<8x128xf32>
    %59 = math.tanh %58 : vector<8x128xf32>
    %60 = vector.extract_strided_slice %45 {offsets = [0, 384], sizes = [8, 128], strides = [1, 1]} : vector<8x512xf32> to vector<8x128xf32>
    %61 = arith.negf %60 : vector<8x128xf32>
    %62 = math.exp %61 : vector<8x128xf32>
    %cst_28 = arith.constant 1.000000e+00 : f32
    %63 = vector.broadcast %cst_28 : f32 to vector<8x128xf32>
    %64 = arith.addf %63, %62 : vector<8x128xf32>
    %65 = arith.divf %63, %64 : vector<8x128xf32>
    %66 = arith.mulf %57, %38 : vector<8x128xf32>
    %67 = arith.mulf %51, %59 : vector<8x128xf32>
    %68 = arith.addf %66, %67 : vector<8x128xf32>
    %69 = math.tanh %68 : vector<8x128xf32>
    %70 = arith.mulf %65, %69 : vector<8x128xf32>
    %c8_29 = arith.constant 8 : index
    %c0_30 = arith.constant 0 : index
    %71 = vector.load %arg5[%c8_29, %c0_30] : memref<64x128xf32, #tpu.memory_space<vmem>>, vector<8x128xf32>
    tpu.vector_store %arg5[%c8_29, %c0_30], %70 {strides = array<i32>} : memref<64x128xf32, #tpu.memory_space<vmem>>, vector<8x128xf32>,
    %c16 = arith.constant 16 : index
    %c0_31 = arith.constant 0 : index
    %72 = vector.load %arg9[%c16, %c0_31] : memref<64x512xf32, #tpu.memory_space<vmem>>, vector<8x512xf32>
    %c0_32 = arith.constant 0 : index
    %c0_33 = arith.constant 0 : index
    %73 = vector.load %arg7[%c0_32, %c0_33] : memref<128x512xf32, #tpu.memory_space<vmem>>, vector<128x512xf32>
    %cst_34 = arith.constant dense<0.000000e+00> : vector<8x512xf32>
    %74 = tpu.matmul %70, %73, %cst_34 {dimension_numbers = #tpu.dot_dimension_numbers<[1], [0], [0], [1], [0, 0, 1, 1], [], []>} : vector<8x128xf32>, vector<128x512xf32>, vector<8x512xf32> -> vector<8x512xf32>
    %75 = arith.addf %72, %74 : vector<8x512xf32>
    %76 = vector.extract_strided_slice %75 {offsets = [0, 0], sizes = [8, 128], strides = [1, 1]} : vector<8x512xf32> to vector<8x128xf32>
    %77 = arith.negf %76 : vector<8x128xf32>
    %78 = math.exp %77 : vector<8x128xf32>
    %cst_35 = arith.constant 1.000000e+00 : f32
    %79 = vector.broadcast %cst_35 : f32 to vector<8x128xf32>
    %80 = arith.addf %79, %78 : vector<8x128xf32>
    %81 = arith.divf %79, %80 : vector<8x128xf32>
    %82 = vector.extract_strided_slice %75 {offsets = [0, 128], sizes = [8, 128], strides = [1, 1]} : vector<8x512xf32> to vector<8x128xf32>
    %83 = arith.negf %82 : vector<8x128xf32>
    %84 = math.exp %83 : vector<8x128xf32>
    %cst_36 = arith.constant 1.000000e+00 : f32
    %85 = vector.broadcast %cst_36 : f32 to vector<8x128xf32>
    %86 = arith.addf %85, %84 : vector<8x128xf32>
    %87 = arith.divf %85, %86 : vector<8x128xf32>
    %88 = vector.extract_strided_slice %75 {offsets = [0, 256], sizes = [8, 128], strides = [1, 1]} : vector<8x512xf32> to vector<8x128xf32>
    %89 = math.tanh %88 : vector<8x128xf32>
    %90 = vector.extract_strided_slice %75 {offsets = [0, 384], sizes = [8, 128], strides = [1, 1]} : vector<8x512xf32> to vector<8x128xf32>
    %91 = arith.negf %90 : vector<8x128xf32>
    %92 = math.exp %91 : vector<8x128xf32>
    %cst_37 = arith.constant 1.000000e+00 : f32
    %93 = vector.broadcast %cst_37 : f32 to vector<8x128xf32>
    %94 = arith.addf %93, %92 : vector<8x128xf32>
    %95 = arith.divf %93, %94 : vector<8x128xf32>
    %96 = arith.mulf %87, %68 : vector<8x128xf32>
    %97 = arith.mulf %81, %89 : vector<8x128xf32>
    %98 = arith.addf %96, %97 : vector<8x128xf32>
    %99 = math.tanh %98 : vector<8x128xf32>
    %100 = arith.mulf %95, %99 : vector<8x128xf32>
    %c16_38 = arith.constant 16 : index
    %c0_39 = arith.constant 0 : index
    %101 = vector.load %arg5[%c16_38, %c0_39] : memref<64x128xf32, #tpu.memory_space<vmem>>, vector<8x128xf32>
    tpu.vector_store %arg5[%c16_38, %c0_39], %100 {strides = array<i32>} : memref<64x128xf32, #tpu.memory_space<vmem>>, vector<8x128xf32>,
    %c24 = arith.constant 24 : index
    %c0_40 = arith.constant 0 : index
    %102 = vector.load %arg9[%c24, %c0_40] : memref<64x512xf32, #tpu.memory_space<vmem>>, vector<8x512xf32>
    %c0_41 = arith.constant 0 : index
    %c0_42 = arith.constant 0 : index
    %103 = vector.load %arg7[%c0_41, %c0_42] : memref<128x512xf32, #tpu.memory_space<vmem>>, vector<128x512xf32>
    %cst_43 = arith.constant dense<0.000000e+00> : vector<8x512xf32>
    %104 = tpu.matmul %100, %103, %cst_43 {dimension_numbers = #tpu.dot_dimension_numbers<[1], [0], [0], [1], [0, 0, 1, 1], [], []>} : vector<8x128xf32>, vector<128x512xf32>, vector<8x512xf32> -> vector<8x512xf32>
    %105 = arith.addf %102, %104 : vector<8x512xf32>
    %106 = vector.extract_strided_slice %105 {offsets = [0, 0], sizes = [8, 128], strides = [1, 1]} : vector<8x512xf32> to vector<8x128xf32>
    %107 = arith.negf %106 : vector<8x128xf32>
    %108 = math.exp %107 : vector<8x128xf32>
    %cst_44 = arith.constant 1.000000e+00 : f32
    %109 = vector.broadcast %cst_44 : f32 to vector<8x128xf32>
    %110 = arith.addf %109, %108 : vector<8x128xf32>
    %111 = arith.divf %109, %110 : vector<8x128xf32>
    %112 = vector.extract_strided_slice %105 {offsets = [0, 128], sizes = [8, 128], strides = [1, 1]} : vector<8x512xf32> to vector<8x128xf32>
    %113 = arith.negf %112 : vector<8x128xf32>
    %114 = math.exp %113 : vector<8x128xf32>
    %cst_45 = arith.constant 1.000000e+00 : f32
    %115 = vector.broadcast %cst_45 : f32 to vector<8x128xf32>
    %116 = arith.addf %115, %114 : vector<8x128xf32>
    %117 = arith.divf %115, %116 : vector<8x128xf32>
    %118 = vector.extract_strided_slice %105 {offsets = [0, 256], sizes = [8, 128], strides = [1, 1]} : vector<8x512xf32> to vector<8x128xf32>
    %119 = math.tanh %118 : vector<8x128xf32>
    %120 = vector.extract_strided_slice %105 {offsets = [0, 384], sizes = [8, 128], strides = [1, 1]} : vector<8x512xf32> to vector<8x128xf32>
    %121 = arith.negf %120 : vector<8x128xf32>
    %122 = math.exp %121 : vector<8x128xf32>
    %cst_46 = arith.constant 1.000000e+00 : f32
    %123 = vector.broadcast %cst_46 : f32 to vector<8x128xf32>
    %124 = arith.addf %123, %122 : vector<8x128xf32>
    %125 = arith.divf %123, %124 : vector<8x128xf32>
    %126 = arith.mulf %117, %98 : vector<8x128xf32>
    %127 = arith.mulf %111, %119 : vector<8x128xf32>
    %128 = arith.addf %126, %127 : vector<8x128xf32>
    %129 = math.tanh %128 : vector<8x128xf32>
    %130 = arith.mulf %125, %129 : vector<8x128xf32>
    %c24_47 = arith.constant 24 : index
    %c0_48 = arith.constant 0 : index
    %131 = vector.load %arg5[%c24_47, %c0_48] : memref<64x128xf32, #tpu.memory_space<vmem>>, vector<8x128xf32>
    tpu.vector_store %arg5[%c24_47, %c0_48], %130 {strides = array<i32>} : memref<64x128xf32, #tpu.memory_space<vmem>>, vector<8x128xf32>,
    %c32 = arith.constant 32 : index
    %c0_49 = arith.constant 0 : index
    %132 = vector.load %arg9[%c32, %c0_49] : memref<64x512xf32, #tpu.memory_space<vmem>>, vector<8x512xf32>
    %c0_50 = arith.constant 0 : index
    %c0_51 = arith.constant 0 : index
    %133 = vector.load %arg7[%c0_50, %c0_51] : memref<128x512xf32, #tpu.memory_space<vmem>>, vector<128x512xf32>
    %cst_52 = arith.constant dense<0.000000e+00> : vector<8x512xf32>
    %134 = tpu.matmul %130, %133, %cst_52 {dimension_numbers = #tpu.dot_dimension_numbers<[1], [0], [0], [1], [0, 0, 1, 1], [], []>} : vector<8x128xf32>, vector<128x512xf32>, vector<8x512xf32> -> vector<8x512xf32>
    %135 = arith.addf %132, %134 : vector<8x512xf32>
    %136 = vector.extract_strided_slice %135 {offsets = [0, 0], sizes = [8, 128], strides = [1, 1]} : vector<8x512xf32> to vector<8x128xf32>
    %137 = arith.negf %136 : vector<8x128xf32>
    %138 = math.exp %137 : vector<8x128xf32>
    %cst_53 = arith.constant 1.000000e+00 : f32
    %139 = vector.broadcast %cst_53 : f32 to vector<8x128xf32>
    %140 = arith.addf %139, %138 : vector<8x128xf32>
    %141 = arith.divf %139, %140 : vector<8x128xf32>
    %142 = vector.extract_strided_slice %135 {offsets = [0, 128], sizes = [8, 128], strides = [1, 1]} : vector<8x512xf32> to vector<8x128xf32>
    %143 = arith.negf %142 : vector<8x128xf32>
    %144 = math.exp %143 : vector<8x128xf32>
    %cst_54 = arith.constant 1.000000e+00 : f32
    %145 = vector.broadcast %cst_54 : f32 to vector<8x128xf32>
    %146 = arith.addf %145, %144 : vector<8x128xf32>
    %147 = arith.divf %145, %146 : vector<8x128xf32>
    %148 = vector.extract_strided_slice %135 {offsets = [0, 256], sizes = [8, 128], strides = [1, 1]} : vector<8x512xf32> to vector<8x128xf32>
    %149 = math.tanh %148 : vector<8x128xf32>
    %150 = vector.extract_strided_slice %135 {offsets = [0, 384], sizes = [8, 128], strides = [1, 1]} : vector<8x512xf32> to vector<8x128xf32>
    %151 = arith.negf %150 : vector<8x128xf32>
    %152 = math.exp %151 : vector<8x128xf32>
    %cst_55 = arith.constant 1.000000e+00 : f32
    %153 = vector.broadcast %cst_55 : f32 to vector<8x128xf32>
    %154 = arith.addf %153, %152 : vector<8x128xf32>
    %155 = arith.divf %153, %154 : vector<8x128xf32>
    %156 = arith.mulf %147, %128 : vector<8x128xf32>
    %157 = arith.mulf %141, %149 : vector<8x128xf32>
    %158 = arith.addf %156, %157 : vector<8x128xf32>
    %159 = math.tanh %158 : vector<8x128xf32>
    %160 = arith.mulf %155, %159 : vector<8x128xf32>
    %c32_56 = arith.constant 32 : index
    %c0_57 = arith.constant 0 : index
    %161 = vector.load %arg5[%c32_56, %c0_57] : memref<64x128xf32, #tpu.memory_space<vmem>>, vector<8x128xf32>
    tpu.vector_store %arg5[%c32_56, %c0_57], %160 {strides = array<i32>} : memref<64x128xf32, #tpu.memory_space<vmem>>, vector<8x128xf32>,
    %c40 = arith.constant 40 : index
    %c0_58 = arith.constant 0 : index
    %162 = vector.load %arg9[%c40, %c0_58] : memref<64x512xf32, #tpu.memory_space<vmem>>, vector<8x512xf32>
    %c0_59 = arith.constant 0 : index
    %c0_60 = arith.constant 0 : index
    %163 = vector.load %arg7[%c0_59, %c0_60] : memref<128x512xf32, #tpu.memory_space<vmem>>, vector<128x512xf32>
    %cst_61 = arith.constant dense<0.000000e+00> : vector<8x512xf32>
    %164 = tpu.matmul %160, %163, %cst_61 {dimension_numbers = #tpu.dot_dimension_numbers<[1], [0], [0], [1], [0, 0, 1, 1], [], []>} : vector<8x128xf32>, vector<128x512xf32>, vector<8x512xf32> -> vector<8x512xf32>
    %165 = arith.addf %162, %164 : vector<8x512xf32>
    %166 = vector.extract_strided_slice %165 {offsets = [0, 0], sizes = [8, 128], strides = [1, 1]} : vector<8x512xf32> to vector<8x128xf32>
    %167 = arith.negf %166 : vector<8x128xf32>
    %168 = math.exp %167 : vector<8x128xf32>
    %cst_62 = arith.constant 1.000000e+00 : f32
    %169 = vector.broadcast %cst_62 : f32 to vector<8x128xf32>
    %170 = arith.addf %169, %168 : vector<8x128xf32>
    %171 = arith.divf %169, %170 : vector<8x128xf32>
    %172 = vector.extract_strided_slice %165 {offsets = [0, 128], sizes = [8, 128], strides = [1, 1]} : vector<8x512xf32> to vector<8x128xf32>
    %173 = arith.negf %172 : vector<8x128xf32>
    %174 = math.exp %173 : vector<8x128xf32>
    %cst_63 = arith.constant 1.000000e+00 : f32
    %175 = vector.broadcast %cst_63 : f32 to vector<8x128xf32>
    %176 = arith.addf %175, %174 : vector<8x128xf32>
    %177 = arith.divf %175, %176 : vector<8x128xf32>
    %178 = vector.extract_strided_slice %165 {offsets = [0, 256], sizes = [8, 128], strides = [1, 1]} : vector<8x512xf32> to vector<8x128xf32>
    %179 = math.tanh %178 : vector<8x128xf32>
    %180 = vector.extract_strided_slice %165 {offsets = [0, 384], sizes = [8, 128], strides = [1, 1]} : vector<8x512xf32> to vector<8x128xf32>
    %181 = arith.negf %180 : vector<8x128xf32>
    %182 = math.exp %181 : vector<8x128xf32>
    %cst_64 = arith.constant 1.000000e+00 : f32
    %183 = vector.broadcast %cst_64 : f32 to vector<8x128xf32>
    %184 = arith.addf %183, %182 : vector<8x128xf32>
    %185 = arith.divf %183, %184 : vector<8x128xf32>
    %186 = arith.mulf %177, %158 : vector<8x128xf32>
    %187 = arith.mulf %171, %179 : vector<8x128xf32>
    %188 = arith.addf %186, %187 : vector<8x128xf32>
    %189 = math.tanh %188 : vector<8x128xf32>
    %190 = arith.mulf %185, %189 : vector<8x128xf32>
    %c40_65 = arith.constant 40 : index
    %c0_66 = arith.constant 0 : index
    %191 = vector.load %arg5[%c40_65, %c0_66] : memref<64x128xf32, #tpu.memory_space<vmem>>, vector<8x128xf32>
    tpu.vector_store %arg5[%c40_65, %c0_66], %190 {strides = array<i32>} : memref<64x128xf32, #tpu.memory_space<vmem>>, vector<8x128xf32>,
    %c48 = arith.constant 48 : index
    %c0_67 = arith.constant 0 : index
    %192 = vector.load %arg9[%c48, %c0_67] : memref<64x512xf32, #tpu.memory_space<vmem>>, vector<8x512xf32>
    %c0_68 = arith.constant 0 : index
    %c0_69 = arith.constant 0 : index
    %193 = vector.load %arg7[%c0_68, %c0_69] : memref<128x512xf32, #tpu.memory_space<vmem>>, vector<128x512xf32>
    %cst_70 = arith.constant dense<0.000000e+00> : vector<8x512xf32>
    %194 = tpu.matmul %190, %193, %cst_70 {dimension_numbers = #tpu.dot_dimension_numbers<[1], [0], [0], [1], [0, 0, 1, 1], [], []>} : vector<8x128xf32>, vector<128x512xf32>, vector<8x512xf32> -> vector<8x512xf32>
    %195 = arith.addf %192, %194 : vector<8x512xf32>
    %196 = vector.extract_strided_slice %195 {offsets = [0, 0], sizes = [8, 128], strides = [1, 1]} : vector<8x512xf32> to vector<8x128xf32>
    %197 = arith.negf %196 : vector<8x128xf32>
    %198 = math.exp %197 : vector<8x128xf32>
    %cst_71 = arith.constant 1.000000e+00 : f32
    %199 = vector.broadcast %cst_71 : f32 to vector<8x128xf32>
    %200 = arith.addf %199, %198 : vector<8x128xf32>
    %201 = arith.divf %199, %200 : vector<8x128xf32>
    %202 = vector.extract_strided_slice %195 {offsets = [0, 128], sizes = [8, 128], strides = [1, 1]} : vector<8x512xf32> to vector<8x128xf32>
    %203 = arith.negf %202 : vector<8x128xf32>
    %204 = math.exp %203 : vector<8x128xf32>
    %cst_72 = arith.constant 1.000000e+00 : f32
    %205 = vector.broadcast %cst_72 : f32 to vector<8x128xf32>
    %206 = arith.addf %205, %204 : vector<8x128xf32>
    %207 = arith.divf %205, %206 : vector<8x128xf32>
    %208 = vector.extract_strided_slice %195 {offsets = [0, 256], sizes = [8, 128], strides = [1, 1]} : vector<8x512xf32> to vector<8x128xf32>
    %209 = math.tanh %208 : vector<8x128xf32>
    %210 = vector.extract_strided_slice %195 {offsets = [0, 384], sizes = [8, 128], strides = [1, 1]} : vector<8x512xf32> to vector<8x128xf32>
    %211 = arith.negf %210 : vector<8x128xf32>
    %212 = math.exp %211 : vector<8x128xf32>
    %cst_73 = arith.constant 1.000000e+00 : f32
    %213 = vector.broadcast %cst_73 : f32 to vector<8x128xf32>
    %214 = arith.addf %213, %212 : vector<8x128xf32>
    %215 = arith.divf %213, %214 : vector<8x128xf32>
    %216 = arith.mulf %207, %188 : vector<8x128xf32>
    %217 = arith.mulf %201, %209 : vector<8x128xf32>
    %218 = arith.addf %216, %217 : vector<8x128xf32>
    %219 = math.tanh %218 : vector<8x128xf32>
    %220 = arith.mulf %215, %219 : vector<8x128xf32>
    %c48_74 = arith.constant 48 : index
    %c0_75 = arith.constant 0 : index
    %221 = vector.load %arg5[%c48_74, %c0_75] : memref<64x128xf32, #tpu.memory_space<vmem>>, vector<8x128xf32>
    tpu.vector_store %arg5[%c48_74, %c0_75], %220 {strides = array<i32>} : memref<64x128xf32, #tpu.memory_space<vmem>>, vector<8x128xf32>,
    %c56 = arith.constant 56 : index
    %c0_76 = arith.constant 0 : index
    %222 = vector.load %arg9[%c56, %c0_76] : memref<64x512xf32, #tpu.memory_space<vmem>>, vector<8x512xf32>
    %c0_77 = arith.constant 0 : index
    %c0_78 = arith.constant 0 : index
    %223 = vector.load %arg7[%c0_77, %c0_78] : memref<128x512xf32, #tpu.memory_space<vmem>>, vector<128x512xf32>
    %cst_79 = arith.constant dense<0.000000e+00> : vector<8x512xf32>
    %224 = tpu.matmul %220, %223, %cst_79 {dimension_numbers = #tpu.dot_dimension_numbers<[1], [0], [0], [1], [0, 0, 1, 1], [], []>} : vector<8x128xf32>, vector<128x512xf32>, vector<8x512xf32> -> vector<8x512xf32>
    %225 = arith.addf %222, %224 : vector<8x512xf32>
    %226 = vector.extract_strided_slice %225 {offsets = [0, 0], sizes = [8, 128], strides = [1, 1]} : vector<8x512xf32> to vector<8x128xf32>
    %227 = arith.negf %226 : vector<8x128xf32>
    %228 = math.exp %227 : vector<8x128xf32>
    %cst_80 = arith.constant 1.000000e+00 : f32
    %229 = vector.broadcast %cst_80 : f32 to vector<8x128xf32>
    %230 = arith.addf %229, %228 : vector<8x128xf32>
    %231 = arith.divf %229, %230 : vector<8x128xf32>
    %232 = vector.extract_strided_slice %225 {offsets = [0, 128], sizes = [8, 128], strides = [1, 1]} : vector<8x512xf32> to vector<8x128xf32>
    %233 = arith.negf %232 : vector<8x128xf32>
    %234 = math.exp %233 : vector<8x128xf32>
    %cst_81 = arith.constant 1.000000e+00 : f32
    %235 = vector.broadcast %cst_81 : f32 to vector<8x128xf32>
    %236 = arith.addf %235, %234 : vector<8x128xf32>
    %237 = arith.divf %235, %236 : vector<8x128xf32>
    %238 = vector.extract_strided_slice %225 {offsets = [0, 256], sizes = [8, 128], strides = [1, 1]} : vector<8x512xf32> to vector<8x128xf32>
    %239 = math.tanh %238 : vector<8x128xf32>
    %240 = vector.extract_strided_slice %225 {offsets = [0, 384], sizes = [8, 128], strides = [1, 1]} : vector<8x512xf32> to vector<8x128xf32>
    %241 = arith.negf %240 : vector<8x128xf32>
    %242 = math.exp %241 : vector<8x128xf32>
    %cst_82 = arith.constant 1.000000e+00 : f32
    %243 = vector.broadcast %cst_82 : f32 to vector<8x128xf32>
    %244 = arith.addf %243, %242 : vector<8x128xf32>
    %245 = arith.divf %243, %244 : vector<8x128xf32>
    %246 = arith.mulf %237, %218 : vector<8x128xf32>
    %247 = arith.mulf %231, %239 : vector<8x128xf32>
    %248 = arith.addf %246, %247 : vector<8x128xf32>
    %249 = math.tanh %248 : vector<8x128xf32>
    %250 = arith.mulf %245, %249 : vector<8x128xf32>
    %c56_83 = arith.constant 56 : index
    %c0_84 = arith.constant 0 : index
    %251 = vector.load %arg5[%c56_83, %c0_84] : memref<64x128xf32, #tpu.memory_space<vmem>>, vector<8x128xf32>
    tpu.vector_store %arg5[%c56_83, %c0_84], %250 {strides = array<i32>} : memref<64x128xf32, #tpu.memory_space<vmem>>, vector<8x128xf32>,
    %c0_85 = arith.constant 0 : index
    %c0_86 = arith.constant 0 : index
    %252 = vector.load %arg10[%c0_85, %c0_86] : memref<8x128xf32, #tpu.memory_space<vmem>>, vector<8x128xf32>
    tpu.vector_store %arg10[%c0_85, %c0_86], %250 {strides = array<i32>} : memref<8x128xf32, #tpu.memory_space<vmem>>, vector<8x128xf32>,
    %c0_87 = arith.constant 0 : index
    %c0_88 = arith.constant 0 : index
    %253 = vector.load %arg11[%c0_87, %c0_88] : memref<8x128xf32, #tpu.memory_space<vmem>>, vector<8x128xf32>
    tpu.vector_store %arg11[%c0_87, %c0_88], %248 {strides = array<i32>} : memref<8x128xf32, #tpu.memory_space<vmem>>, vector<8x128xf32>,
    return
  }
  func.func @transform_0(%arg0: i32) -> (i32, i32) {
    %c0_i32 = arith.constant 0 : i32
    %c0_i32_0 = arith.constant 0 : i32
    return %arg0, %c0_i32 : i32, i32
  }
  func.func @transform_4(%arg0: i32) -> (i32, i32) {
    %c0_i32 = arith.constant 0 : i32
    %c0_i32_0 = arith.constant 0 : i32
    return %arg0, %c0_i32 : i32, i32
  }
}

module attributes {stable_mosaic.version = 11 : i64} {
  func.func @_lstm_layer_kernel(%arg0: i32, %arg1: memref<64x128xf32, #tpu.memory_space<vmem>>, %arg2: memref<128x512xf32, #tpu.memory_space<any>>, %arg3: memref<128x512xf32, #tpu.memory_space<any>>, %arg4: memref<1x512xf32, #tpu.memory_space<any>>, %arg5: memref<64x128xf32, #tpu.memory_space<vmem>>, %arg6: memref<128x512xf32, #tpu.memory_space<vmem>>, %arg7: memref<128x512xf32, #tpu.memory_space<vmem>>, %arg8: memref<1x512xf32, #tpu.memory_space<vmem>>, %arg9: memref<64x512xf32, #tpu.memory_space<vmem>>, %arg10: memref<8x128xf32, #tpu.memory_space<vmem>>, %arg11: memref<8x128xf32, #tpu.memory_space<vmem>>, %arg12: memref<3x!tpu.dma_semaphore, #tpu.memory_space<semaphore_mem>>) attributes {dimension_semantics = [#tpu.dimension_semantics<arbitrary>], iteration_bounds = array<i64: 1>, scalar_prefetch = 0 : i64, scratch_operands = 7 : i64, tpu.core_type = #tpu.core_type<tc>, window_params = [{transform_indices = @transform_0, window_bounds = array<i64: 64, 128>}, {}, {}, {}, {transform_indices = @transform_4, window_bounds = array<i64: 64, 128>}]} {
    %c0_i32 = arith.constant 0 : i32
    %0 = arith.cmpi eq, %arg0, %c0_i32 : i32
    %1 = arith.extui %0 : i1 to i32
    %c0_i32_0 = arith.constant 0 : i32
    %2 = arith.cmpi ne, %1, %c0_i32_0 : i32
    scf.if %2 {
      %c0_i32_89 = arith.constant 0 : i32
      %254 = tpu.memref_slice %arg12[%c0_i32_89] : memref<3x!tpu.dma_semaphore, #tpu.memory_space<semaphore_mem>> -> memref<1x!tpu.dma_semaphore, #tpu.memory_space<semaphore_mem>>
      %255 = tpu.memref_squeeze %254 : memref<1x!tpu.dma_semaphore, #tpu.memory_space<semaphore_mem>> -> memref<!tpu.dma_semaphore, #tpu.memory_space<semaphore_mem>>
      tpu.enqueue_dma source(%arg2 : memref<128x512xf32, #tpu.memory_space<any>>) target(%arg6 : memref<128x512xf32, #tpu.memory_space<vmem>>) target_semaphore(%255 : memref<!tpu.dma_semaphore, #tpu.memory_space<semaphore_mem>>)
      %c1_i32 = arith.constant 1 : i32
      %256 = tpu.memref_slice %arg12[%c1_i32] : memref<3x!tpu.dma_semaphore, #tpu.memory_space<semaphore_mem>> -> memref<1x!tpu.dma_semaphore, #tpu.memory_space<semaphore_mem>>
      %257 = tpu.memref_squeeze %256 : memref<1x!tpu.dma_semaphore, #tpu.memory_space<semaphore_mem>> -> memref<!tpu.dma_semaphore, #tpu.memory_space<semaphore_mem>>
      tpu.enqueue_dma source(%arg3 : memref<128x512xf32, #tpu.memory_space<any>>) target(%arg7 : memref<128x512xf32, #tpu.memory_space<vmem>>) target_semaphore(%257 : memref<!tpu.dma_semaphore, #tpu.memory_space<semaphore_mem>>)
      %c2_i32 = arith.constant 2 : i32
      %258 = tpu.memref_slice %arg12[%c2_i32] : memref<3x!tpu.dma_semaphore, #tpu.memory_space<semaphore_mem>> -> memref<1x!tpu.dma_semaphore, #tpu.memory_space<semaphore_mem>>
      %259 = tpu.memref_squeeze %258 : memref<1x!tpu.dma_semaphore, #tpu.memory_space<semaphore_mem>> -> memref<!tpu.dma_semaphore, #tpu.memory_space<semaphore_mem>>
      tpu.enqueue_dma source(%arg4 : memref<1x512xf32, #tpu.memory_space<any>>) target(%arg8 : memref<1x512xf32, #tpu.memory_space<vmem>>) target_semaphore(%259 : memref<!tpu.dma_semaphore, #tpu.memory_space<semaphore_mem>>)
      %cst_90 = arith.constant 0.000000e+00 : f32
      %260 = vector.broadcast %cst_90 : f32 to vector<8x128xf32>
      %c0_91 = arith.constant 0 : index
      %c0_92 = arith.constant 0 : index
      %261 = vector.load %arg10[%c0_91, %c0_92] : memref<8x128xf32, #tpu.memory_space<vmem>>, vector<8x128xf32>
      tpu.vector_store %arg10[%c0_91, %c0_92], %260 {strides = array<i32>} : memref<8x128xf32, #tpu.memory_space<vmem>>, vector<8x128xf32>,
      %cst_93 = arith.constant 0.000000e+00 : f32
      %262 = vector.broadcast %cst_93 : f32 to vector<8x128xf32>
      %c0_94 = arith.constant 0 : index
      %c0_95 = arith.constant 0 : index
      %263 = vector.load %arg11[%c0_94, %c0_95] : memref<8x128xf32, #tpu.memory_space<vmem>>, vector<8x128xf32>
      tpu.vector_store %arg11[%c0_94, %c0_95], %262 {strides = array<i32>} : memref<8x128xf32, #tpu.memory_space<vmem>>, vector<8x128xf32>,
      %c0_i32_96 = arith.constant 0 : i32
      %264 = tpu.memref_slice %arg12[%c0_i32_96] : memref<3x!tpu.dma_semaphore, #tpu.memory_space<semaphore_mem>> -> memref<1x!tpu.dma_semaphore, #tpu.memory_space<semaphore_mem>>
      %265 = tpu.memref_squeeze %264 : memref<1x!tpu.dma_semaphore, #tpu.memory_space<semaphore_mem>> -> memref<!tpu.dma_semaphore, #tpu.memory_space<semaphore_mem>>
      tpu.wait_dma2 semaphore(%265 : memref<!tpu.dma_semaphore, #tpu.memory_space<semaphore_mem>>) src(%arg2 : memref<128x512xf32, #tpu.memory_space<any>>) dst(%arg6 : memref<128x512xf32, #tpu.memory_space<vmem>>)
      %c1_i32_97 = arith.constant 1 : i32
      %266 = tpu.memref_slice %arg12[%c1_i32_97] : memref<3x!tpu.dma_semaphore, #tpu.memory_space<semaphore_mem>> -> memref<1x!tpu.dma_semaphore, #tpu.memory_space<semaphore_mem>>
      %267 = tpu.memref_squeeze %266 : memref<1x!tpu.dma_semaphore, #tpu.memory_space<semaphore_mem>> -> memref<!tpu.dma_semaphore, #tpu.memory_space<semaphore_mem>>
      tpu.wait_dma2 semaphore(%267 : memref<!tpu.dma_semaphore, #tpu.memory_space<semaphore_mem>>) src(%arg3 : memref<128x512xf32, #tpu.memory_space<any>>) dst(%arg7 : memref<128x512xf32, #tpu.memory_space<vmem>>)
      %c2_i32_98 = arith.constant 2 : i32
      %268 = tpu.memref_slice %arg12[%c2_i32_98] : memref<3x!tpu.dma_semaphore, #tpu.memory_space<semaphore_mem>> -> memref<1x!tpu.dma_semaphore, #tpu.memory_space<semaphore_mem>>
      %269 = tpu.memref_squeeze %268 : memref<1x!tpu.dma_semaphore, #tpu.memory_space<semaphore_mem>> -> memref<!tpu.dma_semaphore, #tpu.memory_space<semaphore_mem>>
      tpu.wait_dma2 semaphore(%269 : memref<!tpu.dma_semaphore, #tpu.memory_space<semaphore_mem>>) src(%arg4 : memref<1x512xf32, #tpu.memory_space<any>>) dst(%arg8 : memref<1x512xf32, #tpu.memory_space<vmem>>)
    } else {
    }
    %c0 = arith.constant 0 : index
    %c0_1 = arith.constant 0 : index
    %3 = vector.load %arg1[%c0, %c0_1] : memref<64x128xf32, #tpu.memory_space<vmem>>, vector<64x128xf32>
    %c0_2 = arith.constant 0 : index
    %c0_3 = arith.constant 0 : index
    %4 = vector.load %arg6[%c0_2, %c0_3] : memref<128x512xf32, #tpu.memory_space<vmem>>, vector<128x512xf32>
    %cst = arith.constant dense<0.000000e+00> : vector<64x512xf32>
    %5 = tpu.matmul %3, %4, %cst {dimension_numbers = #tpu.dot_dimension_numbers<[1], [0], [0], [1], [0, 0, 1, 1], [], []>} : vector<64x128xf32>, vector<128x512xf32>, vector<64x512xf32> -> vector<64x512xf32>
    %c0_4 = arith.constant 0 : index
    %c0_5 = arith.constant 0 : index
    %6 = vector.load %arg8[%c0_4, %c0_5] : memref<1x512xf32, #tpu.memory_space<vmem>>, vector<1x512xf32>
    %7 = vector.broadcast %6 : vector<1x512xf32> to vector<64x512xf32>
    %8 = arith.addf %5, %7 : vector<64x512xf32>
    %c0_6 = arith.constant 0 : index
    %c0_7 = arith.constant 0 : index
    %9 = vector.load %arg9[%c0_6, %c0_7] : memref<64x512xf32, #tpu.memory_space<vmem>>, vector<64x512xf32>
    tpu.vector_store %arg9[%c0_6, %c0_7], %8 {strides = array<i32>} : memref<64x512xf32, #tpu.memory_space<vmem>>, vector<64x512xf32>,
    %c0_8 = arith.constant 0 : index
    %c0_9 = arith.constant 0 : index
    %10 = vector.load %arg10[%c0_8, %c0_9] : memref<8x128xf32, #tpu.memory_space<vmem>>, vector<8x128xf32>
    %c0_10 = arith.constant 0 : index
    %c0_11 = arith.constant 0 : index
    %11 = vector.load %arg11[%c0_10, %c0_11] : memref<8x128xf32, #tpu.memory_space<vmem>>, vector<8x128xf32>
    %c0_12 = arith.constant 0 : index
    %c0_13 = arith.constant 0 : index
    %12 = vector.load %arg9[%c0_12, %c0_13] : memref<64x512xf32, #tpu.memory_space<vmem>>, vector<8x512xf32>
    %c0_14 = arith.constant 0 : index
    %c0_15 = arith.constant 0 : index
    %13 = vector.load %arg7[%c0_14, %c0_15] : memref<128x512xf32, #tpu.memory_space<vmem>>, vector<128x512xf32>
    %cst_16 = arith.constant dense<0.000000e+00> : vector<8x512xf32>
    %14 = tpu.matmul %10, %13, %cst_16 {dimension_numbers = #tpu.dot_dimension_numbers<[1], [0], [0], [1], [0, 0, 1, 1], [], []>} : vector<8x128xf32>, vector<128x512xf32>, vector<8x512xf32> -> vector<8x512xf32>
    %15 = arith.addf %12, %14 : vector<8x512xf32>
    %16 = vector.extract_strided_slice %15 {offsets = [0, 0], sizes = [8, 128], strides = [1, 1]} : vector<8x512xf32> to vector<8x128xf32>
    %17 = arith.negf %16 : vector<8x128xf32>
    %18 = math.exp %17 : vector<8x128xf32>
    %cst_17 = arith.constant 1.000000e+00 : f32
    %19 = vector.broadcast %cst_17 : f32 to vector<8x128xf32>
    %20 = arith.addf %19, %18 : vector<8x128xf32>
    %21 = arith.divf %19, %20 : vector<8x128xf32>
    %22 = vector.extract_strided_slice %15 {offsets = [0, 128], sizes = [8, 128], strides = [1, 1]} : vector<8x512xf32> to vector<8x128xf32>
    %23 = arith.negf %22 : vector<8x128xf32>
    %24 = math.exp %23 : vector<8x128xf32>
    %cst_18 = arith.constant 1.000000e+00 : f32
    %25 = vector.broadcast %cst_18 : f32 to vector<8x128xf32>
    %26 = arith.addf %25, %24 : vector<8x128xf32>
    %27 = arith.divf %25, %26 : vector<8x128xf32>
    %28 = vector.extract_strided_slice %15 {offsets = [0, 256], sizes = [8, 128], strides = [1, 1]} : vector<8x512xf32> to vector<8x128xf32>
    %29 = math.tanh %28 : vector<8x128xf32>
    %30 = vector.extract_strided_slice %15 {offsets = [0, 384], sizes = [8, 128], strides = [1, 1]} : vector<8x512xf32> to vector<8x128xf32>
    %31 = arith.negf %30 : vector<8x128xf32>
    %32 = math.exp %31 : vector<8x128xf32>
    %cst_19 = arith.constant 1.000000e+00 : f32
    %33 = vector.broadcast %cst_19 : f32 to vector<8x128xf32>
    %34 = arith.addf %33, %32 : vector<8x128xf32>
    %35 = arith.divf %33, %34 : vector<8x128xf32>
    %36 = arith.mulf %27, %11 : vector<8x128xf32>
    %37 = arith.mulf %21, %29 : vector<8x128xf32>
    %38 = arith.addf %36, %37 : vector<8x128xf32>
    %39 = math.tanh %38 : vector<8x128xf32>
    %40 = arith.mulf %35, %39 : vector<8x128xf32>
    %c0_20 = arith.constant 0 : index
    %c0_21 = arith.constant 0 : index
    %41 = vector.load %arg5[%c0_20, %c0_21] : memref<64x128xf32, #tpu.memory_space<vmem>>, vector<8x128xf32>
    tpu.vector_store %arg5[%c0_20, %c0_21], %40 {strides = array<i32>} : memref<64x128xf32, #tpu.memory_space<vmem>>, vector<8x128xf32>,
    %c8 = arith.constant 8 : index
    %c0_22 = arith.constant 0 : index
    %42 = vector.load %arg9[%c8, %c0_22] : memref<64x512xf32, #tpu.memory_space<vmem>>, vector<8x512xf32>
    %c0_23 = arith.constant 0 : index
    %c0_24 = arith.constant 0 : index
    %43 = vector.load %arg7[%c0_23, %c0_24] : memref<128x512xf32, #tpu.memory_space<vmem>>, vector<128x512xf32>
    %cst_25 = arith.constant dense<0.000000e+00> : vector<8x512xf32>
    %44 = tpu.matmul %40, %43, %cst_25 {dimension_numbers = #tpu.dot_dimension_numbers<[1], [0], [0], [1], [0, 0, 1, 1], [], []>} : vector<8x128xf32>, vector<128x512xf32>, vector<8x512xf32> -> vector<8x512xf32>
    %45 = arith.addf %42, %44 : vector<8x512xf32>
    %46 = vector.extract_strided_slice %45 {offsets = [0, 0], sizes = [8, 128], strides = [1, 1]} : vector<8x512xf32> to vector<8x128xf32>
    %47 = arith.negf %46 : vector<8x128xf32>
    %48 = math.exp %47 : vector<8x128xf32>
    %cst_26 = arith.constant 1.000000e+00 : f32
    %49 = vector.broadcast %cst_26 : f32 to vector<8x128xf32>
    %50 = arith.addf %49, %48 : vector<8x128xf32>
    %51 = arith.divf %49, %50 : vector<8x128xf32>
    %52 = vector.extract_strided_slice %45 {offsets = [0, 128], sizes = [8, 128], strides = [1, 1]} : vector<8x512xf32> to vector<8x128xf32>
    %53 = arith.negf %52 : vector<8x128xf32>
    %54 = math.exp %53 : vector<8x128xf32>
    %cst_27 = arith.constant 1.000000e+00 : f32
    %55 = vector.broadcast %cst_27 : f32 to vector<8x128xf32>
    %56 = arith.addf %55, %54 : vector<8x128xf32>
    %57 = arith.divf %55, %56 : vector<8x128xf32>
    %58 = vector.extract_strided_slice %45 {offsets = [0, 256], sizes = [8, 128], strides = [1, 1]} : vector<8x512xf32> to vector<8x128xf32>
    %59 = math.tanh %58 : vector<8x128xf32>
    %60 = vector.extract_strided_slice %45 {offsets = [0, 384], sizes = [8, 128], strides = [1, 1]} : vector<8x512xf32> to vector<8x128xf32>
    %61 = arith.negf %60 : vector<8x128xf32>
    %62 = math.exp %61 : vector<8x128xf32>
    %cst_28 = arith.constant 1.000000e+00 : f32
    %63 = vector.broadcast %cst_28 : f32 to vector<8x128xf32>
    %64 = arith.addf %63, %62 : vector<8x128xf32>
    %65 = arith.divf %63, %64 : vector<8x128xf32>
    %66 = arith.mulf %57, %38 : vector<8x128xf32>
    %67 = arith.mulf %51, %59 : vector<8x128xf32>
    %68 = arith.addf %66, %67 : vector<8x128xf32>
    %69 = math.tanh %68 : vector<8x128xf32>
    %70 = arith.mulf %65, %69 : vector<8x128xf32>
    %c8_29 = arith.constant 8 : index
    %c0_30 = arith.constant 0 : index
    %71 = vector.load %arg5[%c8_29, %c0_30] : memref<64x128xf32, #tpu.memory_space<vmem>>, vector<8x128xf32>
    tpu.vector_store %arg5[%c8_29, %c0_30], %70 {strides = array<i32>} : memref<64x128xf32, #tpu.memory_space<vmem>>, vector<8x128xf32>,
    %c16 = arith.constant 16 : index
    %c0_31 = arith.constant 0 : index
    %72 = vector.load %arg9[%c16, %c0_31] : memref<64x512xf32, #tpu.memory_space<vmem>>, vector<8x512xf32>
    %c0_32 = arith.constant 0 : index
    %c0_33 = arith.constant 0 : index
    %73 = vector.load %arg7[%c0_32, %c0_33] : memref<128x512xf32, #tpu.memory_space<vmem>>, vector<128x512xf32>
    %cst_34 = arith.constant dense<0.000000e+00> : vector<8x512xf32>
    %74 = tpu.matmul %70, %73, %cst_34 {dimension_numbers = #tpu.dot_dimension_numbers<[1], [0], [0], [1], [0, 0, 1, 1], [], []>} : vector<8x128xf32>, vector<128x512xf32>, vector<8x512xf32> -> vector<8x512xf32>
    %75 = arith.addf %72, %74 : vector<8x512xf32>
    %76 = vector.extract_strided_slice %75 {offsets = [0, 0], sizes = [8, 128], strides = [1, 1]} : vector<8x512xf32> to vector<8x128xf32>
    %77 = arith.negf %76 : vector<8x128xf32>
    %78 = math.exp %77 : vector<8x128xf32>
    %cst_35 = arith.constant 1.000000e+00 : f32
    %79 = vector.broadcast %cst_35 : f32 to vector<8x128xf32>
    %80 = arith.addf %79, %78 : vector<8x128xf32>
    %81 = arith.divf %79, %80 : vector<8x128xf32>
    %82 = vector.extract_strided_slice %75 {offsets = [0, 128], sizes = [8, 128], strides = [1, 1]} : vector<8x512xf32> to vector<8x128xf32>
    %83 = arith.negf %82 : vector<8x128xf32>
    %84 = math.exp %83 : vector<8x128xf32>
    %cst_36 = arith.constant 1.000000e+00 : f32
    %85 = vector.broadcast %cst_36 : f32 to vector<8x128xf32>
    %86 = arith.addf %85, %84 : vector<8x128xf32>
    %87 = arith.divf %85, %86 : vector<8x128xf32>
    %88 = vector.extract_strided_slice %75 {offsets = [0, 256], sizes = [8, 128], strides = [1, 1]} : vector<8x512xf32> to vector<8x128xf32>
    %89 = math.tanh %88 : vector<8x128xf32>
    %90 = vector.extract_strided_slice %75 {offsets = [0, 384], sizes = [8, 128], strides = [1, 1]} : vector<8x512xf32> to vector<8x128xf32>
    %91 = arith.negf %90 : vector<8x128xf32>
    %92 = math.exp %91 : vector<8x128xf32>
    %cst_37 = arith.constant 1.000000e+00 : f32
    %93 = vector.broadcast %cst_37 : f32 to vector<8x128xf32>
    %94 = arith.addf %93, %92 : vector<8x128xf32>
    %95 = arith.divf %93, %94 : vector<8x128xf32>
    %96 = arith.mulf %87, %68 : vector<8x128xf32>
    %97 = arith.mulf %81, %89 : vector<8x128xf32>
    %98 = arith.addf %96, %97 : vector<8x128xf32>
    %99 = math.tanh %98 : vector<8x128xf32>
    %100 = arith.mulf %95, %99 : vector<8x128xf32>
    %c16_38 = arith.constant 16 : index
    %c0_39 = arith.constant 0 : index
    %101 = vector.load %arg5[%c16_38, %c0_39] : memref<64x128xf32, #tpu.memory_space<vmem>>, vector<8x128xf32>
    tpu.vector_store %arg5[%c16_38, %c0_39], %100 {strides = array<i32>} : memref<64x128xf32, #tpu.memory_space<vmem>>, vector<8x128xf32>,
    %c24 = arith.constant 24 : index
    %c0_40 = arith.constant 0 : index
    %102 = vector.load %arg9[%c24, %c0_40] : memref<64x512xf32, #tpu.memory_space<vmem>>, vector<8x512xf32>
    %c0_41 = arith.constant 0 : index
    %c0_42 = arith.constant 0 : index
    %103 = vector.load %arg7[%c0_41, %c0_42] : memref<128x512xf32, #tpu.memory_space<vmem>>, vector<128x512xf32>
    %cst_43 = arith.constant dense<0.000000e+00> : vector<8x512xf32>
    %104 = tpu.matmul %100, %103, %cst_43 {dimension_numbers = #tpu.dot_dimension_numbers<[1], [0], [0], [1], [0, 0, 1, 1], [], []>} : vector<8x128xf32>, vector<128x512xf32>, vector<8x512xf32> -> vector<8x512xf32>
    %105 = arith.addf %102, %104 : vector<8x512xf32>
    %106 = vector.extract_strided_slice %105 {offsets = [0, 0], sizes = [8, 128], strides = [1, 1]} : vector<8x512xf32> to vector<8x128xf32>
    %107 = arith.negf %106 : vector<8x128xf32>
    %108 = math.exp %107 : vector<8x128xf32>
    %cst_44 = arith.constant 1.000000e+00 : f32
    %109 = vector.broadcast %cst_44 : f32 to vector<8x128xf32>
    %110 = arith.addf %109, %108 : vector<8x128xf32>
    %111 = arith.divf %109, %110 : vector<8x128xf32>
    %112 = vector.extract_strided_slice %105 {offsets = [0, 128], sizes = [8, 128], strides = [1, 1]} : vector<8x512xf32> to vector<8x128xf32>
    %113 = arith.negf %112 : vector<8x128xf32>
    %114 = math.exp %113 : vector<8x128xf32>
    %cst_45 = arith.constant 1.000000e+00 : f32
    %115 = vector.broadcast %cst_45 : f32 to vector<8x128xf32>
    %116 = arith.addf %115, %114 : vector<8x128xf32>
    %117 = arith.divf %115, %116 : vector<8x128xf32>
    %118 = vector.extract_strided_slice %105 {offsets = [0, 256], sizes = [8, 128], strides = [1, 1]} : vector<8x512xf32> to vector<8x128xf32>
    %119 = math.tanh %118 : vector<8x128xf32>
    %120 = vector.extract_strided_slice %105 {offsets = [0, 384], sizes = [8, 128], strides = [1, 1]} : vector<8x512xf32> to vector<8x128xf32>
    %121 = arith.negf %120 : vector<8x128xf32>
    %122 = math.exp %121 : vector<8x128xf32>
    %cst_46 = arith.constant 1.000000e+00 : f32
    %123 = vector.broadcast %cst_46 : f32 to vector<8x128xf32>
    %124 = arith.addf %123, %122 : vector<8x128xf32>
    %125 = arith.divf %123, %124 : vector<8x128xf32>
    %126 = arith.mulf %117, %98 : vector<8x128xf32>
    %127 = arith.mulf %111, %119 : vector<8x128xf32>
    %128 = arith.addf %126, %127 : vector<8x128xf32>
    %129 = math.tanh %128 : vector<8x128xf32>
    %130 = arith.mulf %125, %129 : vector<8x128xf32>
    %c24_47 = arith.constant 24 : index
    %c0_48 = arith.constant 0 : index
    %131 = vector.load %arg5[%c24_47, %c0_48] : memref<64x128xf32, #tpu.memory_space<vmem>>, vector<8x128xf32>
    tpu.vector_store %arg5[%c24_47, %c0_48], %130 {strides = array<i32>} : memref<64x128xf32, #tpu.memory_space<vmem>>, vector<8x128xf32>,
    %c32 = arith.constant 32 : index
    %c0_49 = arith.constant 0 : index
    %132 = vector.load %arg9[%c32, %c0_49] : memref<64x512xf32, #tpu.memory_space<vmem>>, vector<8x512xf32>
    %c0_50 = arith.constant 0 : index
    %c0_51 = arith.constant 0 : index
    %133 = vector.load %arg7[%c0_50, %c0_51] : memref<128x512xf32, #tpu.memory_space<vmem>>, vector<128x512xf32>
    %cst_52 = arith.constant dense<0.000000e+00> : vector<8x512xf32>
    %134 = tpu.matmul %130, %133, %cst_52 {dimension_numbers = #tpu.dot_dimension_numbers<[1], [0], [0], [1], [0, 0, 1, 1], [], []>} : vector<8x128xf32>, vector<128x512xf32>, vector<8x512xf32> -> vector<8x512xf32>
    %135 = arith.addf %132, %134 : vector<8x512xf32>
    %136 = vector.extract_strided_slice %135 {offsets = [0, 0], sizes = [8, 128], strides = [1, 1]} : vector<8x512xf32> to vector<8x128xf32>
    %137 = arith.negf %136 : vector<8x128xf32>
    %138 = math.exp %137 : vector<8x128xf32>
    %cst_53 = arith.constant 1.000000e+00 : f32
    %139 = vector.broadcast %cst_53 : f32 to vector<8x128xf32>
    %140 = arith.addf %139, %138 : vector<8x128xf32>
    %141 = arith.divf %139, %140 : vector<8x128xf32>
    %142 = vector.extract_strided_slice %135 {offsets = [0, 128], sizes = [8, 128], strides = [1, 1]} : vector<8x512xf32> to vector<8x128xf32>
    %143 = arith.negf %142 : vector<8x128xf32>
    %144 = math.exp %143 : vector<8x128xf32>
    %cst_54 = arith.constant 1.000000e+00 : f32
    %145 = vector.broadcast %cst_54 : f32 to vector<8x128xf32>
    %146 = arith.addf %145, %144 : vector<8x128xf32>
    %147 = arith.divf %145, %146 : vector<8x128xf32>
    %148 = vector.extract_strided_slice %135 {offsets = [0, 256], sizes = [8, 128], strides = [1, 1]} : vector<8x512xf32> to vector<8x128xf32>
    %149 = math.tanh %148 : vector<8x128xf32>
    %150 = vector.extract_strided_slice %135 {offsets = [0, 384], sizes = [8, 128], strides = [1, 1]} : vector<8x512xf32> to vector<8x128xf32>
    %151 = arith.negf %150 : vector<8x128xf32>
    %152 = math.exp %151 : vector<8x128xf32>
    %cst_55 = arith.constant 1.000000e+00 : f32
    %153 = vector.broadcast %cst_55 : f32 to vector<8x128xf32>
    %154 = arith.addf %153, %152 : vector<8x128xf32>
    %155 = arith.divf %153, %154 : vector<8x128xf32>
    %156 = arith.mulf %147, %128 : vector<8x128xf32>
    %157 = arith.mulf %141, %149 : vector<8x128xf32>
    %158 = arith.addf %156, %157 : vector<8x128xf32>
    %159 = math.tanh %158 : vector<8x128xf32>
    %160 = arith.mulf %155, %159 : vector<8x128xf32>
    %c32_56 = arith.constant 32 : index
    %c0_57 = arith.constant 0 : index
    %161 = vector.load %arg5[%c32_56, %c0_57] : memref<64x128xf32, #tpu.memory_space<vmem>>, vector<8x128xf32>
    tpu.vector_store %arg5[%c32_56, %c0_57], %160 {strides = array<i32>} : memref<64x128xf32, #tpu.memory_space<vmem>>, vector<8x128xf32>,
    %c40 = arith.constant 40 : index
    %c0_58 = arith.constant 0 : index
    %162 = vector.load %arg9[%c40, %c0_58] : memref<64x512xf32, #tpu.memory_space<vmem>>, vector<8x512xf32>
    %c0_59 = arith.constant 0 : index
    %c0_60 = arith.constant 0 : index
    %163 = vector.load %arg7[%c0_59, %c0_60] : memref<128x512xf32, #tpu.memory_space<vmem>>, vector<128x512xf32>
    %cst_61 = arith.constant dense<0.000000e+00> : vector<8x512xf32>
    %164 = tpu.matmul %160, %163, %cst_61 {dimension_numbers = #tpu.dot_dimension_numbers<[1], [0], [0], [1], [0, 0, 1, 1], [], []>} : vector<8x128xf32>, vector<128x512xf32>, vector<8x512xf32> -> vector<8x512xf32>
    %165 = arith.addf %162, %164 : vector<8x512xf32>
    %166 = vector.extract_strided_slice %165 {offsets = [0, 0], sizes = [8, 128], strides = [1, 1]} : vector<8x512xf32> to vector<8x128xf32>
    %167 = arith.negf %166 : vector<8x128xf32>
    %168 = math.exp %167 : vector<8x128xf32>
    %cst_62 = arith.constant 1.000000e+00 : f32
    %169 = vector.broadcast %cst_62 : f32 to vector<8x128xf32>
    %170 = arith.addf %169, %168 : vector<8x128xf32>
    %171 = arith.divf %169, %170 : vector<8x128xf32>
    %172 = vector.extract_strided_slice %165 {offsets = [0, 128], sizes = [8, 128], strides = [1, 1]} : vector<8x512xf32> to vector<8x128xf32>
    %173 = arith.negf %172 : vector<8x128xf32>
    %174 = math.exp %173 : vector<8x128xf32>
    %cst_63 = arith.constant 1.000000e+00 : f32
    %175 = vector.broadcast %cst_63 : f32 to vector<8x128xf32>
    %176 = arith.addf %175, %174 : vector<8x128xf32>
    %177 = arith.divf %175, %176 : vector<8x128xf32>
    %178 = vector.extract_strided_slice %165 {offsets = [0, 256], sizes = [8, 128], strides = [1, 1]} : vector<8x512xf32> to vector<8x128xf32>
    %179 = math.tanh %178 : vector<8x128xf32>
    %180 = vector.extract_strided_slice %165 {offsets = [0, 384], sizes = [8, 128], strides = [1, 1]} : vector<8x512xf32> to vector<8x128xf32>
    %181 = arith.negf %180 : vector<8x128xf32>
    %182 = math.exp %181 : vector<8x128xf32>
    %cst_64 = arith.constant 1.000000e+00 : f32
    %183 = vector.broadcast %cst_64 : f32 to vector<8x128xf32>
    %184 = arith.addf %183, %182 : vector<8x128xf32>
    %185 = arith.divf %183, %184 : vector<8x128xf32>
    %186 = arith.mulf %177, %158 : vector<8x128xf32>
    %187 = arith.mulf %171, %179 : vector<8x128xf32>
    %188 = arith.addf %186, %187 : vector<8x128xf32>
    %189 = math.tanh %188 : vector<8x128xf32>
    %190 = arith.mulf %185, %189 : vector<8x128xf32>
    %c40_65 = arith.constant 40 : index
    %c0_66 = arith.constant 0 : index
    %191 = vector.load %arg5[%c40_65, %c0_66] : memref<64x128xf32, #tpu.memory_space<vmem>>, vector<8x128xf32>
    tpu.vector_store %arg5[%c40_65, %c0_66], %190 {strides = array<i32>} : memref<64x128xf32, #tpu.memory_space<vmem>>, vector<8x128xf32>,
    %c48 = arith.constant 48 : index
    %c0_67 = arith.constant 0 : index
    %192 = vector.load %arg9[%c48, %c0_67] : memref<64x512xf32, #tpu.memory_space<vmem>>, vector<8x512xf32>
    %c0_68 = arith.constant 0 : index
    %c0_69 = arith.constant 0 : index
    %193 = vector.load %arg7[%c0_68, %c0_69] : memref<128x512xf32, #tpu.memory_space<vmem>>, vector<128x512xf32>
    %cst_70 = arith.constant dense<0.000000e+00> : vector<8x512xf32>
    %194 = tpu.matmul %190, %193, %cst_70 {dimension_numbers = #tpu.dot_dimension_numbers<[1], [0], [0], [1], [0, 0, 1, 1], [], []>} : vector<8x128xf32>, vector<128x512xf32>, vector<8x512xf32> -> vector<8x512xf32>
    %195 = arith.addf %192, %194 : vector<8x512xf32>
    %196 = vector.extract_strided_slice %195 {offsets = [0, 0], sizes = [8, 128], strides = [1, 1]} : vector<8x512xf32> to vector<8x128xf32>
    %197 = arith.negf %196 : vector<8x128xf32>
    %198 = math.exp %197 : vector<8x128xf32>
    %cst_71 = arith.constant 1.000000e+00 : f32
    %199 = vector.broadcast %cst_71 : f32 to vector<8x128xf32>
    %200 = arith.addf %199, %198 : vector<8x128xf32>
    %201 = arith.divf %199, %200 : vector<8x128xf32>
    %202 = vector.extract_strided_slice %195 {offsets = [0, 128], sizes = [8, 128], strides = [1, 1]} : vector<8x512xf32> to vector<8x128xf32>
    %203 = arith.negf %202 : vector<8x128xf32>
    %204 = math.exp %203 : vector<8x128xf32>
    %cst_72 = arith.constant 1.000000e+00 : f32
    %205 = vector.broadcast %cst_72 : f32 to vector<8x128xf32>
    %206 = arith.addf %205, %204 : vector<8x128xf32>
    %207 = arith.divf %205, %206 : vector<8x128xf32>
    %208 = vector.extract_strided_slice %195 {offsets = [0, 256], sizes = [8, 128], strides = [1, 1]} : vector<8x512xf32> to vector<8x128xf32>
    %209 = math.tanh %208 : vector<8x128xf32>
    %210 = vector.extract_strided_slice %195 {offsets = [0, 384], sizes = [8, 128], strides = [1, 1]} : vector<8x512xf32> to vector<8x128xf32>
    %211 = arith.negf %210 : vector<8x128xf32>
    %212 = math.exp %211 : vector<8x128xf32>
    %cst_73 = arith.constant 1.000000e+00 : f32
    %213 = vector.broadcast %cst_73 : f32 to vector<8x128xf32>
    %214 = arith.addf %213, %212 : vector<8x128xf32>
    %215 = arith.divf %213, %214 : vector<8x128xf32>
    %216 = arith.mulf %207, %188 : vector<8x128xf32>
    %217 = arith.mulf %201, %209 : vector<8x128xf32>
    %218 = arith.addf %216, %217 : vector<8x128xf32>
    %219 = math.tanh %218 : vector<8x128xf32>
    %220 = arith.mulf %215, %219 : vector<8x128xf32>
    %c48_74 = arith.constant 48 : index
    %c0_75 = arith.constant 0 : index
    %221 = vector.load %arg5[%c48_74, %c0_75] : memref<64x128xf32, #tpu.memory_space<vmem>>, vector<8x128xf32>
    tpu.vector_store %arg5[%c48_74, %c0_75], %220 {strides = array<i32>} : memref<64x128xf32, #tpu.memory_space<vmem>>, vector<8x128xf32>,
    %c56 = arith.constant 56 : index
    %c0_76 = arith.constant 0 : index
    %222 = vector.load %arg9[%c56, %c0_76] : memref<64x512xf32, #tpu.memory_space<vmem>>, vector<8x512xf32>
    %c0_77 = arith.constant 0 : index
    %c0_78 = arith.constant 0 : index
    %223 = vector.load %arg7[%c0_77, %c0_78] : memref<128x512xf32, #tpu.memory_space<vmem>>, vector<128x512xf32>
    %cst_79 = arith.constant dense<0.000000e+00> : vector<8x512xf32>
    %224 = tpu.matmul %220, %223, %cst_79 {dimension_numbers = #tpu.dot_dimension_numbers<[1], [0], [0], [1], [0, 0, 1, 1], [], []>} : vector<8x128xf32>, vector<128x512xf32>, vector<8x512xf32> -> vector<8x512xf32>
    %225 = arith.addf %222, %224 : vector<8x512xf32>
    %226 = vector.extract_strided_slice %225 {offsets = [0, 0], sizes = [8, 128], strides = [1, 1]} : vector<8x512xf32> to vector<8x128xf32>
    %227 = arith.negf %226 : vector<8x128xf32>
    %228 = math.exp %227 : vector<8x128xf32>
    %cst_80 = arith.constant 1.000000e+00 : f32
    %229 = vector.broadcast %cst_80 : f32 to vector<8x128xf32>
    %230 = arith.addf %229, %228 : vector<8x128xf32>
    %231 = arith.divf %229, %230 : vector<8x128xf32>
    %232 = vector.extract_strided_slice %225 {offsets = [0, 128], sizes = [8, 128], strides = [1, 1]} : vector<8x512xf32> to vector<8x128xf32>
    %233 = arith.negf %232 : vector<8x128xf32>
    %234 = math.exp %233 : vector<8x128xf32>
    %cst_81 = arith.constant 1.000000e+00 : f32
    %235 = vector.broadcast %cst_81 : f32 to vector<8x128xf32>
    %236 = arith.addf %235, %234 : vector<8x128xf32>
    %237 = arith.divf %235, %236 : vector<8x128xf32>
    %238 = vector.extract_strided_slice %225 {offsets = [0, 256], sizes = [8, 128], strides = [1, 1]} : vector<8x512xf32> to vector<8x128xf32>
    %239 = math.tanh %238 : vector<8x128xf32>
    %240 = vector.extract_strided_slice %225 {offsets = [0, 384], sizes = [8, 128], strides = [1, 1]} : vector<8x512xf32> to vector<8x128xf32>
    %241 = arith.negf %240 : vector<8x128xf32>
    %242 = math.exp %241 : vector<8x128xf32>
    %cst_82 = arith.constant 1.000000e+00 : f32
    %243 = vector.broadcast %cst_82 : f32 to vector<8x128xf32>
    %244 = arith.addf %243, %242 : vector<8x128xf32>
    %245 = arith.divf %243, %244 : vector<8x128xf32>
    %246 = arith.mulf %237, %218 : vector<8x128xf32>
    %247 = arith.mulf %231, %239 : vector<8x128xf32>
    %248 = arith.addf %246, %247 : vector<8x128xf32>
    %249 = math.tanh %248 : vector<8x128xf32>
    %250 = arith.mulf %245, %249 : vector<8x128xf32>
    %c56_83 = arith.constant 56 : index
    %c0_84 = arith.constant 0 : index
    %251 = vector.load %arg5[%c56_83, %c0_84] : memref<64x128xf32, #tpu.memory_space<vmem>>, vector<8x128xf32>
    tpu.vector_store %arg5[%c56_83, %c0_84], %250 {strides = array<i32>} : memref<64x128xf32, #tpu.memory_space<vmem>>, vector<8x128xf32>,
    %c0_85 = arith.constant 0 : index
    %c0_86 = arith.constant 0 : index
    %252 = vector.load %arg10[%c0_85, %c0_86] : memref<8x128xf32, #tpu.memory_space<vmem>>, vector<8x128xf32>
    tpu.vector_store %arg10[%c0_85, %c0_86], %250 {strides = array<i32>} : memref<8x128xf32, #tpu.memory_space<vmem>>, vector<8x128xf32>,
    %c0_87 = arith.constant 0 : index
    %c0_88 = arith.constant 0 : index
    %253 = vector.load %arg11[%c0_87, %c0_88] : memref<8x128xf32, #tpu.memory_space<vmem>>, vector<8x128xf32>
    tpu.vector_store %arg11[%c0_87, %c0_88], %248 {strides = array<i32>} : memref<8x128xf32, #tpu.memory_space<vmem>>, vector<8x128xf32>,
    return
  }
  func.func @transform_0(%arg0: i32) -> (i32, i32) {
    %c0_i32 = arith.constant 0 : i32
    %c0_i32_0 = arith.constant 0 : i32
    return %arg0, %c0_i32 : i32, i32
  }
  func.func @transform_4(%arg0: i32) -> (i32, i32) {
    %c0_i32 = arith.constant 0 : i32
    %c0_i32_0 = arith.constant 0 : i32
    return %arg0, %c0_i32 : i32, i32
  }
}

</mosaic_0001>

<llo_original>
// kernel: embedder_forward.5
$region0: #{embedder_forward.5}
  #allocation0 [shape = 'u32[]', space=smem, size = 0x4, offset = 0x4, fixed_abs, tag = 'smem constant byte address 0x4 - core index']
  #allocation1 [shape = 'u32[144,128]{1,0:T(1,128)}', space=vmem, size = 0x12000, scoped, tag = 'internal scratch']
  %s0 = inlined_call_operand.vmem [shape: f32[64,128], index: 0, kind: input, shape index: {}]
  %s1 = inlined_call_operand.vmem [shape: f32[128,128], index: 1, kind: input, shape index: {}]
  %s2 = inlined_call_operand.vmem [shape: f32[1,128], index: 2, kind: input, shape index: {}]
  %s3 = inlined_call_operand.vmem [shape: f32[64,128], index: 3, kind: output, shape index: {}]
  %s4 = sld [smem:[#allocation0]]
  $region22: #{embedder_forward.5} parent=0
    _
  %s6 = ssub.s32 1, %s4
  %s7 = scalar_select 0, %s6, %s4
  // Predicated region
  $region2: #{embedder_forward.5} parent=0 // pred_check
    _
  $region3: #{embedder_forward.5} parent=0 // pred_check_branch
    %9 = sbr.rel (0) target = $region5
  $region4: #{embedder_forward.5} parent=0 // pred_region
    _
  $region5: #{embedder_forward.5} parent=0 // pred_fallthru
    _
  // Predicated region
  $region6: #{embedder_forward.5} parent=0 // pred_check
    _
  $region7: #{embedder_forward.5} parent=0 // pred_check_branch
    %11 = sbr.rel (0) target = $region9
  $region8: #{embedder_forward.5} parent=0 // pred_region
    _
  $region9: #{embedder_forward.5} parent=0 // pred_fallthru
    _
  // Predicated region
  $region10: #{embedder_forward.5} parent=0 // pred_check
    _
  $region11: #{embedder_forward.5} parent=0 // pred_check_branch
    %13 = sbr.rel (0) target = $region13
  $region12: #{embedder_forward.5} parent=0 // pred_region
    _
  $region13: #{embedder_forward.5} parent=0 // pred_fallthru
    _
  %v14 = vld [vmem:[%s0] sm:$0xff]
  %v15 = vld [vmem:[%s0 + $0x8] sm:$0xff]
  %v16 = vld [vmem:[%s0 + $0x10] sm:$0xff]
  %v17 = vld [vmem:[%s0 + $0x18] sm:$0xff]
  %v18 = vld [vmem:[%s0 + $0x20] sm:$0xff]
  %v19 = vld [vmem:[%s0 + $0x28] sm:$0xff]
  %v20 = vld [vmem:[%s0 + $0x30] sm:$0xff]
  %v21 = vld [vmem:[%s0 + $0x38] sm:$0xff]
  %v22 = vld [vmem:[%s1] sm:$0xff]
  %v23 = vld [vmem:[%s1 + $0x8] sm:$0xff]
  %v24 = vld [vmem:[%s1 + $0x10] sm:$0xff]
  %v25 = vld [vmem:[%s1 + $0x18] sm:$0xff]
  %v26 = vld [vmem:[%s1 + $0x20] sm:$0xff]
  %v27 = vld [vmem:[%s1 + $0x28] sm:$0xff]
  %v28 = vld [vmem:[%s1 + $0x30] sm:$0xff]
  %v29 = vld [vmem:[%s1 + $0x38] sm:$0xff]
  %v30 = vld [vmem:[%s1 + $0x40] sm:$0xff]
  %v31 = vld [vmem:[%s1 + $0x48] sm:$0xff]
  %v32 = vld [vmem:[%s1 + $0x50] sm:$0xff]
  %v33 = vld [vmem:[%s1 + $0x58] sm:$0xff]
  %v34 = vld [vmem:[%s1 + $0x60] sm:$0xff]
  %v35 = vld [vmem:[%s1 + $0x68] sm:$0xff]
  %v36 = vld [vmem:[%s1 + $0x70] sm:$0xff]
  %v37 = vld [vmem:[%s1 + $0x78] sm:$0xff]
  %v38 = vld [vmem:[%s2] sm:$0x1]
  %v40 = vlaneseq
  %v41 = vshrl.u32 %v40, 7
  %v42 = vsub.s32 0, %v41
  %v43 = vrot.slane %v38, %v42
  %45 = vmatprep.subr.mxu0 0.0
  %46 = vmatpush1.msra.mxu0 %v37
  %47 = vmatprep.subr.mxu0 0.0
  %48 = vmatpush1.msra.mxu0 %v36
  %49 = vmatprep.subr.mxu0 0.0
  %50 = vmatpush1.msra.mxu0 %v35
  %51 = vmatprep.subr.mxu0 0.0
  %52 = vmatpush1.msra.mxu0 %v34
  %53 = vmatprep.subr.mxu0 0.0
  %54 = vmatpush1.msra.mxu0 %v33
  %55 = vmatprep.subr.mxu0 0.0
  %56 = vmatpush1.msra.mxu0 %v32
  %57 = vmatprep.subr.mxu0 0.0
  %58 = vmatpush1.msra.mxu0 %v31
  %59 = vmatprep.subr.mxu0 0.0
  %60 = vmatpush1.msra.mxu0 %v30
  %61 = vmatprep.subr.mxu0 0.0
  %62 = vmatpush1.msra.mxu0 %v29
  %63 = vmatprep.subr.mxu0 0.0
  %64 = vmatpush1.msra.mxu0 %v28
  %65 = vmatprep.subr.mxu0 0.0
  %66 = vmatpush1.msra.mxu0 %v27
  %67 = vmatprep.subr.mxu0 0.0
  %68 = vmatpush1.msra.mxu0 %v26
  %69 = vmatprep.subr.mxu0 0.0
  %70 = vmatpush1.msra.mxu0 %v25
  %71 = vmatprep.subr.mxu0 0.0
  %72 = vmatpush1.msra.mxu0 %v24
  %73 = vmatprep.subr.mxu0 0.0
  %74 = vmatpush1.msra.mxu0 %v23
  %75 = vmatprep.subr.mxu0 0.0
  %76 = vmatpush1.msra.mxu0 %v22
  %77 = vmatprep.subr.mxu0 0.0
  %78 = vmatpush2.msra.mxu0 0.0
  %79 = vmatprep.subr.mxu0 0.0
  %80 = vmatpush2.msra.mxu0 0.0
  %81 = vmatprep.subr.mxu0 0.0
  %82 = vmatpush2.msra.mxu0 0.0
  %83 = vmatprep.subr.mxu0 0.0
  %84 = vmatpush2.msra.mxu0 0.0
  %85 = vmatprep.subr.mxu0 0.0
  %86 = vmatpush2.msra.mxu0 0.0
  %87 = vmatprep.subr.mxu0 0.0
  %88 = vmatpush2.msra.mxu0 0.0
  %89 = vmatprep.subr.mxu0 0.0
  %90 = vmatpush2.msra.mxu0 0.0
  %91 = vmatprep.subr.mxu0 0.0
  %92 = vmatpush2.msra.mxu0 0.0
  %93 = vmatprep.subr.mxu0 0.0
  %94 = vmatpush2.msra.mxu0 0.0
  %95 = vmatprep.subr.mxu0 0.0
  %96 = vmatpush2.msra.mxu0 0.0
  %97 = vmatprep.subr.mxu0 0.0
  %98 = vmatpush2.msra.mxu0 0.0
  %99 = vmatprep.subr.mxu0 0.0
  %100 = vmatpush2.msra.mxu0 0.0
  %101 = vmatprep.subr.mxu0 0.0
  %102 = vmatpush2.msra.mxu0 0.0
  %103 = vmatprep.subr.mxu0 0.0
  %104 = vmatpush2.msra.mxu0 0.0
  %105 = vmatprep.subr.mxu0 0.0
  %106 = vmatpush2.msra.mxu0 0.0
  %107 = vmatprep.subr.mxu0 0.0
  %108 = vmatpush2.msra.mxu0 0.0
  %109 = vmatprep.mubr.f32.mxu0 0.0
  %110 = vmatmul.mubr.f32.gmra.mxu0 %v14
  %v111 = vpop.f32.mrf.mxu0
  %v112 = vadd.f32 %v43, %v111
  %v113 = vpop.f32.mrf.mxu0
  %114 = vmatprep.mubr.f32.mxu0 0.0
  %115 = vmatmul.mubr.f32.gmra.mxu0 %v15
  %v116 = vpop.f32.mrf.mxu0
  %v117 = vadd.f32 %v43, %v116
  %v118 = vpop.f32.mrf.mxu0
  %119 = vmatprep.mubr.f32.mxu0 0.0
  %120 = vmatmul.mubr.f32.gmra.mxu0 %v16
  %v121 = vpop.f32.mrf.mxu0
  %v122 = vadd.f32 %v43, %v121
  %v123 = vpop.f32.mrf.mxu0
  %124 = vmatprep.mubr.f32.mxu0 0.0
  %125 = vmatmul.mubr.f32.gmra.mxu0 %v17
  %v126 = vpop.f32.mrf.mxu0
  %v127 = vadd.f32 %v43, %v126
  %v128 = vpop.f32.mrf.mxu0
  %129 = vmatprep.mubr.f32.mxu0 0.0
  %130 = vmatmul.mubr.f32.gmra.mxu0 %v18
  %v131 = vpop.f32.mrf.mxu0
  %v132 = vadd.f32 %v43, %v131
  %v133 = vpop.f32.mrf.mxu0
  %134 = vmatprep.mubr.f32.mxu0 0.0
  %135 = vmatmul.mubr.f32.gmra.mxu0 %v19
  %v136 = vpop.f32.mrf.mxu0
  %v137 = vadd.f32 %v43, %v136
  %v138 = vpop.f32.mrf.mxu0
  %139 = vmatprep.mubr.f32.mxu0 0.0
  %140 = vmatmul.mubr.f32.gmra.mxu0 %v20
  %v141 = vpop.f32.mrf.mxu0
  %v142 = vadd.f32 %v43, %v141
  %v143 = vpop.f32.mrf.mxu0
  %144 = vmatprep.mubr.f32.mxu0 0.0
  %145 = vmatmul.mubr.f32.gmra.mxu0 %v21
  %v146 = vpop.f32.mrf.mxu0
  %v147 = vadd.f32 %v43, %v146
  %v148 = vpop.f32.mrf.mxu0
  %149 = vdwg.mxu0
  %v150 = vmax.f32 %v112, 0.0
  %v151 = vmax.f32 %v117, 0.0
  %v152 = vmax.f32 %v122, 0.0
  %v153 = vmax.f32 %v127, 0.0
  %v154 = vmax.f32 %v132, 0.0
  %v155 = vmax.f32 %v137, 0.0
  %v156 = vmax.f32 %v142, 0.0
  %v157 = vmax.f32 %v147, 0.0
  %158 = vst [vmem:[%s3] sm:$0xff] %v150
  %159 = vst [vmem:[%s3 + $0x8] sm:$0xff] %v151
  %160 = vst [vmem:[%s3 + $0x10] sm:$0xff] %v152
  %161 = vst [vmem:[%s3 + $0x18] sm:$0xff] %v153
  %162 = vst [vmem:[%s3 + $0x20] sm:$0xff] %v154
  %163 = vst [vmem:[%s3 + $0x28] sm:$0xff] %v155
  %164 = vst [vmem:[%s3 + $0x30] sm:$0xff] %v156
  %165 = vst [vmem:[%s3 + $0x38] sm:$0xff] %v157
  // Predicated region
  $region14: #{embedder_forward.5} parent=0 // pred_check
    _
  $region15: #{embedder_forward.5} parent=0 // pred_check_branch
    %167 = sbr.rel (0) target = $region17
  $region16: #{embedder_forward.5} parent=0 // pred_region
    _
  $region17: #{embedder_forward.5} parent=0 // pred_fallthru
    _
  // Predicated region
  $region18: #{embedder_forward.5} parent=0 // pred_check
    _
  $region19: #{embedder_forward.5} parent=0 // pred_check_branch
    %169 = sbr.rel (0) target = $region21
  $region20: #{embedder_forward.5} parent=0 // pred_region
    _
  $region21: #{embedder_forward.5} parent=0 // pred_fallthru
    _

// kernel: embedder_forward.4
$region0: #{embedder_forward.4}
  #allocation0 [shape = 'u32[]', space=smem, size = 0x4, offset = 0x4, fixed_abs, tag = 'smem constant byte address 0x4 - core index']
  #allocation1 [shape = 'u32[144,128]{1,0:T(1,128)}', space=vmem, size = 0x12000, scoped, tag = 'internal scratch']
  #allocation2 [shape = 'f32[128,512]{1,0:T(8,128)}', space=vmem, size = 0x40000, scoped, tag = 'scratch operand']
  #allocation3 [shape = 'f32[128,512]{1,0:T(8,128)}', space=vmem, size = 0x40000, scoped, tag = 'scratch operand']
  #allocation4 [shape = 'f32[1,512]{1,0:T(1,128)}', space=vmem, size = 0x800, scoped, tag = 'scratch operand']
  #allocation5 [shape = 'f32[64,512]{1,0:T(8,128)}', space=vmem, size = 0x20000, scoped, tag = 'scratch operand']
  #allocation6 [shape = 'f32[8,128]{1,0:T(8,128)}', space=vmem, size = 0x1000, scoped, tag = 'scratch operand']
  #allocation7 [shape = 'f32[8,128]{1,0:T(8,128)}', space=vmem, size = 0x1000, scoped, tag = 'scratch operand']
  #allocation8 [shape = 's32[3]{0}', space=sflag, size = 0xc, scoped, tag = 'scratch operand']
  #allocation9 [shape = 's32[]', space=sflag, size = 0x4, offset = 0, fixed_abs, tag = 'sflag constant byte address 0x0 - dummy sync flag']
  #allocation10 [shape = 's32[]', space=sflag, size = 0x4, offset = 0, fixed_abs, tag = 'sflag constant byte address 0x0 - dummy sync flag']
  #allocation11 [shape = 's32[]', space=sflag, size = 0x4, offset = 0, fixed_abs, tag = 'sflag constant byte address 0x0 - dummy sync flag']
  %s0 = inlined_call_operand.vmem [shape: f32[64,128], index: 0, kind: input, shape index: {}]
  %s1 = inlined_call_operand.vmem [shape: f32[128,512], index: 1, kind: input, shape index: {}]
  %s2 = inlined_call_operand.vmem [shape: f32[128,512], index: 2, kind: input, shape index: {}]
  %s3 = inlined_call_operand.vmem [shape: f32[1,512], index: 3, kind: input, shape index: {}]
  %s4 = inlined_call_operand.vmem [shape: f32[64,128], index: 4, kind: output, shape index: {}]
  %s5 = sld [smem:[#allocation0]]
  $region116: #{embedder_forward.4} parent=0
    _
  %s7 = ssub.s32 1, %s5
  %s8 = scalar_select 0, %s7, %s5
  // Predicated region
  $region2: #{embedder_forward.4} parent=0 // pred_check
    _
  $region3: #{embedder_forward.4} parent=0 // pred_check_branch
    %10 = sbr.rel (0) target = $region5
  $region4: #{embedder_forward.4} parent=0 // pred_region
    _
  $region5: #{embedder_forward.4} parent=0 // pred_fallthru
    _
  %p11 = scmp.eq.s32.totalorder 0, 0
  // Predicated region
  $region6: #{embedder_forward.4} parent=0 // pred_check
    %p12 = pneg %p11
  $region7: #{embedder_forward.4} parent=0 // pred_check_branch
    %14 = sbr.rel (%p12) target = $region9
  $region8: #{embedder_forward.4} parent=0 // pred_region
    %p16 = scmp.lt.u32.totalorder 512, 8
    %p17 = pneg %p16
    // Predicated region
    $region10: #{embedder_forward.4} parent=8 // pred_check
      _
    $region11: #{embedder_forward.4} parent=8 // pred_check_branch
      %19 = sbr.rel (%p16) target = $region13
    $region12: #{embedder_forward.4} parent=8 // pred_region
      %s35 = sand.u32 512, 7
      %p36 = scmp.eq.s32.totalorder %s35, 0
      // Predicated region
      $region25: #{embedder_forward.4} parent=12 // pred_check
        %p37 = pneg %p36
      $region26: #{embedder_forward.4} parent=12 // pred_check_branch
        %39 = sbr.rel (%p37) target = $region28
      $region27: #{embedder_forward.4} parent=12 // pred_region
        loop: start=0, step=1, limit=1
        $region29: #{embedder_forward.4} parent=27 // loop_pre_header
          _
        $region30: #{embedder_forward.4} parent=27 // loop_header
          %s41 = sphi 0, %s45
          %p42 = scmp.ge.s32.totalorder %s41, 1
          %s46 = sphi %s1, %s1
          %s47 = sphi [#allocation2], [#allocation2]
        $region31: #{embedder_forward.4} parent=27 // loop_header_branch
          %44 = sbr.rel (%p42) target = $region35
        $region32: #{embedder_forward.4} parent=27 // loop_body
          %v48 = vld [vmem:[%s46] sm:$0xff]
          %49 = vst [vmem:[%s47] sm:$0xff] %v48
          %v50 = vld [vmem:[%s46 + $0x8] sm:$0xff]
          %51 = vst [vmem:[%s47 + $0x8] sm:$0xff] %v50
          %v52 = vld [vmem:[%s46 + $0x10] sm:$0xff]
          %53 = vst [vmem:[%s47 + $0x10] sm:$0xff] %v52
          %v54 = vld [vmem:[%s46 + $0x18] sm:$0xff]
          %55 = vst [vmem:[%s47 + $0x18] sm:$0xff] %v54
          %v56 = vld [vmem:[%s46 + $0x20] sm:$0xff]
          %57 = vst [vmem:[%s47 + $0x20] sm:$0xff] %v56
          %v58 = vld [vmem:[%s46 + $0x28] sm:$0xff]
          %59 = vst [vmem:[%s47 + $0x28] sm:$0xff] %v58
          %v60 = vld [vmem:[%s46 + $0x30] sm:$0xff]
          %61 = vst [vmem:[%s47 + $0x30] sm:$0xff] %v60
          %v62 = vld [vmem:[%s46 + $0x38] sm:$0xff]
          %63 = vst [vmem:[%s47 + $0x38] sm:$0xff] %v62
          %v64 = vld [vmem:[%s46 + $0x40] sm:$0xff]
          %65 = vst [vmem:[%s47 + $0x40] sm:$0xff] %v64
          %v66 = vld [vmem:[%s46 + $0x48] sm:$0xff]
          %67 = vst [vmem:[%s47 + $0x48] sm:$0xff] %v66
          %v68 = vld [vmem:[%s46 + $0x50] sm:$0xff]
          %69 = vst [vmem:[%s47 + $0x50] sm:$0xff] %v68
          %v70 = vld [vmem:[%s46 + $0x58] sm:$0xff]
          %71 = vst [vmem:[%s47 + $0x58] sm:$0xff] %v70
          %v72 = vld [vmem:[%s46 + $0x60] sm:$0xff]
          %73 = vst [vmem:[%s47 + $0x60] sm:$0xff] %v72
          %v74 = vld [vmem:[%s46 + $0x68] sm:$0xff]
          %75 = vst [vmem:[%s47 + $0x68] sm:$0xff] %v74
          %v76 = vld [vmem:[%s46 + $0x70] sm:$0xff]
          %77 = vst [vmem:[%s47 + $0x70] sm:$0xff] %v76
          %v78 = vld [vmem:[%s46 + $0x78] sm:$0xff]
          %79 = vst [vmem:[%s47 + $0x78] sm:$0xff] %v78
          %v80 = vld [vmem:[%s46 + $0x80] sm:$0xff]
          %81 = vst [vmem:[%s47 + $0x80] sm:$0xff] %v80
          %v82 = vld [vmem:[%s46 + $0x88] sm:$0xff]
          %83 = vst [vmem:[%s47 + $0x88] sm:$0xff] %v82
          %v84 = vld [vmem:[%s46 + $0x90] sm:$0xff]
          %85 = vst [vmem:[%s47 + $0x90] sm:$0xff] %v84
          %v86 = vld [vmem:[%s46 + $0x98] sm:$0xff]
          %87 = vst [vmem:[%s47 + $0x98] sm:$0xff] %v86
          %v88 = vld [vmem:[%s46 + $0xa0] sm:$0xff]
          %89 = vst [vmem:[%s47 + $0xa0] sm:$0xff] %v88
          %v90 = vld [vmem:[%s46 + $0xa8] sm:$0xff]
          %91 = vst [vmem:[%s47 + $0xa8] sm:$0xff] %v90
          %v92 = vld [vmem:[%s46 + $0xb0] sm:$0xff]
          %93 = vst [vmem:[%s47 + $0xb0] sm:$0xff] %v92
          %v94 = vld [vmem:[%s46 + $0xb8] sm:$0xff]
          %95 = vst [vmem:[%s47 + $0xb8] sm:$0xff] %v94
          %v96 = vld [vmem:[%s46 + $0xc0] sm:$0xff]
          %97 = vst [vmem:[%s47 + $0xc0] sm:$0xff] %v96
          %v98 = vld [vmem:[%s46 + $0xc8] sm:$0xff]
          %99 = vst [vmem:[%s47 + $0xc8] sm:$0xff] %v98
          %v100 = vld [vmem:[%s46 + $0xd0] sm:$0xff]
          %101 = vst [vmem:[%s47 + $0xd0] sm:$0xff] %v100
          %v102 = vld [vmem:[%s46 + $0xd8] sm:$0xff]
          %103 = vst [vmem:[%s47 + $0xd8] sm:$0xff] %v102
          %v104 = vld [vmem:[%s46 + $0xe0] sm:$0xff]
          %105 = vst [vmem:[%s47 + $0xe0] sm:$0xff] %v104
          %v106 = vld [vmem:[%s46 + $0xe8] sm:$0xff]
          %107 = vst [vmem:[%s47 + $0xe8] sm:$0xff] %v106
          %v108 = vld [vmem:[%s46 + $0xf0] sm:$0xff]
          %109 = vst [vmem:[%s47 + $0xf0] sm:$0xff] %v108
          %v110 = vld [vmem:[%s46 + $0xf8] sm:$0xff]
          %111 = vst [vmem:[%s47 + $0xf8] sm:$0xff] %v110
          %v112 = vld [vmem:[%s46 + $0x100] sm:$0xff]
          %113 = vst [vmem:[%s47 + $0x100] sm:$0xff] %v112
          %v114 = vld [vmem:[%s46 + $0x108] sm:$0xff]
          %115 = vst [vmem:[%s47 + $0x108] sm:$0xff] %v114
          %v116 = vld [vmem:[%s46 + $0x110] sm:$0xff]
          %117 = vst [vmem:[%s47 + $0x110] sm:$0xff] %v116
          %v118 = vld [vmem:[%s46 + $0x118] sm:$0xff]
          %119 = vst [vmem:[%s47 + $0x118] sm:$0xff] %v118
          %v120 = vld [vmem:[%s46 + $0x120] sm:$0xff]
          %121 = vst [vmem:[%s47 + $0x120] sm:$0xff] %v120
          %v122 = vld [vmem:[%s46 + $0x128] sm:$0xff]
          %123 = vst [vmem:[%s47 + $0x128] sm:$0xff] %v122
          %v124 = vld [vmem:[%s46 + $0x130] sm:$0xff]
          %125 = vst [vmem:[%s47 + $0x130] sm:$0xff] %v124
          %v126 = vld [vmem:[%s46 + $0x138] sm:$0xff]
          %127 = vst [vmem:[%s47 + $0x138] sm:$0xff] %v126
          %v128 = vld [vmem:[%s46 + $0x140] sm:$0xff]
          %129 = vst [vmem:[%s47 + $0x140] sm:$0xff] %v128
          %v130 = vld [vmem:[%s46 + $0x148] sm:$0xff]
          %131 = vst [vmem:[%s47 + $0x148] sm:$0xff] %v130
          %v132 = vld [vmem:[%s46 + $0x150] sm:$0xff]
          %133 = vst [vmem:[%s47 + $0x150] sm:$0xff] %v132
          %v134 = vld [vmem:[%s46 + $0x158] sm:$0xff]
          %135 = vst [vmem:[%s47 + $0x158] sm:$0xff] %v134
          %v136 = vld [vmem:[%s46 + $0x160] sm:$0xff]
          %137 = vst [vmem:[%s47 + $0x160] sm:$0xff] %v136
          %v138 = vld [vmem:[%s46 + $0x168] sm:$0xff]
          %139 = vst [vmem:[%s47 + $0x168] sm:$0xff] %v138
          %v140 = vld [vmem:[%s46 + $0x170] sm:$0xff]
          %141 = vst [vmem:[%s47 + $0x170] sm:$0xff] %v140
          %v142 = vld [vmem:[%s46 + $0x178] sm:$0xff]
          %143 = vst [vmem:[%s47 + $0x178] sm:$0xff] %v142
          %v144 = vld [vmem:[%s46 + $0x180] sm:$0xff]
          %145 = vst [vmem:[%s47 + $0x180] sm:$0xff] %v144
          %v146 = vld [vmem:[%s46 + $0x188] sm:$0xff]
          %147 = vst [vmem:[%s47 + $0x188] sm:$0xff] %v146
          %v148 = vld [vmem:[%s46 + $0x190] sm:$0xff]
          %149 = vst [vmem:[%s47 + $0x190] sm:$0xff] %v148
          %v150 = vld [vmem:[%s46 + $0x198] sm:$0xff]
          %151 = vst [vmem:[%s47 + $0x198] sm:$0xff] %v150
          %v152 = vld [vmem:[%s46 + $0x1a0] sm:$0xff]
          %153 = vst [vmem:[%s47 + $0x1a0] sm:$0xff] %v152
          %v154 = vld [vmem:[%s46 + $0x1a8] sm:$0xff]
          %155 = vst [vmem:[%s47 + $0x1a8] sm:$0xff] %v154
          %v156 = vld [vmem:[%s46 + $0x1b0] sm:$0xff]
          %157 = vst [vmem:[%s47 + $0x1b0] sm:$0xff] %v156
          %v158 = vld [vmem:[%s46 + $0x1b8] sm:$0xff]
          %159 = vst [vmem:[%s47 + $0x1b8] sm:$0xff] %v158
          %v160 = vld [vmem:[%s46 + $0x1c0] sm:$0xff]
          %161 = vst [vmem:[%s47 + $0x1c0] sm:$0xff] %v160
          %v162 = vld [vmem:[%s46 + $0x1c8] sm:$0xff]
          %163 = vst [vmem:[%s47 + $0x1c8] sm:$0xff] %v162
          %v164 = vld [vmem:[%s46 + $0x1d0] sm:$0xff]
          %165 = vst [vmem:[%s47 + $0x1d0] sm:$0xff] %v164
          %v166 = vld [vmem:[%s46 + $0x1d8] sm:$0xff]
          %167 = vst [vmem:[%s47 + $0x1d8] sm:$0xff] %v166
          %v168 = vld [vmem:[%s46 + $0x1e0] sm:$0xff]
          %169 = vst [vmem:[%s47 + $0x1e0] sm:$0xff] %v168
          %v170 = vld [vmem:[%s46 + $0x1e8] sm:$0xff]
          %171 = vst [vmem:[%s47 + $0x1e8] sm:$0xff] %v170
          %v172 = vld [vmem:[%s46 + $0x1f0] sm:$0xff]
          %173 = vst [vmem:[%s47 + $0x1f0] sm:$0xff] %v172
          %v174 = vld [vmem:[%s46 + $0x1f8] sm:$0xff]
          %175 = vst [vmem:[%s47 + $0x1f8] sm:$0xff] %v174
        $region33: #{embedder_forward.4} parent=27 // loop_footer
          %s45 = sadd.s32 1, %s41
        $region34: #{embedder_forward.4} parent=27 // loop_footer_branch
          %40 = sbr.rel target = $region30
        $region35: #{embedder_forward.4} parent=27 // loop_exit
          _
      $region28: #{embedder_forward.4} parent=12 // pred_fallthru
        _
      %p176 = pneg %p36
      // Predicated region
      $region36: #{embedder_forward.4} parent=12 // pred_check
        _
      $region37: #{embedder_forward.4} parent=12 // pred_check_branch
        %178 = sbr.rel (%p36) target = $region39
      $region38: #{embedder_forward.4} parent=12 // pred_region
        %s179 = sand.u32 512, 7
      $region39: #{embedder_forward.4} parent=12 // pred_fallthru
        _
    $region13: #{embedder_forward.4} parent=8 // pred_fallthru
      _
    // Predicated region
    $region14: #{embedder_forward.4} parent=8 // pred_check
      %p20 = pneg %p16
    $region15: #{embedder_forward.4} parent=8 // pred_check_branch
      %22 = sbr.rel (%p20) target = $region17
    $region16: #{embedder_forward.4} parent=8 // pred_region
      %s23 = sshll.u32 1, 512
      %s24 = ssub.s32 %s23, 1
      loop: start=0, step=1, limit=1
      $region18: #{embedder_forward.4} parent=16 // loop_pre_header
        _
      $region19: #{embedder_forward.4} parent=16 // loop_header
        %s26 = sphi 0, %s30
        %p27 = scmp.ge.s32.totalorder %s26, 1
        %s31 = sphi %s1, %s1
        %s32 = sphi [#allocation2], [#allocation2]
      $region20: #{embedder_forward.4} parent=16 // loop_header_branch
        %29 = sbr.rel (%p27) target = $region24
      $region21: #{embedder_forward.4} parent=16 // loop_body
        %v33 = vld [vmem:[%s31] sm:%s24]
        %34 = vst [vmem:[%s32] sm:%s24] %v33
      $region22: #{embedder_forward.4} parent=16 // loop_footer
        %s30 = sadd.s32 1, %s26
      $region23: #{embedder_forward.4} parent=16 // loop_footer_branch
        %25 = sbr.rel target = $region19
      $region24: #{embedder_forward.4} parent=16 // loop_exit
        _
    $region17: #{embedder_forward.4} parent=8 // pred_fallthru
      _
    // Predicated region
    $region40: #{embedder_forward.4} parent=8 // pred_check
      _
    $region41: #{embedder_forward.4} parent=8 // pred_check_branch
      %182 = sbr.rel (0) target = $region43
    $region42: #{embedder_forward.4} parent=8 // pred_region
      %183 = vsyncadd [#allocation8], 8192
    $region43: #{embedder_forward.4} parent=8 // pred_fallthru
      _
    %s184 = scalar_lea.sflag [#allocation8], 1
    %p186 = scmp.lt.u32.totalorder 512, 8
    %p187 = pneg %p186
    // Predicated region
    $region44: #{embedder_forward.4} parent=8 // pred_check
      _
    $region45: #{embedder_forward.4} parent=8 // pred_check_branch
      %189 = sbr.rel (%p186) target = $region47
    $region46: #{embedder_forward.4} parent=8 // pred_region
      %s205 = sand.u32 512, 7
      %p206 = scmp.eq.s32.totalorder %s205, 0
      // Predicated region
      $region59: #{embedder_forward.4} parent=46 // pred_check
        %p207 = pneg %p206
      $region60: #{embedder_forward.4} parent=46 // pred_check_branch
        %209 = sbr.rel (%p207) target = $region62
      $region61: #{embedder_forward.4} parent=46 // pred_region
        loop: start=0, step=1, limit=1
        $region63: #{embedder_forward.4} parent=61 // loop_pre_header
          _
        $region64: #{embedder_forward.4} parent=61 // loop_header
          %s211 = sphi 0, %s215
          %p212 = scmp.ge.s32.totalorder %s211, 1
          %s216 = sphi %s2, %s2
          %s217 = sphi [#allocation3], [#allocation3]
        $region65: #{embedder_forward.4} parent=61 // loop_header_branch
          %214 = sbr.rel (%p212) target = $region69
        $region66: #{embedder_forward.4} parent=61 // loop_body
          %v218 = vld [vmem:[%s216] sm:$0xff]
          %219 = vst [vmem:[%s217] sm:$0xff] %v218
          %v220 = vld [vmem:[%s216 + $0x8] sm:$0xff]
          %221 = vst [vmem:[%s217 + $0x8] sm:$0xff] %v220
          %v222 = vld [vmem:[%s216 + $0x10] sm:$0xff]
          %223 = vst [vmem:[%s217 + $0x10] sm:$0xff] %v222
          %v224 = vld [vmem:[%s216 + $0x18] sm:$0xff]
          %225 = vst [vmem:[%s217 + $0x18] sm:$0xff] %v224
          %v226 = vld [vmem:[%s216 + $0x20] sm:$0xff]
          %227 = vst [vmem:[%s217 + $0x20] sm:$0xff] %v226
          %v228 = vld [vmem:[%s216 + $0x28] sm:$0xff]
          %229 = vst [vmem:[%s217 + $0x28] sm:$0xff] %v228
          %v230 = vld [vmem:[%s216 + $0x30] sm:$0xff]
          %231 = vst [vmem:[%s217 + $0x30] sm:$0xff] %v230
          %v232 = vld [vmem:[%s216 + $0x38] sm:$0xff]
          %233 = vst [vmem:[%s217 + $0x38] sm:$0xff] %v232
          %v234 = vld [vmem:[%s216 + $0x40] sm:$0xff]
          %235 = vst [vmem:[%s217 + $0x40] sm:$0xff] %v234
          %v236 = vld [vmem:[%s216 + $0x48] sm:$0xff]
          %237 = vst [vmem:[%s217 + $0x48] sm:$0xff] %v236
          %v238 = vld [vmem:[%s216 + $0x50] sm:$0xff]
          %239 = vst [vmem:[%s217 + $0x50] sm:$0xff] %v238
          %v240 = vld [vmem:[%s216 + $0x58] sm:$0xff]
          %241 = vst [vmem:[%s217 + $0x58] sm:$0xff] %v240
          %v242 = vld [vmem:[%s216 + $0x60] sm:$0xff]
          %243 = vst [vmem:[%s217 + $0x60] sm:$0xff] %v242
          %v244 = vld [vmem:[%s216 + $0x68] sm:$0xff]
          %245 = vst [vmem:[%s217 + $0x68] sm:$0xff] %v244
          %v246 = vld [vmem:[%s216 + $0x70] sm:$0xff]
          %247 = vst [vmem:[%s217 + $0x70] sm:$0xff] %v246
          %v248 = vld [vmem:[%s216 + $0x78] sm:$0xff]
          %249 = vst [vmem:[%s217 + $0x78] sm:$0xff] %v248
          %v250 = vld [vmem:[%s216 + $0x80] sm:$0xff]
          %251 = vst [vmem:[%s217 + $0x80] sm:$0xff] %v250
          %v252 = vld [vmem:[%s216 + $0x88] sm:$0xff]
          %253 = vst [vmem:[%s217 + $0x88] sm:$0xff] %v252
          %v254 = vld [vmem:[%s216 + $0x90] sm:$0xff]
          %255 = vst [vmem:[%s217 + $0x90] sm:$0xff] %v254
          %v256 = vld [vmem:[%s216 + $0x98] sm:$0xff]
          %257 = vst [vmem:[%s217 + $0x98] sm:$0xff] %v256
          %v258 = vld [vmem:[%s216 + $0xa0] sm:$0xff]
          %259 = vst [vmem:[%s217 + $0xa0] sm:$0xff] %v258
          %v260 = vld [vmem:[%s216 + $0xa8] sm:$0xff]
          %261 = vst [vmem:[%s217 + $0xa8] sm:$0xff] %v260
          %v262 = vld [vmem:[%s216 + $0xb0] sm:$0xff]
          %263 = vst [vmem:[%s217 + $0xb0] sm:$0xff] %v262
          %v264 = vld [vmem:[%s216 + $0xb8] sm:$0xff]
          %265 = vst [vmem:[%s217 + $0xb8] sm:$0xff] %v264
          %v266 = vld [vmem:[%s216 + $0xc0] sm:$0xff]
          %267 = vst [vmem:[%s217 + $0xc0] sm:$0xff] %v266
          %v268 = vld [vmem:[%s216 + $0xc8] sm:$0xff]
          %269 = vst [vmem:[%s217 + $0xc8] sm:$0xff] %v268
          %v270 = vld [vmem:[%s216 + $0xd0] sm:$0xff]
          %271 = vst [vmem:[%s217 + $0xd0] sm:$0xff] %v270
          %v272 = vld [vmem:[%s216 + $0xd8] sm:$0xff]
          %273 = vst [vmem:[%s217 + $0xd8] sm:$0xff] %v272
          %v274 = vld [vmem:[%s216 + $0xe0] sm:$0xff]
          %275 = vst [vmem:[%s217 + $0xe0] sm:$0xff] %v274
          %v276 = vld [vmem:[%s216 + $0xe8] sm:$0xff]
          %277 = vst [vmem:[%s217 + $0xe8] sm:$0xff] %v276
          %v278 = vld [vmem:[%s216 + $0xf0] sm:$0xff]
          %279 = vst [vmem:[%s217 + $0xf0] sm:$0xff] %v278
          %v280 = vld [vmem:[%s216 + $0xf8] sm:$0xff]
          %281 = vst [vmem:[%s217 + $0xf8] sm:$0xff] %v280
          %v282 = vld [vmem:[%s216 + $0x100] sm:$0xff]
          %283 = vst [vmem:[%s217 + $0x100] sm:$0xff] %v282
          %v284 = vld [vmem:[%s216 + $0x108] sm:$0xff]
          %285 = vst [vmem:[%s217 + $0x108] sm:$0xff] %v284
          %v286 = vld [vmem:[%s216 + $0x110] sm:$0xff]
          %287 = vst [vmem:[%s217 + $0x110] sm:$0xff] %v286
          %v288 = vld [vmem:[%s216 + $0x118] sm:$0xff]
          %289 = vst [vmem:[%s217 + $0x118] sm:$0xff] %v288
          %v290 = vld [vmem:[%s216 + $0x120] sm:$0xff]
          %291 = vst [vmem:[%s217 + $0x120] sm:$0xff] %v290
          %v292 = vld [vmem:[%s216 + $0x128] sm:$0xff]
          %293 = vst [vmem:[%s217 + $0x128] sm:$0xff] %v292
          %v294 = vld [vmem:[%s216 + $0x130] sm:$0xff]
          %295 = vst [vmem:[%s217 + $0x130] sm:$0xff] %v294
          %v296 = vld [vmem:[%s216 + $0x138] sm:$0xff]
          %297 = vst [vmem:[%s217 + $0x138] sm:$0xff] %v296
          %v298 = vld [vmem:[%s216 + $0x140] sm:$0xff]
          %299 = vst [vmem:[%s217 + $0x140] sm:$0xff] %v298
          %v300 = vld [vmem:[%s216 + $0x148] sm:$0xff]
          %301 = vst [vmem:[%s217 + $0x148] sm:$0xff] %v300
          %v302 = vld [vmem:[%s216 + $0x150] sm:$0xff]
          %303 = vst [vmem:[%s217 + $0x150] sm:$0xff] %v302
          %v304 = vld [vmem:[%s216 + $0x158] sm:$0xff]
          %305 = vst [vmem:[%s217 + $0x158] sm:$0xff] %v304
          %v306 = vld [vmem:[%s216 + $0x160] sm:$0xff]
          %307 = vst [vmem:[%s217 + $0x160] sm:$0xff] %v306
          %v308 = vld [vmem:[%s216 + $0x168] sm:$0xff]
          %309 = vst [vmem:[%s217 + $0x168] sm:$0xff] %v308
          %v310 = vld [vmem:[%s216 + $0x170] sm:$0xff]
          %311 = vst [vmem:[%s217 + $0x170] sm:$0xff] %v310
          %v312 = vld [vmem:[%s216 + $0x178] sm:$0xff]
          %313 = vst [vmem:[%s217 + $0x178] sm:$0xff] %v312
          %v314 = vld [vmem:[%s216 + $0x180] sm:$0xff]
          %315 = vst [vmem:[%s217 + $0x180] sm:$0xff] %v314
          %v316 = vld [vmem:[%s216 + $0x188] sm:$0xff]
          %317 = vst [vmem:[%s217 + $0x188] sm:$0xff] %v316
          %v318 = vld [vmem:[%s216 + $0x190] sm:$0xff]
          %319 = vst [vmem:[%s217 + $0x190] sm:$0xff] %v318
          %v320 = vld [vmem:[%s216 + $0x198] sm:$0xff]
          %321 = vst [vmem:[%s217 + $0x198] sm:$0xff] %v320
          %v322 = vld [vmem:[%s216 + $0x1a0] sm:$0xff]
          %323 = vst [vmem:[%s217 + $0x1a0] sm:$0xff] %v322
          %v324 = vld [vmem:[%s216 + $0x1a8] sm:$0xff]
          %325 = vst [vmem:[%s217 + $0x1a8] sm:$0xff] %v324
          %v326 = vld [vmem:[%s216 + $0x1b0] sm:$0xff]
          %327 = vst [vmem:[%s217 + $0x1b0] sm:$0xff] %v326
          %v328 = vld [vmem:[%s216 + $0x1b8] sm:$0xff]
          %329 = vst [vmem:[%s217 + $0x1b8] sm:$0xff] %v328
          %v330 = vld [vmem:[%s216 + $0x1c0] sm:$0xff]
          %331 = vst [vmem:[%s217 + $0x1c0] sm:$0xff] %v330
          %v332 = vld [vmem:[%s216 + $0x1c8] sm:$0xff]
          %333 = vst [vmem:[%s217 + $0x1c8] sm:$0xff] %v332
          %v334 = vld [vmem:[%s216 + $0x1d0] sm:$0xff]
          %335 = vst [vmem:[%s217 + $0x1d0] sm:$0xff] %v334
          %v336 = vld [vmem:[%s216 + $0x1d8] sm:$0xff]
          %337 = vst [vmem:[%s217 + $0x1d8] sm:$0xff] %v336
          %v338 = vld [vmem:[%s216 + $0x1e0] sm:$0xff]
          %339 = vst [vmem:[%s217 + $0x1e0] sm:$0xff] %v338
          %v340 = vld [vmem:[%s216 + $0x1e8] sm:$0xff]
          %341 = vst [vmem:[%s217 + $0x1e8] sm:$0xff] %v340
          %v342 = vld [vmem:[%s216 + $0x1f0] sm:$0xff]
          %343 = vst [vmem:[%s217 + $0x1f0] sm:$0xff] %v342
          %v344 = vld [vmem:[%s216 + $0x1f8] sm:$0xff]
          %345 = vst [vmem:[%s217 + $0x1f8] sm:$0xff] %v344
        $region67: #{embedder_forward.4} parent=61 // loop_footer
          %s215 = sadd.s32 1, %s211
        $region68: #{embedder_forward.4} parent=61 // loop_footer_branch
          %210 = sbr.rel target = $region64
        $region69: #{embedder_forward.4} parent=61 // loop_exit
          _
      $region62: #{embedder_forward.4} parent=46 // pred_fallthru
        _
      %p346 = pneg %p206
      // Predicated region
      $region70: #{embedder_forward.4} parent=46 // pred_check
        _
      $region71: #{embedder_forward.4} parent=46 // pred_check_branch
        %348 = sbr.rel (%p206) target = $region73
      $region72: #{embedder_forward.4} parent=46 // pred_region
        %s349 = sand.u32 512, 7
      $region73: #{embedder_forward.4} parent=46 // pred_fallthru
        _
    $region47: #{embedder_forward.4} parent=8 // pred_fallthru
      _
    // Predicated region
    $region48: #{embedder_forward.4} parent=8 // pred_check
      %p190 = pneg %p186
    $region49: #{embedder_forward.4} parent=8 // pred_check_branch
      %192 = sbr.rel (%p190) target = $region51
    $region50: #{embedder_forward.4} parent=8 // pred_region
      %s193 = sshll.u32 1, 512
      %s194 = ssub.s32 %s193, 1
      loop: start=0, step=1, limit=1
      $region52: #{embedder_forward.4} parent=50 // loop_pre_header
        _
      $region53: #{embedder_forward.4} parent=50 // loop_header
        %s196 = sphi 0, %s200
        %p197 = scmp.ge.s32.totalorder %s196, 1
        %s201 = sphi %s2, %s2
        %s202 = sphi [#allocation3], [#allocation3]
      $region54: #{embedder_forward.4} parent=50 // loop_header_branch
        %199 = sbr.rel (%p197) target = $region58
      $region55: #{embedder_forward.4} parent=50 // loop_body
        %v203 = vld [vmem:[%s201] sm:%s194]
        %204 = vst [vmem:[%s202] sm:%s194] %v203
      $region56: #{embedder_forward.4} parent=50 // loop_footer
        %s200 = sadd.s32 1, %s196
      $region57: #{embedder_forward.4} parent=50 // loop_footer_branch
        %195 = sbr.rel target = $region53
      $region58: #{embedder_forward.4} parent=50 // loop_exit
        _
    $region51: #{embedder_forward.4} parent=8 // pred_fallthru
      _
    // Predicated region
    $region74: #{embedder_forward.4} parent=8 // pred_check
      _
    $region75: #{embedder_forward.4} parent=8 // pred_check_branch
      %352 = sbr.rel (0) target = $region77
    $region76: #{embedder_forward.4} parent=8 // pred_region
      %353 = vsyncadd %s184, 8192
    $region77: #{embedder_forward.4} parent=8 // pred_fallthru
      _
    %s354 = scalar_lea.sflag [#allocation8], 2
    %p356 = scmp.lt.u32.totalorder 4, 8
    %p357 = pneg %p356
    // Predicated region
    $region78: #{embedder_forward.4} parent=8 // pred_check
      _
    $region79: #{embedder_forward.4} parent=8 // pred_check_branch
      %359 = sbr.rel (%p356) target = $region81
    $region80: #{embedder_forward.4} parent=8 // pred_region
      %s375 = sand.u32 4, 7
      %p376 = scmp.eq.s32.totalorder %s375, 0
      %p377 = pneg %p376
      // Predicated region
      $region93: #{embedder_forward.4} parent=80 // pred_check
        _
      $region94: #{embedder_forward.4} parent=80 // pred_check_branch
        %379 = sbr.rel (%p376) target = $region96
      $region95: #{embedder_forward.4} parent=80 // pred_region
        %s380 = sand.u32 4, 7
        %s381 = ssub.s32 4, %s380
        %s382 = scalar_lea.vmem %s3, %s381
        %s383 = ssub.s32 4, %s380
        %s384 = scalar_lea.vmem [#allocation4], %s383
        %s385 = sshll.u32 1, %s380
        %s386 = ssub.s32 %s385, 1
        loop: start=0, step=1, limit=1
        $region97: #{embedder_forward.4} parent=95 // loop_pre_header
          _
        $region98: #{embedder_forward.4} parent=95 // loop_header
          %s388 = sphi 0, %s392
          %p389 = scmp.ge.s32.totalorder %s388, 1
          %s393 = sphi %s382, %s382
          %s394 = sphi %s384, %s384
        $region99: #{embedder_forward.4} parent=95 // loop_header_branch
          %391 = sbr.rel (%p389) target = $region103
        $region100: #{embedder_forward.4} parent=95 // loop_body
          %v395 = vld [vmem:[%s393] sm:%s386]
          %396 = vst [vmem:[%s394] sm:%s386] %v395
        $region101: #{embedder_forward.4} parent=95 // loop_footer
          %s392 = sadd.s32 1, %s388
        $region102: #{embedder_forward.4} parent=95 // loop_footer_branch
          %387 = sbr.rel target = $region98
        $region103: #{embedder_forward.4} parent=95 // loop_exit
          _
      $region96: #{embedder_forward.4} parent=80 // pred_fallthru
        _
    $region81: #{embedder_forward.4} parent=8 // pred_fallthru
      _
    // Predicated region
    $region82: #{embedder_forward.4} parent=8 // pred_check
      %p360 = pneg %p356
    $region83: #{embedder_forward.4} parent=8 // pred_check_branch
      %362 = sbr.rel (%p360) target = $region85
    $region84: #{embedder_forward.4} parent=8 // pred_region
      %s363 = sshll.u32 1, 4
      %s364 = ssub.s32 %s363, 1
      loop: start=0, step=1, limit=1
      $region86: #{embedder_forward.4} parent=84 // loop_pre_header
        _
      $region87: #{embedder_forward.4} parent=84 // loop_header
        %s366 = sphi 0, %s370
        %p367 = scmp.ge.s32.totalorder %s366, 1
        %s371 = sphi %s3, %s3
        %s372 = sphi [#allocation4], [#allocation4]
      $region88: #{embedder_forward.4} parent=84 // loop_header_branch
        %369 = sbr.rel (%p367) target = $region92
      $region89: #{embedder_forward.4} parent=84 // loop_body
        %v373 = vld [vmem:[%s371] sm:%s364]
        %374 = vst [vmem:[%s372] sm:%s364] %v373
      $region90: #{embedder_forward.4} parent=84 // loop_footer
        %s370 = sadd.s32 1, %s366
      $region91: #{embedder_forward.4} parent=84 // loop_footer_branch
        %365 = sbr.rel target = $region87
      $region92: #{embedder_forward.4} parent=84 // loop_exit
        _
    $region85: #{embedder_forward.4} parent=8 // pred_fallthru
      _
    // Predicated region
    $region104: #{embedder_forward.4} parent=8 // pred_check
      _
    $region105: #{embedder_forward.4} parent=8 // pred_check_branch
      %399 = sbr.rel (0) target = $region107
    $region106: #{embedder_forward.4} parent=8 // pred_region
      %400 = vsyncadd %s354, 64
    $region107: #{embedder_forward.4} parent=8 // pred_fallthru
      _
    %401 = vst [vmem:[#allocation6] sm:$0xff] 0.0
    %402 = vst [vmem:[#allocation7] sm:$0xff] 0.0
    %s403 = smul.u32 8, 16
    %s404 = smul.u32 %s403, 4
    %s405 = sshll.u32 %s404, 4
    %406 = dma.done [#allocation8], %s405
    %s407 = sshll.u32 %s404, 4
    %408 = dma.done %s184, %s407
    %s409 = smul.u32 1, 4
    %s410 = sshll.u32 %s409, 4
    %411 = dma.done %s354, %s410
  $region9: #{embedder_forward.4} parent=0 // pred_fallthru
    _
  %v412 = vld [vmem:[%s0] sm:$0xff]
  %v413 = vld [vmem:[%s0 + $0x8] sm:$0xff]
  %v414 = vld [vmem:[%s0 + $0x10] sm:$0xff]
  %v415 = vld [vmem:[%s0 + $0x18] sm:$0xff]
  %v416 = vld [vmem:[%s0 + $0x20] sm:$0xff]
  %v417 = vld [vmem:[%s0 + $0x28] sm:$0xff]
  %v418 = vld [vmem:[%s0 + $0x30] sm:$0xff]
  %v419 = vld [vmem:[%s0 + $0x38] sm:$0xff]
  %v420 = vld [vmem:[#allocation2] sm:$0xff]
  %v421 = vld [vmem:[#allocation2 + $0x8] sm:$0xff]
  %v422 = vld [vmem:[#allocation2 + $0x10] sm:$0xff]
  %v423 = vld [vmem:[#allocation2 + $0x18] sm:$0xff]
  %v424 = vld [vmem:[#allocation2 + $0x20] sm:$0xff]
  %v425 = vld [vmem:[#allocation2 + $0x28] sm:$0xff]
  %v426 = vld [vmem:[#allocation2 + $0x30] sm:$0xff]
  %v427 = vld [vmem:[#allocation2 + $0x38] sm:$0xff]
  %v428 = vld [vmem:[#allocation2 + $0x40] sm:$0xff]
  %v429 = vld [vmem:[#allocation2 + $0x48] sm:$0xff]
  %v430 = vld [vmem:[#allocation2 + $0x50] sm:$0xff]
  %v431 = vld [vmem:[#allocation2 + $0x58] sm:$0xff]
  %v432 = vld [vmem:[#allocation2 + $0x60] sm:$0xff]
  %v433 = vld [vmem:[#allocation2 + $0x68] sm:$0xff]
  %v434 = vld [vmem:[#allocation2 + $0x70] sm:$0xff]
  %v435 = vld [vmem:[#allocation2 + $0x78] sm:$0xff]
  %v436 = vld [vmem:[#allocation2 + $0x80] sm:$0xff]
  %v437 = vld [vmem:[#allocation2 + $0x88] sm:$0xff]
  %v438 = vld [vmem:[#allocation2 + $0x90] sm:$0xff]
  %v439 = vld [vmem:[#allocation2 + $0x98] sm:$0xff]
  %v440 = vld [vmem:[#allocation2 + $0xa0] sm:$0xff]
  %v441 = vld [vmem:[#allocation2 + $0xa8] sm:$0xff]
  %v442 = vld [vmem:[#allocation2 + $0xb0] sm:$0xff]
  %v443 = vld [vmem:[#allocation2 + $0xb8] sm:$0xff]
  %v444 = vld [vmem:[#allocation2 + $0xc0] sm:$0xff]
  %v445 = vld [vmem:[#allocation2 + $0xc8] sm:$0xff]
  %v446 = vld [vmem:[#allocation2 + $0xd0] sm:$0xff]
  %v447 = vld [vmem:[#allocation2 + $0xd8] sm:$0xff]
  %v448 = vld [vmem:[#allocation2 + $0xe0] sm:$0xff]
  %v449 = vld [vmem:[#allocation2 + $0xe8] sm:$0xff]
  %v450 = vld [vmem:[#allocation2 + $0xf0] sm:$0xff]
  %v451 = vld [vmem:[#allocation2 + $0xf8] sm:$0xff]
  %v452 = vld [vmem:[#allocation2 + $0x100] sm:$0xff]
  %v453 = vld [vmem:[#allocation2 + $0x108] sm:$0xff]
  %v454 = vld [vmem:[#allocation2 + $0x110] sm:$0xff]
  %v455 = vld [vmem:[#allocation2 + $0x118] sm:$0xff]
  %v456 = vld [vmem:[#allocation2 + $0x120] sm:$0xff]
  %v457 = vld [vmem:[#allocation2 + $0x128] sm:$0xff]
  %v458 = vld [vmem:[#allocation2 + $0x130] sm:$0xff]
  %v459 = vld [vmem:[#allocation2 + $0x138] sm:$0xff]
  %v460 = vld [vmem:[#allocation2 + $0x140] sm:$0xff]
  %v461 = vld [vmem:[#allocation2 + $0x148] sm:$0xff]
  %v462 = vld [vmem:[#allocation2 + $0x150] sm:$0xff]
  %v463 = vld [vmem:[#allocation2 + $0x158] sm:$0xff]
  %v464 = vld [vmem:[#allocation2 + $0x160] sm:$0xff]
  %v465 = vld [vmem:[#allocation2 + $0x168] sm:$0xff]
  %v466 = vld [vmem:[#allocation2 + $0x170] sm:$0xff]
  %v467 = vld [vmem:[#allocation2 + $0x178] sm:$0xff]
  %v468 = vld [vmem:[#allocation2 + $0x180] sm:$0xff]
  %v469 = vld [vmem:[#allocation2 + $0x188] sm:$0xff]
  %v470 = vld [vmem:[#allocation2 + $0x190] sm:$0xff]
  %v471 = vld [vmem:[#allocation2 + $0x198] sm:$0xff]
  %v472 = vld [vmem:[#allocation2 + $0x1a0] sm:$0xff]
  %v473 = vld [vmem:[#allocation2 + $0x1a8] sm:$0xff]
  %v474 = vld [vmem:[#allocation2 + $0x1b0] sm:$0xff]
  %v475 = vld [vmem:[#allocation2 + $0x1b8] sm:$0xff]
  %v476 = vld [vmem:[#allocation2 + $0x1c0] sm:$0xff]
  %v477 = vld [vmem:[#allocation2 + $0x1c8] sm:$0xff]
  %v478 = vld [vmem:[#allocation2 + $0x1d0] sm:$0xff]
  %v479 = vld [vmem:[#allocation2 + $0x1d8] sm:$0xff]
  %v480 = vld [vmem:[#allocation2 + $0x1e0] sm:$0xff]
  %v481 = vld [vmem:[#allocation2 + $0x1e8] sm:$0xff]
  %v482 = vld [vmem:[#allocation2 + $0x1f0] sm:$0xff]
  %v483 = vld [vmem:[#allocation2 + $0x1f8] sm:$0xff]
  %v484 = vld [vmem:[#allocation4] sm:$0xf]
  %v486 = vlaneseq
  %v487 = vshrl.u32 %v486, 7
  %v488 = vsub.s32 0, %v487
  %v489 = vrot.slane %v484, %v488
  %v490 = vlaneseq
  %v491 = vshrl.u32 %v490, 7
  %v492 = vsub.s32 1, %v491
  %v493 = vrot.slane %v484, %v492
  %v494 = vlaneseq
  %v495 = vshrl.u32 %v494, 7
  %v496 = vsub.s32 2, %v495
  %v497 = vrot.slane %v484, %v496
  %v498 = vlaneseq
  %v499 = vshrl.u32 %v498, 7
  %v500 = vsub.s32 3, %v499
  %v501 = vrot.slane %v484, %v500
  %506 = vmatprep.subr.mxu0 %v481
  %507 = vmatpush1.msra.mxu0 %v480
  %508 = vmatprep.subr.mxu0 %v477
  %509 = vmatpush1.msra.mxu0 %v476
  %510 = vmatprep.subr.mxu0 %v473
  %511 = vmatpush1.msra.mxu0 %v472
  %512 = vmatprep.subr.mxu0 %v469
  %513 = vmatpush1.msra.mxu0 %v468
  %514 = vmatprep.subr.mxu0 %v465
  %515 = vmatpush1.msra.mxu0 %v464
  %516 = vmatprep.subr.mxu0 %v461
  %517 = vmatpush1.msra.mxu0 %v460
  %518 = vmatprep.subr.mxu0 %v457
  %519 = vmatpush1.msra.mxu0 %v456
  %520 = vmatprep.subr.mxu0 %v453
  %521 = vmatpush1.msra.mxu0 %v452
  %522 = vmatprep.subr.mxu0 %v449
  %523 = vmatpush1.msra.mxu0 %v448
  %524 = vmatprep.subr.mxu0 %v445
  %525 = vmatpush1.msra.mxu0 %v444
  %526 = vmatprep.subr.mxu0 %v441
  %527 = vmatpush1.msra.mxu0 %v440
  %528 = vmatprep.subr.mxu0 %v437
  %529 = vmatpush1.msra.mxu0 %v436
  %530 = vmatprep.subr.mxu0 %v433
  %531 = vmatpush1.msra.mxu0 %v432
  %532 = vmatprep.subr.mxu0 %v429
  %533 = vmatpush1.msra.mxu0 %v428
  %534 = vmatprep.subr.mxu0 %v425
  %535 = vmatpush1.msra.mxu0 %v424
  %536 = vmatprep.subr.mxu0 %v421
  %537 = vmatpush1.msra.mxu0 %v420
  %538 = vmatprep.subr.mxu0 0.0
  %539 = vmatpush2.msra.mxu0 0.0
  %540 = vmatprep.subr.mxu0 0.0
  %541 = vmatpush2.msra.mxu0 0.0
  %542 = vmatprep.subr.mxu0 0.0
  %543 = vmatpush2.msra.mxu0 0.0
  %544 = vmatprep.subr.mxu0 0.0
  %545 = vmatpush2.msra.mxu0 0.0
  %546 = vmatprep.subr.mxu0 0.0
  %547 = vmatpush2.msra.mxu0 0.0
  %548 = vmatprep.subr.mxu0 0.0
  %549 = vmatpush2.msra.mxu0 0.0
  %550 = vmatprep.subr.mxu0 0.0
  %551 = vmatpush2.msra.mxu0 0.0
  %552 = vmatprep.subr.mxu0 0.0
  %553 = vmatpush2.msra.mxu0 0.0
  %554 = vmatprep.subr.mxu0 0.0
  %555 = vmatpush2.msra.mxu0 0.0
  %556 = vmatprep.subr.mxu0 0.0
  %557 = vmatpush2.msra.mxu0 0.0
  %558 = vmatprep.subr.mxu0 0.0
  %559 = vmatpush2.msra.mxu0 0.0
  %560 = vmatprep.subr.mxu0 0.0
  %561 = vmatpush2.msra.mxu0 0.0
  %562 = vmatprep.subr.mxu0 0.0
  %563 = vmatpush2.msra.mxu0 0.0
  %564 = vmatprep.subr.mxu0 0.0
  %565 = vmatpush2.msra.mxu0 0.0
  %566 = vmatprep.subr.mxu0 0.0
  %567 = vmatpush2.msra.mxu0 0.0
  %568 = vmatprep.subr.mxu0 0.0
  %569 = vmatpush2.msra.mxu0 0.0
  %570 = vmatprep.mubr.f32.mxu0 0.0
  %571 = vmatmul.mubr.f32.gmra.mxu0 %v412
  %v572 = vpop.f32.mrf.mxu0
  %v573 = vadd.f32 %v489, %v572
  %v574 = vpop.f32.mrf.mxu0
  %v575 = vadd.f32 %v493, %v574
  %576 = vmatprep.mubr.f32.mxu0 0.0
  %577 = vmatmul.mubr.f32.gmra.mxu0 %v413
  %v578 = vpop.f32.mrf.mxu0
  %v579 = vadd.f32 %v489, %v578
  %v580 = vpop.f32.mrf.mxu0
  %v581 = vadd.f32 %v493, %v580
  %582 = vmatprep.mubr.f32.mxu0 0.0
  %583 = vmatmul.mubr.f32.gmra.mxu0 %v414
  %v584 = vpop.f32.mrf.mxu0
  %v585 = vadd.f32 %v489, %v584
  %v586 = vpop.f32.mrf.mxu0
  %v587 = vadd.f32 %v493, %v586
  %588 = vmatprep.mubr.f32.mxu0 0.0
  %589 = vmatmul.mubr.f32.gmra.mxu0 %v415
  %v590 = vpop.f32.mrf.mxu0
  %v591 = vadd.f32 %v489, %v590
  %v592 = vpop.f32.mrf.mxu0
  %v593 = vadd.f32 %v493, %v592
  %594 = vmatprep.mubr.f32.mxu0 0.0
  %595 = vmatmul.mubr.f32.gmra.mxu0 %v416
  %v596 = vpop.f32.mrf.mxu0
  %v597 = vadd.f32 %v489, %v596
  %v598 = vpop.f32.mrf.mxu0
  %v599 = vadd.f32 %v493, %v598
  %600 = vmatprep.mubr.f32.mxu0 0.0
  %601 = vmatmul.mubr.f32.gmra.mxu0 %v417
  %v602 = vpop.f32.mrf.mxu0
  %v603 = vadd.f32 %v489, %v602
  %v604 = vpop.f32.mrf.mxu0
  %v605 = vadd.f32 %v493, %v604
  %606 = vmatprep.mubr.f32.mxu0 0.0
  %607 = vmatmul.mubr.f32.gmra.mxu0 %v418
  %v608 = vpop.f32.mrf.mxu0
  %v609 = vadd.f32 %v489, %v608
  %v610 = vpop.f32.mrf.mxu0
  %v611 = vadd.f32 %v493, %v610
  %612 = vmatprep.mubr.f32.mxu0 0.0
  %613 = vmatmul.mubr.f32.gmra.mxu0 %v419
  %v614 = vpop.f32.mrf.mxu0
  %v615 = vadd.f32 %v489, %v614
  %v616 = vpop.f32.mrf.mxu0
  %v617 = vadd.f32 %v493, %v616
  %618 = vdwg.mxu0
  %619 = vmatprep.subr.mxu0 %v483
  %620 = vmatpush1.msra.mxu0 %v482
  %621 = vmatprep.subr.mxu0 %v479
  %622 = vmatpush1.msra.mxu0 %v478
  %623 = vmatprep.subr.mxu0 %v475
  %624 = vmatpush1.msra.mxu0 %v474
  %625 = vmatprep.subr.mxu0 %v471
  %626 = vmatpush1.msra.mxu0 %v470
  %627 = vmatprep.subr.mxu0 %v467
  %628 = vmatpush1.msra.mxu0 %v466
  %629 = vmatprep.subr.mxu0 %v463
  %630 = vmatpush1.msra.mxu0 %v462
  %631 = vmatprep.subr.mxu0 %v459
  %632 = vmatpush1.msra.mxu0 %v458
  %633 = vmatprep.subr.mxu0 %v455
  %634 = vmatpush1.msra.mxu0 %v454
  %635 = vmatprep.subr.mxu0 %v451
  %636 = vmatpush1.msra.mxu0 %v450
  %637 = vmatprep.subr.mxu0 %v447
  %638 = vmatpush1.msra.mxu0 %v446
  %639 = vmatprep.subr.mxu0 %v443
  %640 = vmatpush1.msra.mxu0 %v442
  %641 = vmatprep.subr.mxu0 %v439
  %642 = vmatpush1.msra.mxu0 %v438
  %643 = vmatprep.subr.mxu0 %v435
  %644 = vmatpush1.msra.mxu0 %v434
  %645 = vmatprep.subr.mxu0 %v431
  %646 = vmatpush1.msra.mxu0 %v430
  %647 = vmatprep.subr.mxu0 %v427
  %648 = vmatpush1.msra.mxu0 %v426
  %649 = vmatprep.subr.mxu0 %v423
  %650 = vmatpush1.msra.mxu0 %v422
  %651 = vmatprep.subr.mxu0 0.0
  %652 = vmatpush2.msra.mxu0 0.0
  %653 = vmatprep.subr.mxu0 0.0
  %654 = vmatpush2.msra.mxu0 0.0
  %655 = vmatprep.subr.mxu0 0.0
  %656 = vmatpush2.msra.mxu0 0.0
  %657 = vmatprep.subr.mxu0 0.0
  %658 = vmatpush2.msra.mxu0 0.0
  %659 = vmatprep.subr.mxu0 0.0
  %660 = vmatpush2.msra.mxu0 0.0
  %661 = vmatprep.subr.mxu0 0.0
  %662 = vmatpush2.msra.mxu0 0.0
  %663 = vmatprep.subr.mxu0 0.0
  %664 = vmatpush2.msra.mxu0 0.0
  %665 = vmatprep.subr.mxu0 0.0
  %666 = vmatpush2.msra.mxu0 0.0
  %667 = vmatprep.subr.mxu0 0.0
  %668 = vmatpush2.msra.mxu0 0.0
  %669 = vmatprep.subr.mxu0 0.0
  %670 = vmatpush2.msra.mxu0 0.0
  %671 = vmatprep.subr.mxu0 0.0
  %672 = vmatpush2.msra.mxu0 0.0
  %673 = vmatprep.subr.mxu0 0.0
  %674 = vmatpush2.msra.mxu0 0.0
  %675 = vmatprep.subr.mxu0 0.0
  %676 = vmatpush2.msra.mxu0 0.0
  %677 = vmatprep.subr.mxu0 0.0
  %678 = vmatpush2.msra.mxu0 0.0
  %679 = vmatprep.subr.mxu0 0.0
  %680 = vmatpush2.msra.mxu0 0.0
  %681 = vmatprep.subr.mxu0 0.0
  %682 = vmatpush2.msra.mxu0 0.0
  %683 = vmatprep.mubr.f32.mxu0 0.0
  %684 = vmatmul.mubr.f32.gmra.mxu0 %v412
  %v685 = vpop.f32.mrf.mxu0
  %v686 = vadd.f32 %v497, %v685
  %v687 = vpop.f32.mrf.mxu0
  %v688 = vadd.f32 %v501, %v687
  %689 = vmatprep.mubr.f32.mxu0 0.0
  %690 = vmatmul.mubr.f32.gmra.mxu0 %v413
  %v691 = vpop.f32.mrf.mxu0
  %v692 = vadd.f32 %v497, %v691
  %v693 = vpop.f32.mrf.mxu0
  %v694 = vadd.f32 %v501, %v693
  %695 = vmatprep.mubr.f32.mxu0 0.0
  %696 = vmatmul.mubr.f32.gmra.mxu0 %v414
  %v697 = vpop.f32.mrf.mxu0
  %v698 = vadd.f32 %v497, %v697
  %v699 = vpop.f32.mrf.mxu0
  %v700 = vadd.f32 %v501, %v699
  %701 = vmatprep.mubr.f32.mxu0 0.0
  %702 = vmatmul.mubr.f32.gmra.mxu0 %v415
  %v703 = vpop.f32.mrf.mxu0
  %v704 = vadd.f32 %v497, %v703
  %v705 = vpop.f32.mrf.mxu0
  %v706 = vadd.f32 %v501, %v705
  %707 = vmatprep.mubr.f32.mxu0 0.0
  %708 = vmatmul.mubr.f32.gmra.mxu0 %v416
  %v709 = vpop.f32.mrf.mxu0
  %v710 = vadd.f32 %v497, %v709
  %v711 = vpop.f32.mrf.mxu0
  %v712 = vadd.f32 %v501, %v711
  %713 = vmatprep.mubr.f32.mxu0 0.0
  %714 = vmatmul.mubr.f32.gmra.mxu0 %v417
  %v715 = vpop.f32.mrf.mxu0
  %v716 = vadd.f32 %v497, %v715
  %v717 = vpop.f32.mrf.mxu0
  %v718 = vadd.f32 %v501, %v717
  %719 = vmatprep.mubr.f32.mxu0 0.0
  %720 = vmatmul.mubr.f32.gmra.mxu0 %v418
  %v721 = vpop.f32.mrf.mxu0
  %v722 = vadd.f32 %v497, %v721
  %v723 = vpop.f32.mrf.mxu0
  %v724 = vadd.f32 %v501, %v723
  %725 = vmatprep.mubr.f32.mxu0 0.0
  %726 = vmatmul.mubr.f32.gmra.mxu0 %v419
  %v727 = vpop.f32.mrf.mxu0
  %v728 = vadd.f32 %v497, %v727
  %v729 = vpop.f32.mrf.mxu0
  %v730 = vadd.f32 %v501, %v729
  %731 = vdwg.mxu0
  %732 = vst [vmem:[#allocation5] sm:$0xff] %v573
  %733 = vst [vmem:[#allocation5 + $0x8] sm:$0xff] %v575
  %734 = vst [vmem:[#allocation5 + $0x10] sm:$0xff] %v686
  %735 = vst [vmem:[#allocation5 + $0x18] sm:$0xff] %v688
  %736 = vst [vmem:[#allocation5 + $0x20] sm:$0xff] %v579
  %737 = vst [vmem:[#allocation5 + $0x28] sm:$0xff] %v581
  %738 = vst [vmem:[#allocation5 + $0x30] sm:$0xff] %v692
  %739 = vst [vmem:[#allocation5 + $0x38] sm:$0xff] %v694
  %740 = vst [vmem:[#allocation5 + $0x40] sm:$0xff] %v585
  %741 = vst [vmem:[#allocation5 + $0x48] sm:$0xff] %v587
  %742 = vst [vmem:[#allocation5 + $0x50] sm:$0xff] %v698
  %743 = vst [vmem:[#allocation5 + $0x58] sm:$0xff] %v700
  %744 = vst [vmem:[#allocation5 + $0x60] sm:$0xff] %v591
  %745 = vst [vmem:[#allocation5 + $0x68] sm:$0xff] %v593
  %746 = vst [vmem:[#allocation5 + $0x70] sm:$0xff] %v704
  %747 = vst [vmem:[#allocation5 + $0x78] sm:$0xff] %v706
  %748 = vst [vmem:[#allocation5 + $0x80] sm:$0xff] %v597
  %749 = vst [vmem:[#allocation5 + $0x88] sm:$0xff] %v599
  %750 = vst [vmem:[#allocation5 + $0x90] sm:$0xff] %v710
  %751 = vst [vmem:[#allocation5 + $0x98] sm:$0xff] %v712
  %752 = vst [vmem:[#allocation5 + $0xa0] sm:$0xff] %v603
  %753 = vst [vmem:[#allocation5 + $0xa8] sm:$0xff] %v605
  %754 = vst [vmem:[#allocation5 + $0xb0] sm:$0xff] %v716
  %755 = vst [vmem:[#allocation5 + $0xb8] sm:$0xff] %v718
  %756 = vst [vmem:[#allocation5 + $0xc0] sm:$0xff] %v609
  %757 = vst [vmem:[#allocation5 + $0xc8] sm:$0xff] %v611
  %758 = vst [vmem:[#allocation5 + $0xd0] sm:$0xff] %v722
  %759 = vst [vmem:[#allocation5 + $0xd8] sm:$0xff] %v724
  %760 = vst [vmem:[#allocation5 + $0xe0] sm:$0xff] %v615
  %761 = vst [vmem:[#allocation5 + $0xe8] sm:$0xff] %v617
  %762 = vst [vmem:[#allocation5 + $0xf0] sm:$0xff] %v728
  %763 = vst [vmem:[#allocation5 + $0xf8] sm:$0xff] %v730
  %v764 = vld [vmem:[#allocation6] sm:$0xff]
  %v765 = vld [vmem:[#allocation7] sm:$0xff]
  %v766 = vld [vmem:[#allocation5] sm:$0xff]
  %v767 = vld [vmem:[#allocation5 + $0x8] sm:$0xff]
  %v768 = vld [vmem:[#allocation5 + $0x10] sm:$0xff]
  %v769 = vld [vmem:[#allocation5 + $0x18] sm:$0xff]
  %v770 = vld [vmem:[#allocation3] sm:$0xff]
  %v771 = vld [vmem:[#allocation3 + $0x8] sm:$0xff]
  %v772 = vld [vmem:[#allocation3 + $0x10] sm:$0xff]
  %v773 = vld [vmem:[#allocation3 + $0x18] sm:$0xff]
  %v774 = vld [vmem:[#allocation3 + $0x20] sm:$0xff]
  %v775 = vld [vmem:[#allocation3 + $0x28] sm:$0xff]
  %v776 = vld [vmem:[#allocation3 + $0x30] sm:$0xff]
  %v777 = vld [vmem:[#allocation3 + $0x38] sm:$0xff]
  %v778 = vld [vmem:[#allocation3 + $0x40] sm:$0xff]
  %v779 = vld [vmem:[#allocation3 + $0x48] sm:$0xff]
  %v780 = vld [vmem:[#allocation3 + $0x50] sm:$0xff]
  %v781 = vld [vmem:[#allocation3 + $0x58] sm:$0xff]
  %v782 = vld [vmem:[#allocation3 + $0x60] sm:$0xff]
  %v783 = vld [vmem:[#allocation3 + $0x68] sm:$0xff]
  %v784 = vld [vmem:[#allocation3 + $0x70] sm:$0xff]
  %v785 = vld [vmem:[#allocation3 + $0x78] sm:$0xff]
  %v786 = vld [vmem:[#allocation3 + $0x80] sm:$0xff]
  %v787 = vld [vmem:[#allocation3 + $0x88] sm:$0xff]
  %v788 = vld [vmem:[#allocation3 + $0x90] sm:$0xff]
  %v789 = vld [vmem:[#allocation3 + $0x98] sm:$0xff]
  %v790 = vld [vmem:[#allocation3 + $0xa0] sm:$0xff]
  %v791 = vld [vmem:[#allocation3 + $0xa8] sm:$0xff]
  %v792 = vld [vmem:[#allocation3 + $0xb0] sm:$0xff]
  %v793 = vld [vmem:[#allocation3 + $0xb8] sm:$0xff]
  %v794 = vld [vmem:[#allocation3 + $0xc0] sm:$0xff]
  %v795 = vld [vmem:[#allocation3 + $0xc8] sm:$0xff]
  %v796 = vld [vmem:[#allocation3 + $0xd0] sm:$0xff]
  %v797 = vld [vmem:[#allocation3 + $0xd8] sm:$0xff]
  %v798 = vld [vmem:[#allocation3 + $0xe0] sm:$0xff]
  %v799 = vld [vmem:[#allocation3 + $0xe8] sm:$0xff]
  %v800 = vld [vmem:[#allocation3 + $0xf0] sm:$0xff]
  %v801 = vld [vmem:[#allocation3 + $0xf8] sm:$0xff]
  %v802 = vld [vmem:[#allocation3 + $0x100] sm:$0xff]
  %v803 = vld [vmem:[#allocation3 + $0x108] sm:$0xff]
  %v804 = vld [vmem:[#allocation3 + $0x110] sm:$0xff]
  %v805 = vld [vmem:[#allocation3 + $0x118] sm:$0xff]
  %v806 = vld [vmem:[#allocation3 + $0x120] sm:$0xff]
  %v807 = vld [vmem:[#allocation3 + $0x128] sm:$0xff]
  %v808 = vld [vmem:[#allocation3 + $0x130] sm:$0xff]
  %v809 = vld [vmem:[#allocation3 + $0x138] sm:$0xff]
  %v810 = vld [vmem:[#allocation3 + $0x140] sm:$0xff]
  %v811 = vld [vmem:[#allocation3 + $0x148] sm:$0xff]
  %v812 = vld [vmem:[#allocation3 + $0x150] sm:$0xff]
  %v813 = vld [vmem:[#allocation3 + $0x158] sm:$0xff]
  %v814 = vld [vmem:[#allocation3 + $0x160] sm:$0xff]
  %v815 = vld [vmem:[#allocation3 + $0x168] sm:$0xff]
  %v816 = vld [vmem:[#allocation3 + $0x170] sm:$0xff]
  %v817 = vld [vmem:[#allocation3 + $0x178] sm:$0xff]
  %v818 = vld [vmem:[#allocation3 + $0x180] sm:$0xff]
  %v819 = vld [vmem:[#allocation3 + $0x188] sm:$0xff]
  %v820 = vld [vmem:[#allocation3 + $0x190] sm:$0xff]
  %v821 = vld [vmem:[#allocation3 + $0x198] sm:$0xff]
  %v822 = vld [vmem:[#allocation3 + $0x1a0] sm:$0xff]
  %v823 = vld [vmem:[#allocation3 + $0x1a8] sm:$0xff]
  %v824 = vld [vmem:[#allocation3 + $0x1b0] sm:$0xff]
  %v825 = vld [vmem:[#allocation3 + $0x1b8] sm:$0xff]
  %v826 = vld [vmem:[#allocation3 + $0x1c0] sm:$0xff]
  %v827 = vld [vmem:[#allocation3 + $0x1c8] sm:$0xff]
  %v828 = vld [vmem:[#allocation3 + $0x1d0] sm:$0xff]
  %v829 = vld [vmem:[#allocation3 + $0x1d8] sm:$0xff]
  %v830 = vld [vmem:[#allocation3 + $0x1e0] sm:$0xff]
  %v831 = vld [vmem:[#allocation3 + $0x1e8] sm:$0xff]
  %v832 = vld [vmem:[#allocation3 + $0x1f0] sm:$0xff]
  %v833 = vld [vmem:[#allocation3 + $0x1f8] sm:$0xff]
  %834 = vmatprep.subr.mxu0 %v831
  %835 = vmatpush1.msra.mxu0 %v830
  %836 = vmatprep.subr.mxu0 %v827
  %837 = vmatpush1.msra.mxu0 %v826
  %838 = vmatprep.subr.mxu0 %v823
  %839 = vmatpush1.msra.mxu0 %v822
  %840 = vmatprep.subr.mxu0 %v819
  %841 = vmatpush1.msra.mxu0 %v818
  %842 = vmatprep.subr.mxu0 %v815
  %843 = vmatpush1.msra.mxu0 %v814
  %844 = vmatprep.subr.mxu0 %v811
  %845 = vmatpush1.msra.mxu0 %v810
  %846 = vmatprep.subr.mxu0 %v807
  %847 = vmatpush1.msra.mxu0 %v806
  %848 = vmatprep.subr.mxu0 %v803
  %849 = vmatpush1.msra.mxu0 %v802
  %850 = vmatprep.subr.mxu0 %v799
  %851 = vmatpush1.msra.mxu0 %v798
  %852 = vmatprep.subr.mxu0 %v795
  %853 = vmatpush1.msra.mxu0 %v794
  %854 = vmatprep.subr.mxu0 %v791
  %855 = vmatpush1.msra.mxu0 %v790
  %856 = vmatprep.subr.mxu0 %v787
  %857 = vmatpush1.msra.mxu0 %v786
  %858 = vmatprep.subr.mxu0 %v783
  %859 = vmatpush1.msra.mxu0 %v782
  %860 = vmatprep.subr.mxu0 %v779
  %861 = vmatpush1.msra.mxu0 %v778
  %862 = vmatprep.subr.mxu0 %v775
  %863 = vmatpush1.msra.mxu0 %v774
  %864 = vmatprep.subr.mxu0 %v771
  %865 = vmatpush1.msra.mxu0 %v770
  %866 = vmatprep.subr.mxu0 0.0
  %867 = vmatpush2.msra.mxu0 0.0
  %868 = vmatprep.subr.mxu0 0.0
  %869 = vmatpush2.msra.mxu0 0.0
  %870 = vmatprep.subr.mxu0 0.0
  %871 = vmatpush2.msra.mxu0 0.0
  %872 = vmatprep.subr.mxu0 0.0
  %873 = vmatpush2.msra.mxu0 0.0
  %874 = vmatprep.subr.mxu0 0.0
  %875 = vmatpush2.msra.mxu0 0.0
  %876 = vmatprep.subr.mxu0 0.0
  %877 = vmatpush2.msra.mxu0 0.0
  %878 = vmatprep.subr.mxu0 0.0
  %879 = vmatpush2.msra.mxu0 0.0
  %880 = vmatprep.subr.mxu0 0.0
  %881 = vmatpush2.msra.mxu0 0.0
  %882 = vmatprep.subr.mxu0 0.0
  %883 = vmatpush2.msra.mxu0 0.0
  %884 = vmatprep.subr.mxu0 0.0
  %885 = vmatpush2.msra.mxu0 0.0
  %886 = vmatprep.subr.mxu0 0.0
  %887 = vmatpush2.msra.mxu0 0.0
  %888 = vmatprep.subr.mxu0 0.0
  %889 = vmatpush2.msra.mxu0 0.0
  %890 = vmatprep.subr.mxu0 0.0
  %891 = vmatpush2.msra.mxu0 0.0
  %892 = vmatprep.subr.mxu0 0.0
  %893 = vmatpush2.msra.mxu0 0.0
  %894 = vmatprep.subr.mxu0 0.0
  %895 = vmatpush2.msra.mxu0 0.0
  %896 = vmatprep.subr.mxu0 0.0
  %897 = vmatpush2.msra.mxu0 0.0
  %898 = vmatprep.mubr.f32.mxu0 0.0
  %899 = vmatmul.mubr.f32.gmra.mxu0 %v764
  %v900 = vpop.f32.mrf.mxu0
  %v901 = vadd.f32 0.0, %v900
  %v902 = vpop.f32.mrf.mxu0
  %v903 = vadd.f32 0.0, %v902
  %904 = vdwg.mxu0
  %905 = vmatprep.subr.mxu0 %v833
  %906 = vmatpush1.msra.mxu0 %v832
  %907 = vmatprep.subr.mxu0 %v829
  %908 = vmatpush1.msra.mxu0 %v828
  %909 = vmatprep.subr.mxu0 %v825
  %910 = vmatpush1.msra.mxu0 %v824
  %911 = vmatprep.subr.mxu0 %v821
  %912 = vmatpush1.msra.mxu0 %v820
  %913 = vmatprep.subr.mxu0 %v817
  %914 = vmatpush1.msra.mxu0 %v816
  %915 = vmatprep.subr.mxu0 %v813
  %916 = vmatpush1.msra.mxu0 %v812
  %917 = vmatprep.subr.mxu0 %v809
  %918 = vmatpush1.msra.mxu0 %v808
  %919 = vmatprep.subr.mxu0 %v805
  %920 = vmatpush1.msra.mxu0 %v804
  %921 = vmatprep.subr.mxu0 %v801
  %922 = vmatpush1.msra.mxu0 %v800
  %923 = vmatprep.subr.mxu0 %v797
  %924 = vmatpush1.msra.mxu0 %v796
  %925 = vmatprep.subr.mxu0 %v793
  %926 = vmatpush1.msra.mxu0 %v792
  %927 = vmatprep.subr.mxu0 %v789
  %928 = vmatpush1.msra.mxu0 %v788
  %929 = vmatprep.subr.mxu0 %v785
  %930 = vmatpush1.msra.mxu0 %v784
  %931 = vmatprep.subr.mxu0 %v781
  %932 = vmatpush1.msra.mxu0 %v780
  %933 = vmatprep.subr.mxu0 %v777
  %934 = vmatpush1.msra.mxu0 %v776
  %935 = vmatprep.subr.mxu0 %v773
  %936 = vmatpush1.msra.mxu0 %v772
  %937 = vmatprep.subr.mxu0 0.0
  %938 = vmatpush2.msra.mxu0 0.0
  %939 = vmatprep.subr.mxu0 0.0
  %940 = vmatpush2.msra.mxu0 0.0
  %941 = vmatprep.subr.mxu0 0.0
  %942 = vmatpush2.msra.mxu0 0.0
  %943 = vmatprep.subr.mxu0 0.0
  %944 = vmatpush2.msra.mxu0 0.0
  %945 = vmatprep.subr.mxu0 0.0
  %946 = vmatpush2.msra.mxu0 0.0
  %947 = vmatprep.subr.mxu0 0.0
  %948 = vmatpush2.msra.mxu0 0.0
  %949 = vmatprep.subr.mxu0 0.0
  %950 = vmatpush2.msra.mxu0 0.0
  %951 = vmatprep.subr.mxu0 0.0
  %952 = vmatpush2.msra.mxu0 0.0
  %953 = vmatprep.subr.mxu0 0.0
  %954 = vmatpush2.msra.mxu0 0.0
  %955 = vmatprep.subr.mxu0 0.0
  %956 = vmatpush2.msra.mxu0 0.0
  %957 = vmatprep.subr.mxu0 0.0
  %958 = vmatpush2.msra.mxu0 0.0
  %959 = vmatprep.subr.mxu0 0.0
  %960 = vmatpush2.msra.mxu0 0.0
  %961 = vmatprep.subr.mxu0 0.0
  %962 = vmatpush2.msra.mxu0 0.0
  %963 = vmatprep.subr.mxu0 0.0
  %964 = vmatpush2.msra.mxu0 0.0
  %965 = vmatprep.subr.mxu0 0.0
  %966 = vmatpush2.msra.mxu0 0.0
  %967 = vmatprep.subr.mxu0 0.0
  %968 = vmatpush2.msra.mxu0 0.0
  %969 = vmatprep.mubr.f32.mxu0 0.0
  %970 = vmatmul.mubr.f32.gmra.mxu0 %v764
  %v971 = vpop.f32.mrf.mxu0
  %v972 = vadd.f32 0.0, %v971
  %v973 = vpop.f32.mrf.mxu0
  %v974 = vadd.f32 0.0, %v973
  %975 = vdwg.mxu0
  %v976 = vadd.f32 %v766, %v901
  %v977 = vadd.f32 %v767, %v903
  %v978 = vadd.f32 %v768, %v972
  %v979 = vadd.f32 %v769, %v974
  %v980 = vxor.u32 %v976, 2147483648
  %v981 = vmul.f32 %v980, 1.442695
  %v982 = vpow.pop %v981
  %v983 = vadd.f32 %v982, 1.0
  %v984 = vrcp.pop %v983
  %v985 = vmul.f32 1.0, %v984
  %v986 = vxor.u32 %v977, 2147483648
  %v987 = vmul.f32 %v986, 1.442695
  %v988 = vpow.pop %v987
  %v989 = vadd.f32 %v988, 1.0
  %v990 = vrcp.pop %v989
  %v991 = vmul.f32 1.0, %v990
  %v992 = vtanh.pop %v978
  %v993 = vxor.u32 %v979, 2147483648
  %v994 = vmul.f32 %v993, 1.442695
  %v995 = vpow.pop %v994
  %v996 = vadd.f32 %v995, 1.0
  %v997 = vrcp.pop %v996
  %v998 = vmul.f32 1.0, %v997
  %v999 = vmul.f32 %v991, %v765
  %v1000 = vmul.f32 %v985, %v992
  %v1001 = vadd.f32 %v999, %v1000
  %v1002 = vtanh.pop %v1001
  %v1003 = vmul.f32 %v998, %v1002
  %1004 = vst [vmem:[%s4] sm:$0xff] %v1003
  %v1005 = vld [vmem:[#allocation5 + $0x20] sm:$0xff]
  %v1006 = vld [vmem:[#allocation5 + $0x28] sm:$0xff]
  %v1007 = vld [vmem:[#allocation5 + $0x30] sm:$0xff]
  %v1008 = vld [vmem:[#allocation5 + $0x38] sm:$0xff]
  %v1009 = vld [vmem:[#allocation3] sm:$0xff]
  %v1010 = vld [vmem:[#allocation3 + $0x8] sm:$0xff]
  %v1011 = vld [vmem:[#allocation3 + $0x10] sm:$0xff]
  %v1012 = vld [vmem:[#allocation3 + $0x18] sm:$0xff]
  %v1013 = vld [vmem:[#allocation3 + $0x20] sm:$0xff]
  %v1014 = vld [vmem:[#allocation3 + $0x28] sm:$0xff]
  %v1015 = vld [vmem:[#allocation3 + $0x30] sm:$0xff]
  %v1016 = vld [vmem:[#allocation3 + $0x38] sm:$0xff]
  %v1017 = vld [vmem:[#allocation3 + $0x40] sm:$0xff]
  %v1018 = vld [vmem:[#allocation3 + $0x48] sm:$0xff]
  %v1019 = vld [vmem:[#allocation3 + $0x50] sm:$0xff]
  %v1020 = vld [vmem:[#allocation3 + $0x58] sm:$0xff]
  %v1021 = vld [vmem:[#allocation3 + $0x60] sm:$0xff]
  %v1022 = vld [vmem:[#allocation3 + $0x68] sm:$0xff]
  %v1023 = vld [vmem:[#allocation3 + $0x70] sm:$0xff]
  %v1024 = vld [vmem:[#allocation3 + $0x78] sm:$0xff]
  %v1025 = vld [vmem:[#allocation3 + $0x80] sm:$0xff]
  %v1026 = vld [vmem:[#allocation3 + $0x88] sm:$0xff]
  %v1027 = vld [vmem:[#allocation3 + $0x90] sm:$0xff]
  %v1028 = vld [vmem:[#allocation3 + $0x98] sm:$0xff]
  %v1029 = vld [vmem:[#allocation3 + $0xa0] sm:$0xff]
  %v1030 = vld [vmem:[#allocation3 + $0xa8] sm:$0xff]
  %v1031 = vld [vmem:[#allocation3 + $0xb0] sm:$0xff]
  %v1032 = vld [vmem:[#allocation3 + $0xb8] sm:$0xff]
  %v1033 = vld [vmem:[#allocation3 + $0xc0] sm:$0xff]
  %v1034 = vld [vmem:[#allocation3 + $0xc8] sm:$0xff]
  %v1035 = vld [vmem:[#allocation3 + $0xd0] sm:$0xff]
  %v1036 = vld [vmem:[#allocation3 + $0xd8] sm:$0xff]
  %v1037 = vld [vmem:[#allocation3 + $0xe0] sm:$0xff]
  %v1038 = vld [vmem:[#allocation3 + $0xe8] sm:$0xff]
  %v1039 = vld [vmem:[#allocation3 + $0xf0] sm:$0xff]
  %v1040 = vld [vmem:[#allocation3 + $0xf8] sm:$0xff]
  %v1041 = vld [vmem:[#allocation3 + $0x100] sm:$0xff]
  %v1042 = vld [vmem:[#allocation3 + $0x108] sm:$0xff]
  %v1043 = vld [vmem:[#allocation3 + $0x110] sm:$0xff]
  %v1044 = vld [vmem:[#allocation3 + $0x118] sm:$0xff]
  %v1045 = vld [vmem:[#allocation3 + $0x120] sm:$0xff]
  %v1046 = vld [vmem:[#allocation3 + $0x128] sm:$0xff]
  %v1047 = vld [vmem:[#allocation3 + $0x130] sm:$0xff]
  %v1048 = vld [vmem:[#allocation3 + $0x138] sm:$0xff]
  %v1049 = vld [vmem:[#allocation3 + $0x140] sm:$0xff]
  %v1050 = vld [vmem:[#allocation3 + $0x148] sm:$0xff]
  %v1051 = vld [vmem:[#allocation3 + $0x150] sm:$0xff]
  %v1052 = vld [vmem:[#allocation3 + $0x158] sm:$0xff]
  %v1053 = vld [vmem:[#allocation3 + $0x160] sm:$0xff]
  %v1054 = vld [vmem:[#allocation3 + $0x168] sm:$0xff]
  %v1055 = vld [vmem:[#allocation3 + $0x170] sm:$0xff]
  %v1056 = vld [vmem:[#allocation3 + $0x178] sm:$0xff]
  %v1057 = vld [vmem:[#allocation3 + $0x180] sm:$0xff]
  %v1058 = vld [vmem:[#allocation3 + $0x188] sm:$0xff]
  %v1059 = vld [vmem:[#allocation3 + $0x190] sm:$0xff]
  %v1060 = vld [vmem:[#allocation3 + $0x198] sm:$0xff]
  %v1061 = vld [vmem:[#allocation3 + $0x1a0] sm:$0xff]
  %v1062 = vld [vmem:[#allocation3 + $0x1a8] sm:$0xff]
  %v1063 = vld [vmem:[#allocation3 + $0x1b0] sm:$0xff]
  %v1064 = vld [vmem:[#allocation3 + $0x1b8] sm:$0xff]
  %v1065 = vld [vmem:[#allocation3 + $0x1c0] sm:$0xff]
  %v1066 = vld [vmem:[#allocation3 + $0x1c8] sm:$0xff]
  %v1067 = vld [vmem:[#allocation3 + $0x1d0] sm:$0xff]
  %v1068 = vld [vmem:[#allocation3 + $0x1d8] sm:$0xff]
  %v1069 = vld [vmem:[#allocation3 + $0x1e0] sm:$0xff]
  %v1070 = vld [vmem:[#allocation3 + $0x1e8] sm:$0xff]
  %v1071 = vld [vmem:[#allocation3 + $0x1f0] sm:$0xff]
  %v1072 = vld [vmem:[#allocation3 + $0x1f8] sm:$0xff]
  %1073 = vmatprep.subr.mxu0 %v1070
  %1074 = vmatpush1.msra.mxu0 %v1069
  %1075 = vmatprep.subr.mxu0 %v1066
  %1076 = vmatpush1.msra.mxu0 %v1065
  %1077 = vmatprep.subr.mxu0 %v1062
  %1078 = vmatpush1.msra.mxu0 %v1061
  %1079 = vmatprep.subr.mxu0 %v1058
  %1080 = vmatpush1.msra.mxu0 %v1057
  %1081 = vmatprep.subr.mxu0 %v1054
  %1082 = vmatpush1.msra.mxu0 %v1053
  %1083 = vmatprep.subr.mxu0 %v1050
  %1084 = vmatpush1.msra.mxu0 %v1049
  %1085 = vmatprep.subr.mxu0 %v1046
  %1086 = vmatpush1.msra.mxu0 %v1045
  %1087 = vmatprep.subr.mxu0 %v1042
  %1088 = vmatpush1.msra.mxu0 %v1041
  %1089 = vmatprep.subr.mxu0 %v1038
  %1090 = vmatpush1.msra.mxu0 %v1037
  %1091 = vmatprep.subr.mxu0 %v1034
  %1092 = vmatpush1.msra.mxu0 %v1033
  %1093 = vmatprep.subr.mxu0 %v1030
  %1094 = vmatpush1.msra.mxu0 %v1029
  %1095 = vmatprep.subr.mxu0 %v1026
  %1096 = vmatpush1.msra.mxu0 %v1025
  %1097 = vmatprep.subr.mxu0 %v1022
  %1098 = vmatpush1.msra.mxu0 %v1021
  %1099 = vmatprep.subr.mxu0 %v1018
  %1100 = vmatpush1.msra.mxu0 %v1017
  %1101 = vmatprep.subr.mxu0 %v1014
  %1102 = vmatpush1.msra.mxu0 %v1013
  %1103 = vmatprep.subr.mxu0 %v1010
  %1104 = vmatpush1.msra.mxu0 %v1009
  %1105 = vmatprep.subr.mxu0 0.0
  %1106 = vmatpush2.msra.mxu0 0.0
  %1107 = vmatprep.subr.mxu0 0.0
  %1108 = vmatpush2.msra.mxu0 0.0
  %1109 = vmatprep.subr.mxu0 0.0
  %1110 = vmatpush2.msra.mxu0 0.0
  %1111 = vmatprep.subr.mxu0 0.0
  %1112 = vmatpush2.msra.mxu0 0.0
  %1113 = vmatprep.subr.mxu0 0.0
  %1114 = vmatpush2.msra.mxu0 0.0
  %1115 = vmatprep.subr.mxu0 0.0
  %1116 = vmatpush2.msra.mxu0 0.0
  %1117 = vmatprep.subr.mxu0 0.0
  %1118 = vmatpush2.msra.mxu0 0.0
  %1119 = vmatprep.subr.mxu0 0.0
  %1120 = vmatpush2.msra.mxu0 0.0
  %1121 = vmatprep.subr.mxu0 0.0
  %1122 = vmatpush2.msra.mxu0 0.0
  %1123 = vmatprep.subr.mxu0 0.0
  %1124 = vmatpush2.msra.mxu0 0.0
  %1125 = vmatprep.subr.mxu0 0.0
  %1126 = vmatpush2.msra.mxu0 0.0
  %1127 = vmatprep.subr.mxu0 0.0
  %1128 = vmatpush2.msra.mxu0 0.0
  %1129 = vmatprep.subr.mxu0 0.0
  %1130 = vmatpush2.msra.mxu0 0.0
  %1131 = vmatprep.subr.mxu0 0.0
  %1132 = vmatpush2.msra.mxu0 0.0
  %1133 = vmatprep.subr.mxu0 0.0
  %1134 = vmatpush2.msra.mxu0 0.0
  %1135 = vmatprep.subr.mxu0 0.0
  %1136 = vmatpush2.msra.mxu0 0.0
  %1137 = vmatprep.mubr.f32.mxu0 0.0
  %1138 = vmatmul.mubr.f32.gmra.mxu0 %v1003
  %v1139 = vpop.f32.mrf.mxu0
  %v1140 = vadd.f32 0.0, %v1139
  %v1141 = vpop.f32.mrf.mxu0
  %v1142 = vadd.f32 0.0, %v1141
  %1143 = vdwg.mxu0
  %1144 = vmatprep.subr.mxu0 %v1072
  %1145 = vmatpush1.msra.mxu0 %v1071
  %1146 = vmatprep.subr.mxu0 %v1068
  %1147 = vmatpush1.msra.mxu0 %v1067
  %1148 = vmatprep.subr.mxu0 %v1064
  %1149 = vmatpush1.msra.mxu0 %v1063
  %1150 = vmatprep.subr.mxu0 %v1060
  %1151 = vmatpush1.msra.mxu0 %v1059
  %1152 = vmatprep.subr.mxu0 %v1056
  %1153 = vmatpush1.msra.mxu0 %v1055
  %1154 = vmatprep.subr.mxu0 %v1052
  %1155 = vmatpush1.msra.mxu0 %v1051
  %1156 = vmatprep.subr.mxu0 %v1048
  %1157 = vmatpush1.msra.mxu0 %v1047
  %1158 = vmatprep.subr.mxu0 %v1044
  %1159 = vmatpush1.msra.mxu0 %v1043
  %1160 = vmatprep.subr.mxu0 %v1040
  %1161 = vmatpush1.msra.mxu0 %v1039
  %1162 = vmatprep.subr.mxu0 %v1036
  %1163 = vmatpush1.msra.mxu0 %v1035
  %1164 = vmatprep.subr.mxu0 %v1032
  %1165 = vmatpush1.msra.mxu0 %v1031
  %1166 = vmatprep.subr.mxu0 %v1028
  %1167 = vmatpush1.msra.mxu0 %v1027
  %1168 = vmatprep.subr.mxu0 %v1024
  %1169 = vmatpush1.msra.mxu0 %v1023
  %1170 = vmatprep.subr.mxu0 %v1020
  %1171 = vmatpush1.msra.mxu0 %v1019
  %1172 = vmatprep.subr.mxu0 %v1016
  %1173 = vmatpush1.msra.mxu0 %v1015
  %1174 = vmatprep.subr.mxu0 %v1012
  %1175 = vmatpush1.msra.mxu0 %v1011
  %1176 = vmatprep.subr.mxu0 0.0
  %1177 = vmatpush2.msra.mxu0 0.0
  %1178 = vmatprep.subr.mxu0 0.0
  %1179 = vmatpush2.msra.mxu0 0.0
  %1180 = vmatprep.subr.mxu0 0.0
  %1181 = vmatpush2.msra.mxu0 0.0
  %1182 = vmatprep.subr.mxu0 0.0
  %1183 = vmatpush2.msra.mxu0 0.0
  %1184 = vmatprep.subr.mxu0 0.0
  %1185 = vmatpush2.msra.mxu0 0.0
  %1186 = vmatprep.subr.mxu0 0.0
  %1187 = vmatpush2.msra.mxu0 0.0
  %1188 = vmatprep.subr.mxu0 0.0
  %1189 = vmatpush2.msra.mxu0 0.0
  %1190 = vmatprep.subr.mxu0 0.0
  %1191 = vmatpush2.msra.mxu0 0.0
  %1192 = vmatprep.subr.mxu0 0.0
  %1193 = vmatpush2.msra.mxu0 0.0
  %1194 = vmatprep.subr.mxu0 0.0
  %1195 = vmatpush2.msra.mxu0 0.0
  %1196 = vmatprep.subr.mxu0 0.0
  %1197 = vmatpush2.msra.mxu0 0.0
  %1198 = vmatprep.subr.mxu0 0.0
  %1199 = vmatpush2.msra.mxu0 0.0
  %1200 = vmatprep.subr.mxu0 0.0
  %1201 = vmatpush2.msra.mxu0 0.0
  %1202 = vmatprep.subr.mxu0 0.0
  %1203 = vmatpush2.msra.mxu0 0.0
  %1204 = vmatprep.subr.mxu0 0.0
  %1205 = vmatpush2.msra.mxu0 0.0
  %1206 = vmatprep.subr.mxu0 0.0
  %1207 = vmatpush2.msra.mxu0 0.0
  %1208 = vmatprep.mubr.f32.mxu0 0.0
  %1209 = vmatmul.mubr.f32.gmra.mxu0 %v1003
  %v1210 = vpop.f32.mrf.mxu0
  %v1211 = vadd.f32 0.0, %v1210
  %v1212 = vpop.f32.mrf.mxu0
  %v1213 = vadd.f32 0.0, %v1212
  %1214 = vdwg.mxu0
  %v1215 = vadd.f32 %v1005, %v1140
  %v1216 = vadd.f32 %v1006, %v1142
  %v1217 = vadd.f32 %v1007, %v1211
  %v1218 = vadd.f32 %v1008, %v1213
  %v1219 = vxor.u32 %v1215, 2147483648
  %v1220 = vmul.f32 %v1219, 1.442695
  %v1221 = vpow.pop %v1220
  %v1222 = vadd.f32 %v1221, 1.0
  %v1223 = vrcp.pop %v1222
  %v1224 = vmul.f32 1.0, %v1223
  %v1225 = vxor.u32 %v1216, 2147483648
  %v1226 = vmul.f32 %v1225, 1.442695
  %v1227 = vpow.pop %v1226
  %v1228 = vadd.f32 %v1227, 1.0
  %v1229 = vrcp.pop %v1228
  %v1230 = vmul.f32 1.0, %v1229
  %v1231 = vtanh.pop %v1217
  %v1232 = vxor.u32 %v1218, 2147483648
  %v1233 = vmul.f32 %v1232, 1.442695
  %v1234 = vpow.pop %v1233
  %v1235 = vadd.f32 %v1234, 1.0
  %v1236 = vrcp.pop %v1235
  %v1237 = vmul.f32 1.0, %v1236
  %v1238 = vmul.f32 %v1230, %v1001
  %v1239 = vmul.f32 %v1224, %v1231
  %v1240 = vadd.f32 %v1238, %v1239
  %v1241 = vtanh.pop %v1240
  %v1242 = vmul.f32 %v1237, %v1241
  %1243 = vst [vmem:[%s4 + $0x8] sm:$0xff] %v1242
  %v1244 = vld [vmem:[#allocation5 + $0x40] sm:$0xff]
  %v1245 = vld [vmem:[#allocation5 + $0x48] sm:$0xff]
  %v1246 = vld [vmem:[#allocation5 + $0x50] sm:$0xff]
  %v1247 = vld [vmem:[#allocation5 + $0x58] sm:$0xff]
  %v1248 = vld [vmem:[#allocation3] sm:$0xff]
  %v1249 = vld [vmem:[#allocation3 + $0x8] sm:$0xff]
  %v1250 = vld [vmem:[#allocation3 + $0x10] sm:$0xff]
  %v1251 = vld [vmem:[#allocation3 + $0x18] sm:$0xff]
  %v1252 = vld [vmem:[#allocation3 + $0x20] sm:$0xff]
  %v1253 = vld [vmem:[#allocation3 + $0x28] sm:$0xff]
  %v1254 = vld [vmem:[#allocation3 + $0x30] sm:$0xff]
  %v1255 = vld [vmem:[#allocation3 + $0x38] sm:$0xff]
  %v1256 = vld [vmem:[#allocation3 + $0x40] sm:$0xff]
  %v1257 = vld [vmem:[#allocation3 + $0x48] sm:$0xff]
  %v1258 = vld [vmem:[#allocation3 + $0x50] sm:$0xff]
  %v1259 = vld [vmem:[#allocation3 + $0x58] sm:$0xff]
  %v1260 = vld [vmem:[#allocation3 + $0x60] sm:$0xff]
  %v1261 = vld [vmem:[#allocation3 + $0x68] sm:$0xff]
  %v1262 = vld [vmem:[#allocation3 + $0x70] sm:$0xff]
  %v1263 = vld [vmem:[#allocation3 + $0x78] sm:$0xff]
  %v1264 = vld [vmem:[#allocation3 + $0x80] sm:$0xff]
  %v1265 = vld [vmem:[#allocation3 + $0x88] sm:$0xff]
  %v1266 = vld [vmem:[#allocation3 + $0x90] sm:$0xff]
  %v1267 = vld [vmem:[#allocation3 + $0x98] sm:$0xff]
  %v1268 = vld [vmem:[#allocation3 + $0xa0] sm:$0xff]
  %v1269 = vld [vmem:[#allocation3 + $0xa8] sm:$0xff]
  %v1270 = vld [vmem:[#allocation3 + $0xb0] sm:$0xff]
  %v1271 = vld [vmem:[#allocation3 + $0xb8] sm:$0xff]
  %v1272 = vld [vmem:[#allocation3 + $0xc0] sm:$0xff]
  %v1273 = vld [vmem:[#allocation3 + $0xc8] sm:$0xff]
  %v1274 = vld [vmem:[#allocation3 + $0xd0] sm:$0xff]
  %v1275 = vld [vmem:[#allocation3 + $0xd8] sm:$0xff]
  %v1276 = vld [vmem:[#allocation3 + $0xe0] sm:$0xff]
  %v1277 = vld [vmem:[#allocation3 + $0xe8] sm:$0xff]
  %v1278 = vld [vmem:[#allocation3 + $0xf0] sm:$0xff]
  %v1279 = vld [vmem:[#allocation3 + $0xf8] sm:$0xff]
  %v1280 = vld [vmem:[#allocation3 + $0x100] sm:$0xff]
  %v1281 = vld [vmem:[#allocation3 + $0x108] sm:$0xff]
  %v1282 = vld [vmem:[#allocation3 + $0x110] sm:$0xff]
  %v1283 = vld [vmem:[#allocation3 + $0x118] sm:$0xff]
  %v1284 = vld [vmem:[#allocation3 + $0x120] sm:$0xff]
  %v1285 = vld [vmem:[#allocation3 + $0x128] sm:$0xff]
  %v1286 = vld [vmem:[#allocation3 + $0x130] sm:$0xff]
  %v1287 = vld [vmem:[#allocation3 + $0x138] sm:$0xff]
  %v1288 = vld [vmem:[#allocation3 + $0x140] sm:$0xff]
  %v1289 = vld [vmem:[#allocation3 + $0x148] sm:$0xff]
  %v1290 = vld [vmem:[#allocation3 + $0x150] sm:$0xff]
  %v1291 = vld [vmem:[#allocation3 + $0x158] sm:$0xff]
  %v1292 = vld [vmem:[#allocation3 + $0x160] sm:$0xff]
  %v1293 = vld [vmem:[#allocation3 + $0x168] sm:$0xff]
  %v1294 = vld [vmem:[#allocation3 + $0x170] sm:$0xff]
  %v1295 = vld [vmem:[#allocation3 + $0x178] sm:$0xff]
  %v1296 = vld [vmem:[#allocation3 + $0x180] sm:$0xff]
  %v1297 = vld [vmem:[#allocation3 + $0x188] sm:$0xff]
  %v1298 = vld [vmem:[#allocation3 + $0x190] sm:$0xff]
  %v1299 = vld [vmem:[#allocation3 + $0x198] sm:$0xff]
  %v1300 = vld [vmem:[#allocation3 + $0x1a0] sm:$0xff]
  %v1301 = vld [vmem:[#allocation3 + $0x1a8] sm:$0xff]
  %v1302 = vld [vmem:[#allocation3 + $0x1b0] sm:$0xff]
  %v1303 = vld [vmem:[#allocation3 + $0x1b8] sm:$0xff]
  %v1304 = vld [vmem:[#allocation3 + $0x1c0] sm:$0xff]
  %v1305 = vld [vmem:[#allocation3 + $0x1c8] sm:$0xff]
  %v1306 = vld [vmem:[#allocation3 + $0x1d0] sm:$0xff]
  %v1307 = vld [vmem:[#allocation3 + $0x1d8] sm:$0xff]
  %v1308 = vld [vmem:[#allocation3 + $0x1e0] sm:$0xff]
  %v1309 = vld [vmem:[#allocation3 + $0x1e8] sm:$0xff]
  %v1310 = vld [vmem:[#allocation3 + $0x1f0] sm:$0xff]
  %v1311 = vld [vmem:[#allocation3 + $0x1f8] sm:$0xff]
  %1312 = vmatprep.subr.mxu0 %v1309
  %1313 = vmatpush1.msra.mxu0 %v1308
  %1314 = vmatprep.subr.mxu0 %v1305
  %1315 = vmatpush1.msra.mxu0 %v1304
  %1316 = vmatprep.subr.mxu0 %v1301
  %1317 = vmatpush1.msra.mxu0 %v1300
  %1318 = vmatprep.subr.mxu0 %v1297
  %1319 = vmatpush1.msra.mxu0 %v1296
  %1320 = vmatprep.subr.mxu0 %v1293
  %1321 = vmatpush1.msra.mxu0 %v1292
  %1322 = vmatprep.subr.mxu0 %v1289
  %1323 = vmatpush1.msra.mxu0 %v1288
  %1324 = vmatprep.subr.mxu0 %v1285
  %1325 = vmatpush1.msra.mxu0 %v1284
  %1326 = vmatprep.subr.mxu0 %v1281
  %1327 = vmatpush1.msra.mxu0 %v1280
  %1328 = vmatprep.subr.mxu0 %v1277
  %1329 = vmatpush1.msra.mxu0 %v1276
  %1330 = vmatprep.subr.mxu0 %v1273
  %1331 = vmatpush1.msra.mxu0 %v1272
  %1332 = vmatprep.subr.mxu0 %v1269
  %1333 = vmatpush1.msra.mxu0 %v1268
  %1334 = vmatprep.subr.mxu0 %v1265
  %1335 = vmatpush1.msra.mxu0 %v1264
  %1336 = vmatprep.subr.mxu0 %v1261
  %1337 = vmatpush1.msra.mxu0 %v1260
  %1338 = vmatprep.subr.mxu0 %v1257
  %1339 = vmatpush1.msra.mxu0 %v1256
  %1340 = vmatprep.subr.mxu0 %v1253
  %1341 = vmatpush1.msra.mxu0 %v1252
  %1342 = vmatprep.subr.mxu0 %v1249
  %1343 = vmatpush1.msra.mxu0 %v1248
  %1344 = vmatprep.subr.mxu0 0.0
  %1345 = vmatpush2.msra.mxu0 0.0
  %1346 = vmatprep.subr.mxu0 0.0
  %1347 = vmatpush2.msra.mxu0 0.0
  %1348 = vmatprep.subr.mxu0 0.0
  %1349 = vmatpush2.msra.mxu0 0.0
  %1350 = vmatprep.subr.mxu0 0.0
  %1351 = vmatpush2.msra.mxu0 0.0
  %1352 = vmatprep.subr.mxu0 0.0
  %1353 = vmatpush2.msra.mxu0 0.0
  %1354 = vmatprep.subr.mxu0 0.0
  %1355 = vmatpush2.msra.mxu0 0.0
  %1356 = vmatprep.subr.mxu0 0.0
  %1357 = vmatpush2.msra.mxu0 0.0
  %1358 = vmatprep.subr.mxu0 0.0
  %1359 = vmatpush2.msra.mxu0 0.0
  %1360 = vmatprep.subr.mxu0 0.0
  %1361 = vmatpush2.msra.mxu0 0.0
  %1362 = vmatprep.subr.mxu0 0.0
  %1363 = vmatpush2.msra.mxu0 0.0
  %1364 = vmatprep.subr.mxu0 0.0
  %1365 = vmatpush2.msra.mxu0 0.0
  %1366 = vmatprep.subr.mxu0 0.0
  %1367 = vmatpush2.msra.mxu0 0.0
  %1368 = vmatprep.subr.mxu0 0.0
  %1369 = vmatpush2.msra.mxu0 0.0
  %1370 = vmatprep.subr.mxu0 0.0
  %1371 = vmatpush2.msra.mxu0 0.0
  %1372 = vmatprep.subr.mxu0 0.0
  %1373 = vmatpush2.msra.mxu0 0.0
  %1374 = vmatprep.subr.mxu0 0.0
  %1375 = vmatpush2.msra.mxu0 0.0
  %1376 = vmatprep.mubr.f32.mxu0 0.0
  %1377 = vmatmul.mubr.f32.gmra.mxu0 %v1242
  %v1378 = vpop.f32.mrf.mxu0
  %v1379 = vadd.f32 0.0, %v1378
  %v1380 = vpop.f32.mrf.mxu0
  %v1381 = vadd.f32 0.0, %v1380
  %1382 = vdwg.mxu0
  %1383 = vmatprep.subr.mxu0 %v1311
  %1384 = vmatpush1.msra.mxu0 %v1310
  %1385 = vmatprep.subr.mxu0 %v1307
  %1386 = vmatpush1.msra.mxu0 %v1306
  %1387 = vmatprep.subr.mxu0 %v1303
  %1388 = vmatpush1.msra.mxu0 %v1302
  %1389 = vmatprep.subr.mxu0 %v1299
  %1390 = vmatpush1.msra.mxu0 %v1298
  %1391 = vmatprep.subr.mxu0 %v1295
  %1392 = vmatpush1.msra.mxu0 %v1294
  %1393 = vmatprep.subr.mxu0 %v1291
  %1394 = vmatpush1.msra.mxu0 %v1290
  %1395 = vmatprep.subr.mxu0 %v1287
  %1396 = vmatpush1.msra.mxu0 %v1286
  %1397 = vmatprep.subr.mxu0 %v1283
  %1398 = vmatpush1.msra.mxu0 %v1282
  %1399 = vmatprep.subr.mxu0 %v1279
  %1400 = vmatpush1.msra.mxu0 %v1278
  %1401 = vmatprep.subr.mxu0 %v1275
  %1402 = vmatpush1.msra.mxu0 %v1274
  %1403 = vmatprep.subr.mxu0 %v1271
  %1404 = vmatpush1.msra.mxu0 %v1270
  %1405 = vmatprep.subr.mxu0 %v1267
  %1406 = vmatpush1.msra.mxu0 %v1266
  %1407 = vmatprep.subr.mxu0 %v1263
  %1408 = vmatpush1.msra.mxu0 %v1262
  %1409 = vmatprep.subr.mxu0 %v1259
  %1410 = vmatpush1.msra.mxu0 %v1258
  %1411 = vmatprep.subr.mxu0 %v1255
  %1412 = vmatpush1.msra.mxu0 %v1254
  %1413 = vmatprep.subr.mxu0 %v1251
  %1414 = vmatpush1.msra.mxu0 %v1250
  %1415 = vmatprep.subr.mxu0 0.0
  %1416 = vmatpush2.msra.mxu0 0.0
  %1417 = vmatprep.subr.mxu0 0.0
  %1418 = vmatpush2.msra.mxu0 0.0
  %1419 = vmatprep.subr.mxu0 0.0
  %1420 = vmatpush2.msra.mxu0 0.0
  %1421 = vmatprep.subr.mxu0 0.0
  %1422 = vmatpush2.msra.mxu0 0.0
  %1423 = vmatprep.subr.mxu0 0.0
  %1424 = vmatpush2.msra.mxu0 0.0
  %1425 = vmatprep.subr.mxu0 0.0
  %1426 = vmatpush2.msra.mxu0 0.0
  %1427 = vmatprep.subr.mxu0 0.0
  %1428 = vmatpush2.msra.mxu0 0.0
  %1429 = vmatprep.subr.mxu0 0.0
  %1430 = vmatpush2.msra.mxu0 0.0
  %1431 = vmatprep.subr.mxu0 0.0
  %1432 = vmatpush2.msra.mxu0 0.0
  %1433 = vmatprep.subr.mxu0 0.0
  %1434 = vmatpush2.msra.mxu0 0.0
  %1435 = vmatprep.subr.mxu0 0.0
  %1436 = vmatpush2.msra.mxu0 0.0
  %1437 = vmatprep.subr.mxu0 0.0
  %1438 = vmatpush2.msra.mxu0 0.0
  %1439 = vmatprep.subr.mxu0 0.0
  %1440 = vmatpush2.msra.mxu0 0.0
  %1441 = vmatprep.subr.mxu0 0.0
  %1442 = vmatpush2.msra.mxu0 0.0
  %1443 = vmatprep.subr.mxu0 0.0
  %1444 = vmatpush2.msra.mxu0 0.0
  %1445 = vmatprep.subr.mxu0 0.0
  %1446 = vmatpush2.msra.mxu0 0.0
  %1447 = vmatprep.mubr.f32.mxu0 0.0
  %1448 = vmatmul.mubr.f32.gmra.mxu0 %v1242
  %v1449 = vpop.f32.mrf.mxu0
  %v1450 = vadd.f32 0.0, %v1449
  %v1451 = vpop.f32.mrf.mxu0
  %v1452 = vadd.f32 0.0, %v1451
  %1453 = vdwg.mxu0
  %v1454 = vadd.f32 %v1244, %v1379
  %v1455 = vadd.f32 %v1245, %v1381
  %v1456 = vadd.f32 %v1246, %v1450
  %v1457 = vadd.f32 %v1247, %v1452
  %v1458 = vxor.u32 %v1454, 2147483648
  %v1459 = vmul.f32 %v1458, 1.442695
  %v1460 = vpow.pop %v1459
  %v1461 = vadd.f32 %v1460, 1.0
  %v1462 = vrcp.pop %v1461
  %v1463 = vmul.f32 1.0, %v1462
  %v1464 = vxor.u32 %v1455, 2147483648
  %v1465 = vmul.f32 %v1464, 1.442695
  %v1466 = vpow.pop %v1465
  %v1467 = vadd.f32 %v1466, 1.0
  %v1468 = vrcp.pop %v1467
  %v1469 = vmul.f32 1.0, %v1468
  %v1470 = vtanh.pop %v1456
  %v1471 = vxor.u32 %v1457, 2147483648
  %v1472 = vmul.f32 %v1471, 1.442695
  %v1473 = vpow.pop %v1472
  %v1474 = vadd.f32 %v1473, 1.0
  %v1475 = vrcp.pop %v1474
  %v1476 = vmul.f32 1.0, %v1475
  %v1477 = vmul.f32 %v1469, %v1240
  %v1478 = vmul.f32 %v1463, %v1470
  %v1479 = vadd.f32 %v1477, %v1478
  %v1480 = vtanh.pop %v1479
  %v1481 = vmul.f32 %v1476, %v1480
  %1482 = vst [vmem:[%s4 + $0x10] sm:$0xff] %v1481
  %v1483 = vld [vmem:[#allocation5 + $0x60] sm:$0xff]
  %v1484 = vld [vmem:[#allocation5 + $0x68] sm:$0xff]
  %v1485 = vld [vmem:[#allocation5 + $0x70] sm:$0xff]
  %v1486 = vld [vmem:[#allocation5 + $0x78] sm:$0xff]
  %v1487 = vld [vmem:[#allocation3] sm:$0xff]
  %v1488 = vld [vmem:[#allocation3 + $0x8] sm:$0xff]
  %v1489 = vld [vmem:[#allocation3 + $0x10] sm:$0xff]
  %v1490 = vld [vmem:[#allocation3 + $0x18] sm:$0xff]
  %v1491 = vld [vmem:[#allocation3 + $0x20] sm:$0xff]
  %v1492 = vld [vmem:[#allocation3 + $0x28] sm:$0xff]
  %v1493 = vld [vmem:[#allocation3 + $0x30] sm:$0xff]
  %v1494 = vld [vmem:[#allocation3 + $0x38] sm:$0xff]
  %v1495 = vld [vmem:[#allocation3 + $0x40] sm:$0xff]
  %v1496 = vld [vmem:[#allocation3 + $0x48] sm:$0xff]
  %v1497 = vld [vmem:[#allocation3 + $0x50] sm:$0xff]
  %v1498 = vld [vmem:[#allocation3 + $0x58] sm:$0xff]
  %v1499 = vld [vmem:[#allocation3 + $0x60] sm:$0xff]
  %v1500 = vld [vmem:[#allocation3 + $0x68] sm:$0xff]
  %v1501 = vld [vmem:[#allocation3 + $0x70] sm:$0xff]
  %v1502 = vld [vmem:[#allocation3 + $0x78] sm:$0xff]
  %v1503 = vld [vmem:[#allocation3 + $0x80] sm:$0xff]
  %v1504 = vld [vmem:[#allocation3 + $0x88] sm:$0xff]
  %v1505 = vld [vmem:[#allocation3 + $0x90] sm:$0xff]
  %v1506 = vld [vmem:[#allocation3 + $0x98] sm:$0xff]
  %v1507 = vld [vmem:[#allocation3 + $0xa0] sm:$0xff]
  %v1508 = vld [vmem:[#allocation3 + $0xa8] sm:$0xff]
  %v1509 = vld [vmem:[#allocation3 + $0xb0] sm:$0xff]
  %v1510 = vld [vmem:[#allocation3 + $0xb8] sm:$0xff]
  %v1511 = vld [vmem:[#allocation3 + $0xc0] sm:$0xff]
  %v1512 = vld [vmem:[#allocation3 + $0xc8] sm:$0xff]
  %v1513 = vld [vmem:[#allocation3 + $0xd0] sm:$0xff]
  %v1514 = vld [vmem:[#allocation3 + $0xd8] sm:$0xff]
  %v1515 = vld [vmem:[#allocation3 + $0xe0] sm:$0xff]
  %v1516 = vld [vmem:[#allocation3 + $0xe8] sm:$0xff]
  %v1517 = vld [vmem:[#allocation3 + $0xf0] sm:$0xff]
  %v1518 = vld [vmem:[#allocation3 + $0xf8] sm:$0xff]
  %v1519 = vld [vmem:[#allocation3 + $0x100] sm:$0xff]
  %v1520 = vld [vmem:[#allocation3 + $0x108] sm:$0xff]
  %v1521 = vld [vmem:[#allocation3 + $0x110] sm:$0xff]
  %v1522 = vld [vmem:[#allocation3 + $0x118] sm:$0xff]
  %v1523 = vld [vmem:[#allocation3 + $0x120] sm:$0xff]
  %v1524 = vld [vmem:[#allocation3 + $0x128] sm:$0xff]
  %v1525 = vld [vmem:[#allocation3 + $0x130] sm:$0xff]
  %v1526 = vld [vmem:[#allocation3 + $0x138] sm:$0xff]
  %v1527 = vld [vmem:[#allocation3 + $0x140] sm:$0xff]
  %v1528 = vld [vmem:[#allocation3 + $0x148] sm:$0xff]
  %v1529 = vld [vmem:[#allocation3 + $0x150] sm:$0xff]
  %v1530 = vld [vmem:[#allocation3 + $0x158] sm:$0xff]
  %v1531 = vld [vmem:[#allocation3 + $0x160] sm:$0xff]
  %v1532 = vld [vmem:[#allocation3 + $0x168] sm:$0xff]
  %v1533 = vld [vmem:[#allocation3 + $0x170] sm:$0xff]
  %v1534 = vld [vmem:[#allocation3 + $0x178] sm:$0xff]
  %v1535 = vld [vmem:[#allocation3 + $0x180] sm:$0xff]
  %v1536 = vld [vmem:[#allocation3 + $0x188] sm:$0xff]
  %v1537 = vld [vmem:[#allocation3 + $0x190] sm:$0xff]
  %v1538 = vld [vmem:[#allocation3 + $0x198] sm:$0xff]
  %v1539 = vld [vmem:[#allocation3 + $0x1a0] sm:$0xff]
  %v1540 = vld [vmem:[#allocation3 + $0x1a8] sm:$0xff]
  %v1541 = vld [vmem:[#allocation3 + $0x1b0] sm:$0xff]
  %v1542 = vld [vmem:[#allocation3 + $0x1b8] sm:$0xff]
  %v1543 = vld [vmem:[#allocation3 + $0x1c0] sm:$0xff]
  %v1544 = vld [vmem:[#allocation3 + $0x1c8] sm:$0xff]
  %v1545 = vld [vmem:[#allocation3 + $0x1d0] sm:$0xff]
  %v1546 = vld [vmem:[#allocation3 + $0x1d8] sm:$0xff]
  %v1547 = vld [vmem:[#allocation3 + $0x1e0] sm:$0xff]
  %v1548 = vld [vmem:[#allocation3 + $0x1e8] sm:$0xff]
  %v1549 = vld [vmem:[#allocation3 + $0x1f0] sm:$0xff]
  %v1550 = vld [vmem:[#allocation3 + $0x1f8] sm:$0xff]
  %1551 = vmatprep.subr.mxu0 %v1548
  %1552 = vmatpush1.msra.mxu0 %v1547
  %1553 = vmatprep.subr.mxu0 %v1544
  %1554 = vmatpush1.msra.mxu0 %v1543
  %1555 = vmatprep.subr.mxu0 %v1540
  %1556 = vmatpush1.msra.mxu0 %v1539
  %1557 = vmatprep.subr.mxu0 %v1536
  %1558 = vmatpush1.msra.mxu0 %v1535
  %1559 = vmatprep.subr.mxu0 %v1532
  %1560 = vmatpush1.msra.mxu0 %v1531
  %1561 = vmatprep.subr.mxu0 %v1528
  %1562 = vmatpush1.msra.mxu0 %v1527
  %1563 = vmatprep.subr.mxu0 %v1524
  %1564 = vmatpush1.msra.mxu0 %v1523
  %1565 = vmatprep.subr.mxu0 %v1520
  %1566 = vmatpush1.msra.mxu0 %v1519
  %1567 = vmatprep.subr.mxu0 %v1516
  %1568 = vmatpush1.msra.mxu0 %v1515
  %1569 = vmatprep.subr.mxu0 %v1512
  %1570 = vmatpush1.msra.mxu0 %v1511
  %1571 = vmatprep.subr.mxu0 %v1508
  %1572 = vmatpush1.msra.mxu0 %v1507
  %1573 = vmatprep.subr.mxu0 %v1504
  %1574 = vmatpush1.msra.mxu0 %v1503
  %1575 = vmatprep.subr.mxu0 %v1500
  %1576 = vmatpush1.msra.mxu0 %v1499
  %1577 = vmatprep.subr.mxu0 %v1496
  %1578 = vmatpush1.msra.mxu0 %v1495
  %1579 = vmatprep.subr.mxu0 %v1492
  %1580 = vmatpush1.msra.mxu0 %v1491
  %1581 = vmatprep.subr.mxu0 %v1488
  %1582 = vmatpush1.msra.mxu0 %v1487
  %1583 = vmatprep.subr.mxu0 0.0
  %1584 = vmatpush2.msra.mxu0 0.0
  %1585 = vmatprep.subr.mxu0 0.0
  %1586 = vmatpush2.msra.mxu0 0.0
  %1587 = vmatprep.subr.mxu0 0.0
  %1588 = vmatpush2.msra.mxu0 0.0
  %1589 = vmatprep.subr.mxu0 0.0
  %1590 = vmatpush2.msra.mxu0 0.0
  %1591 = vmatprep.subr.mxu0 0.0
  %1592 = vmatpush2.msra.mxu0 0.0
  %1593 = vmatprep.subr.mxu0 0.0
  %1594 = vmatpush2.msra.mxu0 0.0
  %1595 = vmatprep.subr.mxu0 0.0
  %1596 = vmatpush2.msra.mxu0 0.0
  %1597 = vmatprep.subr.mxu0 0.0
  %1598 = vmatpush2.msra.mxu0 0.0
  %1599 = vmatprep.subr.mxu0 0.0
  %1600 = vmatpush2.msra.mxu0 0.0
  %1601 = vmatprep.subr.mxu0 0.0
  %1602 = vmatpush2.msra.mxu0 0.0
  %1603 = vmatprep.subr.mxu0 0.0
  %1604 = vmatpush2.msra.mxu0 0.0
  %1605 = vmatprep.subr.mxu0 0.0
  %1606 = vmatpush2.msra.mxu0 0.0
  %1607 = vmatprep.subr.mxu0 0.0
  %1608 = vmatpush2.msra.mxu0 0.0
  %1609 = vmatprep.subr.mxu0 0.0
  %1610 = vmatpush2.msra.mxu0 0.0
  %1611 = vmatprep.subr.mxu0 0.0
  %1612 = vmatpush2.msra.mxu0 0.0
  %1613 = vmatprep.subr.mxu0 0.0
  %1614 = vmatpush2.msra.mxu0 0.0
  %1615 = vmatprep.mubr.f32.mxu0 0.0
  %1616 = vmatmul.mubr.f32.gmra.mxu0 %v1481
  %v1617 = vpop.f32.mrf.mxu0
  %v1618 = vadd.f32 0.0, %v1617
  %v1619 = vpop.f32.mrf.mxu0
  %v1620 = vadd.f32 0.0, %v1619
  %1621 = vdwg.mxu0
  %1622 = vmatprep.subr.mxu0 %v1550
  %1623 = vmatpush1.msra.mxu0 %v1549
  %1624 = vmatprep.subr.mxu0 %v1546
  %1625 = vmatpush1.msra.mxu0 %v1545
  %1626 = vmatprep.subr.mxu0 %v1542
  %1627 = vmatpush1.msra.mxu0 %v1541
  %1628 = vmatprep.subr.mxu0 %v1538
  %1629 = vmatpush1.msra.mxu0 %v1537
  %1630 = vmatprep.subr.mxu0 %v1534
  %1631 = vmatpush1.msra.mxu0 %v1533
  %1632 = vmatprep.subr.mxu0 %v1530
  %1633 = vmatpush1.msra.mxu0 %v1529
  %1634 = vmatprep.subr.mxu0 %v1526
  %1635 = vmatpush1.msra.mxu0 %v1525
  %1636 = vmatprep.subr.mxu0 %v1522
  %1637 = vmatpush1.msra.mxu0 %v1521
  %1638 = vmatprep.subr.mxu0 %v1518
  %1639 = vmatpush1.msra.mxu0 %v1517
  %1640 = vmatprep.subr.mxu0 %v1514
  %1641 = vmatpush1.msra.mxu0 %v1513
  %1642 = vmatprep.subr.mxu0 %v1510
  %1643 = vmatpush1.msra.mxu0 %v1509
  %1644 = vmatprep.subr.mxu0 %v1506
  %1645 = vmatpush1.msra.mxu0 %v1505
  %1646 = vmatprep.subr.mxu0 %v1502
  %1647 = vmatpush1.msra.mxu0 %v1501
  %1648 = vmatprep.subr.mxu0 %v1498
  %1649 = vmatpush1.msra.mxu0 %v1497
  %1650 = vmatprep.subr.mxu0 %v1494
  %1651 = vmatpush1.msra.mxu0 %v1493
  %1652 = vmatprep.subr.mxu0 %v1490
  %1653 = vmatpush1.msra.mxu0 %v1489
  %1654 = vmatprep.subr.mxu0 0.0
  %1655 = vmatpush2.msra.mxu0 0.0
  %1656 = vmatprep.subr.mxu0 0.0
  %1657 = vmatpush2.msra.mxu0 0.0
  %1658 = vmatprep.subr.mxu0 0.0
  %1659 = vmatpush2.msra.mxu0 0.0
  %1660 = vmatprep.subr.mxu0 0.0
  %1661 = vmatpush2.msra.mxu0 0.0
  %1662 = vmatprep.subr.mxu0 0.0
  %1663 = vmatpush2.msra.mxu0 0.0
  %1664 = vmatprep.subr.mxu0 0.0
  %1665 = vmatpush2.msra.mxu0 0.0
  %1666 = vmatprep.subr.mxu0 0.0
  %1667 = vmatpush2.msra.mxu0 0.0
  %1668 = vmatprep.subr.mxu0 0.0
  %1669 = vmatpush2.msra.mxu0 0.0
  %1670 = vmatprep.subr.mxu0 0.0
  %1671 = vmatpush2.msra.mxu0 0.0
  %1672 = vmatprep.subr.mxu0 0.0
  %1673 = vmatpush2.msra.mxu0 0.0
  %1674 = vmatprep.subr.mxu0 0.0
  %1675 = vmatpush2.msra.mxu0 0.0
  %1676 = vmatprep.subr.mxu0 0.0
  %1677 = vmatpush2.msra.mxu0 0.0
  %1678 = vmatprep.subr.mxu0 0.0
  %1679 = vmatpush2.msra.mxu0 0.0
  %1680 = vmatprep.subr.mxu0 0.0
  %1681 = vmatpush2.msra.mxu0 0.0
  %1682 = vmatprep.subr.mxu0 0.0
  %1683 = vmatpush2.msra.mxu0 0.0
  %1684 = vmatprep.subr.mxu0 0.0
  %1685 = vmatpush2.msra.mxu0 0.0
  %1686 = vmatprep.mubr.f32.mxu0 0.0
  %1687 = vmatmul.mubr.f32.gmra.mxu0 %v1481
  %v1688 = vpop.f32.mrf.mxu0
  %v1689 = vadd.f32 0.0, %v1688
  %v1690 = vpop.f32.mrf.mxu0
  %v1691 = vadd.f32 0.0, %v1690
  %1692 = vdwg.mxu0
  %v1693 = vadd.f32 %v1483, %v1618
  %v1694 = vadd.f32 %v1484, %v1620
  %v1695 = vadd.f32 %v1485, %v1689
  %v1696 = vadd.f32 %v1486, %v1691
  %v1697 = vxor.u32 %v1693, 2147483648
  %v1698 = vmul.f32 %v1697, 1.442695
  %v1699 = vpow.pop %v1698
  %v1700 = vadd.f32 %v1699, 1.0
  %v1701 = vrcp.pop %v1700
  %v1702 = vmul.f32 1.0, %v1701
  %v1703 = vxor.u32 %v1694, 2147483648
  %v1704 = vmul.f32 %v1703, 1.442695
  %v1705 = vpow.pop %v1704
  %v1706 = vadd.f32 %v1705, 1.0
  %v1707 = vrcp.pop %v1706
  %v1708 = vmul.f32 1.0, %v1707
  %v1709 = vtanh.pop %v1695
  %v1710 = vxor.u32 %v1696, 2147483648
  %v1711 = vmul.f32 %v1710, 1.442695
  %v1712 = vpow.pop %v1711
  %v1713 = vadd.f32 %v1712, 1.0
  %v1714 = vrcp.pop %v1713
  %v1715 = vmul.f32 1.0, %v1714
  %v1716 = vmul.f32 %v1708, %v1479
  %v1717 = vmul.f32 %v1702, %v1709
  %v1718 = vadd.f32 %v1716, %v1717
  %v1719 = vtanh.pop %v1718
  %v1720 = vmul.f32 %v1715, %v1719
  %1721 = vst [vmem:[%s4 + $0x18] sm:$0xff] %v1720
  %v1722 = vld [vmem:[#allocation5 + $0x80] sm:$0xff]
  %v1723 = vld [vmem:[#allocation5 + $0x88] sm:$0xff]
  %v1724 = vld [vmem:[#allocation5 + $0x90] sm:$0xff]
  %v1725 = vld [vmem:[#allocation5 + $0x98] sm:$0xff]
  %v1726 = vld [vmem:[#allocation3] sm:$0xff]
  %v1727 = vld [vmem:[#allocation3 + $0x8] sm:$0xff]
  %v1728 = vld [vmem:[#allocation3 + $0x10] sm:$0xff]
  %v1729 = vld [vmem:[#allocation3 + $0x18] sm:$0xff]
  %v1730 = vld [vmem:[#allocation3 + $0x20] sm:$0xff]
  %v1731 = vld [vmem:[#allocation3 + $0x28] sm:$0xff]
  %v1732 = vld [vmem:[#allocation3 + $0x30] sm:$0xff]
  %v1733 = vld [vmem:[#allocation3 + $0x38] sm:$0xff]
  %v1734 = vld [vmem:[#allocation3 + $0x40] sm:$0xff]
  %v1735 = vld [vmem:[#allocation3 + $0x48] sm:$0xff]
  %v1736 = vld [vmem:[#allocation3 + $0x50] sm:$0xff]
  %v1737 = vld [vmem:[#allocation3 + $0x58] sm:$0xff]
  %v1738 = vld [vmem:[#allocation3 + $0x60] sm:$0xff]
  %v1739 = vld [vmem:[#allocation3 + $0x68] sm:$0xff]
  %v1740 = vld [vmem:[#allocation3 + $0x70] sm:$0xff]
  %v1741 = vld [vmem:[#allocation3 + $0x78] sm:$0xff]
  %v1742 = vld [vmem:[#allocation3 + $0x80] sm:$0xff]
  %v1743 = vld [vmem:[#allocation3 + $0x88] sm:$0xff]
  %v1744 = vld [vmem:[#allocation3 + $0x90] sm:$0xff]
  %v1745 = vld [vmem:[#allocation3 + $0x98] sm:$0xff]
  %v1746 = vld [vmem:[#allocation3 + $0xa0] sm:$0xff]
  %v1747 = vld [vmem:[#allocation3 + $0xa8] sm:$0xff]
  %v1748 = vld [vmem:[#allocation3 + $0xb0] sm:$0xff]
  %v1749 = vld [vmem:[#allocation3 + $0xb8] sm:$0xff]
  %v1750 = vld [vmem:[#allocation3 + $0xc0] sm:$0xff]
  %v1751 = vld [vmem:[#allocation3 + $0xc8] sm:$0xff]
  %v1752 = vld [vmem:[#allocation3 + $0xd0] sm:$0xff]
  %v1753 = vld [vmem:[#allocation3 + $0xd8] sm:$0xff]
  %v1754 = vld [vmem:[#allocation3 + $0xe0] sm:$0xff]
  %v1755 = vld [vmem:[#allocation3 + $0xe8] sm:$0xff]
  %v1756 = vld [vmem:[#allocation3 + $0xf0] sm:$0xff]
  %v1757 = vld [vmem:[#allocation3 + $0xf8] sm:$0xff]
  %v1758 = vld [vmem:[#allocation3 + $0x100] sm:$0xff]
  %v1759 = vld [vmem:[#allocation3 + $0x108] sm:$0xff]
  %v1760 = vld [vmem:[#allocation3 + $0x110] sm:$0xff]
  %v1761 = vld [vmem:[#allocation3 + $0x118] sm:$0xff]
  %v1762 = vld [vmem:[#allocation3 + $0x120] sm:$0xff]
  %v1763 = vld [vmem:[#allocation3 + $0x128] sm:$0xff]
  %v1764 = vld [vmem:[#allocation3 + $0x130] sm:$0xff]
  %v1765 = vld [vmem:[#allocation3 + $0x138] sm:$0xff]
  %v1766 = vld [vmem:[#allocation3 + $0x140] sm:$0xff]
  %v1767 = vld [vmem:[#allocation3 + $0x148] sm:$0xff]
  %v1768 = vld [vmem:[#allocation3 + $0x150] sm:$0xff]
  %v1769 = vld [vmem:[#allocation3 + $0x158] sm:$0xff]
  %v1770 = vld [vmem:[#allocation3 + $0x160] sm:$0xff]
  %v1771 = vld [vmem:[#allocation3 + $0x168] sm:$0xff]
  %v1772 = vld [vmem:[#allocation3 + $0x170] sm:$0xff]
  %v1773 = vld [vmem:[#allocation3 + $0x178] sm:$0xff]
  %v1774 = vld [vmem:[#allocation3 + $0x180] sm:$0xff]
  %v1775 = vld [vmem:[#allocation3 + $0x188] sm:$0xff]
  %v1776 = vld [vmem:[#allocation3 + $0x190] sm:$0xff]
  %v1777 = vld [vmem:[#allocation3 + $0x198] sm:$0xff]
  %v1778 = vld [vmem:[#allocation3 + $0x1a0] sm:$0xff]
  %v1779 = vld [vmem:[#allocation3 + $0x1a8] sm:$0xff]
  %v1780 = vld [vmem:[#allocation3 + $0x1b0] sm:$0xff]
  %v1781 = vld [vmem:[#allocation3 + $0x1b8] sm:$0xff]
  %v1782 = vld [vmem:[#allocation3 + $0x1c0] sm:$0xff]
  %v1783 = vld [vmem:[#allocation3 + $0x1c8] sm:$0xff]
  %v1784 = vld [vmem:[#allocation3 + $0x1d0] sm:$0xff]
  %v1785 = vld [vmem:[#allocation3 + $0x1d8] sm:$0xff]
  %v1786 = vld [vmem:[#allocation3 + $0x1e0] sm:$0xff]
  %v1787 = vld [vmem:[#allocation3 + $0x1e8] sm:$0xff]
  %v1788 = vld [vmem:[#allocation3 + $0x1f0] sm:$0xff]
  %v1789 = vld [vmem:[#allocation3 + $0x1f8] sm:$0xff]
  %1790 = vmatprep.subr.mxu0 %v1787
  %1791 = vmatpush1.msra.mxu0 %v1786
  %1792 = vmatprep.subr.mxu0 %v1783
  %1793 = vmatpush1.msra.mxu0 %v1782
  %1794 = vmatprep.subr.mxu0 %v1779
  %1795 = vmatpush1.msra.mxu0 %v1778
  %1796 = vmatprep.subr.mxu0 %v1775
  %1797 = vmatpush1.msra.mxu0 %v1774
  %1798 = vmatprep.subr.mxu0 %v1771
  %1799 = vmatpush1.msra.mxu0 %v1770
  %1800 = vmatprep.subr.mxu0 %v1767
  %1801 = vmatpush1.msra.mxu0 %v1766
  %1802 = vmatprep.subr.mxu0 %v1763
  %1803 = vmatpush1.msra.mxu0 %v1762
  %1804 = vmatprep.subr.mxu0 %v1759
  %1805 = vmatpush1.msra.mxu0 %v1758
  %1806 = vmatprep.subr.mxu0 %v1755
  %1807 = vmatpush1.msra.mxu0 %v1754
  %1808 = vmatprep.subr.mxu0 %v1751
  %1809 = vmatpush1.msra.mxu0 %v1750
  %1810 = vmatprep.subr.mxu0 %v1747
  %1811 = vmatpush1.msra.mxu0 %v1746
  %1812 = vmatprep.subr.mxu0 %v1743
  %1813 = vmatpush1.msra.mxu0 %v1742
  %1814 = vmatprep.subr.mxu0 %v1739
  %1815 = vmatpush1.msra.mxu0 %v1738
  %1816 = vmatprep.subr.mxu0 %v1735
  %1817 = vmatpush1.msra.mxu0 %v1734
  %1818 = vmatprep.subr.mxu0 %v1731
  %1819 = vmatpush1.msra.mxu0 %v1730
  %1820 = vmatprep.subr.mxu0 %v1727
  %1821 = vmatpush1.msra.mxu0 %v1726
  %1822 = vmatprep.subr.mxu0 0.0
  %1823 = vmatpush2.msra.mxu0 0.0
  %1824 = vmatprep.subr.mxu0 0.0
  %1825 = vmatpush2.msra.mxu0 0.0
  %1826 = vmatprep.subr.mxu0 0.0
  %1827 = vmatpush2.msra.mxu0 0.0
  %1828 = vmatprep.subr.mxu0 0.0
  %1829 = vmatpush2.msra.mxu0 0.0
  %1830 = vmatprep.subr.mxu0 0.0
  %1831 = vmatpush2.msra.mxu0 0.0
  %1832 = vmatprep.subr.mxu0 0.0
  %1833 = vmatpush2.msra.mxu0 0.0
  %1834 = vmatprep.subr.mxu0 0.0
  %1835 = vmatpush2.msra.mxu0 0.0
  %1836 = vmatprep.subr.mxu0 0.0
  %1837 = vmatpush2.msra.mxu0 0.0
  %1838 = vmatprep.subr.mxu0 0.0
  %1839 = vmatpush2.msra.mxu0 0.0
  %1840 = vmatprep.subr.mxu0 0.0
  %1841 = vmatpush2.msra.mxu0 0.0
  %1842 = vmatprep.subr.mxu0 0.0
  %1843 = vmatpush2.msra.mxu0 0.0
  %1844 = vmatprep.subr.mxu0 0.0
  %1845 = vmatpush2.msra.mxu0 0.0
  %1846 = vmatprep.subr.mxu0 0.0
  %1847 = vmatpush2.msra.mxu0 0.0
  %1848 = vmatprep.subr.mxu0 0.0
  %1849 = vmatpush2.msra.mxu0 0.0
  %1850 = vmatprep.subr.mxu0 0.0
  %1851 = vmatpush2.msra.mxu0 0.0
  %1852 = vmatprep.subr.mxu0 0.0
  %1853 = vmatpush2.msra.mxu0 0.0
  %1854 = vmatprep.mubr.f32.mxu0 0.0
  %1855 = vmatmul.mubr.f32.gmra.mxu0 %v1720
  %v1856 = vpop.f32.mrf.mxu0
  %v1857 = vadd.f32 0.0, %v1856
  %v1858 = vpop.f32.mrf.mxu0
  %v1859 = vadd.f32 0.0, %v1858
  %1860 = vdwg.mxu0
  %1861 = vmatprep.subr.mxu0 %v1789
  %1862 = vmatpush1.msra.mxu0 %v1788
  %1863 = vmatprep.subr.mxu0 %v1785
  %1864 = vmatpush1.msra.mxu0 %v1784
  %1865 = vmatprep.subr.mxu0 %v1781
  %1866 = vmatpush1.msra.mxu0 %v1780
  %1867 = vmatprep.subr.mxu0 %v1777
  %1868 = vmatpush1.msra.mxu0 %v1776
  %1869 = vmatprep.subr.mxu0 %v1773
  %1870 = vmatpush1.msra.mxu0 %v1772
  %1871 = vmatprep.subr.mxu0 %v1769
  %1872 = vmatpush1.msra.mxu0 %v1768
  %1873 = vmatprep.subr.mxu0 %v1765
  %1874 = vmatpush1.msra.mxu0 %v1764
  %1875 = vmatprep.subr.mxu0 %v1761
  %1876 = vmatpush1.msra.mxu0 %v1760
  %1877 = vmatprep.subr.mxu0 %v1757
  %1878 = vmatpush1.msra.mxu0 %v1756
  %1879 = vmatprep.subr.mxu0 %v1753
  %1880 = vmatpush1.msra.mxu0 %v1752
  %1881 = vmatprep.subr.mxu0 %v1749
  %1882 = vmatpush1.msra.mxu0 %v1748
  %1883 = vmatprep.subr.mxu0 %v1745
  %1884 = vmatpush1.msra.mxu0 %v1744
  %1885 = vmatprep.subr.mxu0 %v1741
  %1886 = vmatpush1.msra.mxu0 %v1740
  %1887 = vmatprep.subr.mxu0 %v1737
  %1888 = vmatpush1.msra.mxu0 %v1736
  %1889 = vmatprep.subr.mxu0 %v1733
  %1890 = vmatpush1.msra.mxu0 %v1732
  %1891 = vmatprep.subr.mxu0 %v1729
  %1892 = vmatpush1.msra.mxu0 %v1728
  %1893 = vmatprep.subr.mxu0 0.0
  %1894 = vmatpush2.msra.mxu0 0.0
  %1895 = vmatprep.subr.mxu0 0.0
  %1896 = vmatpush2.msra.mxu0 0.0
  %1897 = vmatprep.subr.mxu0 0.0
  %1898 = vmatpush2.msra.mxu0 0.0
  %1899 = vmatprep.subr.mxu0 0.0
  %1900 = vmatpush2.msra.mxu0 0.0
  %1901 = vmatprep.subr.mxu0 0.0
  %1902 = vmatpush2.msra.mxu0 0.0
  %1903 = vmatprep.subr.mxu0 0.0
  %1904 = vmatpush2.msra.mxu0 0.0
  %1905 = vmatprep.subr.mxu0 0.0
  %1906 = vmatpush2.msra.mxu0 0.0
  %1907 = vmatprep.subr.mxu0 0.0
  %1908 = vmatpush2.msra.mxu0 0.0
  %1909 = vmatprep.subr.mxu0 0.0
  %1910 = vmatpush2.msra.mxu0 0.0
  %1911 = vmatprep.subr.mxu0 0.0
  %1912 = vmatpush2.msra.mxu0 0.0
  %1913 = vmatprep.subr.mxu0 0.0
  %1914 = vmatpush2.msra.mxu0 0.0
  %1915 = vmatprep.subr.mxu0 0.0
  %1916 = vmatpush2.msra.mxu0 0.0
  %1917 = vmatprep.subr.mxu0 0.0
  %1918 = vmatpush2.msra.mxu0 0.0
  %1919 = vmatprep.subr.mxu0 0.0
  %1920 = vmatpush2.msra.mxu0 0.0
  %1921 = vmatprep.subr.mxu0 0.0
  %1922 = vmatpush2.msra.mxu0 0.0
  %1923 = vmatprep.subr.mxu0 0.0
  %1924 = vmatpush2.msra.mxu0 0.0
  %1925 = vmatprep.mubr.f32.mxu0 0.0
  %1926 = vmatmul.mubr.f32.gmra.mxu0 %v1720
  %v1927 = vpop.f32.mrf.mxu0
  %v1928 = vadd.f32 0.0, %v1927
  %v1929 = vpop.f32.mrf.mxu0
  %v1930 = vadd.f32 0.0, %v1929
  %1931 = vdwg.mxu0
  %v1932 = vadd.f32 %v1722, %v1857
  %v1933 = vadd.f32 %v1723, %v1859
  %v1934 = vadd.f32 %v1724, %v1928
  %v1935 = vadd.f32 %v1725, %v1930
  %v1936 = vxor.u32 %v1932, 2147483648
  %v1937 = vmul.f32 %v1936, 1.442695
  %v1938 = vpow.pop %v1937
  %v1939 = vadd.f32 %v1938, 1.0
  %v1940 = vrcp.pop %v1939
  %v1941 = vmul.f32 1.0, %v1940
  %v1942 = vxor.u32 %v1933, 2147483648
  %v1943 = vmul.f32 %v1942, 1.442695
  %v1944 = vpow.pop %v1943
  %v1945 = vadd.f32 %v1944, 1.0
  %v1946 = vrcp.pop %v1945
  %v1947 = vmul.f32 1.0, %v1946
  %v1948 = vtanh.pop %v1934
  %v1949 = vxor.u32 %v1935, 2147483648
  %v1950 = vmul.f32 %v1949, 1.442695
  %v1951 = vpow.pop %v1950
  %v1952 = vadd.f32 %v1951, 1.0
  %v1953 = vrcp.pop %v1952
  %v1954 = vmul.f32 1.0, %v1953
  %v1955 = vmul.f32 %v1947, %v1718
  %v1956 = vmul.f32 %v1941, %v1948
  %v1957 = vadd.f32 %v1955, %v1956
  %v1958 = vtanh.pop %v1957
  %v1959 = vmul.f32 %v1954, %v1958
  %1960 = vst [vmem:[%s4 + $0x20] sm:$0xff] %v1959
  %v1961 = vld [vmem:[#allocation5 + $0xa0] sm:$0xff]
  %v1962 = vld [vmem:[#allocation5 + $0xa8] sm:$0xff]
  %v1963 = vld [vmem:[#allocation5 + $0xb0] sm:$0xff]
  %v1964 = vld [vmem:[#allocation5 + $0xb8] sm:$0xff]
  %v1965 = vld [vmem:[#allocation3] sm:$0xff]
  %v1966 = vld [vmem:[#allocation3 + $0x8] sm:$0xff]
  %v1967 = vld [vmem:[#allocation3 + $0x10] sm:$0xff]
  %v1968 = vld [vmem:[#allocation3 + $0x18] sm:$0xff]
  %v1969 = vld [vmem:[#allocation3 + $0x20] sm:$0xff]
  %v1970 = vld [vmem:[#allocation3 + $0x28] sm:$0xff]
  %v1971 = vld [vmem:[#allocation3 + $0x30] sm:$0xff]
  %v1972 = vld [vmem:[#allocation3 + $0x38] sm:$0xff]
  %v1973 = vld [vmem:[#allocation3 + $0x40] sm:$0xff]
  %v1974 = vld [vmem:[#allocation3 + $0x48] sm:$0xff]
  %v1975 = vld [vmem:[#allocation3 + $0x50] sm:$0xff]
  %v1976 = vld [vmem:[#allocation3 + $0x58] sm:$0xff]
  %v1977 = vld [vmem:[#allocation3 + $0x60] sm:$0xff]
  %v1978 = vld [vmem:[#allocation3 + $0x68] sm:$0xff]
  %v1979 = vld [vmem:[#allocation3 + $0x70] sm:$0xff]
  %v1980 = vld [vmem:[#allocation3 + $0x78] sm:$0xff]
  %v1981 = vld [vmem:[#allocation3 + $0x80] sm:$0xff]
  %v1982 = vld [vmem:[#allocation3 + $0x88] sm:$0xff]
  %v1983 = vld [vmem:[#allocation3 + $0x90] sm:$0xff]
  %v1984 = vld [vmem:[#allocation3 + $0x98] sm:$0xff]
  %v1985 = vld [vmem:[#allocation3 + $0xa0] sm:$0xff]
  %v1986 = vld [vmem:[#allocation3 + $0xa8] sm:$0xff]
  %v1987 = vld [vmem:[#allocation3 + $0xb0] sm:$0xff]
  %v1988 = vld [vmem:[#allocation3 + $0xb8] sm:$0xff]
  %v1989 = vld [vmem:[#allocation3 + $0xc0] sm:$0xff]
  %v1990 = vld [vmem:[#allocation3 + $0xc8] sm:$0xff]
  %v1991 = vld [vmem:[#allocation3 + $0xd0] sm:$0xff]
  %v1992 = vld [vmem:[#allocation3 + $0xd8] sm:$0xff]
  %v1993 = vld [vmem:[#allocation3 + $0xe0] sm:$0xff]
  %v1994 = vld [vmem:[#allocation3 + $0xe8] sm:$0xff]
  %v1995 = vld [vmem:[#allocation3 + $0xf0] sm:$0xff]
  %v1996 = vld [vmem:[#allocation3 + $0xf8] sm:$0xff]
  %v1997 = vld [vmem:[#allocation3 + $0x100] sm:$0xff]
  %v1998 = vld [vmem:[#allocation3 + $0x108] sm:$0xff]
  %v1999 = vld [vmem:[#allocation3 + $0x110] sm:$0xff]
  %v2000 = vld [vmem:[#allocation3 + $0x118] sm:$0xff]
  %v2001 = vld [vmem:[#allocation3 + $0x120] sm:$0xff]
  %v2002 = vld [vmem:[#allocation3 + $0x128] sm:$0xff]
  %v2003 = vld [vmem:[#allocation3 + $0x130] sm:$0xff]
  %v2004 = vld [vmem:[#allocation3 + $0x138] sm:$0xff]
  %v2005 = vld [vmem:[#allocation3 + $0x140] sm:$0xff]
  %v2006 = vld [vmem:[#allocation3 + $0x148] sm:$0xff]
  %v2007 = vld [vmem:[#allocation3 + $0x150] sm:$0xff]
  %v2008 = vld [vmem:[#allocation3 + $0x158] sm:$0xff]
  %v2009 = vld [vmem:[#allocation3 + $0x160] sm:$0xff]
  %v2010 = vld [vmem:[#allocation3 + $0x168] sm:$0xff]
  %v2011 = vld [vmem:[#allocation3 + $0x170] sm:$0xff]
  %v2012 = vld [vmem:[#allocation3 + $0x178] sm:$0xff]
  %v2013 = vld [vmem:[#allocation3 + $0x180] sm:$0xff]
  %v2014 = vld [vmem:[#allocation3 + $0x188] sm:$0xff]
  %v2015 = vld [vmem:[#allocation3 + $0x190] sm:$0xff]
  %v2016 = vld [vmem:[#allocation3 + $0x198] sm:$0xff]
  %v2017 = vld [vmem:[#allocation3 + $0x1a0] sm:$0xff]
  %v2018 = vld [vmem:[#allocation3 + $0x1a8] sm:$0xff]
  %v2019 = vld [vmem:[#allocation3 + $0x1b0] sm:$0xff]
  %v2020 = vld [vmem:[#allocation3 + $0x1b8] sm:$0xff]
  %v2021 = vld [vmem:[#allocation3 + $0x1c0] sm:$0xff]
  %v2022 = vld [vmem:[#allocation3 + $0x1c8] sm:$0xff]
  %v2023 = vld [vmem:[#allocation3 + $0x1d0] sm:$0xff]
  %v2024 = vld [vmem:[#allocation3 + $0x1d8] sm:$0xff]
  %v2025 = vld [vmem:[#allocation3 + $0x1e0] sm:$0xff]
  %v2026 = vld [vmem:[#allocation3 + $0x1e8] sm:$0xff]
  %v2027 = vld [vmem:[#allocation3 + $0x1f0] sm:$0xff]
  %v2028 = vld [vmem:[#allocation3 + $0x1f8] sm:$0xff]
  %2029 = vmatprep.subr.mxu0 %v2026
  %2030 = vmatpush1.msra.mxu0 %v2025
  %2031 = vmatprep.subr.mxu0 %v2022
  %2032 = vmatpush1.msra.mxu0 %v2021
  %2033 = vmatprep.subr.mxu0 %v2018
  %2034 = vmatpush1.msra.mxu0 %v2017
  %2035 = vmatprep.subr.mxu0 %v2014
  %2036 = vmatpush1.msra.mxu0 %v2013
  %2037 = vmatprep.subr.mxu0 %v2010
  %2038 = vmatpush1.msra.mxu0 %v2009
  %2039 = vmatprep.subr.mxu0 %v2006
  %2040 = vmatpush1.msra.mxu0 %v2005
  %2041 = vmatprep.subr.mxu0 %v2002
  %2042 = vmatpush1.msra.mxu0 %v2001
  %2043 = vmatprep.subr.mxu0 %v1998
  %2044 = vmatpush1.msra.mxu0 %v1997
  %2045 = vmatprep.subr.mxu0 %v1994
  %2046 = vmatpush1.msra.mxu0 %v1993
  %2047 = vmatprep.subr.mxu0 %v1990
  %2048 = vmatpush1.msra.mxu0 %v1989
  %2049 = vmatprep.subr.mxu0 %v1986
  %2050 = vmatpush1.msra.mxu0 %v1985
  %2051 = vmatprep.subr.mxu0 %v1982
  %2052 = vmatpush1.msra.mxu0 %v1981
  %2053 = vmatprep.subr.mxu0 %v1978
  %2054 = vmatpush1.msra.mxu0 %v1977
  %2055 = vmatprep.subr.mxu0 %v1974
  %2056 = vmatpush1.msra.mxu0 %v1973
  %2057 = vmatprep.subr.mxu0 %v1970
  %2058 = vmatpush1.msra.mxu0 %v1969
  %2059 = vmatprep.subr.mxu0 %v1966
  %2060 = vmatpush1.msra.mxu0 %v1965
  %2061 = vmatprep.subr.mxu0 0.0
  %2062 = vmatpush2.msra.mxu0 0.0
  %2063 = vmatprep.subr.mxu0 0.0
  %2064 = vmatpush2.msra.mxu0 0.0
  %2065 = vmatprep.subr.mxu0 0.0
  %2066 = vmatpush2.msra.mxu0 0.0
  %2067 = vmatprep.subr.mxu0 0.0
  %2068 = vmatpush2.msra.mxu0 0.0
  %2069 = vmatprep.subr.mxu0 0.0
  %2070 = vmatpush2.msra.mxu0 0.0
  %2071 = vmatprep.subr.mxu0 0.0
  %2072 = vmatpush2.msra.mxu0 0.0
  %2073 = vmatprep.subr.mxu0 0.0
  %2074 = vmatpush2.msra.mxu0 0.0
  %2075 = vmatprep.subr.mxu0 0.0
  %2076 = vmatpush2.msra.mxu0 0.0
  %2077 = vmatprep.subr.mxu0 0.0
  %2078 = vmatpush2.msra.mxu0 0.0
  %2079 = vmatprep.subr.mxu0 0.0
  %2080 = vmatpush2.msra.mxu0 0.0
  %2081 = vmatprep.subr.mxu0 0.0
  %2082 = vmatpush2.msra.mxu0 0.0
  %2083 = vmatprep.subr.mxu0 0.0
  %2084 = vmatpush2.msra.mxu0 0.0
  %2085 = vmatprep.subr.mxu0 0.0
  %2086 = vmatpush2.msra.mxu0 0.0
  %2087 = vmatprep.subr.mxu0 0.0
  %2088 = vmatpush2.msra.mxu0 0.0
  %2089 = vmatprep.subr.mxu0 0.0
  %2090 = vmatpush2.msra.mxu0 0.0
  %2091 = vmatprep.subr.mxu0 0.0
  %2092 = vmatpush2.msra.mxu0 0.0
  %2093 = vmatprep.mubr.f32.mxu0 0.0
  %2094 = vmatmul.mubr.f32.gmra.mxu0 %v1959
  %v2095 = vpop.f32.mrf.mxu0
  %v2096 = vadd.f32 0.0, %v2095
  %v2097 = vpop.f32.mrf.mxu0
  %v2098 = vadd.f32 0.0, %v2097
  %2099 = vdwg.mxu0
  %2100 = vmatprep.subr.mxu0 %v2028
  %2101 = vmatpush1.msra.mxu0 %v2027
  %2102 = vmatprep.subr.mxu0 %v2024
  %2103 = vmatpush1.msra.mxu0 %v2023
  %2104 = vmatprep.subr.mxu0 %v2020
  %2105 = vmatpush1.msra.mxu0 %v2019
  %2106 = vmatprep.subr.mxu0 %v2016
  %2107 = vmatpush1.msra.mxu0 %v2015
  %2108 = vmatprep.subr.mxu0 %v2012
  %2109 = vmatpush1.msra.mxu0 %v2011
  %2110 = vmatprep.subr.mxu0 %v2008
  %2111 = vmatpush1.msra.mxu0 %v2007
  %2112 = vmatprep.subr.mxu0 %v2004
  %2113 = vmatpush1.msra.mxu0 %v2003
  %2114 = vmatprep.subr.mxu0 %v2000
  %2115 = vmatpush1.msra.mxu0 %v1999
  %2116 = vmatprep.subr.mxu0 %v1996
  %2117 = vmatpush1.msra.mxu0 %v1995
  %2118 = vmatprep.subr.mxu0 %v1992
  %2119 = vmatpush1.msra.mxu0 %v1991
  %2120 = vmatprep.subr.mxu0 %v1988
  %2121 = vmatpush1.msra.mxu0 %v1987
  %2122 = vmatprep.subr.mxu0 %v1984
  %2123 = vmatpush1.msra.mxu0 %v1983
  %2124 = vmatprep.subr.mxu0 %v1980
  %2125 = vmatpush1.msra.mxu0 %v1979
  %2126 = vmatprep.subr.mxu0 %v1976
  %2127 = vmatpush1.msra.mxu0 %v1975
  %2128 = vmatprep.subr.mxu0 %v1972
  %2129 = vmatpush1.msra.mxu0 %v1971
  %2130 = vmatprep.subr.mxu0 %v1968
  %2131 = vmatpush1.msra.mxu0 %v1967
  %2132 = vmatprep.subr.mxu0 0.0
  %2133 = vmatpush2.msra.mxu0 0.0
  %2134 = vmatprep.subr.mxu0 0.0
  %2135 = vmatpush2.msra.mxu0 0.0
  %2136 = vmatprep.subr.mxu0 0.0
  %2137 = vmatpush2.msra.mxu0 0.0
  %2138 = vmatprep.subr.mxu0 0.0
  %2139 = vmatpush2.msra.mxu0 0.0
  %2140 = vmatprep.subr.mxu0 0.0
  %2141 = vmatpush2.msra.mxu0 0.0
  %2142 = vmatprep.subr.mxu0 0.0
  %2143 = vmatpush2.msra.mxu0 0.0
  %2144 = vmatprep.subr.mxu0 0.0
  %2145 = vmatpush2.msra.mxu0 0.0
  %2146 = vmatprep.subr.mxu0 0.0
  %2147 = vmatpush2.msra.mxu0 0.0
  %2148 = vmatprep.subr.mxu0 0.0
  %2149 = vmatpush2.msra.mxu0 0.0
  %2150 = vmatprep.subr.mxu0 0.0
  %2151 = vmatpush2.msra.mxu0 0.0
  %2152 = vmatprep.subr.mxu0 0.0
  %2153 = vmatpush2.msra.mxu0 0.0
  %2154 = vmatprep.subr.mxu0 0.0
  %2155 = vmatpush2.msra.mxu0 0.0
  %2156 = vmatprep.subr.mxu0 0.0
  %2157 = vmatpush2.msra.mxu0 0.0
  %2158 = vmatprep.subr.mxu0 0.0
  %2159 = vmatpush2.msra.mxu0 0.0
  %2160 = vmatprep.subr.mxu0 0.0
  %2161 = vmatpush2.msra.mxu0 0.0
  %2162 = vmatprep.subr.mxu0 0.0
  %2163 = vmatpush2.msra.mxu0 0.0
  %2164 = vmatprep.mubr.f32.mxu0 0.0
  %2165 = vmatmul.mubr.f32.gmra.mxu0 %v1959
  %v2166 = vpop.f32.mrf.mxu0
  %v2167 = vadd.f32 0.0, %v2166
  %v2168 = vpop.f32.mrf.mxu0
  %v2169 = vadd.f32 0.0, %v2168
  %2170 = vdwg.mxu0
  %v2171 = vadd.f32 %v1961, %v2096
  %v2172 = vadd.f32 %v1962, %v2098
  %v2173 = vadd.f32 %v1963, %v2167
  %v2174 = vadd.f32 %v1964, %v2169
  %v2175 = vxor.u32 %v2171, 2147483648
  %v2176 = vmul.f32 %v2175, 1.442695
  %v2177 = vpow.pop %v2176
  %v2178 = vadd.f32 %v2177, 1.0
  %v2179 = vrcp.pop %v2178
  %v2180 = vmul.f32 1.0, %v2179
  %v2181 = vxor.u32 %v2172, 2147483648
  %v2182 = vmul.f32 %v2181, 1.442695
  %v2183 = vpow.pop %v2182
  %v2184 = vadd.f32 %v2183, 1.0
  %v2185 = vrcp.pop %v2184
  %v2186 = vmul.f32 1.0, %v2185
  %v2187 = vtanh.pop %v2173
  %v2188 = vxor.u32 %v2174, 2147483648
  %v2189 = vmul.f32 %v2188, 1.442695
  %v2190 = vpow.pop %v2189
  %v2191 = vadd.f32 %v2190, 1.0
  %v2192 = vrcp.pop %v2191
  %v2193 = vmul.f32 1.0, %v2192
  %v2194 = vmul.f32 %v2186, %v1957
  %v2195 = vmul.f32 %v2180, %v2187
  %v2196 = vadd.f32 %v2194, %v2195
  %v2197 = vtanh.pop %v2196
  %v2198 = vmul.f32 %v2193, %v2197
  %2199 = vst [vmem:[%s4 + $0x28] sm:$0xff] %v2198
  %v2200 = vld [vmem:[#allocation5 + $0xc0] sm:$0xff]
  %v2201 = vld [vmem:[#allocation5 + $0xc8] sm:$0xff]
  %v2202 = vld [vmem:[#allocation5 + $0xd0] sm:$0xff]
  %v2203 = vld [vmem:[#allocation5 + $0xd8] sm:$0xff]
  %v2204 = vld [vmem:[#allocation3] sm:$0xff]
  %v2205 = vld [vmem:[#allocation3 + $0x8] sm:$0xff]
  %v2206 = vld [vmem:[#allocation3 + $0x10] sm:$0xff]
  %v2207 = vld [vmem:[#allocation3 + $0x18] sm:$0xff]
  %v2208 = vld [vmem:[#allocation3 + $0x20] sm:$0xff]
  %v2209 = vld [vmem:[#allocation3 + $0x28] sm:$0xff]
  %v2210 = vld [vmem:[#allocation3 + $0x30] sm:$0xff]
  %v2211 = vld [vmem:[#allocation3 + $0x38] sm:$0xff]
  %v2212 = vld [vmem:[#allocation3 + $0x40] sm:$0xff]
  %v2213 = vld [vmem:[#allocation3 + $0x48] sm:$0xff]
  %v2214 = vld [vmem:[#allocation3 + $0x50] sm:$0xff]
  %v2215 = vld [vmem:[#allocation3 + $0x58] sm:$0xff]
  %v2216 = vld [vmem:[#allocation3 + $0x60] sm:$0xff]
  %v2217 = vld [vmem:[#allocation3 + $0x68] sm:$0xff]
  %v2218 = vld [vmem:[#allocation3 + $0x70] sm:$0xff]
  %v2219 = vld [vmem:[#allocation3 + $0x78] sm:$0xff]
  %v2220 = vld [vmem:[#allocation3 + $0x80] sm:$0xff]
  %v2221 = vld [vmem:[#allocation3 + $0x88] sm:$0xff]
  %v2222 = vld [vmem:[#allocation3 + $0x90] sm:$0xff]
  %v2223 = vld [vmem:[#allocation3 + $0x98] sm:$0xff]
  %v2224 = vld [vmem:[#allocation3 + $0xa0] sm:$0xff]
  %v2225 = vld [vmem:[#allocation3 + $0xa8] sm:$0xff]
  %v2226 = vld [vmem:[#allocation3 + $0xb0] sm:$0xff]
  %v2227 = vld [vmem:[#allocation3 + $0xb8] sm:$0xff]
  %v2228 = vld [vmem:[#allocation3 + $0xc0] sm:$0xff]
  %v2229 = vld [vmem:[#allocation3 + $0xc8] sm:$0xff]
  %v2230 = vld [vmem:[#allocation3 + $0xd0] sm:$0xff]
  %v2231 = vld [vmem:[#allocation3 + $0xd8] sm:$0xff]
  %v2232 = vld [vmem:[#allocation3 + $0xe0] sm:$0xff]
  %v2233 = vld [vmem:[#allocation3 + $0xe8] sm:$0xff]
  %v2234 = vld [vmem:[#allocation3 + $0xf0] sm:$0xff]
  %v2235 = vld [vmem:[#allocation3 + $0xf8] sm:$0xff]
  %v2236 = vld [vmem:[#allocation3 + $0x100] sm:$0xff]
  %v2237 = vld [vmem:[#allocation3 + $0x108] sm:$0xff]
  %v2238 = vld [vmem:[#allocation3 + $0x110] sm:$0xff]
  %v2239 = vld [vmem:[#allocation3 + $0x118] sm:$0xff]
  %v2240 = vld [vmem:[#allocation3 + $0x120] sm:$0xff]
  %v2241 = vld [vmem:[#allocation3 + $0x128] sm:$0xff]
  %v2242 = vld [vmem:[#allocation3 + $0x130] sm:$0xff]
  %v2243 = vld [vmem:[#allocation3 + $0x138] sm:$0xff]
  %v2244 = vld [vmem:[#allocation3 + $0x140] sm:$0xff]
  %v2245 = vld [vmem:[#allocation3 + $0x148] sm:$0xff]
  %v2246 = vld [vmem:[#allocation3 + $0x150] sm:$0xff]
  %v2247 = vld [vmem:[#allocation3 + $0x158] sm:$0xff]
  %v2248 = vld [vmem:[#allocation3 + $0x160] sm:$0xff]
  %v2249 = vld [vmem:[#allocation3 + $0x168] sm:$0xff]
  %v2250 = vld [vmem:[#allocation3 + $0x170] sm:$0xff]
  %v2251 = vld [vmem:[#allocation3 + $0x178] sm:$0xff]
  %v2252 = vld [vmem:[#allocation3 + $0x180] sm:$0xff]
  %v2253 = vld [vmem:[#allocation3 + $0x188] sm:$0xff]
  %v2254 = vld [vmem:[#allocation3 + $0x190] sm:$0xff]
  %v2255 = vld [vmem:[#allocation3 + $0x198] sm:$0xff]
  %v2256 = vld [vmem:[#allocation3 + $0x1a0] sm:$0xff]
  %v2257 = vld [vmem:[#allocation3 + $0x1a8] sm:$0xff]
  %v2258 = vld [vmem:[#allocation3 + $0x1b0] sm:$0xff]
  %v2259 = vld [vmem:[#allocation3 + $0x1b8] sm:$0xff]
  %v2260 = vld [vmem:[#allocation3 + $0x1c0] sm:$0xff]
  %v2261 = vld [vmem:[#allocation3 + $0x1c8] sm:$0xff]
  %v2262 = vld [vmem:[#allocation3 + $0x1d0] sm:$0xff]
  %v2263 = vld [vmem:[#allocation3 + $0x1d8] sm:$0xff]
  %v2264 = vld [vmem:[#allocation3 + $0x1e0] sm:$0xff]
  %v2265 = vld [vmem:[#allocation3 + $0x1e8] sm:$0xff]
  %v2266 = vld [vmem:[#allocation3 + $0x1f0] sm:$0xff]
  %v2267 = vld [vmem:[#allocation3 + $0x1f8] sm:$0xff]
  %2268 = vmatprep.subr.mxu0 %v2265
  %2269 = vmatpush1.msra.mxu0 %v2264
  %2270 = vmatprep.subr.mxu0 %v2261
  %2271 = vmatpush1.msra.mxu0 %v2260
  %2272 = vmatprep.subr.mxu0 %v2257
  %2273 = vmatpush1.msra.mxu0 %v2256
  %2274 = vmatprep.subr.mxu0 %v2253
  %2275 = vmatpush1.msra.mxu0 %v2252
  %2276 = vmatprep.subr.mxu0 %v2249
  %2277 = vmatpush1.msra.mxu0 %v2248
  %2278 = vmatprep.subr.mxu0 %v2245
  %2279 = vmatpush1.msra.mxu0 %v2244
  %2280 = vmatprep.subr.mxu0 %v2241
  %2281 = vmatpush1.msra.mxu0 %v2240
  %2282 = vmatprep.subr.mxu0 %v2237
  %2283 = vmatpush1.msra.mxu0 %v2236
  %2284 = vmatprep.subr.mxu0 %v2233
  %2285 = vmatpush1.msra.mxu0 %v2232
  %2286 = vmatprep.subr.mxu0 %v2229
  %2287 = vmatpush1.msra.mxu0 %v2228
  %2288 = vmatprep.subr.mxu0 %v2225
  %2289 = vmatpush1.msra.mxu0 %v2224
  %2290 = vmatprep.subr.mxu0 %v2221
  %2291 = vmatpush1.msra.mxu0 %v2220
  %2292 = vmatprep.subr.mxu0 %v2217
  %2293 = vmatpush1.msra.mxu0 %v2216
  %2294 = vmatprep.subr.mxu0 %v2213
  %2295 = vmatpush1.msra.mxu0 %v2212
  %2296 = vmatprep.subr.mxu0 %v2209
  %2297 = vmatpush1.msra.mxu0 %v2208
  %2298 = vmatprep.subr.mxu0 %v2205
  %2299 = vmatpush1.msra.mxu0 %v2204
  %2300 = vmatprep.subr.mxu0 0.0
  %2301 = vmatpush2.msra.mxu0 0.0
  %2302 = vmatprep.subr.mxu0 0.0
  %2303 = vmatpush2.msra.mxu0 0.0
  %2304 = vmatprep.subr.mxu0 0.0
  %2305 = vmatpush2.msra.mxu0 0.0
  %2306 = vmatprep.subr.mxu0 0.0
  %2307 = vmatpush2.msra.mxu0 0.0
  %2308 = vmatprep.subr.mxu0 0.0
  %2309 = vmatpush2.msra.mxu0 0.0
  %2310 = vmatprep.subr.mxu0 0.0
  %2311 = vmatpush2.msra.mxu0 0.0
  %2312 = vmatprep.subr.mxu0 0.0
  %2313 = vmatpush2.msra.mxu0 0.0
  %2314 = vmatprep.subr.mxu0 0.0
  %2315 = vmatpush2.msra.mxu0 0.0
  %2316 = vmatprep.subr.mxu0 0.0
  %2317 = vmatpush2.msra.mxu0 0.0
  %2318 = vmatprep.subr.mxu0 0.0
  %2319 = vmatpush2.msra.mxu0 0.0
  %2320 = vmatprep.subr.mxu0 0.0
  %2321 = vmatpush2.msra.mxu0 0.0
  %2322 = vmatprep.subr.mxu0 0.0
  %2323 = vmatpush2.msra.mxu0 0.0
  %2324 = vmatprep.subr.mxu0 0.0
  %2325 = vmatpush2.msra.mxu0 0.0
  %2326 = vmatprep.subr.mxu0 0.0
  %2327 = vmatpush2.msra.mxu0 0.0
  %2328 = vmatprep.subr.mxu0 0.0
  %2329 = vmatpush2.msra.mxu0 0.0
  %2330 = vmatprep.subr.mxu0 0.0
  %2331 = vmatpush2.msra.mxu0 0.0
  %2332 = vmatprep.mubr.f32.mxu0 0.0
  %2333 = vmatmul.mubr.f32.gmra.mxu0 %v2198
  %v2334 = vpop.f32.mrf.mxu0
  %v2335 = vadd.f32 0.0, %v2334
  %v2336 = vpop.f32.mrf.mxu0
  %v2337 = vadd.f32 0.0, %v2336
  %2338 = vdwg.mxu0
  %2339 = vmatprep.subr.mxu0 %v2267
  %2340 = vmatpush1.msra.mxu0 %v2266
  %2341 = vmatprep.subr.mxu0 %v2263
  %2342 = vmatpush1.msra.mxu0 %v2262
  %2343 = vmatprep.subr.mxu0 %v2259
  %2344 = vmatpush1.msra.mxu0 %v2258
  %2345 = vmatprep.subr.mxu0 %v2255
  %2346 = vmatpush1.msra.mxu0 %v2254
  %2347 = vmatprep.subr.mxu0 %v2251
  %2348 = vmatpush1.msra.mxu0 %v2250
  %2349 = vmatprep.subr.mxu0 %v2247
  %2350 = vmatpush1.msra.mxu0 %v2246
  %2351 = vmatprep.subr.mxu0 %v2243
  %2352 = vmatpush1.msra.mxu0 %v2242
  %2353 = vmatprep.subr.mxu0 %v2239
  %2354 = vmatpush1.msra.mxu0 %v2238
  %2355 = vmatprep.subr.mxu0 %v2235
  %2356 = vmatpush1.msra.mxu0 %v2234
  %2357 = vmatprep.subr.mxu0 %v2231
  %2358 = vmatpush1.msra.mxu0 %v2230
  %2359 = vmatprep.subr.mxu0 %v2227
  %2360 = vmatpush1.msra.mxu0 %v2226
  %2361 = vmatprep.subr.mxu0 %v2223
  %2362 = vmatpush1.msra.mxu0 %v2222
  %2363 = vmatprep.subr.mxu0 %v2219
  %2364 = vmatpush1.msra.mxu0 %v2218
  %2365 = vmatprep.subr.mxu0 %v2215
  %2366 = vmatpush1.msra.mxu0 %v2214
  %2367 = vmatprep.subr.mxu0 %v2211
  %2368 = vmatpush1.msra.mxu0 %v2210
  %2369 = vmatprep.subr.mxu0 %v2207
  %2370 = vmatpush1.msra.mxu0 %v2206
  %2371 = vmatprep.subr.mxu0 0.0
  %2372 = vmatpush2.msra.mxu0 0.0
  %2373 = vmatprep.subr.mxu0 0.0
  %2374 = vmatpush2.msra.mxu0 0.0
  %2375 = vmatprep.subr.mxu0 0.0
  %2376 = vmatpush2.msra.mxu0 0.0
  %2377 = vmatprep.subr.mxu0 0.0
  %2378 = vmatpush2.msra.mxu0 0.0
  %2379 = vmatprep.subr.mxu0 0.0
  %2380 = vmatpush2.msra.mxu0 0.0
  %2381 = vmatprep.subr.mxu0 0.0
  %2382 = vmatpush2.msra.mxu0 0.0
  %2383 = vmatprep.subr.mxu0 0.0
  %2384 = vmatpush2.msra.mxu0 0.0
  %2385 = vmatprep.subr.mxu0 0.0
  %2386 = vmatpush2.msra.mxu0 0.0
  %2387 = vmatprep.subr.mxu0 0.0
  %2388 = vmatpush2.msra.mxu0 0.0
  %2389 = vmatprep.subr.mxu0 0.0
  %2390 = vmatpush2.msra.mxu0 0.0
  %2391 = vmatprep.subr.mxu0 0.0
  %2392 = vmatpush2.msra.mxu0 0.0
  %2393 = vmatprep.subr.mxu0 0.0
  %2394 = vmatpush2.msra.mxu0 0.0
  %2395 = vmatprep.subr.mxu0 0.0
  %2396 = vmatpush2.msra.mxu0 0.0
  %2397 = vmatprep.subr.mxu0 0.0
  %2398 = vmatpush2.msra.mxu0 0.0
  %2399 = vmatprep.subr.mxu0 0.0
  %2400 = vmatpush2.msra.mxu0 0.0
  %2401 = vmatprep.subr.mxu0 0.0
  %2402 = vmatpush2.msra.mxu0 0.0
  %2403 = vmatprep.mubr.f32.mxu0 0.0
  %2404 = vmatmul.mubr.f32.gmra.mxu0 %v2198
  %v2405 = vpop.f32.mrf.mxu0
  %v2406 = vadd.f32 0.0, %v2405
  %v2407 = vpop.f32.mrf.mxu0
  %v2408 = vadd.f32 0.0, %v2407
  %2409 = vdwg.mxu0
  %v2410 = vadd.f32 %v2200, %v2335
  %v2411 = vadd.f32 %v2201, %v2337
  %v2412 = vadd.f32 %v2202, %v2406
  %v2413 = vadd.f32 %v2203, %v2408
  %v2414 = vxor.u32 %v2410, 2147483648
  %v2415 = vmul.f32 %v2414, 1.442695
  %v2416 = vpow.pop %v2415
  %v2417 = vadd.f32 %v2416, 1.0
  %v2418 = vrcp.pop %v2417
  %v2419 = vmul.f32 1.0, %v2418
  %v2420 = vxor.u32 %v2411, 2147483648
  %v2421 = vmul.f32 %v2420, 1.442695
  %v2422 = vpow.pop %v2421
  %v2423 = vadd.f32 %v2422, 1.0
  %v2424 = vrcp.pop %v2423
  %v2425 = vmul.f32 1.0, %v2424
  %v2426 = vtanh.pop %v2412
  %v2427 = vxor.u32 %v2413, 2147483648
  %v2428 = vmul.f32 %v2427, 1.442695
  %v2429 = vpow.pop %v2428
  %v2430 = vadd.f32 %v2429, 1.0
  %v2431 = vrcp.pop %v2430
  %v2432 = vmul.f32 1.0, %v2431
  %v2433 = vmul.f32 %v2425, %v2196
  %v2434 = vmul.f32 %v2419, %v2426
  %v2435 = vadd.f32 %v2433, %v2434
  %v2436 = vtanh.pop %v2435
  %v2437 = vmul.f32 %v2432, %v2436
  %2438 = vst [vmem:[%s4 + $0x30] sm:$0xff] %v2437
  %v2439 = vld [vmem:[#allocation5 + $0xe0] sm:$0xff]
  %v2440 = vld [vmem:[#allocation5 + $0xe8] sm:$0xff]
  %v2441 = vld [vmem:[#allocation5 + $0xf0] sm:$0xff]
  %v2442 = vld [vmem:[#allocation5 + $0xf8] sm:$0xff]
  %v2443 = vld [vmem:[#allocation3] sm:$0xff]
  %v2444 = vld [vmem:[#allocation3 + $0x8] sm:$0xff]
  %v2445 = vld [vmem:[#allocation3 + $0x10] sm:$0xff]
  %v2446 = vld [vmem:[#allocation3 + $0x18] sm:$0xff]
  %v2447 = vld [vmem:[#allocation3 + $0x20] sm:$0xff]
  %v2448 = vld [vmem:[#allocation3 + $0x28] sm:$0xff]
  %v2449 = vld [vmem:[#allocation3 + $0x30] sm:$0xff]
  %v2450 = vld [vmem:[#allocation3 + $0x38] sm:$0xff]
  %v2451 = vld [vmem:[#allocation3 + $0x40] sm:$0xff]
  %v2452 = vld [vmem:[#allocation3 + $0x48] sm:$0xff]
  %v2453 = vld [vmem:[#allocation3 + $0x50] sm:$0xff]
  %v2454 = vld [vmem:[#allocation3 + $0x58] sm:$0xff]
  %v2455 = vld [vmem:[#allocation3 + $0x60] sm:$0xff]
  %v2456 = vld [vmem:[#allocation3 + $0x68] sm:$0xff]
  %v2457 = vld [vmem:[#allocation3 + $0x70] sm:$0xff]
  %v2458 = vld [vmem:[#allocation3 + $0x78] sm:$0xff]
  %v2459 = vld [vmem:[#allocation3 + $0x80] sm:$0xff]
  %v2460 = vld [vmem:[#allocation3 + $0x88] sm:$0xff]
  %v2461 = vld [vmem:[#allocation3 + $0x90] sm:$0xff]
  %v2462 = vld [vmem:[#allocation3 + $0x98] sm:$0xff]
  %v2463 = vld [vmem:[#allocation3 + $0xa0] sm:$0xff]
  %v2464 = vld [vmem:[#allocation3 + $0xa8] sm:$0xff]
  %v2465 = vld [vmem:[#allocation3 + $0xb0] sm:$0xff]
  %v2466 = vld [vmem:[#allocation3 + $0xb8] sm:$0xff]
  %v2467 = vld [vmem:[#allocation3 + $0xc0] sm:$0xff]
  %v2468 = vld [vmem:[#allocation3 + $0xc8] sm:$0xff]
  %v2469 = vld [vmem:[#allocation3 + $0xd0] sm:$0xff]
  %v2470 = vld [vmem:[#allocation3 + $0xd8] sm:$0xff]
  %v2471 = vld [vmem:[#allocation3 + $0xe0] sm:$0xff]
  %v2472 = vld [vmem:[#allocation3 + $0xe8] sm:$0xff]
  %v2473 = vld [vmem:[#allocation3 + $0xf0] sm:$0xff]
  %v2474 = vld [vmem:[#allocation3 + $0xf8] sm:$0xff]
  %v2475 = vld [vmem:[#allocation3 + $0x100] sm:$0xff]
  %v2476 = vld [vmem:[#allocation3 + $0x108] sm:$0xff]
  %v2477 = vld [vmem:[#allocation3 + $0x110] sm:$0xff]
  %v2478 = vld [vmem:[#allocation3 + $0x118] sm:$0xff]
  %v2479 = vld [vmem:[#allocation3 + $0x120] sm:$0xff]
  %v2480 = vld [vmem:[#allocation3 + $0x128] sm:$0xff]
  %v2481 = vld [vmem:[#allocation3 + $0x130] sm:$0xff]
  %v2482 = vld [vmem:[#allocation3 + $0x138] sm:$0xff]
  %v2483 = vld [vmem:[#allocation3 + $0x140] sm:$0xff]
  %v2484 = vld [vmem:[#allocation3 + $0x148] sm:$0xff]
  %v2485 = vld [vmem:[#allocation3 + $0x150] sm:$0xff]
  %v2486 = vld [vmem:[#allocation3 + $0x158] sm:$0xff]
  %v2487 = vld [vmem:[#allocation3 + $0x160] sm:$0xff]
  %v2488 = vld [vmem:[#allocation3 + $0x168] sm:$0xff]
  %v2489 = vld [vmem:[#allocation3 + $0x170] sm:$0xff]
  %v2490 = vld [vmem:[#allocation3 + $0x178] sm:$0xff]
  %v2491 = vld [vmem:[#allocation3 + $0x180] sm:$0xff]
  %v2492 = vld [vmem:[#allocation3 + $0x188] sm:$0xff]
  %v2493 = vld [vmem:[#allocation3 + $0x190] sm:$0xff]
  %v2494 = vld [vmem:[#allocation3 + $0x198] sm:$0xff]
  %v2495 = vld [vmem:[#allocation3 + $0x1a0] sm:$0xff]
  %v2496 = vld [vmem:[#allocation3 + $0x1a8] sm:$0xff]
  %v2497 = vld [vmem:[#allocation3 + $0x1b0] sm:$0xff]
  %v2498 = vld [vmem:[#allocation3 + $0x1b8] sm:$0xff]
  %v2499 = vld [vmem:[#allocation3 + $0x1c0] sm:$0xff]
  %v2500 = vld [vmem:[#allocation3 + $0x1c8] sm:$0xff]
  %v2501 = vld [vmem:[#allocation3 + $0x1d0] sm:$0xff]
  %v2502 = vld [vmem:[#allocation3 + $0x1d8] sm:$0xff]
  %v2503 = vld [vmem:[#allocation3 + $0x1e0] sm:$0xff]
  %v2504 = vld [vmem:[#allocation3 + $0x1e8] sm:$0xff]
  %v2505 = vld [vmem:[#allocation3 + $0x1f0] sm:$0xff]
  %v2506 = vld [vmem:[#allocation3 + $0x1f8] sm:$0xff]
  %2507 = vmatprep.subr.mxu0 %v2504
  %2508 = vmatpush1.msra.mxu0 %v2503
  %2509 = vmatprep.subr.mxu0 %v2500
  %2510 = vmatpush1.msra.mxu0 %v2499
  %2511 = vmatprep.subr.mxu0 %v2496
  %2512 = vmatpush1.msra.mxu0 %v2495
  %2513 = vmatprep.subr.mxu0 %v2492
  %2514 = vmatpush1.msra.mxu0 %v2491
  %2515 = vmatprep.subr.mxu0 %v2488
  %2516 = vmatpush1.msra.mxu0 %v2487
  %2517 = vmatprep.subr.mxu0 %v2484
  %2518 = vmatpush1.msra.mxu0 %v2483
  %2519 = vmatprep.subr.mxu0 %v2480
  %2520 = vmatpush1.msra.mxu0 %v2479
  %2521 = vmatprep.subr.mxu0 %v2476
  %2522 = vmatpush1.msra.mxu0 %v2475
  %2523 = vmatprep.subr.mxu0 %v2472
  %2524 = vmatpush1.msra.mxu0 %v2471
  %2525 = vmatprep.subr.mxu0 %v2468
  %2526 = vmatpush1.msra.mxu0 %v2467
  %2527 = vmatprep.subr.mxu0 %v2464
  %2528 = vmatpush1.msra.mxu0 %v2463
  %2529 = vmatprep.subr.mxu0 %v2460
  %2530 = vmatpush1.msra.mxu0 %v2459
  %2531 = vmatprep.subr.mxu0 %v2456
  %2532 = vmatpush1.msra.mxu0 %v2455
  %2533 = vmatprep.subr.mxu0 %v2452
  %2534 = vmatpush1.msra.mxu0 %v2451
  %2535 = vmatprep.subr.mxu0 %v2448
  %2536 = vmatpush1.msra.mxu0 %v2447
  %2537 = vmatprep.subr.mxu0 %v2444
  %2538 = vmatpush1.msra.mxu0 %v2443
  %2539 = vmatprep.subr.mxu0 0.0
  %2540 = vmatpush2.msra.mxu0 0.0
  %2541 = vmatprep.subr.mxu0 0.0
  %2542 = vmatpush2.msra.mxu0 0.0
  %2543 = vmatprep.subr.mxu0 0.0
  %2544 = vmatpush2.msra.mxu0 0.0
  %2545 = vmatprep.subr.mxu0 0.0
  %2546 = vmatpush2.msra.mxu0 0.0
  %2547 = vmatprep.subr.mxu0 0.0
  %2548 = vmatpush2.msra.mxu0 0.0
  %2549 = vmatprep.subr.mxu0 0.0
  %2550 = vmatpush2.msra.mxu0 0.0
  %2551 = vmatprep.subr.mxu0 0.0
  %2552 = vmatpush2.msra.mxu0 0.0
  %2553 = vmatprep.subr.mxu0 0.0
  %2554 = vmatpush2.msra.mxu0 0.0
  %2555 = vmatprep.subr.mxu0 0.0
  %2556 = vmatpush2.msra.mxu0 0.0
  %2557 = vmatprep.subr.mxu0 0.0
  %2558 = vmatpush2.msra.mxu0 0.0
  %2559 = vmatprep.subr.mxu0 0.0
  %2560 = vmatpush2.msra.mxu0 0.0
  %2561 = vmatprep.subr.mxu0 0.0
  %2562 = vmatpush2.msra.mxu0 0.0
  %2563 = vmatprep.subr.mxu0 0.0
  %2564 = vmatpush2.msra.mxu0 0.0
  %2565 = vmatprep.subr.mxu0 0.0
  %2566 = vmatpush2.msra.mxu0 0.0
  %2567 = vmatprep.subr.mxu0 0.0
  %2568 = vmatpush2.msra.mxu0 0.0
  %2569 = vmatprep.subr.mxu0 0.0
  %2570 = vmatpush2.msra.mxu0 0.0
  %2571 = vmatprep.mubr.f32.mxu0 0.0
  %2572 = vmatmul.mubr.f32.gmra.mxu0 %v2437
  %v2573 = vpop.f32.mrf.mxu0
  %v2574 = vadd.f32 0.0, %v2573
  %v2575 = vpop.f32.mrf.mxu0
  %v2576 = vadd.f32 0.0, %v2575
  %2577 = vdwg.mxu0
  %2578 = vmatprep.subr.mxu0 %v2506
  %2579 = vmatpush1.msra.mxu0 %v2505
  %2580 = vmatprep.subr.mxu0 %v2502
  %2581 = vmatpush1.msra.mxu0 %v2501
  %2582 = vmatprep.subr.mxu0 %v2498
  %2583 = vmatpush1.msra.mxu0 %v2497
  %2584 = vmatprep.subr.mxu0 %v2494
  %2585 = vmatpush1.msra.mxu0 %v2493
  %2586 = vmatprep.subr.mxu0 %v2490
  %2587 = vmatpush1.msra.mxu0 %v2489
  %2588 = vmatprep.subr.mxu0 %v2486
  %2589 = vmatpush1.msra.mxu0 %v2485
  %2590 = vmatprep.subr.mxu0 %v2482
  %2591 = vmatpush1.msra.mxu0 %v2481
  %2592 = vmatprep.subr.mxu0 %v2478
  %2593 = vmatpush1.msra.mxu0 %v2477
  %2594 = vmatprep.subr.mxu0 %v2474
  %2595 = vmatpush1.msra.mxu0 %v2473
  %2596 = vmatprep.subr.mxu0 %v2470
  %2597 = vmatpush1.msra.mxu0 %v2469
  %2598 = vmatprep.subr.mxu0 %v2466
  %2599 = vmatpush1.msra.mxu0 %v2465
  %2600 = vmatprep.subr.mxu0 %v2462
  %2601 = vmatpush1.msra.mxu0 %v2461
  %2602 = vmatprep.subr.mxu0 %v2458
  %2603 = vmatpush1.msra.mxu0 %v2457
  %2604 = vmatprep.subr.mxu0 %v2454
  %2605 = vmatpush1.msra.mxu0 %v2453
  %2606 = vmatprep.subr.mxu0 %v2450
  %2607 = vmatpush1.msra.mxu0 %v2449
  %2608 = vmatprep.subr.mxu0 %v2446
  %2609 = vmatpush1.msra.mxu0 %v2445
  %2610 = vmatprep.subr.mxu0 0.0
  %2611 = vmatpush2.msra.mxu0 0.0
  %2612 = vmatprep.subr.mxu0 0.0
  %2613 = vmatpush2.msra.mxu0 0.0
  %2614 = vmatprep.subr.mxu0 0.0
  %2615 = vmatpush2.msra.mxu0 0.0
  %2616 = vmatprep.subr.mxu0 0.0
  %2617 = vmatpush2.msra.mxu0 0.0
  %2618 = vmatprep.subr.mxu0 0.0
  %2619 = vmatpush2.msra.mxu0 0.0
  %2620 = vmatprep.subr.mxu0 0.0
  %2621 = vmatpush2.msra.mxu0 0.0
  %2622 = vmatprep.subr.mxu0 0.0
  %2623 = vmatpush2.msra.mxu0 0.0
  %2624 = vmatprep.subr.mxu0 0.0
  %2625 = vmatpush2.msra.mxu0 0.0
  %2626 = vmatprep.subr.mxu0 0.0
  %2627 = vmatpush2.msra.mxu0 0.0
  %2628 = vmatprep.subr.mxu0 0.0
  %2629 = vmatpush2.msra.mxu0 0.0
  %2630 = vmatprep.subr.mxu0 0.0
  %2631 = vmatpush2.msra.mxu0 0.0
  %2632 = vmatprep.subr.mxu0 0.0
  %2633 = vmatpush2.msra.mxu0 0.0
  %2634 = vmatprep.subr.mxu0 0.0
  %2635 = vmatpush2.msra.mxu0 0.0
  %2636 = vmatprep.subr.mxu0 0.0
  %2637 = vmatpush2.msra.mxu0 0.0
  %2638 = vmatprep.subr.mxu0 0.0
  %2639 = vmatpush2.msra.mxu0 0.0
  %2640 = vmatprep.subr.mxu0 0.0
  %2641 = vmatpush2.msra.mxu0 0.0
  %2642 = vmatprep.mubr.f32.mxu0 0.0
  %2643 = vmatmul.mubr.f32.gmra.mxu0 %v2437
  %v2644 = vpop.f32.mrf.mxu0
  %v2645 = vadd.f32 0.0, %v2644
  %v2646 = vpop.f32.mrf.mxu0
  %v2647 = vadd.f32 0.0, %v2646
  %2648 = vdwg.mxu0
  %v2649 = vadd.f32 %v2439, %v2574
  %v2650 = vadd.f32 %v2440, %v2576
  %v2651 = vadd.f32 %v2441, %v2645
  %v2652 = vadd.f32 %v2442, %v2647
  %v2653 = vxor.u32 %v2649, 2147483648
  %v2654 = vmul.f32 %v2653, 1.442695
  %v2655 = vpow.pop %v2654
  %v2656 = vadd.f32 %v2655, 1.0
  %v2657 = vrcp.pop %v2656
  %v2658 = vmul.f32 1.0, %v2657
  %v2659 = vxor.u32 %v2650, 2147483648
  %v2660 = vmul.f32 %v2659, 1.442695
  %v2661 = vpow.pop %v2660
  %v2662 = vadd.f32 %v2661, 1.0
  %v2663 = vrcp.pop %v2662
  %v2664 = vmul.f32 1.0, %v2663
  %v2665 = vtanh.pop %v2651
  %v2666 = vxor.u32 %v2652, 2147483648
  %v2667 = vmul.f32 %v2666, 1.442695
  %v2668 = vpow.pop %v2667
  %v2669 = vadd.f32 %v2668, 1.0
  %v2670 = vrcp.pop %v2669
  %v2671 = vmul.f32 1.0, %v2670
  %v2672 = vmul.f32 %v2664, %v2435
  %v2673 = vmul.f32 %v2658, %v2665
  %v2674 = vadd.f32 %v2672, %v2673
  %v2675 = vtanh.pop %v2674
  %v2676 = vmul.f32 %v2671, %v2675
  %2677 = vst [vmem:[%s4 + $0x38] sm:$0xff] %v2676
  %2678 = vst [vmem:[#allocation6] sm:$0xff] %v2676
  %2679 = vst [vmem:[#allocation7] sm:$0xff] %v2674
  // Predicated region
  $region108: #{embedder_forward.4} parent=0 // pred_check
    _
  $region109: #{embedder_forward.4} parent=0 // pred_check_branch
    %2681 = sbr.rel (0) target = $region111
  $region110: #{embedder_forward.4} parent=0 // pred_region
    _
  $region111: #{embedder_forward.4} parent=0 // pred_fallthru
    _
  // Predicated region
  $region112: #{embedder_forward.4} parent=0 // pred_check
    _
  $region113: #{embedder_forward.4} parent=0 // pred_check_branch
    %2683 = sbr.rel (0) target = $region115
  $region114: #{embedder_forward.4} parent=0 // pred_region
    _
  $region115: #{embedder_forward.4} parent=0 // pred_fallthru
    _
  %2684 = vsyncmov [#allocation8]
  %s2685 = vpop.sfrf %2684
  %p2686 = scmp.eq.s32.totalorder %s2685, 0
  %p2687 = pneg %p2686
  %2689 = shalt.err (%p2687)
  %s2690 = scalar_lea.sflag [#allocation8], 1
  %2691 = vsyncmov %s2690
  %s2692 = vpop.sfrf %2691
  %p2693 = scmp.eq.s32.totalorder %s2692, 0
  %p2694 = pneg %p2693
  %2696 = shalt.err (%p2694)
  %s2697 = scalar_lea.sflag [#allocation8], 2
  %2698 = vsyncmov %s2697
  %s2699 = vpop.sfrf %2698
  %p2700 = scmp.eq.s32.totalorder %s2699, 0
  %p2701 = pneg %p2700
  %2703 = shalt.err (%p2701)

// kernel: embedder_forward.3
$region0: #{embedder_forward.3}
  #allocation0 [shape = 'u32[]', space=smem, size = 0x4, offset = 0x4, fixed_abs, tag = 'smem constant byte address 0x4 - core index']
  #allocation1 [shape = 'u32[144,128]{1,0:T(1,128)}', space=vmem, size = 0x12000, scoped, tag = 'internal scratch']
  #allocation2 [shape = 'f32[4,512]{1,0:T(4,128)}', space=vmem, size = 0x2000, scoped, tag = 'scratch operand']
  #allocation3 [shape = 'f32[128,512]{1,0:T(8,128)}', space=vmem, size = 0x40000, scoped, tag = 'scratch operand']
  #allocation4 [shape = 'f32[1,512]{1,0:T(1,128)}', space=vmem, size = 0x800, scoped, tag = 'scratch operand']
  #allocation5 [shape = 'f32[64,512]{1,0:T(8,128)}', space=vmem, size = 0x20000, scoped, tag = 'scratch operand']
  #allocation6 [shape = 'f32[8,128]{1,0:T(8,128)}', space=vmem, size = 0x1000, scoped, tag = 'scratch operand']
  #allocation7 [shape = 'f32[8,128]{1,0:T(8,128)}', space=vmem, size = 0x1000, scoped, tag = 'scratch operand']
  #allocation8 [shape = 's32[3]{0}', space=sflag, size = 0xc, scoped, tag = 'scratch operand']
  #allocation9 [shape = 's32[]', space=sflag, size = 0x4, offset = 0, fixed_abs, tag = 'sflag constant byte address 0x0 - dummy sync flag']
  #allocation10 [shape = 's32[]', space=sflag, size = 0x4, offset = 0, fixed_abs, tag = 'sflag constant byte address 0x0 - dummy sync flag']
  #allocation11 [shape = 's32[]', space=sflag, size = 0x4, offset = 0, fixed_abs, tag = 'sflag constant byte address 0x0 - dummy sync flag']
  %s0 = inlined_call_operand.vmem [shape: f32[64,4], index: 0, kind: input, shape index: {}]
  %s1 = inlined_call_operand.vmem [shape: f32[4,512], index: 1, kind: input, shape index: {}]
  %s2 = inlined_call_operand.vmem [shape: f32[128,512], index: 2, kind: input, shape index: {}]
  %s3 = inlined_call_operand.vmem [shape: f32[1,512], index: 3, kind: input, shape index: {}]
  %s4 = inlined_call_operand.vmem [shape: f32[64,128], index: 4, kind: output, shape index: {}]
  %s5 = sld [smem:[#allocation0]]
  $region116: #{embedder_forward.3} parent=0
    _
  %s7 = ssub.s32 1, %s5
  %s8 = scalar_select 0, %s7, %s5
  // Predicated region
  $region2: #{embedder_forward.3} parent=0 // pred_check
    _
  $region3: #{embedder_forward.3} parent=0 // pred_check_branch
    %10 = sbr.rel (0) target = $region5
  $region4: #{embedder_forward.3} parent=0 // pred_region
    _
  $region5: #{embedder_forward.3} parent=0 // pred_fallthru
    _
  %p11 = scmp.eq.s32.totalorder 0, 0
  // Predicated region
  $region6: #{embedder_forward.3} parent=0 // pred_check
    %p12 = pneg %p11
  $region7: #{embedder_forward.3} parent=0 // pred_check_branch
    %14 = sbr.rel (%p12) target = $region9
  $region8: #{embedder_forward.3} parent=0 // pred_region
    %p16 = scmp.lt.u32.totalorder 16, 8
    %p17 = pneg %p16
    // Predicated region
    $region10: #{embedder_forward.3} parent=8 // pred_check
      _
    $region11: #{embedder_forward.3} parent=8 // pred_check_branch
      %19 = sbr.rel (%p16) target = $region13
    $region12: #{embedder_forward.3} parent=8 // pred_region
      %s35 = sand.u32 16, 7
      %p36 = scmp.eq.s32.totalorder %s35, 0
      // Predicated region
      $region25: #{embedder_forward.3} parent=12 // pred_check
        %p37 = pneg %p36
      $region26: #{embedder_forward.3} parent=12 // pred_check_branch
        %39 = sbr.rel (%p37) target = $region28
      $region27: #{embedder_forward.3} parent=12 // pred_region
        loop: start=0, step=1, limit=1
        $region29: #{embedder_forward.3} parent=27 // loop_pre_header
          _
        $region30: #{embedder_forward.3} parent=27 // loop_header
          %s41 = sphi 0, %s45
          %p42 = scmp.ge.s32.totalorder %s41, 1
          %s46 = sphi %s1, %s1
          %s47 = sphi [#allocation2], [#allocation2]
        $region31: #{embedder_forward.3} parent=27 // loop_header_branch
          %44 = sbr.rel (%p42) target = $region35
        $region32: #{embedder_forward.3} parent=27 // loop_body
          %v48 = vld [vmem:[%s46] sm:$0xff]
          %49 = vst [vmem:[%s47] sm:$0xff] %v48
          %v50 = vld [vmem:[%s46 + $0x8] sm:$0xff]
          %51 = vst [vmem:[%s47 + $0x8] sm:$0xff] %v50
        $region33: #{embedder_forward.3} parent=27 // loop_footer
          %s45 = sadd.s32 1, %s41
        $region34: #{embedder_forward.3} parent=27 // loop_footer_branch
          %40 = sbr.rel target = $region30
        $region35: #{embedder_forward.3} parent=27 // loop_exit
          _
      $region28: #{embedder_forward.3} parent=12 // pred_fallthru
        _
      %p52 = pneg %p36
      // Predicated region
      $region36: #{embedder_forward.3} parent=12 // pred_check
        _
      $region37: #{embedder_forward.3} parent=12 // pred_check_branch
        %54 = sbr.rel (%p36) target = $region39
      $region38: #{embedder_forward.3} parent=12 // pred_region
        %s55 = sand.u32 16, 7
      $region39: #{embedder_forward.3} parent=12 // pred_fallthru
        _
    $region13: #{embedder_forward.3} parent=8 // pred_fallthru
      _
    // Predicated region
    $region14: #{embedder_forward.3} parent=8 // pred_check
      %p20 = pneg %p16
    $region15: #{embedder_forward.3} parent=8 // pred_check_branch
      %22 = sbr.rel (%p20) target = $region17
    $region16: #{embedder_forward.3} parent=8 // pred_region
      %s23 = sshll.u32 1, 16
      %s24 = ssub.s32 %s23, 1
      loop: start=0, step=1, limit=1
      $region18: #{embedder_forward.3} parent=16 // loop_pre_header
        _
      $region19: #{embedder_forward.3} parent=16 // loop_header
        %s26 = sphi 0, %s30
        %p27 = scmp.ge.s32.totalorder %s26, 1
        %s31 = sphi %s1, %s1
        %s32 = sphi [#allocation2], [#allocation2]
      $region20: #{embedder_forward.3} parent=16 // loop_header_branch
        %29 = sbr.rel (%p27) target = $region24
      $region21: #{embedder_forward.3} parent=16 // loop_body
        %v33 = vld [vmem:[%s31] sm:%s24]
        %34 = vst [vmem:[%s32] sm:%s24] %v33
      $region22: #{embedder_forward.3} parent=16 // loop_footer
        %s30 = sadd.s32 1, %s26
      $region23: #{embedder_forward.3} parent=16 // loop_footer_branch
        %25 = sbr.rel target = $region19
      $region24: #{embedder_forward.3} parent=16 // loop_exit
        _
    $region17: #{embedder_forward.3} parent=8 // pred_fallthru
      _
    // Predicated region
    $region40: #{embedder_forward.3} parent=8 // pred_check
      _
    $region41: #{embedder_forward.3} parent=8 // pred_check_branch
      %58 = sbr.rel (0) target = $region43
    $region42: #{embedder_forward.3} parent=8 // pred_region
      %59 = vsyncadd [#allocation8], 256
    $region43: #{embedder_forward.3} parent=8 // pred_fallthru
      _
    %s60 = scalar_lea.sflag [#allocation8], 1
    %p62 = scmp.lt.u32.totalorder 512, 8
    %p63 = pneg %p62
    // Predicated region
    $region44: #{embedder_forward.3} parent=8 // pred_check
      _
    $region45: #{embedder_forward.3} parent=8 // pred_check_branch
      %65 = sbr.rel (%p62) target = $region47
    $region46: #{embedder_forward.3} parent=8 // pred_region
      %s81 = sand.u32 512, 7
      %p82 = scmp.eq.s32.totalorder %s81, 0
      // Predicated region
      $region59: #{embedder_forward.3} parent=46 // pred_check
        %p83 = pneg %p82
      $region60: #{embedder_forward.3} parent=46 // pred_check_branch
        %85 = sbr.rel (%p83) target = $region62
      $region61: #{embedder_forward.3} parent=46 // pred_region
        loop: start=0, step=1, limit=1
        $region63: #{embedder_forward.3} parent=61 // loop_pre_header
          _
        $region64: #{embedder_forward.3} parent=61 // loop_header
          %s87 = sphi 0, %s91
          %p88 = scmp.ge.s32.totalorder %s87, 1
          %s92 = sphi %s2, %s2
          %s93 = sphi [#allocation3], [#allocation3]
        $region65: #{embedder_forward.3} parent=61 // loop_header_branch
          %90 = sbr.rel (%p88) target = $region69
        $region66: #{embedder_forward.3} parent=61 // loop_body
          %v94 = vld [vmem:[%s92] sm:$0xff]
          %95 = vst [vmem:[%s93] sm:$0xff] %v94
          %v96 = vld [vmem:[%s92 + $0x8] sm:$0xff]
          %97 = vst [vmem:[%s93 + $0x8] sm:$0xff] %v96
          %v98 = vld [vmem:[%s92 + $0x10] sm:$0xff]
          %99 = vst [vmem:[%s93 + $0x10] sm:$0xff] %v98
          %v100 = vld [vmem:[%s92 + $0x18] sm:$0xff]
          %101 = vst [vmem:[%s93 + $0x18] sm:$0xff] %v100
          %v102 = vld [vmem:[%s92 + $0x20] sm:$0xff]
          %103 = vst [vmem:[%s93 + $0x20] sm:$0xff] %v102
          %v104 = vld [vmem:[%s92 + $0x28] sm:$0xff]
          %105 = vst [vmem:[%s93 + $0x28] sm:$0xff] %v104
          %v106 = vld [vmem:[%s92 + $0x30] sm:$0xff]
          %107 = vst [vmem:[%s93 + $0x30] sm:$0xff] %v106
          %v108 = vld [vmem:[%s92 + $0x38] sm:$0xff]
          %109 = vst [vmem:[%s93 + $0x38] sm:$0xff] %v108
          %v110 = vld [vmem:[%s92 + $0x40] sm:$0xff]
          %111 = vst [vmem:[%s93 + $0x40] sm:$0xff] %v110
          %v112 = vld [vmem:[%s92 + $0x48] sm:$0xff]
          %113 = vst [vmem:[%s93 + $0x48] sm:$0xff] %v112
          %v114 = vld [vmem:[%s92 + $0x50] sm:$0xff]
          %115 = vst [vmem:[%s93 + $0x50] sm:$0xff] %v114
          %v116 = vld [vmem:[%s92 + $0x58] sm:$0xff]
          %117 = vst [vmem:[%s93 + $0x58] sm:$0xff] %v116
          %v118 = vld [vmem:[%s92 + $0x60] sm:$0xff]
          %119 = vst [vmem:[%s93 + $0x60] sm:$0xff] %v118
          %v120 = vld [vmem:[%s92 + $0x68] sm:$0xff]
          %121 = vst [vmem:[%s93 + $0x68] sm:$0xff] %v120
          %v122 = vld [vmem:[%s92 + $0x70] sm:$0xff]
          %123 = vst [vmem:[%s93 + $0x70] sm:$0xff] %v122
          %v124 = vld [vmem:[%s92 + $0x78] sm:$0xff]
          %125 = vst [vmem:[%s93 + $0x78] sm:$0xff] %v124
          %v126 = vld [vmem:[%s92 + $0x80] sm:$0xff]
          %127 = vst [vmem:[%s93 + $0x80] sm:$0xff] %v126
          %v128 = vld [vmem:[%s92 + $0x88] sm:$0xff]
          %129 = vst [vmem:[%s93 + $0x88] sm:$0xff] %v128
          %v130 = vld [vmem:[%s92 + $0x90] sm:$0xff]
          %131 = vst [vmem:[%s93 + $0x90] sm:$0xff] %v130
          %v132 = vld [vmem:[%s92 + $0x98] sm:$0xff]
          %133 = vst [vmem:[%s93 + $0x98] sm:$0xff] %v132
          %v134 = vld [vmem:[%s92 + $0xa0] sm:$0xff]
          %135 = vst [vmem:[%s93 + $0xa0] sm:$0xff] %v134
          %v136 = vld [vmem:[%s92 + $0xa8] sm:$0xff]
          %137 = vst [vmem:[%s93 + $0xa8] sm:$0xff] %v136
          %v138 = vld [vmem:[%s92 + $0xb0] sm:$0xff]
          %139 = vst [vmem:[%s93 + $0xb0] sm:$0xff] %v138
          %v140 = vld [vmem:[%s92 + $0xb8] sm:$0xff]
          %141 = vst [vmem:[%s93 + $0xb8] sm:$0xff] %v140
          %v142 = vld [vmem:[%s92 + $0xc0] sm:$0xff]
          %143 = vst [vmem:[%s93 + $0xc0] sm:$0xff] %v142
          %v144 = vld [vmem:[%s92 + $0xc8] sm:$0xff]
          %145 = vst [vmem:[%s93 + $0xc8] sm:$0xff] %v144
          %v146 = vld [vmem:[%s92 + $0xd0] sm:$0xff]
          %147 = vst [vmem:[%s93 + $0xd0] sm:$0xff] %v146
          %v148 = vld [vmem:[%s92 + $0xd8] sm:$0xff]
          %149 = vst [vmem:[%s93 + $0xd8] sm:$0xff] %v148
          %v150 = vld [vmem:[%s92 + $0xe0] sm:$0xff]
          %151 = vst [vmem:[%s93 + $0xe0] sm:$0xff] %v150
          %v152 = vld [vmem:[%s92 + $0xe8] sm:$0xff]
          %153 = vst [vmem:[%s93 + $0xe8] sm:$0xff] %v152
          %v154 = vld [vmem:[%s92 + $0xf0] sm:$0xff]
          %155 = vst [vmem:[%s93 + $0xf0] sm:$0xff] %v154
          %v156 = vld [vmem:[%s92 + $0xf8] sm:$0xff]
          %157 = vst [vmem:[%s93 + $0xf8] sm:$0xff] %v156
          %v158 = vld [vmem:[%s92 + $0x100] sm:$0xff]
          %159 = vst [vmem:[%s93 + $0x100] sm:$0xff] %v158
          %v160 = vld [vmem:[%s92 + $0x108] sm:$0xff]
          %161 = vst [vmem:[%s93 + $0x108] sm:$0xff] %v160
          %v162 = vld [vmem:[%s92 + $0x110] sm:$0xff]
          %163 = vst [vmem:[%s93 + $0x110] sm:$0xff] %v162
          %v164 = vld [vmem:[%s92 + $0x118] sm:$0xff]
          %165 = vst [vmem:[%s93 + $0x118] sm:$0xff] %v164
          %v166 = vld [vmem:[%s92 + $0x120] sm:$0xff]
          %167 = vst [vmem:[%s93 + $0x120] sm:$0xff] %v166
          %v168 = vld [vmem:[%s92 + $0x128] sm:$0xff]
          %169 = vst [vmem:[%s93 + $0x128] sm:$0xff] %v168
          %v170 = vld [vmem:[%s92 + $0x130] sm:$0xff]
          %171 = vst [vmem:[%s93 + $0x130] sm:$0xff] %v170
          %v172 = vld [vmem:[%s92 + $0x138] sm:$0xff]
          %173 = vst [vmem:[%s93 + $0x138] sm:$0xff] %v172
          %v174 = vld [vmem:[%s92 + $0x140] sm:$0xff]
          %175 = vst [vmem:[%s93 + $0x140] sm:$0xff] %v174
          %v176 = vld [vmem:[%s92 + $0x148] sm:$0xff]
          %177 = vst [vmem:[%s93 + $0x148] sm:$0xff] %v176
          %v178 = vld [vmem:[%s92 + $0x150] sm:$0xff]
          %179 = vst [vmem:[%s93 + $0x150] sm:$0xff] %v178
          %v180 = vld [vmem:[%s92 + $0x158] sm:$0xff]
          %181 = vst [vmem:[%s93 + $0x158] sm:$0xff] %v180
          %v182 = vld [vmem:[%s92 + $0x160] sm:$0xff]
          %183 = vst [vmem:[%s93 + $0x160] sm:$0xff] %v182
          %v184 = vld [vmem:[%s92 + $0x168] sm:$0xff]
          %185 = vst [vmem:[%s93 + $0x168] sm:$0xff] %v184
          %v186 = vld [vmem:[%s92 + $0x170] sm:$0xff]
          %187 = vst [vmem:[%s93 + $0x170] sm:$0xff] %v186
          %v188 = vld [vmem:[%s92 + $0x178] sm:$0xff]
          %189 = vst [vmem:[%s93 + $0x178] sm:$0xff] %v188
          %v190 = vld [vmem:[%s92 + $0x180] sm:$0xff]
          %191 = vst [vmem:[%s93 + $0x180] sm:$0xff] %v190
          %v192 = vld [vmem:[%s92 + $0x188] sm:$0xff]
          %193 = vst [vmem:[%s93 + $0x188] sm:$0xff] %v192
          %v194 = vld [vmem:[%s92 + $0x190] sm:$0xff]
          %195 = vst [vmem:[%s93 + $0x190] sm:$0xff] %v194
          %v196 = vld [vmem:[%s92 + $0x198] sm:$0xff]
          %197 = vst [vmem:[%s93 + $0x198] sm:$0xff] %v196
          %v198 = vld [vmem:[%s92 + $0x1a0] sm:$0xff]
          %199 = vst [vmem:[%s93 + $0x1a0] sm:$0xff] %v198
          %v200 = vld [vmem:[%s92 + $0x1a8] sm:$0xff]
          %201 = vst [vmem:[%s93 + $0x1a8] sm:$0xff] %v200
          %v202 = vld [vmem:[%s92 + $0x1b0] sm:$0xff]
          %203 = vst [vmem:[%s93 + $0x1b0] sm:$0xff] %v202
          %v204 = vld [vmem:[%s92 + $0x1b8] sm:$0xff]
          %205 = vst [vmem:[%s93 + $0x1b8] sm:$0xff] %v204
          %v206 = vld [vmem:[%s92 + $0x1c0] sm:$0xff]
          %207 = vst [vmem:[%s93 + $0x1c0] sm:$0xff] %v206
          %v208 = vld [vmem:[%s92 + $0x1c8] sm:$0xff]
          %209 = vst [vmem:[%s93 + $0x1c8] sm:$0xff] %v208
          %v210 = vld [vmem:[%s92 + $0x1d0] sm:$0xff]
          %211 = vst [vmem:[%s93 + $0x1d0] sm:$0xff] %v210
          %v212 = vld [vmem:[%s92 + $0x1d8] sm:$0xff]
          %213 = vst [vmem:[%s93 + $0x1d8] sm:$0xff] %v212
          %v214 = vld [vmem:[%s92 + $0x1e0] sm:$0xff]
          %215 = vst [vmem:[%s93 + $0x1e0] sm:$0xff] %v214
          %v216 = vld [vmem:[%s92 + $0x1e8] sm:$0xff]
          %217 = vst [vmem:[%s93 + $0x1e8] sm:$0xff] %v216
          %v218 = vld [vmem:[%s92 + $0x1f0] sm:$0xff]
          %219 = vst [vmem:[%s93 + $0x1f0] sm:$0xff] %v218
          %v220 = vld [vmem:[%s92 + $0x1f8] sm:$0xff]
          %221 = vst [vmem:[%s93 + $0x1f8] sm:$0xff] %v220
        $region67: #{embedder_forward.3} parent=61 // loop_footer
          %s91 = sadd.s32 1, %s87
        $region68: #{embedder_forward.3} parent=61 // loop_footer_branch
          %86 = sbr.rel target = $region64
        $region69: #{embedder_forward.3} parent=61 // loop_exit
          _
      $region62: #{embedder_forward.3} parent=46 // pred_fallthru
        _
      %p222 = pneg %p82
      // Predicated region
      $region70: #{embedder_forward.3} parent=46 // pred_check
        _
      $region71: #{embedder_forward.3} parent=46 // pred_check_branch
        %224 = sbr.rel (%p82) target = $region73
      $region72: #{embedder_forward.3} parent=46 // pred_region
        %s225 = sand.u32 512, 7
      $region73: #{embedder_forward.3} parent=46 // pred_fallthru
        _
    $region47: #{embedder_forward.3} parent=8 // pred_fallthru
      _
    // Predicated region
    $region48: #{embedder_forward.3} parent=8 // pred_check
      %p66 = pneg %p62
    $region49: #{embedder_forward.3} parent=8 // pred_check_branch
      %68 = sbr.rel (%p66) target = $region51
    $region50: #{embedder_forward.3} parent=8 // pred_region
      %s69 = sshll.u32 1, 512
      %s70 = ssub.s32 %s69, 1
      loop: start=0, step=1, limit=1
      $region52: #{embedder_forward.3} parent=50 // loop_pre_header
        _
      $region53: #{embedder_forward.3} parent=50 // loop_header
        %s72 = sphi 0, %s76
        %p73 = scmp.ge.s32.totalorder %s72, 1
        %s77 = sphi %s2, %s2
        %s78 = sphi [#allocation3], [#allocation3]
      $region54: #{embedder_forward.3} parent=50 // loop_header_branch
        %75 = sbr.rel (%p73) target = $region58
      $region55: #{embedder_forward.3} parent=50 // loop_body
        %v79 = vld [vmem:[%s77] sm:%s70]
        %80 = vst [vmem:[%s78] sm:%s70] %v79
      $region56: #{embedder_forward.3} parent=50 // loop_footer
        %s76 = sadd.s32 1, %s72
      $region57: #{embedder_forward.3} parent=50 // loop_footer_branch
        %71 = sbr.rel target = $region53
      $region58: #{embedder_forward.3} parent=50 // loop_exit
        _
    $region51: #{embedder_forward.3} parent=8 // pred_fallthru
      _
    // Predicated region
    $region74: #{embedder_forward.3} parent=8 // pred_check
      _
    $region75: #{embedder_forward.3} parent=8 // pred_check_branch
      %228 = sbr.rel (0) target = $region77
    $region76: #{embedder_forward.3} parent=8 // pred_region
      %229 = vsyncadd %s60, 8192
    $region77: #{embedder_forward.3} parent=8 // pred_fallthru
      _
    %s230 = scalar_lea.sflag [#allocation8], 2
    %p232 = scmp.lt.u32.totalorder 4, 8
    %p233 = pneg %p232
    // Predicated region
    $region78: #{embedder_forward.3} parent=8 // pred_check
      _
    $region79: #{embedder_forward.3} parent=8 // pred_check_branch
      %235 = sbr.rel (%p232) target = $region81
    $region80: #{embedder_forward.3} parent=8 // pred_region
      %s251 = sand.u32 4, 7
      %p252 = scmp.eq.s32.totalorder %s251, 0
      %p253 = pneg %p252
      // Predicated region
      $region93: #{embedder_forward.3} parent=80 // pred_check
        _
      $region94: #{embedder_forward.3} parent=80 // pred_check_branch
        %255 = sbr.rel (%p252) target = $region96
      $region95: #{embedder_forward.3} parent=80 // pred_region
        %s256 = sand.u32 4, 7
        %s257 = ssub.s32 4, %s256
        %s258 = scalar_lea.vmem %s3, %s257
        %s259 = ssub.s32 4, %s256
        %s260 = scalar_lea.vmem [#allocation4], %s259
        %s261 = sshll.u32 1, %s256
        %s262 = ssub.s32 %s261, 1
        loop: start=0, step=1, limit=1
        $region97: #{embedder_forward.3} parent=95 // loop_pre_header
          _
        $region98: #{embedder_forward.3} parent=95 // loop_header
          %s264 = sphi 0, %s268
          %p265 = scmp.ge.s32.totalorder %s264, 1
          %s269 = sphi %s258, %s258
          %s270 = sphi %s260, %s260
        $region99: #{embedder_forward.3} parent=95 // loop_header_branch
          %267 = sbr.rel (%p265) target = $region103
        $region100: #{embedder_forward.3} parent=95 // loop_body
          %v271 = vld [vmem:[%s269] sm:%s262]
          %272 = vst [vmem:[%s270] sm:%s262] %v271
        $region101: #{embedder_forward.3} parent=95 // loop_footer
          %s268 = sadd.s32 1, %s264
        $region102: #{embedder_forward.3} parent=95 // loop_footer_branch
          %263 = sbr.rel target = $region98
        $region103: #{embedder_forward.3} parent=95 // loop_exit
          _
      $region96: #{embedder_forward.3} parent=80 // pred_fallthru
        _
    $region81: #{embedder_forward.3} parent=8 // pred_fallthru
      _
    // Predicated region
    $region82: #{embedder_forward.3} parent=8 // pred_check
      %p236 = pneg %p232
    $region83: #{embedder_forward.3} parent=8 // pred_check_branch
      %238 = sbr.rel (%p236) target = $region85
    $region84: #{embedder_forward.3} parent=8 // pred_region
      %s239 = sshll.u32 1, 4
      %s240 = ssub.s32 %s239, 1
      loop: start=0, step=1, limit=1
      $region86: #{embedder_forward.3} parent=84 // loop_pre_header
        _
      $region87: #{embedder_forward.3} parent=84 // loop_header
        %s242 = sphi 0, %s246
        %p243 = scmp.ge.s32.totalorder %s242, 1
        %s247 = sphi %s3, %s3
        %s248 = sphi [#allocation4], [#allocation4]
      $region88: #{embedder_forward.3} parent=84 // loop_header_branch
        %245 = sbr.rel (%p243) target = $region92
      $region89: #{embedder_forward.3} parent=84 // loop_body
        %v249 = vld [vmem:[%s247] sm:%s240]
        %250 = vst [vmem:[%s248] sm:%s240] %v249
      $region90: #{embedder_forward.3} parent=84 // loop_footer
        %s246 = sadd.s32 1, %s242
      $region91: #{embedder_forward.3} parent=84 // loop_footer_branch
        %241 = sbr.rel target = $region87
      $region92: #{embedder_forward.3} parent=84 // loop_exit
        _
    $region85: #{embedder_forward.3} parent=8 // pred_fallthru
      _
    // Predicated region
    $region104: #{embedder_forward.3} parent=8 // pred_check
      _
    $region105: #{embedder_forward.3} parent=8 // pred_check_branch
      %275 = sbr.rel (0) target = $region107
    $region106: #{embedder_forward.3} parent=8 // pred_region
      %276 = vsyncadd %s230, 64
    $region107: #{embedder_forward.3} parent=8 // pred_fallthru
      _
    %277 = vst [vmem:[#allocation6] sm:$0xff] 0.0
    %278 = vst [vmem:[#allocation7] sm:$0xff] 0.0
    %s279 = smul.u32 4, 1
    %s280 = smul.u32 %s279, 4
    %s281 = sshll.u32 %s280, 4
    %282 = dma.done [#allocation8], %s281
    %s283 = smul.u32 8, 16
    %s284 = smul.u32 %s283, 4
    %s285 = sshll.u32 %s284, 4
    %286 = dma.done %s60, %s285
    %s287 = smul.u32 1, 4
    %s288 = sshll.u32 %s287, 4
    %289 = dma.done %s230, %s288
  $region9: #{embedder_forward.3} parent=0 // pred_fallthru
    _
  %v290 = vld [vmem:[%s0] sm:$0xff]
  %v291 = vld [vmem:[%s0 + $0x8] sm:$0xff]
  %v292 = vld [vmem:[%s0 + $0x10] sm:$0xff]
  %v293 = vld [vmem:[%s0 + $0x18] sm:$0xff]
  %v294 = vld [vmem:[%s0 + $0x20] sm:$0xff]
  %v295 = vld [vmem:[%s0 + $0x28] sm:$0xff]
  %v296 = vld [vmem:[%s0 + $0x30] sm:$0xff]
  %v297 = vld [vmem:[%s0 + $0x38] sm:$0xff]
  %v298 = vld [vmem:[#allocation2] sm:$0xff]
  %v299 = vld [vmem:[#allocation2 + $0x8] sm:$0xff]
  %v300 = vld [vmem:[#allocation4] sm:$0xf]
  %v302 = vlaneseq
  %v303 = vshrl.u32 %v302, 7
  %v304 = vsub.s32 0, %v303
  %v305 = vrot.slane %v300, %v304
  %v306 = vlaneseq
  %v307 = vshrl.u32 %v306, 7
  %v308 = vsub.s32 1, %v307
  %v309 = vrot.slane %v300, %v308
  %v310 = vlaneseq
  %v311 = vshrl.u32 %v310, 7
  %v312 = vsub.s32 2, %v311
  %v313 = vrot.slane %v300, %v312
  %v314 = vlaneseq
  %v315 = vshrl.u32 %v314, 7
  %v316 = vsub.s32 3, %v315
  %v317 = vrot.slane %v300, %v316
  %v324 = vcombine.high %v298, %v298
  %v325 = vcombine.high %v299, %v299
  %vm326 = vcmask 31744
  %v328 = vsel %vm326, %v290, 0
  %v331 = vsel %vm326, %v291, 0
  %v334 = vsel %vm326, %v292, 0
  %v337 = vsel %vm326, %v293, 0
  %v340 = vsel %vm326, %v294, 0
  %v343 = vsel %vm326, %v295, 0
  %v346 = vsel %vm326, %v296, 0
  %v349 = vsel %vm326, %v297, 0
  %vm351 = vcmask 1043456
  %v352 = vsel %vm351, %v298, 0
  %v354 = vsel %vm351, %v324, 0
  %v356 = vsel %vm351, %v299, 0
  %v358 = vsel %vm351, %v325, 0
  %360 = vmatprep.subr.mxu0 0.0
  %361 = vmatpush1.msra.mxu0 0.0
  %362 = vmatprep.subr.mxu0 0.0
  %363 = vmatpush1.msra.mxu0 0.0
  %364 = vmatprep.subr.mxu0 0.0
  %365 = vmatpush1.msra.mxu0 0.0
  %366 = vmatprep.subr.mxu0 0.0
  %367 = vmatpush1.msra.mxu0 0.0
  %368 = vmatprep.subr.mxu0 0.0
  %369 = vmatpush1.msra.mxu0 0.0
  %370 = vmatprep.subr.mxu0 0.0
  %371 = vmatpush1.msra.mxu0 0.0
  %372 = vmatprep.subr.mxu0 0.0
  %373 = vmatpush1.msra.mxu0 0.0
  %374 = vmatprep.subr.mxu0 0.0
  %375 = vmatpush1.msra.mxu0 0.0
  %376 = vmatprep.subr.mxu0 0.0
  %377 = vmatpush1.msra.mxu0 0.0
  %378 = vmatprep.subr.mxu0 0.0
  %379 = vmatpush1.msra.mxu0 0.0
  %380 = vmatprep.subr.mxu0 0.0
  %381 = vmatpush1.msra.mxu0 0.0
  %382 = vmatprep.subr.mxu0 0.0
  %383 = vmatpush1.msra.mxu0 0.0
  %384 = vmatprep.subr.mxu0 0.0
  %385 = vmatpush1.msra.mxu0 0.0
  %386 = vmatprep.subr.mxu0 0.0
  %387 = vmatpush1.msra.mxu0 0.0
  %388 = vmatprep.subr.mxu0 0.0
  %389 = vmatpush1.msra.mxu0 0.0
  %390 = vmatprep.subr.mxu0 %v354
  %391 = vmatpush1.msra.mxu0 %v352
  %392 = vmatprep.subr.mxu0 0.0
  %393 = vmatpush2.msra.mxu0 0.0
  %394 = vmatprep.subr.mxu0 0.0
  %395 = vmatpush2.msra.mxu0 0.0
  %396 = vmatprep.subr.mxu0 0.0
  %397 = vmatpush2.msra.mxu0 0.0
  %398 = vmatprep.subr.mxu0 0.0
  %399 = vmatpush2.msra.mxu0 0.0
  %400 = vmatprep.subr.mxu0 0.0
  %401 = vmatpush2.msra.mxu0 0.0
  %402 = vmatprep.subr.mxu0 0.0
  %403 = vmatpush2.msra.mxu0 0.0
  %404 = vmatprep.subr.mxu0 0.0
  %405 = vmatpush2.msra.mxu0 0.0
  %406 = vmatprep.subr.mxu0 0.0
  %407 = vmatpush2.msra.mxu0 0.0
  %408 = vmatprep.subr.mxu0 0.0
  %409 = vmatpush2.msra.mxu0 0.0
  %410 = vmatprep.subr.mxu0 0.0
  %411 = vmatpush2.msra.mxu0 0.0
  %412 = vmatprep.subr.mxu0 0.0
  %413 = vmatpush2.msra.mxu0 0.0
  %414 = vmatprep.subr.mxu0 0.0
  %415 = vmatpush2.msra.mxu0 0.0
  %416 = vmatprep.subr.mxu0 0.0
  %417 = vmatpush2.msra.mxu0 0.0
  %418 = vmatprep.subr.mxu0 0.0
  %419 = vmatpush2.msra.mxu0 0.0
  %420 = vmatprep.subr.mxu0 0.0
  %421 = vmatpush2.msra.mxu0 0.0
  %422 = vmatprep.subr.mxu0 0.0
  %423 = vmatpush2.msra.mxu0 0.0
  %424 = vmatprep.mubr.f32.mxu0 0.0
  %425 = vmatmul.mubr.f32.gmra.mxu0 %v328
  %v426 = vpop.f32.mrf.mxu0
  %v427 = vadd.f32 %v305, %v426
  %v428 = vpop.f32.mrf.mxu0
  %v429 = vadd.f32 %v309, %v428
  %430 = vmatprep.mubr.f32.mxu0 0.0
  %431 = vmatmul.mubr.f32.gmra.mxu0 %v331
  %v432 = vpop.f32.mrf.mxu0
  %v433 = vadd.f32 %v305, %v432
  %v434 = vpop.f32.mrf.mxu0
  %v435 = vadd.f32 %v309, %v434
  %436 = vmatprep.mubr.f32.mxu0 0.0
  %437 = vmatmul.mubr.f32.gmra.mxu0 %v334
  %v438 = vpop.f32.mrf.mxu0
  %v439 = vadd.f32 %v305, %v438
  %v440 = vpop.f32.mrf.mxu0
  %v441 = vadd.f32 %v309, %v440
  %442 = vmatprep.mubr.f32.mxu0 0.0
  %443 = vmatmul.mubr.f32.gmra.mxu0 %v337
  %v444 = vpop.f32.mrf.mxu0
  %v445 = vadd.f32 %v305, %v444
  %v446 = vpop.f32.mrf.mxu0
  %v447 = vadd.f32 %v309, %v446
  %448 = vmatprep.mubr.f32.mxu0 0.0
  %449 = vmatmul.mubr.f32.gmra.mxu0 %v340
  %v450 = vpop.f32.mrf.mxu0
  %v451 = vadd.f32 %v305, %v450
  %v452 = vpop.f32.mrf.mxu0
  %v453 = vadd.f32 %v309, %v452
  %454 = vmatprep.mubr.f32.mxu0 0.0
  %455 = vmatmul.mubr.f32.gmra.mxu0 %v343
  %v456 = vpop.f32.mrf.mxu0
  %v457 = vadd.f32 %v305, %v456
  %v458 = vpop.f32.mrf.mxu0
  %v459 = vadd.f32 %v309, %v458
  %460 = vmatprep.mubr.f32.mxu0 0.0
  %461 = vmatmul.mubr.f32.gmra.mxu0 %v346
  %v462 = vpop.f32.mrf.mxu0
  %v463 = vadd.f32 %v305, %v462
  %v464 = vpop.f32.mrf.mxu0
  %v465 = vadd.f32 %v309, %v464
  %466 = vmatprep.mubr.f32.mxu0 0.0
  %467 = vmatmul.mubr.f32.gmra.mxu0 %v349
  %v468 = vpop.f32.mrf.mxu0
  %v469 = vadd.f32 %v305, %v468
  %v470 = vpop.f32.mrf.mxu0
  %v471 = vadd.f32 %v309, %v470
  %472 = vdwg.mxu0
  %473 = vmatprep.subr.mxu0 0.0
  %474 = vmatpush1.msra.mxu0 0.0
  %475 = vmatprep.subr.mxu0 0.0
  %476 = vmatpush1.msra.mxu0 0.0
  %477 = vmatprep.subr.mxu0 0.0
  %478 = vmatpush1.msra.mxu0 0.0
  %479 = vmatprep.subr.mxu0 0.0
  %480 = vmatpush1.msra.mxu0 0.0
  %481 = vmatprep.subr.mxu0 0.0
  %482 = vmatpush1.msra.mxu0 0.0
  %483 = vmatprep.subr.mxu0 0.0
  %484 = vmatpush1.msra.mxu0 0.0
  %485 = vmatprep.subr.mxu0 0.0
  %486 = vmatpush1.msra.mxu0 0.0
  %487 = vmatprep.subr.mxu0 0.0
  %488 = vmatpush1.msra.mxu0 0.0
  %489 = vmatprep.subr.mxu0 0.0
  %490 = vmatpush1.msra.mxu0 0.0
  %491 = vmatprep.subr.mxu0 0.0
  %492 = vmatpush1.msra.mxu0 0.0
  %493 = vmatprep.subr.mxu0 0.0
  %494 = vmatpush1.msra.mxu0 0.0
  %495 = vmatprep.subr.mxu0 0.0
  %496 = vmatpush1.msra.mxu0 0.0
  %497 = vmatprep.subr.mxu0 0.0
  %498 = vmatpush1.msra.mxu0 0.0
  %499 = vmatprep.subr.mxu0 0.0
  %500 = vmatpush1.msra.mxu0 0.0
  %501 = vmatprep.subr.mxu0 0.0
  %502 = vmatpush1.msra.mxu0 0.0
  %503 = vmatprep.subr.mxu0 %v358
  %504 = vmatpush1.msra.mxu0 %v356
  %505 = vmatprep.subr.mxu0 0.0
  %506 = vmatpush2.msra.mxu0 0.0
  %507 = vmatprep.subr.mxu0 0.0
  %508 = vmatpush2.msra.mxu0 0.0
  %509 = vmatprep.subr.mxu0 0.0
  %510 = vmatpush2.msra.mxu0 0.0
  %511 = vmatprep.subr.mxu0 0.0
  %512 = vmatpush2.msra.mxu0 0.0
  %513 = vmatprep.subr.mxu0 0.0
  %514 = vmatpush2.msra.mxu0 0.0
  %515 = vmatprep.subr.mxu0 0.0
  %516 = vmatpush2.msra.mxu0 0.0
  %517 = vmatprep.subr.mxu0 0.0
  %518 = vmatpush2.msra.mxu0 0.0
  %519 = vmatprep.subr.mxu0 0.0
  %520 = vmatpush2.msra.mxu0 0.0
  %521 = vmatprep.subr.mxu0 0.0
  %522 = vmatpush2.msra.mxu0 0.0
  %523 = vmatprep.subr.mxu0 0.0
  %524 = vmatpush2.msra.mxu0 0.0
  %525 = vmatprep.subr.mxu0 0.0
  %526 = vmatpush2.msra.mxu0 0.0
  %527 = vmatprep.subr.mxu0 0.0
  %528 = vmatpush2.msra.mxu0 0.0
  %529 = vmatprep.subr.mxu0 0.0
  %530 = vmatpush2.msra.mxu0 0.0
  %531 = vmatprep.subr.mxu0 0.0
  %532 = vmatpush2.msra.mxu0 0.0
  %533 = vmatprep.subr.mxu0 0.0
  %534 = vmatpush2.msra.mxu0 0.0
  %535 = vmatprep.subr.mxu0 0.0
  %536 = vmatpush2.msra.mxu0 0.0
  %537 = vmatprep.mubr.f32.mxu0 0.0
  %538 = vmatmul.mubr.f32.gmra.mxu0 %v328
  %v539 = vpop.f32.mrf.mxu0
  %v540 = vadd.f32 %v313, %v539
  %v541 = vpop.f32.mrf.mxu0
  %v542 = vadd.f32 %v317, %v541
  %543 = vmatprep.mubr.f32.mxu0 0.0
  %544 = vmatmul.mubr.f32.gmra.mxu0 %v331
  %v545 = vpop.f32.mrf.mxu0
  %v546 = vadd.f32 %v313, %v545
  %v547 = vpop.f32.mrf.mxu0
  %v548 = vadd.f32 %v317, %v547
  %549 = vmatprep.mubr.f32.mxu0 0.0
  %550 = vmatmul.mubr.f32.gmra.mxu0 %v334
  %v551 = vpop.f32.mrf.mxu0
  %v552 = vadd.f32 %v313, %v551
  %v553 = vpop.f32.mrf.mxu0
  %v554 = vadd.f32 %v317, %v553
  %555 = vmatprep.mubr.f32.mxu0 0.0
  %556 = vmatmul.mubr.f32.gmra.mxu0 %v337
  %v557 = vpop.f32.mrf.mxu0
  %v558 = vadd.f32 %v313, %v557
  %v559 = vpop.f32.mrf.mxu0
  %v560 = vadd.f32 %v317, %v559
  %561 = vmatprep.mubr.f32.mxu0 0.0
  %562 = vmatmul.mubr.f32.gmra.mxu0 %v340
  %v563 = vpop.f32.mrf.mxu0
  %v564 = vadd.f32 %v313, %v563
  %v565 = vpop.f32.mrf.mxu0
  %v566 = vadd.f32 %v317, %v565
  %567 = vmatprep.mubr.f32.mxu0 0.0
  %568 = vmatmul.mubr.f32.gmra.mxu0 %v343
  %v569 = vpop.f32.mrf.mxu0
  %v570 = vadd.f32 %v313, %v569
  %v571 = vpop.f32.mrf.mxu0
  %v572 = vadd.f32 %v317, %v571
  %573 = vmatprep.mubr.f32.mxu0 0.0
  %574 = vmatmul.mubr.f32.gmra.mxu0 %v346
  %v575 = vpop.f32.mrf.mxu0
  %v576 = vadd.f32 %v313, %v575
  %v577 = vpop.f32.mrf.mxu0
  %v578 = vadd.f32 %v317, %v577
  %579 = vmatprep.mubr.f32.mxu0 0.0
  %580 = vmatmul.mubr.f32.gmra.mxu0 %v349
  %v581 = vpop.f32.mrf.mxu0
  %v582 = vadd.f32 %v313, %v581
  %v583 = vpop.f32.mrf.mxu0
  %v584 = vadd.f32 %v317, %v583
  %585 = vdwg.mxu0
  %586 = vst [vmem:[#allocation5] sm:$0xff] %v427
  %587 = vst [vmem:[#allocation5 + $0x8] sm:$0xff] %v429
  %588 = vst [vmem:[#allocation5 + $0x10] sm:$0xff] %v540
  %589 = vst [vmem:[#allocation5 + $0x18] sm:$0xff] %v542
  %590 = vst [vmem:[#allocation5 + $0x20] sm:$0xff] %v433
  %591 = vst [vmem:[#allocation5 + $0x28] sm:$0xff] %v435
  %592 = vst [vmem:[#allocation5 + $0x30] sm:$0xff] %v546
  %593 = vst [vmem:[#allocation5 + $0x38] sm:$0xff] %v548
  %594 = vst [vmem:[#allocation5 + $0x40] sm:$0xff] %v439
  %595 = vst [vmem:[#allocation5 + $0x48] sm:$0xff] %v441
  %596 = vst [vmem:[#allocation5 + $0x50] sm:$0xff] %v552
  %597 = vst [vmem:[#allocation5 + $0x58] sm:$0xff] %v554
  %598 = vst [vmem:[#allocation5 + $0x60] sm:$0xff] %v445
  %599 = vst [vmem:[#allocation5 + $0x68] sm:$0xff] %v447
  %600 = vst [vmem:[#allocation5 + $0x70] sm:$0xff] %v558
  %601 = vst [vmem:[#allocation5 + $0x78] sm:$0xff] %v560
  %602 = vst [vmem:[#allocation5 + $0x80] sm:$0xff] %v451
  %603 = vst [vmem:[#allocation5 + $0x88] sm:$0xff] %v453
  %604 = vst [vmem:[#allocation5 + $0x90] sm:$0xff] %v564
  %605 = vst [vmem:[#allocation5 + $0x98] sm:$0xff] %v566
  %606 = vst [vmem:[#allocation5 + $0xa0] sm:$0xff] %v457
  %607 = vst [vmem:[#allocation5 + $0xa8] sm:$0xff] %v459
  %608 = vst [vmem:[#allocation5 + $0xb0] sm:$0xff] %v570
  %609 = vst [vmem:[#allocation5 + $0xb8] sm:$0xff] %v572
  %610 = vst [vmem:[#allocation5 + $0xc0] sm:$0xff] %v463
  %611 = vst [vmem:[#allocation5 + $0xc8] sm:$0xff] %v465
  %612 = vst [vmem:[#allocation5 + $0xd0] sm:$0xff] %v576
  %613 = vst [vmem:[#allocation5 + $0xd8] sm:$0xff] %v578
  %614 = vst [vmem:[#allocation5 + $0xe0] sm:$0xff] %v469
  %615 = vst [vmem:[#allocation5 + $0xe8] sm:$0xff] %v471
  %616 = vst [vmem:[#allocation5 + $0xf0] sm:$0xff] %v582
  %617 = vst [vmem:[#allocation5 + $0xf8] sm:$0xff] %v584
  %v618 = vld [vmem:[#allocation6] sm:$0xff]
  %v619 = vld [vmem:[#allocation7] sm:$0xff]
  %v620 = vld [vmem:[#allocation5] sm:$0xff]
  %v621 = vld [vmem:[#allocation5 + $0x8] sm:$0xff]
  %v622 = vld [vmem:[#allocation5 + $0x10] sm:$0xff]
  %v623 = vld [vmem:[#allocation5 + $0x18] sm:$0xff]
  %v624 = vld [vmem:[#allocation3] sm:$0xff]
  %v625 = vld [vmem:[#allocation3 + $0x8] sm:$0xff]
  %v626 = vld [vmem:[#allocation3 + $0x10] sm:$0xff]
  %v627 = vld [vmem:[#allocation3 + $0x18] sm:$0xff]
  %v628 = vld [vmem:[#allocation3 + $0x20] sm:$0xff]
  %v629 = vld [vmem:[#allocation3 + $0x28] sm:$0xff]
  %v630 = vld [vmem:[#allocation3 + $0x30] sm:$0xff]
  %v631 = vld [vmem:[#allocation3 + $0x38] sm:$0xff]
  %v632 = vld [vmem:[#allocation3 + $0x40] sm:$0xff]
  %v633 = vld [vmem:[#allocation3 + $0x48] sm:$0xff]
  %v634 = vld [vmem:[#allocation3 + $0x50] sm:$0xff]
  %v635 = vld [vmem:[#allocation3 + $0x58] sm:$0xff]
  %v636 = vld [vmem:[#allocation3 + $0x60] sm:$0xff]
  %v637 = vld [vmem:[#allocation3 + $0x68] sm:$0xff]
  %v638 = vld [vmem:[#allocation3 + $0x70] sm:$0xff]
  %v639 = vld [vmem:[#allocation3 + $0x78] sm:$0xff]
  %v640 = vld [vmem:[#allocation3 + $0x80] sm:$0xff]
  %v641 = vld [vmem:[#allocation3 + $0x88] sm:$0xff]
  %v642 = vld [vmem:[#allocation3 + $0x90] sm:$0xff]
  %v643 = vld [vmem:[#allocation3 + $0x98] sm:$0xff]
  %v644 = vld [vmem:[#allocation3 + $0xa0] sm:$0xff]
  %v645 = vld [vmem:[#allocation3 + $0xa8] sm:$0xff]
  %v646 = vld [vmem:[#allocation3 + $0xb0] sm:$0xff]
  %v647 = vld [vmem:[#allocation3 + $0xb8] sm:$0xff]
  %v648 = vld [vmem:[#allocation3 + $0xc0] sm:$0xff]
  %v649 = vld [vmem:[#allocation3 + $0xc8] sm:$0xff]
  %v650 = vld [vmem:[#allocation3 + $0xd0] sm:$0xff]
  %v651 = vld [vmem:[#allocation3 + $0xd8] sm:$0xff]
  %v652 = vld [vmem:[#allocation3 + $0xe0] sm:$0xff]
  %v653 = vld [vmem:[#allocation3 + $0xe8] sm:$0xff]
  %v654 = vld [vmem:[#allocation3 + $0xf0] sm:$0xff]
  %v655 = vld [vmem:[#allocation3 + $0xf8] sm:$0xff]
  %v656 = vld [vmem:[#allocation3 + $0x100] sm:$0xff]
  %v657 = vld [vmem:[#allocation3 + $0x108] sm:$0xff]
  %v658 = vld [vmem:[#allocation3 + $0x110] sm:$0xff]
  %v659 = vld [vmem:[#allocation3 + $0x118] sm:$0xff]
  %v660 = vld [vmem:[#allocation3 + $0x120] sm:$0xff]
  %v661 = vld [vmem:[#allocation3 + $0x128] sm:$0xff]
  %v662 = vld [vmem:[#allocation3 + $0x130] sm:$0xff]
  %v663 = vld [vmem:[#allocation3 + $0x138] sm:$0xff]
  %v664 = vld [vmem:[#allocation3 + $0x140] sm:$0xff]
  %v665 = vld [vmem:[#allocation3 + $0x148] sm:$0xff]
  %v666 = vld [vmem:[#allocation3 + $0x150] sm:$0xff]
  %v667 = vld [vmem:[#allocation3 + $0x158] sm:$0xff]
  %v668 = vld [vmem:[#allocation3 + $0x160] sm:$0xff]
  %v669 = vld [vmem:[#allocation3 + $0x168] sm:$0xff]
  %v670 = vld [vmem:[#allocation3 + $0x170] sm:$0xff]
  %v671 = vld [vmem:[#allocation3 + $0x178] sm:$0xff]
  %v672 = vld [vmem:[#allocation3 + $0x180] sm:$0xff]
  %v673 = vld [vmem:[#allocation3 + $0x188] sm:$0xff]
  %v674 = vld [vmem:[#allocation3 + $0x190] sm:$0xff]
  %v675 = vld [vmem:[#allocation3 + $0x198] sm:$0xff]
  %v676 = vld [vmem:[#allocation3 + $0x1a0] sm:$0xff]
  %v677 = vld [vmem:[#allocation3 + $0x1a8] sm:$0xff]
  %v678 = vld [vmem:[#allocation3 + $0x1b0] sm:$0xff]
  %v679 = vld [vmem:[#allocation3 + $0x1b8] sm:$0xff]
  %v680 = vld [vmem:[#allocation3 + $0x1c0] sm:$0xff]
  %v681 = vld [vmem:[#allocation3 + $0x1c8] sm:$0xff]
  %v682 = vld [vmem:[#allocation3 + $0x1d0] sm:$0xff]
  %v683 = vld [vmem:[#allocation3 + $0x1d8] sm:$0xff]
  %v684 = vld [vmem:[#allocation3 + $0x1e0] sm:$0xff]
  %v685 = vld [vmem:[#allocation3 + $0x1e8] sm:$0xff]
  %v686 = vld [vmem:[#allocation3 + $0x1f0] sm:$0xff]
  %v687 = vld [vmem:[#allocation3 + $0x1f8] sm:$0xff]
  %688 = vmatprep.subr.mxu0 %v685
  %689 = vmatpush1.msra.mxu0 %v684
  %690 = vmatprep.subr.mxu0 %v681
  %691 = vmatpush1.msra.mxu0 %v680
  %692 = vmatprep.subr.mxu0 %v677
  %693 = vmatpush1.msra.mxu0 %v676
  %694 = vmatprep.subr.mxu0 %v673
  %695 = vmatpush1.msra.mxu0 %v672
  %696 = vmatprep.subr.mxu0 %v669
  %697 = vmatpush1.msra.mxu0 %v668
  %698 = vmatprep.subr.mxu0 %v665
  %699 = vmatpush1.msra.mxu0 %v664
  %700 = vmatprep.subr.mxu0 %v661
  %701 = vmatpush1.msra.mxu0 %v660
  %702 = vmatprep.subr.mxu0 %v657
  %703 = vmatpush1.msra.mxu0 %v656
  %704 = vmatprep.subr.mxu0 %v653
  %705 = vmatpush1.msra.mxu0 %v652
  %706 = vmatprep.subr.mxu0 %v649
  %707 = vmatpush1.msra.mxu0 %v648
  %708 = vmatprep.subr.mxu0 %v645
  %709 = vmatpush1.msra.mxu0 %v644
  %710 = vmatprep.subr.mxu0 %v641
  %711 = vmatpush1.msra.mxu0 %v640
  %712 = vmatprep.subr.mxu0 %v637
  %713 = vmatpush1.msra.mxu0 %v636
  %714 = vmatprep.subr.mxu0 %v633
  %715 = vmatpush1.msra.mxu0 %v632
  %716 = vmatprep.subr.mxu0 %v629
  %717 = vmatpush1.msra.mxu0 %v628
  %718 = vmatprep.subr.mxu0 %v625
  %719 = vmatpush1.msra.mxu0 %v624
  %720 = vmatprep.subr.mxu0 0.0
  %721 = vmatpush2.msra.mxu0 0.0
  %722 = vmatprep.subr.mxu0 0.0
  %723 = vmatpush2.msra.mxu0 0.0
  %724 = vmatprep.subr.mxu0 0.0
  %725 = vmatpush2.msra.mxu0 0.0
  %726 = vmatprep.subr.mxu0 0.0
  %727 = vmatpush2.msra.mxu0 0.0
  %728 = vmatprep.subr.mxu0 0.0
  %729 = vmatpush2.msra.mxu0 0.0
  %730 = vmatprep.subr.mxu0 0.0
  %731 = vmatpush2.msra.mxu0 0.0
  %732 = vmatprep.subr.mxu0 0.0
  %733 = vmatpush2.msra.mxu0 0.0
  %734 = vmatprep.subr.mxu0 0.0
  %735 = vmatpush2.msra.mxu0 0.0
  %736 = vmatprep.subr.mxu0 0.0
  %737 = vmatpush2.msra.mxu0 0.0
  %738 = vmatprep.subr.mxu0 0.0
  %739 = vmatpush2.msra.mxu0 0.0
  %740 = vmatprep.subr.mxu0 0.0
  %741 = vmatpush2.msra.mxu0 0.0
  %742 = vmatprep.subr.mxu0 0.0
  %743 = vmatpush2.msra.mxu0 0.0
  %744 = vmatprep.subr.mxu0 0.0
  %745 = vmatpush2.msra.mxu0 0.0
  %746 = vmatprep.subr.mxu0 0.0
  %747 = vmatpush2.msra.mxu0 0.0
  %748 = vmatprep.subr.mxu0 0.0
  %749 = vmatpush2.msra.mxu0 0.0
  %750 = vmatprep.subr.mxu0 0.0
  %751 = vmatpush2.msra.mxu0 0.0
  %752 = vmatprep.mubr.f32.mxu0 0.0
  %753 = vmatmul.mubr.f32.gmra.mxu0 %v618
  %v754 = vpop.f32.mrf.mxu0
  %v755 = vadd.f32 0.0, %v754
  %v756 = vpop.f32.mrf.mxu0
  %v757 = vadd.f32 0.0, %v756
  %758 = vdwg.mxu0
  %759 = vmatprep.subr.mxu0 %v687
  %760 = vmatpush1.msra.mxu0 %v686
  %761 = vmatprep.subr.mxu0 %v683
  %762 = vmatpush1.msra.mxu0 %v682
  %763 = vmatprep.subr.mxu0 %v679
  %764 = vmatpush1.msra.mxu0 %v678
  %765 = vmatprep.subr.mxu0 %v675
  %766 = vmatpush1.msra.mxu0 %v674
  %767 = vmatprep.subr.mxu0 %v671
  %768 = vmatpush1.msra.mxu0 %v670
  %769 = vmatprep.subr.mxu0 %v667
  %770 = vmatpush1.msra.mxu0 %v666
  %771 = vmatprep.subr.mxu0 %v663
  %772 = vmatpush1.msra.mxu0 %v662
  %773 = vmatprep.subr.mxu0 %v659
  %774 = vmatpush1.msra.mxu0 %v658
  %775 = vmatprep.subr.mxu0 %v655
  %776 = vmatpush1.msra.mxu0 %v654
  %777 = vmatprep.subr.mxu0 %v651
  %778 = vmatpush1.msra.mxu0 %v650
  %779 = vmatprep.subr.mxu0 %v647
  %780 = vmatpush1.msra.mxu0 %v646
  %781 = vmatprep.subr.mxu0 %v643
  %782 = vmatpush1.msra.mxu0 %v642
  %783 = vmatprep.subr.mxu0 %v639
  %784 = vmatpush1.msra.mxu0 %v638
  %785 = vmatprep.subr.mxu0 %v635
  %786 = vmatpush1.msra.mxu0 %v634
  %787 = vmatprep.subr.mxu0 %v631
  %788 = vmatpush1.msra.mxu0 %v630
  %789 = vmatprep.subr.mxu0 %v627
  %790 = vmatpush1.msra.mxu0 %v626
  %791 = vmatprep.subr.mxu0 0.0
  %792 = vmatpush2.msra.mxu0 0.0
  %793 = vmatprep.subr.mxu0 0.0
  %794 = vmatpush2.msra.mxu0 0.0
  %795 = vmatprep.subr.mxu0 0.0
  %796 = vmatpush2.msra.mxu0 0.0
  %797 = vmatprep.subr.mxu0 0.0
  %798 = vmatpush2.msra.mxu0 0.0
  %799 = vmatprep.subr.mxu0 0.0
  %800 = vmatpush2.msra.mxu0 0.0
  %801 = vmatprep.subr.mxu0 0.0
  %802 = vmatpush2.msra.mxu0 0.0
  %803 = vmatprep.subr.mxu0 0.0
  %804 = vmatpush2.msra.mxu0 0.0
  %805 = vmatprep.subr.mxu0 0.0
  %806 = vmatpush2.msra.mxu0 0.0
  %807 = vmatprep.subr.mxu0 0.0
  %808 = vmatpush2.msra.mxu0 0.0
  %809 = vmatprep.subr.mxu0 0.0
  %810 = vmatpush2.msra.mxu0 0.0
  %811 = vmatprep.subr.mxu0 0.0
  %812 = vmatpush2.msra.mxu0 0.0
  %813 = vmatprep.subr.mxu0 0.0
  %814 = vmatpush2.msra.mxu0 0.0
  %815 = vmatprep.subr.mxu0 0.0
  %816 = vmatpush2.msra.mxu0 0.0
  %817 = vmatprep.subr.mxu0 0.0
  %818 = vmatpush2.msra.mxu0 0.0
  %819 = vmatprep.subr.mxu0 0.0
  %820 = vmatpush2.msra.mxu0 0.0
  %821 = vmatprep.subr.mxu0 0.0
  %822 = vmatpush2.msra.mxu0 0.0
  %823 = vmatprep.mubr.f32.mxu0 0.0
  %824 = vmatmul.mubr.f32.gmra.mxu0 %v618
  %v825 = vpop.f32.mrf.mxu0
  %v826 = vadd.f32 0.0, %v825
  %v827 = vpop.f32.mrf.mxu0
  %v828 = vadd.f32 0.0, %v827
  %829 = vdwg.mxu0
  %v830 = vadd.f32 %v620, %v755
  %v831 = vadd.f32 %v621, %v757
  %v832 = vadd.f32 %v622, %v826
  %v833 = vadd.f32 %v623, %v828
  %v834 = vxor.u32 %v830, 2147483648
  %v835 = vmul.f32 %v834, 1.442695
  %v836 = vpow.pop %v835
  %v837 = vadd.f32 %v836, 1.0
  %v838 = vrcp.pop %v837
  %v839 = vmul.f32 1.0, %v838
  %v840 = vxor.u32 %v831, 2147483648
  %v841 = vmul.f32 %v840, 1.442695
  %v842 = vpow.pop %v841
  %v843 = vadd.f32 %v842, 1.0
  %v844 = vrcp.pop %v843
  %v845 = vmul.f32 1.0, %v844
  %v846 = vtanh.pop %v832
  %v847 = vxor.u32 %v833, 2147483648
  %v848 = vmul.f32 %v847, 1.442695
  %v849 = vpow.pop %v848
  %v850 = vadd.f32 %v849, 1.0
  %v851 = vrcp.pop %v850
  %v852 = vmul.f32 1.0, %v851
  %v853 = vmul.f32 %v845, %v619
  %v854 = vmul.f32 %v839, %v846
  %v855 = vadd.f32 %v853, %v854
  %v856 = vtanh.pop %v855
  %v857 = vmul.f32 %v852, %v856
  %858 = vst [vmem:[%s4] sm:$0xff] %v857
  %v859 = vld [vmem:[#allocation5 + $0x20] sm:$0xff]
  %v860 = vld [vmem:[#allocation5 + $0x28] sm:$0xff]
  %v861 = vld [vmem:[#allocation5 + $0x30] sm:$0xff]
  %v862 = vld [vmem:[#allocation5 + $0x38] sm:$0xff]
  %v863 = vld [vmem:[#allocation3] sm:$0xff]
  %v864 = vld [vmem:[#allocation3 + $0x8] sm:$0xff]
  %v865 = vld [vmem:[#allocation3 + $0x10] sm:$0xff]
  %v866 = vld [vmem:[#allocation3 + $0x18] sm:$0xff]
  %v867 = vld [vmem:[#allocation3 + $0x20] sm:$0xff]
  %v868 = vld [vmem:[#allocation3 + $0x28] sm:$0xff]
  %v869 = vld [vmem:[#allocation3 + $0x30] sm:$0xff]
  %v870 = vld [vmem:[#allocation3 + $0x38] sm:$0xff]
  %v871 = vld [vmem:[#allocation3 + $0x40] sm:$0xff]
  %v872 = vld [vmem:[#allocation3 + $0x48] sm:$0xff]
  %v873 = vld [vmem:[#allocation3 + $0x50] sm:$0xff]
  %v874 = vld [vmem:[#allocation3 + $0x58] sm:$0xff]
  %v875 = vld [vmem:[#allocation3 + $0x60] sm:$0xff]
  %v876 = vld [vmem:[#allocation3 + $0x68] sm:$0xff]
  %v877 = vld [vmem:[#allocation3 + $0x70] sm:$0xff]
  %v878 = vld [vmem:[#allocation3 + $0x78] sm:$0xff]
  %v879 = vld [vmem:[#allocation3 + $0x80] sm:$0xff]
  %v880 = vld [vmem:[#allocation3 + $0x88] sm:$0xff]
  %v881 = vld [vmem:[#allocation3 + $0x90] sm:$0xff]
  %v882 = vld [vmem:[#allocation3 + $0x98] sm:$0xff]
  %v883 = vld [vmem:[#allocation3 + $0xa0] sm:$0xff]
  %v884 = vld [vmem:[#allocation3 + $0xa8] sm:$0xff]
  %v885 = vld [vmem:[#allocation3 + $0xb0] sm:$0xff]
  %v886 = vld [vmem:[#allocation3 + $0xb8] sm:$0xff]
  %v887 = vld [vmem:[#allocation3 + $0xc0] sm:$0xff]
  %v888 = vld [vmem:[#allocation3 + $0xc8] sm:$0xff]
  %v889 = vld [vmem:[#allocation3 + $0xd0] sm:$0xff]
  %v890 = vld [vmem:[#allocation3 + $0xd8] sm:$0xff]
  %v891 = vld [vmem:[#allocation3 + $0xe0] sm:$0xff]
  %v892 = vld [vmem:[#allocation3 + $0xe8] sm:$0xff]
  %v893 = vld [vmem:[#allocation3 + $0xf0] sm:$0xff]
  %v894 = vld [vmem:[#allocation3 + $0xf8] sm:$0xff]
  %v895 = vld [vmem:[#allocation3 + $0x100] sm:$0xff]
  %v896 = vld [vmem:[#allocation3 + $0x108] sm:$0xff]
  %v897 = vld [vmem:[#allocation3 + $0x110] sm:$0xff]
  %v898 = vld [vmem:[#allocation3 + $0x118] sm:$0xff]
  %v899 = vld [vmem:[#allocation3 + $0x120] sm:$0xff]
  %v900 = vld [vmem:[#allocation3 + $0x128] sm:$0xff]
  %v901 = vld [vmem:[#allocation3 + $0x130] sm:$0xff]
  %v902 = vld [vmem:[#allocation3 + $0x138] sm:$0xff]
  %v903 = vld [vmem:[#allocation3 + $0x140] sm:$0xff]
  %v904 = vld [vmem:[#allocation3 + $0x148] sm:$0xff]
  %v905 = vld [vmem:[#allocation3 + $0x150] sm:$0xff]
  %v906 = vld [vmem:[#allocation3 + $0x158] sm:$0xff]
  %v907 = vld [vmem:[#allocation3 + $0x160] sm:$0xff]
  %v908 = vld [vmem:[#allocation3 + $0x168] sm:$0xff]
  %v909 = vld [vmem:[#allocation3 + $0x170] sm:$0xff]
  %v910 = vld [vmem:[#allocation3 + $0x178] sm:$0xff]
  %v911 = vld [vmem:[#allocation3 + $0x180] sm:$0xff]
  %v912 = vld [vmem:[#allocation3 + $0x188] sm:$0xff]
  %v913 = vld [vmem:[#allocation3 + $0x190] sm:$0xff]
  %v914 = vld [vmem:[#allocation3 + $0x198] sm:$0xff]
  %v915 = vld [vmem:[#allocation3 + $0x1a0] sm:$0xff]
  %v916 = vld [vmem:[#allocation3 + $0x1a8] sm:$0xff]
  %v917 = vld [vmem:[#allocation3 + $0x1b0] sm:$0xff]
  %v918 = vld [vmem:[#allocation3 + $0x1b8] sm:$0xff]
  %v919 = vld [vmem:[#allocation3 + $0x1c0] sm:$0xff]
  %v920 = vld [vmem:[#allocation3 + $0x1c8] sm:$0xff]
  %v921 = vld [vmem:[#allocation3 + $0x1d0] sm:$0xff]
  %v922 = vld [vmem:[#allocation3 + $0x1d8] sm:$0xff]
  %v923 = vld [vmem:[#allocation3 + $0x1e0] sm:$0xff]
  %v924 = vld [vmem:[#allocation3 + $0x1e8] sm:$0xff]
  %v925 = vld [vmem:[#allocation3 + $0x1f0] sm:$0xff]
  %v926 = vld [vmem:[#allocation3 + $0x1f8] sm:$0xff]
  %927 = vmatprep.subr.mxu0 %v924
  %928 = vmatpush1.msra.mxu0 %v923
  %929 = vmatprep.subr.mxu0 %v920
  %930 = vmatpush1.msra.mxu0 %v919
  %931 = vmatprep.subr.mxu0 %v916
  %932 = vmatpush1.msra.mxu0 %v915
  %933 = vmatprep.subr.mxu0 %v912
  %934 = vmatpush1.msra.mxu0 %v911
  %935 = vmatprep.subr.mxu0 %v908
  %936 = vmatpush1.msra.mxu0 %v907
  %937 = vmatprep.subr.mxu0 %v904
  %938 = vmatpush1.msra.mxu0 %v903
  %939 = vmatprep.subr.mxu0 %v900
  %940 = vmatpush1.msra.mxu0 %v899
  %941 = vmatprep.subr.mxu0 %v896
  %942 = vmatpush1.msra.mxu0 %v895
  %943 = vmatprep.subr.mxu0 %v892
  %944 = vmatpush1.msra.mxu0 %v891
  %945 = vmatprep.subr.mxu0 %v888
  %946 = vmatpush1.msra.mxu0 %v887
  %947 = vmatprep.subr.mxu0 %v884
  %948 = vmatpush1.msra.mxu0 %v883
  %949 = vmatprep.subr.mxu0 %v880
  %950 = vmatpush1.msra.mxu0 %v879
  %951 = vmatprep.subr.mxu0 %v876
  %952 = vmatpush1.msra.mxu0 %v875
  %953 = vmatprep.subr.mxu0 %v872
  %954 = vmatpush1.msra.mxu0 %v871
  %955 = vmatprep.subr.mxu0 %v868
  %956 = vmatpush1.msra.mxu0 %v867
  %957 = vmatprep.subr.mxu0 %v864
  %958 = vmatpush1.msra.mxu0 %v863
  %959 = vmatprep.subr.mxu0 0.0
  %960 = vmatpush2.msra.mxu0 0.0
  %961 = vmatprep.subr.mxu0 0.0
  %962 = vmatpush2.msra.mxu0 0.0
  %963 = vmatprep.subr.mxu0 0.0
  %964 = vmatpush2.msra.mxu0 0.0
  %965 = vmatprep.subr.mxu0 0.0
  %966 = vmatpush2.msra.mxu0 0.0
  %967 = vmatprep.subr.mxu0 0.0
  %968 = vmatpush2.msra.mxu0 0.0
  %969 = vmatprep.subr.mxu0 0.0
  %970 = vmatpush2.msra.mxu0 0.0
  %971 = vmatprep.subr.mxu0 0.0
  %972 = vmatpush2.msra.mxu0 0.0
  %973 = vmatprep.subr.mxu0 0.0
  %974 = vmatpush2.msra.mxu0 0.0
  %975 = vmatprep.subr.mxu0 0.0
  %976 = vmatpush2.msra.mxu0 0.0
  %977 = vmatprep.subr.mxu0 0.0
  %978 = vmatpush2.msra.mxu0 0.0
  %979 = vmatprep.subr.mxu0 0.0
  %980 = vmatpush2.msra.mxu0 0.0
  %981 = vmatprep.subr.mxu0 0.0
  %982 = vmatpush2.msra.mxu0 0.0
  %983 = vmatprep.subr.mxu0 0.0
  %984 = vmatpush2.msra.mxu0 0.0
  %985 = vmatprep.subr.mxu0 0.0
  %986 = vmatpush2.msra.mxu0 0.0
  %987 = vmatprep.subr.mxu0 0.0
  %988 = vmatpush2.msra.mxu0 0.0
  %989 = vmatprep.subr.mxu0 0.0
  %990 = vmatpush2.msra.mxu0 0.0
  %991 = vmatprep.mubr.f32.mxu0 0.0
  %992 = vmatmul.mubr.f32.gmra.mxu0 %v857
  %v993 = vpop.f32.mrf.mxu0
  %v994 = vadd.f32 0.0, %v993
  %v995 = vpop.f32.mrf.mxu0
  %v996 = vadd.f32 0.0, %v995
  %997 = vdwg.mxu0
  %998 = vmatprep.subr.mxu0 %v926
  %999 = vmatpush1.msra.mxu0 %v925
  %1000 = vmatprep.subr.mxu0 %v922
  %1001 = vmatpush1.msra.mxu0 %v921
  %1002 = vmatprep.subr.mxu0 %v918
  %1003 = vmatpush1.msra.mxu0 %v917
  %1004 = vmatprep.subr.mxu0 %v914
  %1005 = vmatpush1.msra.mxu0 %v913
  %1006 = vmatprep.subr.mxu0 %v910
  %1007 = vmatpush1.msra.mxu0 %v909
  %1008 = vmatprep.subr.mxu0 %v906
  %1009 = vmatpush1.msra.mxu0 %v905
  %1010 = vmatprep.subr.mxu0 %v902
  %1011 = vmatpush1.msra.mxu0 %v901
  %1012 = vmatprep.subr.mxu0 %v898
  %1013 = vmatpush1.msra.mxu0 %v897
  %1014 = vmatprep.subr.mxu0 %v894
  %1015 = vmatpush1.msra.mxu0 %v893
  %1016 = vmatprep.subr.mxu0 %v890
  %1017 = vmatpush1.msra.mxu0 %v889
  %1018 = vmatprep.subr.mxu0 %v886
  %1019 = vmatpush1.msra.mxu0 %v885
  %1020 = vmatprep.subr.mxu0 %v882
  %1021 = vmatpush1.msra.mxu0 %v881
  %1022 = vmatprep.subr.mxu0 %v878
  %1023 = vmatpush1.msra.mxu0 %v877
  %1024 = vmatprep.subr.mxu0 %v874
  %1025 = vmatpush1.msra.mxu0 %v873
  %1026 = vmatprep.subr.mxu0 %v870
  %1027 = vmatpush1.msra.mxu0 %v869
  %1028 = vmatprep.subr.mxu0 %v866
  %1029 = vmatpush1.msra.mxu0 %v865
  %1030 = vmatprep.subr.mxu0 0.0
  %1031 = vmatpush2.msra.mxu0 0.0
  %1032 = vmatprep.subr.mxu0 0.0
  %1033 = vmatpush2.msra.mxu0 0.0
  %1034 = vmatprep.subr.mxu0 0.0
  %1035 = vmatpush2.msra.mxu0 0.0
  %1036 = vmatprep.subr.mxu0 0.0
  %1037 = vmatpush2.msra.mxu0 0.0
  %1038 = vmatprep.subr.mxu0 0.0
  %1039 = vmatpush2.msra.mxu0 0.0
  %1040 = vmatprep.subr.mxu0 0.0
  %1041 = vmatpush2.msra.mxu0 0.0
  %1042 = vmatprep.subr.mxu0 0.0
  %1043 = vmatpush2.msra.mxu0 0.0
  %1044 = vmatprep.subr.mxu0 0.0
  %1045 = vmatpush2.msra.mxu0 0.0
  %1046 = vmatprep.subr.mxu0 0.0
  %1047 = vmatpush2.msra.mxu0 0.0
  %1048 = vmatprep.subr.mxu0 0.0
  %1049 = vmatpush2.msra.mxu0 0.0
  %1050 = vmatprep.subr.mxu0 0.0
  %1051 = vmatpush2.msra.mxu0 0.0
  %1052 = vmatprep.subr.mxu0 0.0
  %1053 = vmatpush2.msra.mxu0 0.0
  %1054 = vmatprep.subr.mxu0 0.0
  %1055 = vmatpush2.msra.mxu0 0.0
  %1056 = vmatprep.subr.mxu0 0.0
  %1057 = vmatpush2.msra.mxu0 0.0
  %1058 = vmatprep.subr.mxu0 0.0
  %1059 = vmatpush2.msra.mxu0 0.0
  %1060 = vmatprep.subr.mxu0 0.0
  %1061 = vmatpush2.msra.mxu0 0.0
  %1062 = vmatprep.mubr.f32.mxu0 0.0
  %1063 = vmatmul.mubr.f32.gmra.mxu0 %v857
  %v1064 = vpop.f32.mrf.mxu0
  %v1065 = vadd.f32 0.0, %v1064
  %v1066 = vpop.f32.mrf.mxu0
  %v1067 = vadd.f32 0.0, %v1066
  %1068 = vdwg.mxu0
  %v1069 = vadd.f32 %v859, %v994
  %v1070 = vadd.f32 %v860, %v996
  %v1071 = vadd.f32 %v861, %v1065
  %v1072 = vadd.f32 %v862, %v1067
  %v1073 = vxor.u32 %v1069, 2147483648
  %v1074 = vmul.f32 %v1073, 1.442695
  %v1075 = vpow.pop %v1074
  %v1076 = vadd.f32 %v1075, 1.0
  %v1077 = vrcp.pop %v1076
  %v1078 = vmul.f32 1.0, %v1077
  %v1079 = vxor.u32 %v1070, 2147483648
  %v1080 = vmul.f32 %v1079, 1.442695
  %v1081 = vpow.pop %v1080
  %v1082 = vadd.f32 %v1081, 1.0
  %v1083 = vrcp.pop %v1082
  %v1084 = vmul.f32 1.0, %v1083
  %v1085 = vtanh.pop %v1071
  %v1086 = vxor.u32 %v1072, 2147483648
  %v1087 = vmul.f32 %v1086, 1.442695
  %v1088 = vpow.pop %v1087
  %v1089 = vadd.f32 %v1088, 1.0
  %v1090 = vrcp.pop %v1089
  %v1091 = vmul.f32 1.0, %v1090
  %v1092 = vmul.f32 %v1084, %v855
  %v1093 = vmul.f32 %v1078, %v1085
  %v1094 = vadd.f32 %v1092, %v1093
  %v1095 = vtanh.pop %v1094
  %v1096 = vmul.f32 %v1091, %v1095
  %1097 = vst [vmem:[%s4 + $0x8] sm:$0xff] %v1096
  %v1098 = vld [vmem:[#allocation5 + $0x40] sm:$0xff]
  %v1099 = vld [vmem:[#allocation5 + $0x48] sm:$0xff]
  %v1100 = vld [vmem:[#allocation5 + $0x50] sm:$0xff]
  %v1101 = vld [vmem:[#allocation5 + $0x58] sm:$0xff]
  %v1102 = vld [vmem:[#allocation3] sm:$0xff]
  %v1103 = vld [vmem:[#allocation3 + $0x8] sm:$0xff]
  %v1104 = vld [vmem:[#allocation3 + $0x10] sm:$0xff]
  %v1105 = vld [vmem:[#allocation3 + $0x18] sm:$0xff]
  %v1106 = vld [vmem:[#allocation3 + $0x20] sm:$0xff]
  %v1107 = vld [vmem:[#allocation3 + $0x28] sm:$0xff]
  %v1108 = vld [vmem:[#allocation3 + $0x30] sm:$0xff]
  %v1109 = vld [vmem:[#allocation3 + $0x38] sm:$0xff]
  %v1110 = vld [vmem:[#allocation3 + $0x40] sm:$0xff]
  %v1111 = vld [vmem:[#allocation3 + $0x48] sm:$0xff]
  %v1112 = vld [vmem:[#allocation3 + $0x50] sm:$0xff]
  %v1113 = vld [vmem:[#allocation3 + $0x58] sm:$0xff]
  %v1114 = vld [vmem:[#allocation3 + $0x60] sm:$0xff]
  %v1115 = vld [vmem:[#allocation3 + $0x68] sm:$0xff]
  %v1116 = vld [vmem:[#allocation3 + $0x70] sm:$0xff]
  %v1117 = vld [vmem:[#allocation3 + $0x78] sm:$0xff]
  %v1118 = vld [vmem:[#allocation3 + $0x80] sm:$0xff]
  %v1119 = vld [vmem:[#allocation3 + $0x88] sm:$0xff]
  %v1120 = vld [vmem:[#allocation3 + $0x90] sm:$0xff]
  %v1121 = vld [vmem:[#allocation3 + $0x98] sm:$0xff]
  %v1122 = vld [vmem:[#allocation3 + $0xa0] sm:$0xff]
  %v1123 = vld [vmem:[#allocation3 + $0xa8] sm:$0xff]
  %v1124 = vld [vmem:[#allocation3 + $0xb0] sm:$0xff]
  %v1125 = vld [vmem:[#allocation3 + $0xb8] sm:$0xff]
  %v1126 = vld [vmem:[#allocation3 + $0xc0] sm:$0xff]
  %v1127 = vld [vmem:[#allocation3 + $0xc8] sm:$0xff]
  %v1128 = vld [vmem:[#allocation3 + $0xd0] sm:$0xff]
  %v1129 = vld [vmem:[#allocation3 + $0xd8] sm:$0xff]
  %v1130 = vld [vmem:[#allocation3 + $0xe0] sm:$0xff]
  %v1131 = vld [vmem:[#allocation3 + $0xe8] sm:$0xff]
  %v1132 = vld [vmem:[#allocation3 + $0xf0] sm:$0xff]
  %v1133 = vld [vmem:[#allocation3 + $0xf8] sm:$0xff]
  %v1134 = vld [vmem:[#allocation3 + $0x100] sm:$0xff]
  %v1135 = vld [vmem:[#allocation3 + $0x108] sm:$0xff]
  %v1136 = vld [vmem:[#allocation3 + $0x110] sm:$0xff]
  %v1137 = vld [vmem:[#allocation3 + $0x118] sm:$0xff]
  %v1138 = vld [vmem:[#allocation3 + $0x120] sm:$0xff]
  %v1139 = vld [vmem:[#allocation3 + $0x128] sm:$0xff]
  %v1140 = vld [vmem:[#allocation3 + $0x130] sm:$0xff]
  %v1141 = vld [vmem:[#allocation3 + $0x138] sm:$0xff]
  %v1142 = vld [vmem:[#allocation3 + $0x140] sm:$0xff]
  %v1143 = vld [vmem:[#allocation3 + $0x148] sm:$0xff]
  %v1144 = vld [vmem:[#allocation3 + $0x150] sm:$0xff]
  %v1145 = vld [vmem:[#allocation3 + $0x158] sm:$0xff]
  %v1146 = vld [vmem:[#allocation3 + $0x160] sm:$0xff]
  %v1147 = vld [vmem:[#allocation3 + $0x168] sm:$0xff]
  %v1148 = vld [vmem:[#allocation3 + $0x170] sm:$0xff]
  %v1149 = vld [vmem:[#allocation3 + $0x178] sm:$0xff]
  %v1150 = vld [vmem:[#allocation3 + $0x180] sm:$0xff]
  %v1151 = vld [vmem:[#allocation3 + $0x188] sm:$0xff]
  %v1152 = vld [vmem:[#allocation3 + $0x190] sm:$0xff]
  %v1153 = vld [vmem:[#allocation3 + $0x198] sm:$0xff]
  %v1154 = vld [vmem:[#allocation3 + $0x1a0] sm:$0xff]
  %v1155 = vld [vmem:[#allocation3 + $0x1a8] sm:$0xff]
  %v1156 = vld [vmem:[#allocation3 + $0x1b0] sm:$0xff]
  %v1157 = vld [vmem:[#allocation3 + $0x1b8] sm:$0xff]
  %v1158 = vld [vmem:[#allocation3 + $0x1c0] sm:$0xff]
  %v1159 = vld [vmem:[#allocation3 + $0x1c8] sm:$0xff]
  %v1160 = vld [vmem:[#allocation3 + $0x1d0] sm:$0xff]
  %v1161 = vld [vmem:[#allocation3 + $0x1d8] sm:$0xff]
  %v1162 = vld [vmem:[#allocation3 + $0x1e0] sm:$0xff]
  %v1163 = vld [vmem:[#allocation3 + $0x1e8] sm:$0xff]
  %v1164 = vld [vmem:[#allocation3 + $0x1f0] sm:$0xff]
  %v1165 = vld [vmem:[#allocation3 + $0x1f8] sm:$0xff]
  %1166 = vmatprep.subr.mxu0 %v1163
  %1167 = vmatpush1.msra.mxu0 %v1162
  %1168 = vmatprep.subr.mxu0 %v1159
  %1169 = vmatpush1.msra.mxu0 %v1158
  %1170 = vmatprep.subr.mxu0 %v1155
  %1171 = vmatpush1.msra.mxu0 %v1154
  %1172 = vmatprep.subr.mxu0 %v1151
  %1173 = vmatpush1.msra.mxu0 %v1150
  %1174 = vmatprep.subr.mxu0 %v1147
  %1175 = vmatpush1.msra.mxu0 %v1146
  %1176 = vmatprep.subr.mxu0 %v1143
  %1177 = vmatpush1.msra.mxu0 %v1142
  %1178 = vmatprep.subr.mxu0 %v1139
  %1179 = vmatpush1.msra.mxu0 %v1138
  %1180 = vmatprep.subr.mxu0 %v1135
  %1181 = vmatpush1.msra.mxu0 %v1134
  %1182 = vmatprep.subr.mxu0 %v1131
  %1183 = vmatpush1.msra.mxu0 %v1130
  %1184 = vmatprep.subr.mxu0 %v1127
  %1185 = vmatpush1.msra.mxu0 %v1126
  %1186 = vmatprep.subr.mxu0 %v1123
  %1187 = vmatpush1.msra.mxu0 %v1122
  %1188 = vmatprep.subr.mxu0 %v1119
  %1189 = vmatpush1.msra.mxu0 %v1118
  %1190 = vmatprep.subr.mxu0 %v1115
  %1191 = vmatpush1.msra.mxu0 %v1114
  %1192 = vmatprep.subr.mxu0 %v1111
  %1193 = vmatpush1.msra.mxu0 %v1110
  %1194 = vmatprep.subr.mxu0 %v1107
  %1195 = vmatpush1.msra.mxu0 %v1106
  %1196 = vmatprep.subr.mxu0 %v1103
  %1197 = vmatpush1.msra.mxu0 %v1102
  %1198 = vmatprep.subr.mxu0 0.0
  %1199 = vmatpush2.msra.mxu0 0.0
  %1200 = vmatprep.subr.mxu0 0.0
  %1201 = vmatpush2.msra.mxu0 0.0
  %1202 = vmatprep.subr.mxu0 0.0
  %1203 = vmatpush2.msra.mxu0 0.0
  %1204 = vmatprep.subr.mxu0 0.0
  %1205 = vmatpush2.msra.mxu0 0.0
  %1206 = vmatprep.subr.mxu0 0.0
  %1207 = vmatpush2.msra.mxu0 0.0
  %1208 = vmatprep.subr.mxu0 0.0
  %1209 = vmatpush2.msra.mxu0 0.0
  %1210 = vmatprep.subr.mxu0 0.0
  %1211 = vmatpush2.msra.mxu0 0.0
  %1212 = vmatprep.subr.mxu0 0.0
  %1213 = vmatpush2.msra.mxu0 0.0
  %1214 = vmatprep.subr.mxu0 0.0
  %1215 = vmatpush2.msra.mxu0 0.0
  %1216 = vmatprep.subr.mxu0 0.0
  %1217 = vmatpush2.msra.mxu0 0.0
  %1218 = vmatprep.subr.mxu0 0.0
  %1219 = vmatpush2.msra.mxu0 0.0
  %1220 = vmatprep.subr.mxu0 0.0
  %1221 = vmatpush2.msra.mxu0 0.0
  %1222 = vmatprep.subr.mxu0 0.0
  %1223 = vmatpush2.msra.mxu0 0.0
  %1224 = vmatprep.subr.mxu0 0.0
  %1225 = vmatpush2.msra.mxu0 0.0
  %1226 = vmatprep.subr.mxu0 0.0
  %1227 = vmatpush2.msra.mxu0 0.0
  %1228 = vmatprep.subr.mxu0 0.0
  %1229 = vmatpush2.msra.mxu0 0.0
  %1230 = vmatprep.mubr.f32.mxu0 0.0
  %1231 = vmatmul.mubr.f32.gmra.mxu0 %v1096
  %v1232 = vpop.f32.mrf.mxu0
  %v1233 = vadd.f32 0.0, %v1232
  %v1234 = vpop.f32.mrf.mxu0
  %v1235 = vadd.f32 0.0, %v1234
  %1236 = vdwg.mxu0
  %1237 = vmatprep.subr.mxu0 %v1165
  %1238 = vmatpush1.msra.mxu0 %v1164
  %1239 = vmatprep.subr.mxu0 %v1161
  %1240 = vmatpush1.msra.mxu0 %v1160
  %1241 = vmatprep.subr.mxu0 %v1157
  %1242 = vmatpush1.msra.mxu0 %v1156
  %1243 = vmatprep.subr.mxu0 %v1153
  %1244 = vmatpush1.msra.mxu0 %v1152
  %1245 = vmatprep.subr.mxu0 %v1149
  %1246 = vmatpush1.msra.mxu0 %v1148
  %1247 = vmatprep.subr.mxu0 %v1145
  %1248 = vmatpush1.msra.mxu0 %v1144
  %1249 = vmatprep.subr.mxu0 %v1141
  %1250 = vmatpush1.msra.mxu0 %v1140
  %1251 = vmatprep.subr.mxu0 %v1137
  %1252 = vmatpush1.msra.mxu0 %v1136
  %1253 = vmatprep.subr.mxu0 %v1133
  %1254 = vmatpush1.msra.mxu0 %v1132
  %1255 = vmatprep.subr.mxu0 %v1129
  %1256 = vmatpush1.msra.mxu0 %v1128
  %1257 = vmatprep.subr.mxu0 %v1125
  %1258 = vmatpush1.msra.mxu0 %v1124
  %1259 = vmatprep.subr.mxu0 %v1121
  %1260 = vmatpush1.msra.mxu0 %v1120
  %1261 = vmatprep.subr.mxu0 %v1117
  %1262 = vmatpush1.msra.mxu0 %v1116
  %1263 = vmatprep.subr.mxu0 %v1113
  %1264 = vmatpush1.msra.mxu0 %v1112
  %1265 = vmatprep.subr.mxu0 %v1109
  %1266 = vmatpush1.msra.mxu0 %v1108
  %1267 = vmatprep.subr.mxu0 %v1105
  %1268 = vmatpush1.msra.mxu0 %v1104
  %1269 = vmatprep.subr.mxu0 0.0
  %1270 = vmatpush2.msra.mxu0 0.0
  %1271 = vmatprep.subr.mxu0 0.0
  %1272 = vmatpush2.msra.mxu0 0.0
  %1273 = vmatprep.subr.mxu0 0.0
  %1274 = vmatpush2.msra.mxu0 0.0
  %1275 = vmatprep.subr.mxu0 0.0
  %1276 = vmatpush2.msra.mxu0 0.0
  %1277 = vmatprep.subr.mxu0 0.0
  %1278 = vmatpush2.msra.mxu0 0.0
  %1279 = vmatprep.subr.mxu0 0.0
  %1280 = vmatpush2.msra.mxu0 0.0
  %1281 = vmatprep.subr.mxu0 0.0
  %1282 = vmatpush2.msra.mxu0 0.0
  %1283 = vmatprep.subr.mxu0 0.0
  %1284 = vmatpush2.msra.mxu0 0.0
  %1285 = vmatprep.subr.mxu0 0.0
  %1286 = vmatpush2.msra.mxu0 0.0
  %1287 = vmatprep.subr.mxu0 0.0
  %1288 = vmatpush2.msra.mxu0 0.0
  %1289 = vmatprep.subr.mxu0 0.0
  %1290 = vmatpush2.msra.mxu0 0.0
  %1291 = vmatprep.subr.mxu0 0.0
  %1292 = vmatpush2.msra.mxu0 0.0
  %1293 = vmatprep.subr.mxu0 0.0
  %1294 = vmatpush2.msra.mxu0 0.0
  %1295 = vmatprep.subr.mxu0 0.0
  %1296 = vmatpush2.msra.mxu0 0.0
  %1297 = vmatprep.subr.mxu0 0.0
  %1298 = vmatpush2.msra.mxu0 0.0
  %1299 = vmatprep.subr.mxu0 0.0
  %1300 = vmatpush2.msra.mxu0 0.0
  %1301 = vmatprep.mubr.f32.mxu0 0.0
  %1302 = vmatmul.mubr.f32.gmra.mxu0 %v1096
  %v1303 = vpop.f32.mrf.mxu0
  %v1304 = vadd.f32 0.0, %v1303
  %v1305 = vpop.f32.mrf.mxu0
  %v1306 = vadd.f32 0.0, %v1305
  %1307 = vdwg.mxu0
  %v1308 = vadd.f32 %v1098, %v1233
  %v1309 = vadd.f32 %v1099, %v1235
  %v1310 = vadd.f32 %v1100, %v1304
  %v1311 = vadd.f32 %v1101, %v1306
  %v1312 = vxor.u32 %v1308, 2147483648
  %v1313 = vmul.f32 %v1312, 1.442695
  %v1314 = vpow.pop %v1313
  %v1315 = vadd.f32 %v1314, 1.0
  %v1316 = vrcp.pop %v1315
  %v1317 = vmul.f32 1.0, %v1316
  %v1318 = vxor.u32 %v1309, 2147483648
  %v1319 = vmul.f32 %v1318, 1.442695
  %v1320 = vpow.pop %v1319
  %v1321 = vadd.f32 %v1320, 1.0
  %v1322 = vrcp.pop %v1321
  %v1323 = vmul.f32 1.0, %v1322
  %v1324 = vtanh.pop %v1310
  %v1325 = vxor.u32 %v1311, 2147483648
  %v1326 = vmul.f32 %v1325, 1.442695
  %v1327 = vpow.pop %v1326
  %v1328 = vadd.f32 %v1327, 1.0
  %v1329 = vrcp.pop %v1328
  %v1330 = vmul.f32 1.0, %v1329
  %v1331 = vmul.f32 %v1323, %v1094
  %v1332 = vmul.f32 %v1317, %v1324
  %v1333 = vadd.f32 %v1331, %v1332
  %v1334 = vtanh.pop %v1333
  %v1335 = vmul.f32 %v1330, %v1334
  %1336 = vst [vmem:[%s4 + $0x10] sm:$0xff] %v1335
  %v1337 = vld [vmem:[#allocation5 + $0x60] sm:$0xff]
  %v1338 = vld [vmem:[#allocation5 + $0x68] sm:$0xff]
  %v1339 = vld [vmem:[#allocation5 + $0x70] sm:$0xff]
  %v1340 = vld [vmem:[#allocation5 + $0x78] sm:$0xff]
  %v1341 = vld [vmem:[#allocation3] sm:$0xff]
  %v1342 = vld [vmem:[#allocation3 + $0x8] sm:$0xff]
  %v1343 = vld [vmem:[#allocation3 + $0x10] sm:$0xff]
  %v1344 = vld [vmem:[#allocation3 + $0x18] sm:$0xff]
  %v1345 = vld [vmem:[#allocation3 + $0x20] sm:$0xff]
  %v1346 = vld [vmem:[#allocation3 + $0x28] sm:$0xff]
  %v1347 = vld [vmem:[#allocation3 + $0x30] sm:$0xff]
  %v1348 = vld [vmem:[#allocation3 + $0x38] sm:$0xff]
  %v1349 = vld [vmem:[#allocation3 + $0x40] sm:$0xff]
  %v1350 = vld [vmem:[#allocation3 + $0x48] sm:$0xff]
  %v1351 = vld [vmem:[#allocation3 + $0x50] sm:$0xff]
  %v1352 = vld [vmem:[#allocation3 + $0x58] sm:$0xff]
  %v1353 = vld [vmem:[#allocation3 + $0x60] sm:$0xff]
  %v1354 = vld [vmem:[#allocation3 + $0x68] sm:$0xff]
  %v1355 = vld [vmem:[#allocation3 + $0x70] sm:$0xff]
  %v1356 = vld [vmem:[#allocation3 + $0x78] sm:$0xff]
  %v1357 = vld [vmem:[#allocation3 + $0x80] sm:$0xff]
  %v1358 = vld [vmem:[#allocation3 + $0x88] sm:$0xff]
  %v1359 = vld [vmem:[#allocation3 + $0x90] sm:$0xff]
  %v1360 = vld [vmem:[#allocation3 + $0x98] sm:$0xff]
  %v1361 = vld [vmem:[#allocation3 + $0xa0] sm:$0xff]
  %v1362 = vld [vmem:[#allocation3 + $0xa8] sm:$0xff]
  %v1363 = vld [vmem:[#allocation3 + $0xb0] sm:$0xff]
  %v1364 = vld [vmem:[#allocation3 + $0xb8] sm:$0xff]
  %v1365 = vld [vmem:[#allocation3 + $0xc0] sm:$0xff]
  %v1366 = vld [vmem:[#allocation3 + $0xc8] sm:$0xff]
  %v1367 = vld [vmem:[#allocation3 + $0xd0] sm:$0xff]
  %v1368 = vld [vmem:[#allocation3 + $0xd8] sm:$0xff]
  %v1369 = vld [vmem:[#allocation3 + $0xe0] sm:$0xff]
  %v1370 = vld [vmem:[#allocation3 + $0xe8] sm:$0xff]
  %v1371 = vld [vmem:[#allocation3 + $0xf0] sm:$0xff]
  %v1372 = vld [vmem:[#allocation3 + $0xf8] sm:$0xff]
  %v1373 = vld [vmem:[#allocation3 + $0x100] sm:$0xff]
  %v1374 = vld [vmem:[#allocation3 + $0x108] sm:$0xff]
  %v1375 = vld [vmem:[#allocation3 + $0x110] sm:$0xff]
  %v1376 = vld [vmem:[#allocation3 + $0x118] sm:$0xff]
  %v1377 = vld [vmem:[#allocation3 + $0x120] sm:$0xff]
  %v1378 = vld [vmem:[#allocation3 + $0x128] sm:$0xff]
  %v1379 = vld [vmem:[#allocation3 + $0x130] sm:$0xff]
  %v1380 = vld [vmem:[#allocation3 + $0x138] sm:$0xff]
  %v1381 = vld [vmem:[#allocation3 + $0x140] sm:$0xff]
  %v1382 = vld [vmem:[#allocation3 + $0x148] sm:$0xff]
  %v1383 = vld [vmem:[#allocation3 + $0x150] sm:$0xff]
  %v1384 = vld [vmem:[#allocation3 + $0x158] sm:$0xff]
  %v1385 = vld [vmem:[#allocation3 + $0x160] sm:$0xff]
  %v1386 = vld [vmem:[#allocation3 + $0x168] sm:$0xff]
  %v1387 = vld [vmem:[#allocation3 + $0x170] sm:$0xff]
  %v1388 = vld [vmem:[#allocation3 + $0x178] sm:$0xff]
  %v1389 = vld [vmem:[#allocation3 + $0x180] sm:$0xff]
  %v1390 = vld [vmem:[#allocation3 + $0x188] sm:$0xff]
  %v1391 = vld [vmem:[#allocation3 + $0x190] sm:$0xff]
  %v1392 = vld [vmem:[#allocation3 + $0x198] sm:$0xff]
  %v1393 = vld [vmem:[#allocation3 + $0x1a0] sm:$0xff]
  %v1394 = vld [vmem:[#allocation3 + $0x1a8] sm:$0xff]
  %v1395 = vld [vmem:[#allocation3 + $0x1b0] sm:$0xff]
  %v1396 = vld [vmem:[#allocation3 + $0x1b8] sm:$0xff]
  %v1397 = vld [vmem:[#allocation3 + $0x1c0] sm:$0xff]
  %v1398 = vld [vmem:[#allocation3 + $0x1c8] sm:$0xff]
  %v1399 = vld [vmem:[#allocation3 + $0x1d0] sm:$0xff]
  %v1400 = vld [vmem:[#allocation3 + $0x1d8] sm:$0xff]
  %v1401 = vld [vmem:[#allocation3 + $0x1e0] sm:$0xff]
  %v1402 = vld [vmem:[#allocation3 + $0x1e8] sm:$0xff]
  %v1403 = vld [vmem:[#allocation3 + $0x1f0] sm:$0xff]
  %v1404 = vld [vmem:[#allocation3 + $0x1f8] sm:$0xff]
  %1405 = vmatprep.subr.mxu0 %v1402
  %1406 = vmatpush1.msra.mxu0 %v1401
  %1407 = vmatprep.subr.mxu0 %v1398
  %1408 = vmatpush1.msra.mxu0 %v1397
  %1409 = vmatprep.subr.mxu0 %v1394
  %1410 = vmatpush1.msra.mxu0 %v1393
  %1411 = vmatprep.subr.mxu0 %v1390
  %1412 = vmatpush1.msra.mxu0 %v1389
  %1413 = vmatprep.subr.mxu0 %v1386
  %1414 = vmatpush1.msra.mxu0 %v1385
  %1415 = vmatprep.subr.mxu0 %v1382
  %1416 = vmatpush1.msra.mxu0 %v1381
  %1417 = vmatprep.subr.mxu0 %v1378
  %1418 = vmatpush1.msra.mxu0 %v1377
  %1419 = vmatprep.subr.mxu0 %v1374
  %1420 = vmatpush1.msra.mxu0 %v1373
  %1421 = vmatprep.subr.mxu0 %v1370
  %1422 = vmatpush1.msra.mxu0 %v1369
  %1423 = vmatprep.subr.mxu0 %v1366
  %1424 = vmatpush1.msra.mxu0 %v1365
  %1425 = vmatprep.subr.mxu0 %v1362
  %1426 = vmatpush1.msra.mxu0 %v1361
  %1427 = vmatprep.subr.mxu0 %v1358
  %1428 = vmatpush1.msra.mxu0 %v1357
  %1429 = vmatprep.subr.mxu0 %v1354
  %1430 = vmatpush1.msra.mxu0 %v1353
  %1431 = vmatprep.subr.mxu0 %v1350
  %1432 = vmatpush1.msra.mxu0 %v1349
  %1433 = vmatprep.subr.mxu0 %v1346
  %1434 = vmatpush1.msra.mxu0 %v1345
  %1435 = vmatprep.subr.mxu0 %v1342
  %1436 = vmatpush1.msra.mxu0 %v1341
  %1437 = vmatprep.subr.mxu0 0.0
  %1438 = vmatpush2.msra.mxu0 0.0
  %1439 = vmatprep.subr.mxu0 0.0
  %1440 = vmatpush2.msra.mxu0 0.0
  %1441 = vmatprep.subr.mxu0 0.0
  %1442 = vmatpush2.msra.mxu0 0.0
  %1443 = vmatprep.subr.mxu0 0.0
  %1444 = vmatpush2.msra.mxu0 0.0
  %1445 = vmatprep.subr.mxu0 0.0
  %1446 = vmatpush2.msra.mxu0 0.0
  %1447 = vmatprep.subr.mxu0 0.0
  %1448 = vmatpush2.msra.mxu0 0.0
  %1449 = vmatprep.subr.mxu0 0.0
  %1450 = vmatpush2.msra.mxu0 0.0
  %1451 = vmatprep.subr.mxu0 0.0
  %1452 = vmatpush2.msra.mxu0 0.0
  %1453 = vmatprep.subr.mxu0 0.0
  %1454 = vmatpush2.msra.mxu0 0.0
  %1455 = vmatprep.subr.mxu0 0.0
  %1456 = vmatpush2.msra.mxu0 0.0
  %1457 = vmatprep.subr.mxu0 0.0
  %1458 = vmatpush2.msra.mxu0 0.0
  %1459 = vmatprep.subr.mxu0 0.0
  %1460 = vmatpush2.msra.mxu0 0.0
  %1461 = vmatprep.subr.mxu0 0.0
  %1462 = vmatpush2.msra.mxu0 0.0
  %1463 = vmatprep.subr.mxu0 0.0
  %1464 = vmatpush2.msra.mxu0 0.0
  %1465 = vmatprep.subr.mxu0 0.0
  %1466 = vmatpush2.msra.mxu0 0.0
  %1467 = vmatprep.subr.mxu0 0.0
  %1468 = vmatpush2.msra.mxu0 0.0
  %1469 = vmatprep.mubr.f32.mxu0 0.0
  %1470 = vmatmul.mubr.f32.gmra.mxu0 %v1335
  %v1471 = vpop.f32.mrf.mxu0
  %v1472 = vadd.f32 0.0, %v1471
  %v1473 = vpop.f32.mrf.mxu0
  %v1474 = vadd.f32 0.0, %v1473
  %1475 = vdwg.mxu0
  %1476 = vmatprep.subr.mxu0 %v1404
  %1477 = vmatpush1.msra.mxu0 %v1403
  %1478 = vmatprep.subr.mxu0 %v1400
  %1479 = vmatpush1.msra.mxu0 %v1399
  %1480 = vmatprep.subr.mxu0 %v1396
  %1481 = vmatpush1.msra.mxu0 %v1395
  %1482 = vmatprep.subr.mxu0 %v1392
  %1483 = vmatpush1.msra.mxu0 %v1391
  %1484 = vmatprep.subr.mxu0 %v1388
  %1485 = vmatpush1.msra.mxu0 %v1387
  %1486 = vmatprep.subr.mxu0 %v1384
  %1487 = vmatpush1.msra.mxu0 %v1383
  %1488 = vmatprep.subr.mxu0 %v1380
  %1489 = vmatpush1.msra.mxu0 %v1379
  %1490 = vmatprep.subr.mxu0 %v1376
  %1491 = vmatpush1.msra.mxu0 %v1375
  %1492 = vmatprep.subr.mxu0 %v1372
  %1493 = vmatpush1.msra.mxu0 %v1371
  %1494 = vmatprep.subr.mxu0 %v1368
  %1495 = vmatpush1.msra.mxu0 %v1367
  %1496 = vmatprep.subr.mxu0 %v1364
  %1497 = vmatpush1.msra.mxu0 %v1363
  %1498 = vmatprep.subr.mxu0 %v1360
  %1499 = vmatpush1.msra.mxu0 %v1359
  %1500 = vmatprep.subr.mxu0 %v1356
  %1501 = vmatpush1.msra.mxu0 %v1355
  %1502 = vmatprep.subr.mxu0 %v1352
  %1503 = vmatpush1.msra.mxu0 %v1351
  %1504 = vmatprep.subr.mxu0 %v1348
  %1505 = vmatpush1.msra.mxu0 %v1347
  %1506 = vmatprep.subr.mxu0 %v1344
  %1507 = vmatpush1.msra.mxu0 %v1343
  %1508 = vmatprep.subr.mxu0 0.0
  %1509 = vmatpush2.msra.mxu0 0.0
  %1510 = vmatprep.subr.mxu0 0.0
  %1511 = vmatpush2.msra.mxu0 0.0
  %1512 = vmatprep.subr.mxu0 0.0
  %1513 = vmatpush2.msra.mxu0 0.0
  %1514 = vmatprep.subr.mxu0 0.0
  %1515 = vmatpush2.msra.mxu0 0.0
  %1516 = vmatprep.subr.mxu0 0.0
  %1517 = vmatpush2.msra.mxu0 0.0
  %1518 = vmatprep.subr.mxu0 0.0
  %1519 = vmatpush2.msra.mxu0 0.0
  %1520 = vmatprep.subr.mxu0 0.0
  %1521 = vmatpush2.msra.mxu0 0.0
  %1522 = vmatprep.subr.mxu0 0.0
  %1523 = vmatpush2.msra.mxu0 0.0
  %1524 = vmatprep.subr.mxu0 0.0
  %1525 = vmatpush2.msra.mxu0 0.0
  %1526 = vmatprep.subr.mxu0 0.0
  %1527 = vmatpush2.msra.mxu0 0.0
  %1528 = vmatprep.subr.mxu0 0.0
  %1529 = vmatpush2.msra.mxu0 0.0
  %1530 = vmatprep.subr.mxu0 0.0
  %1531 = vmatpush2.msra.mxu0 0.0
  %1532 = vmatprep.subr.mxu0 0.0
  %1533 = vmatpush2.msra.mxu0 0.0
  %1534 = vmatprep.subr.mxu0 0.0
  %1535 = vmatpush2.msra.mxu0 0.0
  %1536 = vmatprep.subr.mxu0 0.0
  %1537 = vmatpush2.msra.mxu0 0.0
  %1538 = vmatprep.subr.mxu0 0.0
  %1539 = vmatpush2.msra.mxu0 0.0
  %1540 = vmatprep.mubr.f32.mxu0 0.0
  %1541 = vmatmul.mubr.f32.gmra.mxu0 %v1335
  %v1542 = vpop.f32.mrf.mxu0
  %v1543 = vadd.f32 0.0, %v1542
  %v1544 = vpop.f32.mrf.mxu0
  %v1545 = vadd.f32 0.0, %v1544
  %1546 = vdwg.mxu0
  %v1547 = vadd.f32 %v1337, %v1472
  %v1548 = vadd.f32 %v1338, %v1474
  %v1549 = vadd.f32 %v1339, %v1543
  %v1550 = vadd.f32 %v1340, %v1545
  %v1551 = vxor.u32 %v1547, 2147483648
  %v1552 = vmul.f32 %v1551, 1.442695
  %v1553 = vpow.pop %v1552
  %v1554 = vadd.f32 %v1553, 1.0
  %v1555 = vrcp.pop %v1554
  %v1556 = vmul.f32 1.0, %v1555
  %v1557 = vxor.u32 %v1548, 2147483648
  %v1558 = vmul.f32 %v1557, 1.442695
  %v1559 = vpow.pop %v1558
  %v1560 = vadd.f32 %v1559, 1.0
  %v1561 = vrcp.pop %v1560
  %v1562 = vmul.f32 1.0, %v1561
  %v1563 = vtanh.pop %v1549
  %v1564 = vxor.u32 %v1550, 2147483648
  %v1565 = vmul.f32 %v1564, 1.442695
  %v1566 = vpow.pop %v1565
  %v1567 = vadd.f32 %v1566, 1.0
  %v1568 = vrcp.pop %v1567
  %v1569 = vmul.f32 1.0, %v1568
  %v1570 = vmul.f32 %v1562, %v1333
  %v1571 = vmul.f32 %v1556, %v1563
  %v1572 = vadd.f32 %v1570, %v1571
  %v1573 = vtanh.pop %v1572
  %v1574 = vmul.f32 %v1569, %v1573
  %1575 = vst [vmem:[%s4 + $0x18] sm:$0xff] %v1574
  %v1576 = vld [vmem:[#allocation5 + $0x80] sm:$0xff]
  %v1577 = vld [vmem:[#allocation5 + $0x88] sm:$0xff]
  %v1578 = vld [vmem:[#allocation5 + $0x90] sm:$0xff]
  %v1579 = vld [vmem:[#allocation5 + $0x98] sm:$0xff]
  %v1580 = vld [vmem:[#allocation3] sm:$0xff]
  %v1581 = vld [vmem:[#allocation3 + $0x8] sm:$0xff]
  %v1582 = vld [vmem:[#allocation3 + $0x10] sm:$0xff]
  %v1583 = vld [vmem:[#allocation3 + $0x18] sm:$0xff]
  %v1584 = vld [vmem:[#allocation3 + $0x20] sm:$0xff]
  %v1585 = vld [vmem:[#allocation3 + $0x28] sm:$0xff]
  %v1586 = vld [vmem:[#allocation3 + $0x30] sm:$0xff]
  %v1587 = vld [vmem:[#allocation3 + $0x38] sm:$0xff]
  %v1588 = vld [vmem:[#allocation3 + $0x40] sm:$0xff]
  %v1589 = vld [vmem:[#allocation3 + $0x48] sm:$0xff]
  %v1590 = vld [vmem:[#allocation3 + $0x50] sm:$0xff]
  %v1591 = vld [vmem:[#allocation3 + $0x58] sm:$0xff]
  %v1592 = vld [vmem:[#allocation3 + $0x60] sm:$0xff]
  %v1593 = vld [vmem:[#allocation3 + $0x68] sm:$0xff]
  %v1594 = vld [vmem:[#allocation3 + $0x70] sm:$0xff]
  %v1595 = vld [vmem:[#allocation3 + $0x78] sm:$0xff]
  %v1596 = vld [vmem:[#allocation3 + $0x80] sm:$0xff]
  %v1597 = vld [vmem:[#allocation3 + $0x88] sm:$0xff]
  %v1598 = vld [vmem:[#allocation3 + $0x90] sm:$0xff]
  %v1599 = vld [vmem:[#allocation3 + $0x98] sm:$0xff]
  %v1600 = vld [vmem:[#allocation3 + $0xa0] sm:$0xff]
  %v1601 = vld [vmem:[#allocation3 + $0xa8] sm:$0xff]
  %v1602 = vld [vmem:[#allocation3 + $0xb0] sm:$0xff]
  %v1603 = vld [vmem:[#allocation3 + $0xb8] sm:$0xff]
  %v1604 = vld [vmem:[#allocation3 + $0xc0] sm:$0xff]
  %v1605 = vld [vmem:[#allocation3 + $0xc8] sm:$0xff]
  %v1606 = vld [vmem:[#allocation3 + $0xd0] sm:$0xff]
  %v1607 = vld [vmem:[#allocation3 + $0xd8] sm:$0xff]
  %v1608 = vld [vmem:[#allocation3 + $0xe0] sm:$0xff]
  %v1609 = vld [vmem:[#allocation3 + $0xe8] sm:$0xff]
  %v1610 = vld [vmem:[#allocation3 + $0xf0] sm:$0xff]
  %v1611 = vld [vmem:[#allocation3 + $0xf8] sm:$0xff]
  %v1612 = vld [vmem:[#allocation3 + $0x100] sm:$0xff]
  %v1613 = vld [vmem:[#allocation3 + $0x108] sm:$0xff]
  %v1614 = vld [vmem:[#allocation3 + $0x110] sm:$0xff]
  %v1615 = vld [vmem:[#allocation3 + $0x118] sm:$0xff]
  %v1616 = vld [vmem:[#allocation3 + $0x120] sm:$0xff]
  %v1617 = vld [vmem:[#allocation3 + $0x128] sm:$0xff]
  %v1618 = vld [vmem:[#allocation3 + $0x130] sm:$0xff]
  %v1619 = vld [vmem:[#allocation3 + $0x138] sm:$0xff]
  %v1620 = vld [vmem:[#allocation3 + $0x140] sm:$0xff]
  %v1621 = vld [vmem:[#allocation3 + $0x148] sm:$0xff]
  %v1622 = vld [vmem:[#allocation3 + $0x150] sm:$0xff]
  %v1623 = vld [vmem:[#allocation3 + $0x158] sm:$0xff]
  %v1624 = vld [vmem:[#allocation3 + $0x160] sm:$0xff]
  %v1625 = vld [vmem:[#allocation3 + $0x168] sm:$0xff]
  %v1626 = vld [vmem:[#allocation3 + $0x170] sm:$0xff]
  %v1627 = vld [vmem:[#allocation3 + $0x178] sm:$0xff]
  %v1628 = vld [vmem:[#allocation3 + $0x180] sm:$0xff]
  %v1629 = vld [vmem:[#allocation3 + $0x188] sm:$0xff]
  %v1630 = vld [vmem:[#allocation3 + $0x190] sm:$0xff]
  %v1631 = vld [vmem:[#allocation3 + $0x198] sm:$0xff]
  %v1632 = vld [vmem:[#allocation3 + $0x1a0] sm:$0xff]
  %v1633 = vld [vmem:[#allocation3 + $0x1a8] sm:$0xff]
  %v1634 = vld [vmem:[#allocation3 + $0x1b0] sm:$0xff]
  %v1635 = vld [vmem:[#allocation3 + $0x1b8] sm:$0xff]
  %v1636 = vld [vmem:[#allocation3 + $0x1c0] sm:$0xff]
  %v1637 = vld [vmem:[#allocation3 + $0x1c8] sm:$0xff]
  %v1638 = vld [vmem:[#allocation3 + $0x1d0] sm:$0xff]
  %v1639 = vld [vmem:[#allocation3 + $0x1d8] sm:$0xff]
  %v1640 = vld [vmem:[#allocation3 + $0x1e0] sm:$0xff]
  %v1641 = vld [vmem:[#allocation3 + $0x1e8] sm:$0xff]
  %v1642 = vld [vmem:[#allocation3 + $0x1f0] sm:$0xff]
  %v1643 = vld [vmem:[#allocation3 + $0x1f8] sm:$0xff]
  %1644 = vmatprep.subr.mxu0 %v1641
  %1645 = vmatpush1.msra.mxu0 %v1640
  %1646 = vmatprep.subr.mxu0 %v1637
  %1647 = vmatpush1.msra.mxu0 %v1636
  %1648 = vmatprep.subr.mxu0 %v1633
  %1649 = vmatpush1.msra.mxu0 %v1632
  %1650 = vmatprep.subr.mxu0 %v1629
  %1651 = vmatpush1.msra.mxu0 %v1628
  %1652 = vmatprep.subr.mxu0 %v1625
  %1653 = vmatpush1.msra.mxu0 %v1624
  %1654 = vmatprep.subr.mxu0 %v1621
  %1655 = vmatpush1.msra.mxu0 %v1620
  %1656 = vmatprep.subr.mxu0 %v1617
  %1657 = vmatpush1.msra.mxu0 %v1616
  %1658 = vmatprep.subr.mxu0 %v1613
  %1659 = vmatpush1.msra.mxu0 %v1612
  %1660 = vmatprep.subr.mxu0 %v1609
  %1661 = vmatpush1.msra.mxu0 %v1608
  %1662 = vmatprep.subr.mxu0 %v1605
  %1663 = vmatpush1.msra.mxu0 %v1604
  %1664 = vmatprep.subr.mxu0 %v1601
  %1665 = vmatpush1.msra.mxu0 %v1600
  %1666 = vmatprep.subr.mxu0 %v1597
  %1667 = vmatpush1.msra.mxu0 %v1596
  %1668 = vmatprep.subr.mxu0 %v1593
  %1669 = vmatpush1.msra.mxu0 %v1592
  %1670 = vmatprep.subr.mxu0 %v1589
  %1671 = vmatpush1.msra.mxu0 %v1588
  %1672 = vmatprep.subr.mxu0 %v1585
  %1673 = vmatpush1.msra.mxu0 %v1584
  %1674 = vmatprep.subr.mxu0 %v1581
  %1675 = vmatpush1.msra.mxu0 %v1580
  %1676 = vmatprep.subr.mxu0 0.0
  %1677 = vmatpush2.msra.mxu0 0.0
  %1678 = vmatprep.subr.mxu0 0.0
  %1679 = vmatpush2.msra.mxu0 0.0
  %1680 = vmatprep.subr.mxu0 0.0
  %1681 = vmatpush2.msra.mxu0 0.0
  %1682 = vmatprep.subr.mxu0 0.0
  %1683 = vmatpush2.msra.mxu0 0.0
  %1684 = vmatprep.subr.mxu0 0.0
  %1685 = vmatpush2.msra.mxu0 0.0
  %1686 = vmatprep.subr.mxu0 0.0
  %1687 = vmatpush2.msra.mxu0 0.0
  %1688 = vmatprep.subr.mxu0 0.0
  %1689 = vmatpush2.msra.mxu0 0.0
  %1690 = vmatprep.subr.mxu0 0.0
  %1691 = vmatpush2.msra.mxu0 0.0
  %1692 = vmatprep.subr.mxu0 0.0
  %1693 = vmatpush2.msra.mxu0 0.0
  %1694 = vmatprep.subr.mxu0 0.0
  %1695 = vmatpush2.msra.mxu0 0.0
  %1696 = vmatprep.subr.mxu0 0.0
  %1697 = vmatpush2.msra.mxu0 0.0
  %1698 = vmatprep.subr.mxu0 0.0
  %1699 = vmatpush2.msra.mxu0 0.0
  %1700 = vmatprep.subr.mxu0 0.0
  %1701 = vmatpush2.msra.mxu0 0.0
  %1702 = vmatprep.subr.mxu0 0.0
  %1703 = vmatpush2.msra.mxu0 0.0
  %1704 = vmatprep.subr.mxu0 0.0
  %1705 = vmatpush2.msra.mxu0 0.0
  %1706 = vmatprep.subr.mxu0 0.0
  %1707 = vmatpush2.msra.mxu0 0.0
  %1708 = vmatprep.mubr.f32.mxu0 0.0
  %1709 = vmatmul.mubr.f32.gmra.mxu0 %v1574
  %v1710 = vpop.f32.mrf.mxu0
  %v1711 = vadd.f32 0.0, %v1710
  %v1712 = vpop.f32.mrf.mxu0
  %v1713 = vadd.f32 0.0, %v1712
  %1714 = vdwg.mxu0
  %1715 = vmatprep.subr.mxu0 %v1643
  %1716 = vmatpush1.msra.mxu0 %v1642
  %1717 = vmatprep.subr.mxu0 %v1639
  %1718 = vmatpush1.msra.mxu0 %v1638
  %1719 = vmatprep.subr.mxu0 %v1635
  %1720 = vmatpush1.msra.mxu0 %v1634
  %1721 = vmatprep.subr.mxu0 %v1631
  %1722 = vmatpush1.msra.mxu0 %v1630
  %1723 = vmatprep.subr.mxu0 %v1627
  %1724 = vmatpush1.msra.mxu0 %v1626
  %1725 = vmatprep.subr.mxu0 %v1623
  %1726 = vmatpush1.msra.mxu0 %v1622
  %1727 = vmatprep.subr.mxu0 %v1619
  %1728 = vmatpush1.msra.mxu0 %v1618
  %1729 = vmatprep.subr.mxu0 %v1615
  %1730 = vmatpush1.msra.mxu0 %v1614
  %1731 = vmatprep.subr.mxu0 %v1611
  %1732 = vmatpush1.msra.mxu0 %v1610
  %1733 = vmatprep.subr.mxu0 %v1607
  %1734 = vmatpush1.msra.mxu0 %v1606
  %1735 = vmatprep.subr.mxu0 %v1603
  %1736 = vmatpush1.msra.mxu0 %v1602
  %1737 = vmatprep.subr.mxu0 %v1599
  %1738 = vmatpush1.msra.mxu0 %v1598
  %1739 = vmatprep.subr.mxu0 %v1595
  %1740 = vmatpush1.msra.mxu0 %v1594
  %1741 = vmatprep.subr.mxu0 %v1591
  %1742 = vmatpush1.msra.mxu0 %v1590
  %1743 = vmatprep.subr.mxu0 %v1587
  %1744 = vmatpush1.msra.mxu0 %v1586
  %1745 = vmatprep.subr.mxu0 %v1583
  %1746 = vmatpush1.msra.mxu0 %v1582
  %1747 = vmatprep.subr.mxu0 0.0
  %1748 = vmatpush2.msra.mxu0 0.0
  %1749 = vmatprep.subr.mxu0 0.0
  %1750 = vmatpush2.msra.mxu0 0.0
  %1751 = vmatprep.subr.mxu0 0.0
  %1752 = vmatpush2.msra.mxu0 0.0
  %1753 = vmatprep.subr.mxu0 0.0
  %1754 = vmatpush2.msra.mxu0 0.0
  %1755 = vmatprep.subr.mxu0 0.0
  %1756 = vmatpush2.msra.mxu0 0.0
  %1757 = vmatprep.subr.mxu0 0.0
  %1758 = vmatpush2.msra.mxu0 0.0
  %1759 = vmatprep.subr.mxu0 0.0
  %1760 = vmatpush2.msra.mxu0 0.0
  %1761 = vmatprep.subr.mxu0 0.0
  %1762 = vmatpush2.msra.mxu0 0.0
  %1763 = vmatprep.subr.mxu0 0.0
  %1764 = vmatpush2.msra.mxu0 0.0
  %1765 = vmatprep.subr.mxu0 0.0
  %1766 = vmatpush2.msra.mxu0 0.0
  %1767 = vmatprep.subr.mxu0 0.0
  %1768 = vmatpush2.msra.mxu0 0.0
  %1769 = vmatprep.subr.mxu0 0.0
  %1770 = vmatpush2.msra.mxu0 0.0
  %1771 = vmatprep.subr.mxu0 0.0
  %1772 = vmatpush2.msra.mxu0 0.0
  %1773 = vmatprep.subr.mxu0 0.0
  %1774 = vmatpush2.msra.mxu0 0.0
  %1775 = vmatprep.subr.mxu0 0.0
  %1776 = vmatpush2.msra.mxu0 0.0
  %1777 = vmatprep.subr.mxu0 0.0
  %1778 = vmatpush2.msra.mxu0 0.0
  %1779 = vmatprep.mubr.f32.mxu0 0.0
  %1780 = vmatmul.mubr.f32.gmra.mxu0 %v1574
  %v1781 = vpop.f32.mrf.mxu0
  %v1782 = vadd.f32 0.0, %v1781
  %v1783 = vpop.f32.mrf.mxu0
  %v1784 = vadd.f32 0.0, %v1783
  %1785 = vdwg.mxu0
  %v1786 = vadd.f32 %v1576, %v1711
  %v1787 = vadd.f32 %v1577, %v1713
  %v1788 = vadd.f32 %v1578, %v1782
  %v1789 = vadd.f32 %v1579, %v1784
  %v1790 = vxor.u32 %v1786, 2147483648
  %v1791 = vmul.f32 %v1790, 1.442695
  %v1792 = vpow.pop %v1791
  %v1793 = vadd.f32 %v1792, 1.0
  %v1794 = vrcp.pop %v1793
  %v1795 = vmul.f32 1.0, %v1794
  %v1796 = vxor.u32 %v1787, 2147483648
  %v1797 = vmul.f32 %v1796, 1.442695
  %v1798 = vpow.pop %v1797
  %v1799 = vadd.f32 %v1798, 1.0
  %v1800 = vrcp.pop %v1799
  %v1801 = vmul.f32 1.0, %v1800
  %v1802 = vtanh.pop %v1788
  %v1803 = vxor.u32 %v1789, 2147483648
  %v1804 = vmul.f32 %v1803, 1.442695
  %v1805 = vpow.pop %v1804
  %v1806 = vadd.f32 %v1805, 1.0
  %v1807 = vrcp.pop %v1806
  %v1808 = vmul.f32 1.0, %v1807
  %v1809 = vmul.f32 %v1801, %v1572
  %v1810 = vmul.f32 %v1795, %v1802
  %v1811 = vadd.f32 %v1809, %v1810
  %v1812 = vtanh.pop %v1811
  %v1813 = vmul.f32 %v1808, %v1812
  %1814 = vst [vmem:[%s4 + $0x20] sm:$0xff] %v1813
  %v1815 = vld [vmem:[#allocation5 + $0xa0] sm:$0xff]
  %v1816 = vld [vmem:[#allocation5 + $0xa8] sm:$0xff]
  %v1817 = vld [vmem:[#allocation5 + $0xb0] sm:$0xff]
  %v1818 = vld [vmem:[#allocation5 + $0xb8] sm:$0xff]
  %v1819 = vld [vmem:[#allocation3] sm:$0xff]
  %v1820 = vld [vmem:[#allocation3 + $0x8] sm:$0xff]
  %v1821 = vld [vmem:[#allocation3 + $0x10] sm:$0xff]
  %v1822 = vld [vmem:[#allocation3 + $0x18] sm:$0xff]
  %v1823 = vld [vmem:[#allocation3 + $0x20] sm:$0xff]
  %v1824 = vld [vmem:[#allocation3 + $0x28] sm:$0xff]
  %v1825 = vld [vmem:[#allocation3 + $0x30] sm:$0xff]
  %v1826 = vld [vmem:[#allocation3 + $0x38] sm:$0xff]
  %v1827 = vld [vmem:[#allocation3 + $0x40] sm:$0xff]
  %v1828 = vld [vmem:[#allocation3 + $0x48] sm:$0xff]
  %v1829 = vld [vmem:[#allocation3 + $0x50] sm:$0xff]
  %v1830 = vld [vmem:[#allocation3 + $0x58] sm:$0xff]
  %v1831 = vld [vmem:[#allocation3 + $0x60] sm:$0xff]
  %v1832 = vld [vmem:[#allocation3 + $0x68] sm:$0xff]
  %v1833 = vld [vmem:[#allocation3 + $0x70] sm:$0xff]
  %v1834 = vld [vmem:[#allocation3 + $0x78] sm:$0xff]
  %v1835 = vld [vmem:[#allocation3 + $0x80] sm:$0xff]
  %v1836 = vld [vmem:[#allocation3 + $0x88] sm:$0xff]
  %v1837 = vld [vmem:[#allocation3 + $0x90] sm:$0xff]
  %v1838 = vld [vmem:[#allocation3 + $0x98] sm:$0xff]
  %v1839 = vld [vmem:[#allocation3 + $0xa0] sm:$0xff]
  %v1840 = vld [vmem:[#allocation3 + $0xa8] sm:$0xff]
  %v1841 = vld [vmem:[#allocation3 + $0xb0] sm:$0xff]
  %v1842 = vld [vmem:[#allocation3 + $0xb8] sm:$0xff]
  %v1843 = vld [vmem:[#allocation3 + $0xc0] sm:$0xff]
  %v1844 = vld [vmem:[#allocation3 + $0xc8] sm:$0xff]
  %v1845 = vld [vmem:[#allocation3 + $0xd0] sm:$0xff]
  %v1846 = vld [vmem:[#allocation3 + $0xd8] sm:$0xff]
  %v1847 = vld [vmem:[#allocation3 + $0xe0] sm:$0xff]
  %v1848 = vld [vmem:[#allocation3 + $0xe8] sm:$0xff]
  %v1849 = vld [vmem:[#allocation3 + $0xf0] sm:$0xff]
  %v1850 = vld [vmem:[#allocation3 + $0xf8] sm:$0xff]
  %v1851 = vld [vmem:[#allocation3 + $0x100] sm:$0xff]
  %v1852 = vld [vmem:[#allocation3 + $0x108] sm:$0xff]
  %v1853 = vld [vmem:[#allocation3 + $0x110] sm:$0xff]
  %v1854 = vld [vmem:[#allocation3 + $0x118] sm:$0xff]
  %v1855 = vld [vmem:[#allocation3 + $0x120] sm:$0xff]
  %v1856 = vld [vmem:[#allocation3 + $0x128] sm:$0xff]
  %v1857 = vld [vmem:[#allocation3 + $0x130] sm:$0xff]
  %v1858 = vld [vmem:[#allocation3 + $0x138] sm:$0xff]
  %v1859 = vld [vmem:[#allocation3 + $0x140] sm:$0xff]
  %v1860 = vld [vmem:[#allocation3 + $0x148] sm:$0xff]
  %v1861 = vld [vmem:[#allocation3 + $0x150] sm:$0xff]
  %v1862 = vld [vmem:[#allocation3 + $0x158] sm:$0xff]
  %v1863 = vld [vmem:[#allocation3 + $0x160] sm:$0xff]
  %v1864 = vld [vmem:[#allocation3 + $0x168] sm:$0xff]
  %v1865 = vld [vmem:[#allocation3 + $0x170] sm:$0xff]
  %v1866 = vld [vmem:[#allocation3 + $0x178] sm:$0xff]
  %v1867 = vld [vmem:[#allocation3 + $0x180] sm:$0xff]
  %v1868 = vld [vmem:[#allocation3 + $0x188] sm:$0xff]
  %v1869 = vld [vmem:[#allocation3 + $0x190] sm:$0xff]
  %v1870 = vld [vmem:[#allocation3 + $0x198] sm:$0xff]
  %v1871 = vld [vmem:[#allocation3 + $0x1a0] sm:$0xff]
  %v1872 = vld [vmem:[#allocation3 + $0x1a8] sm:$0xff]
  %v1873 = vld [vmem:[#allocation3 + $0x1b0] sm:$0xff]
  %v1874 = vld [vmem:[#allocation3 + $0x1b8] sm:$0xff]
  %v1875 = vld [vmem:[#allocation3 + $0x1c0] sm:$0xff]
  %v1876 = vld [vmem:[#allocation3 + $0x1c8] sm:$0xff]
  %v1877 = vld [vmem:[#allocation3 + $0x1d0] sm:$0xff]
  %v1878 = vld [vmem:[#allocation3 + $0x1d8] sm:$0xff]
  %v1879 = vld [vmem:[#allocation3 + $0x1e0] sm:$0xff]
  %v1880 = vld [vmem:[#allocation3 + $0x1e8] sm:$0xff]
  %v1881 = vld [vmem:[#allocation3 + $0x1f0] sm:$0xff]
  %v1882 = vld [vmem:[#allocation3 + $0x1f8] sm:$0xff]
  %1883 = vmatprep.subr.mxu0 %v1880
  %1884 = vmatpush1.msra.mxu0 %v1879
  %1885 = vmatprep.subr.mxu0 %v1876
  %1886 = vmatpush1.msra.mxu0 %v1875
  %1887 = vmatprep.subr.mxu0 %v1872
  %1888 = vmatpush1.msra.mxu0 %v1871
  %1889 = vmatprep.subr.mxu0 %v1868
  %1890 = vmatpush1.msra.mxu0 %v1867
  %1891 = vmatprep.subr.mxu0 %v1864
  %1892 = vmatpush1.msra.mxu0 %v1863
  %1893 = vmatprep.subr.mxu0 %v1860
  %1894 = vmatpush1.msra.mxu0 %v1859
  %1895 = vmatprep.subr.mxu0 %v1856
  %1896 = vmatpush1.msra.mxu0 %v1855
  %1897 = vmatprep.subr.mxu0 %v1852
  %1898 = vmatpush1.msra.mxu0 %v1851
  %1899 = vmatprep.subr.mxu0 %v1848
  %1900 = vmatpush1.msra.mxu0 %v1847
  %1901 = vmatprep.subr.mxu0 %v1844
  %1902 = vmatpush1.msra.mxu0 %v1843
  %1903 = vmatprep.subr.mxu0 %v1840
  %1904 = vmatpush1.msra.mxu0 %v1839
  %1905 = vmatprep.subr.mxu0 %v1836
  %1906 = vmatpush1.msra.mxu0 %v1835
  %1907 = vmatprep.subr.mxu0 %v1832
  %1908 = vmatpush1.msra.mxu0 %v1831
  %1909 = vmatprep.subr.mxu0 %v1828
  %1910 = vmatpush1.msra.mxu0 %v1827
  %1911 = vmatprep.subr.mxu0 %v1824
  %1912 = vmatpush1.msra.mxu0 %v1823
  %1913 = vmatprep.subr.mxu0 %v1820
  %1914 = vmatpush1.msra.mxu0 %v1819
  %1915 = vmatprep.subr.mxu0 0.0
  %1916 = vmatpush2.msra.mxu0 0.0
  %1917 = vmatprep.subr.mxu0 0.0
  %1918 = vmatpush2.msra.mxu0 0.0
  %1919 = vmatprep.subr.mxu0 0.0
  %1920 = vmatpush2.msra.mxu0 0.0
  %1921 = vmatprep.subr.mxu0 0.0
  %1922 = vmatpush2.msra.mxu0 0.0
  %1923 = vmatprep.subr.mxu0 0.0
  %1924 = vmatpush2.msra.mxu0 0.0
  %1925 = vmatprep.subr.mxu0 0.0
  %1926 = vmatpush2.msra.mxu0 0.0
  %1927 = vmatprep.subr.mxu0 0.0
  %1928 = vmatpush2.msra.mxu0 0.0
  %1929 = vmatprep.subr.mxu0 0.0
  %1930 = vmatpush2.msra.mxu0 0.0
  %1931 = vmatprep.subr.mxu0 0.0
  %1932 = vmatpush2.msra.mxu0 0.0
  %1933 = vmatprep.subr.mxu0 0.0
  %1934 = vmatpush2.msra.mxu0 0.0
  %1935 = vmatprep.subr.mxu0 0.0
  %1936 = vmatpush2.msra.mxu0 0.0
  %1937 = vmatprep.subr.mxu0 0.0
  %1938 = vmatpush2.msra.mxu0 0.0
  %1939 = vmatprep.subr.mxu0 0.0
  %1940 = vmatpush2.msra.mxu0 0.0
  %1941 = vmatprep.subr.mxu0 0.0
  %1942 = vmatpush2.msra.mxu0 0.0
  %1943 = vmatprep.subr.mxu0 0.0
  %1944 = vmatpush2.msra.mxu0 0.0
  %1945 = vmatprep.subr.mxu0 0.0
  %1946 = vmatpush2.msra.mxu0 0.0
  %1947 = vmatprep.mubr.f32.mxu0 0.0
  %1948 = vmatmul.mubr.f32.gmra.mxu0 %v1813
  %v1949 = vpop.f32.mrf.mxu0
  %v1950 = vadd.f32 0.0, %v1949
  %v1951 = vpop.f32.mrf.mxu0
  %v1952 = vadd.f32 0.0, %v1951
  %1953 = vdwg.mxu0
  %1954 = vmatprep.subr.mxu0 %v1882
  %1955 = vmatpush1.msra.mxu0 %v1881
  %1956 = vmatprep.subr.mxu0 %v1878
  %1957 = vmatpush1.msra.mxu0 %v1877
  %1958 = vmatprep.subr.mxu0 %v1874
  %1959 = vmatpush1.msra.mxu0 %v1873
  %1960 = vmatprep.subr.mxu0 %v1870
  %1961 = vmatpush1.msra.mxu0 %v1869
  %1962 = vmatprep.subr.mxu0 %v1866
  %1963 = vmatpush1.msra.mxu0 %v1865
  %1964 = vmatprep.subr.mxu0 %v1862
  %1965 = vmatpush1.msra.mxu0 %v1861
  %1966 = vmatprep.subr.mxu0 %v1858
  %1967 = vmatpush1.msra.mxu0 %v1857
  %1968 = vmatprep.subr.mxu0 %v1854
  %1969 = vmatpush1.msra.mxu0 %v1853
  %1970 = vmatprep.subr.mxu0 %v1850
  %1971 = vmatpush1.msra.mxu0 %v1849
  %1972 = vmatprep.subr.mxu0 %v1846
  %1973 = vmatpush1.msra.mxu0 %v1845
  %1974 = vmatprep.subr.mxu0 %v1842
  %1975 = vmatpush1.msra.mxu0 %v1841
  %1976 = vmatprep.subr.mxu0 %v1838
  %1977 = vmatpush1.msra.mxu0 %v1837
  %1978 = vmatprep.subr.mxu0 %v1834
  %1979 = vmatpush1.msra.mxu0 %v1833
  %1980 = vmatprep.subr.mxu0 %v1830
  %1981 = vmatpush1.msra.mxu0 %v1829
  %1982 = vmatprep.subr.mxu0 %v1826
  %1983 = vmatpush1.msra.mxu0 %v1825
  %1984 = vmatprep.subr.mxu0 %v1822
  %1985 = vmatpush1.msra.mxu0 %v1821
  %1986 = vmatprep.subr.mxu0 0.0
  %1987 = vmatpush2.msra.mxu0 0.0
  %1988 = vmatprep.subr.mxu0 0.0
  %1989 = vmatpush2.msra.mxu0 0.0
  %1990 = vmatprep.subr.mxu0 0.0
  %1991 = vmatpush2.msra.mxu0 0.0
  %1992 = vmatprep.subr.mxu0 0.0
  %1993 = vmatpush2.msra.mxu0 0.0
  %1994 = vmatprep.subr.mxu0 0.0
  %1995 = vmatpush2.msra.mxu0 0.0
  %1996 = vmatprep.subr.mxu0 0.0
  %1997 = vmatpush2.msra.mxu0 0.0
  %1998 = vmatprep.subr.mxu0 0.0
  %1999 = vmatpush2.msra.mxu0 0.0
  %2000 = vmatprep.subr.mxu0 0.0
  %2001 = vmatpush2.msra.mxu0 0.0
  %2002 = vmatprep.subr.mxu0 0.0
  %2003 = vmatpush2.msra.mxu0 0.0
  %2004 = vmatprep.subr.mxu0 0.0
  %2005 = vmatpush2.msra.mxu0 0.0
  %2006 = vmatprep.subr.mxu0 0.0
  %2007 = vmatpush2.msra.mxu0 0.0
  %2008 = vmatprep.subr.mxu0 0.0
  %2009 = vmatpush2.msra.mxu0 0.0
  %2010 = vmatprep.subr.mxu0 0.0
  %2011 = vmatpush2.msra.mxu0 0.0
  %2012 = vmatprep.subr.mxu0 0.0
  %2013 = vmatpush2.msra.mxu0 0.0
  %2014 = vmatprep.subr.mxu0 0.0
  %2015 = vmatpush2.msra.mxu0 0.0
  %2016 = vmatprep.subr.mxu0 0.0
  %2017 = vmatpush2.msra.mxu0 0.0
  %2018 = vmatprep.mubr.f32.mxu0 0.0
  %2019 = vmatmul.mubr.f32.gmra.mxu0 %v1813
  %v2020 = vpop.f32.mrf.mxu0
  %v2021 = vadd.f32 0.0, %v2020
  %v2022 = vpop.f32.mrf.mxu0
  %v2023 = vadd.f32 0.0, %v2022
  %2024 = vdwg.mxu0
  %v2025 = vadd.f32 %v1815, %v1950
  %v2026 = vadd.f32 %v1816, %v1952
  %v2027 = vadd.f32 %v1817, %v2021
  %v2028 = vadd.f32 %v1818, %v2023
  %v2029 = vxor.u32 %v2025, 2147483648
  %v2030 = vmul.f32 %v2029, 1.442695
  %v2031 = vpow.pop %v2030
  %v2032 = vadd.f32 %v2031, 1.0
  %v2033 = vrcp.pop %v2032
  %v2034 = vmul.f32 1.0, %v2033
  %v2035 = vxor.u32 %v2026, 2147483648
  %v2036 = vmul.f32 %v2035, 1.442695
  %v2037 = vpow.pop %v2036
  %v2038 = vadd.f32 %v2037, 1.0
  %v2039 = vrcp.pop %v2038
  %v2040 = vmul.f32 1.0, %v2039
  %v2041 = vtanh.pop %v2027
  %v2042 = vxor.u32 %v2028, 2147483648
  %v2043 = vmul.f32 %v2042, 1.442695
  %v2044 = vpow.pop %v2043
  %v2045 = vadd.f32 %v2044, 1.0
  %v2046 = vrcp.pop %v2045
  %v2047 = vmul.f32 1.0, %v2046
  %v2048 = vmul.f32 %v2040, %v1811
  %v2049 = vmul.f32 %v2034, %v2041
  %v2050 = vadd.f32 %v2048, %v2049
  %v2051 = vtanh.pop %v2050
  %v2052 = vmul.f32 %v2047, %v2051
  %2053 = vst [vmem:[%s4 + $0x28] sm:$0xff] %v2052
  %v2054 = vld [vmem:[#allocation5 + $0xc0] sm:$0xff]
  %v2055 = vld [vmem:[#allocation5 + $0xc8] sm:$0xff]
  %v2056 = vld [vmem:[#allocation5 + $0xd0] sm:$0xff]
  %v2057 = vld [vmem:[#allocation5 + $0xd8] sm:$0xff]
  %v2058 = vld [vmem:[#allocation3] sm:$0xff]
  %v2059 = vld [vmem:[#allocation3 + $0x8] sm:$0xff]
  %v2060 = vld [vmem:[#allocation3 + $0x10] sm:$0xff]
  %v2061 = vld [vmem:[#allocation3 + $0x18] sm:$0xff]
  %v2062 = vld [vmem:[#allocation3 + $0x20] sm:$0xff]
  %v2063 = vld [vmem:[#allocation3 + $0x28] sm:$0xff]
  %v2064 = vld [vmem:[#allocation3 + $0x30] sm:$0xff]
  %v2065 = vld [vmem:[#allocation3 + $0x38] sm:$0xff]
  %v2066 = vld [vmem:[#allocation3 + $0x40] sm:$0xff]
  %v2067 = vld [vmem:[#allocation3 + $0x48] sm:$0xff]
  %v2068 = vld [vmem:[#allocation3 + $0x50] sm:$0xff]
  %v2069 = vld [vmem:[#allocation3 + $0x58] sm:$0xff]
  %v2070 = vld [vmem:[#allocation3 + $0x60] sm:$0xff]
  %v2071 = vld [vmem:[#allocation3 + $0x68] sm:$0xff]
  %v2072 = vld [vmem:[#allocation3 + $0x70] sm:$0xff]
  %v2073 = vld [vmem:[#allocation3 + $0x78] sm:$0xff]
  %v2074 = vld [vmem:[#allocation3 + $0x80] sm:$0xff]
  %v2075 = vld [vmem:[#allocation3 + $0x88] sm:$0xff]
  %v2076 = vld [vmem:[#allocation3 + $0x90] sm:$0xff]
  %v2077 = vld [vmem:[#allocation3 + $0x98] sm:$0xff]
  %v2078 = vld [vmem:[#allocation3 + $0xa0] sm:$0xff]
  %v2079 = vld [vmem:[#allocation3 + $0xa8] sm:$0xff]
  %v2080 = vld [vmem:[#allocation3 + $0xb0] sm:$0xff]
  %v2081 = vld [vmem:[#allocation3 + $0xb8] sm:$0xff]
  %v2082 = vld [vmem:[#allocation3 + $0xc0] sm:$0xff]
  %v2083 = vld [vmem:[#allocation3 + $0xc8] sm:$0xff]
  %v2084 = vld [vmem:[#allocation3 + $0xd0] sm:$0xff]
  %v2085 = vld [vmem:[#allocation3 + $0xd8] sm:$0xff]
  %v2086 = vld [vmem:[#allocation3 + $0xe0] sm:$0xff]
  %v2087 = vld [vmem:[#allocation3 + $0xe8] sm:$0xff]
  %v2088 = vld [vmem:[#allocation3 + $0xf0] sm:$0xff]
  %v2089 = vld [vmem:[#allocation3 + $0xf8] sm:$0xff]
  %v2090 = vld [vmem:[#allocation3 + $0x100] sm:$0xff]
  %v2091 = vld [vmem:[#allocation3 + $0x108] sm:$0xff]
  %v2092 = vld [vmem:[#allocation3 + $0x110] sm:$0xff]
  %v2093 = vld [vmem:[#allocation3 + $0x118] sm:$0xff]
  %v2094 = vld [vmem:[#allocation3 + $0x120] sm:$0xff]
  %v2095 = vld [vmem:[#allocation3 + $0x128] sm:$0xff]
  %v2096 = vld [vmem:[#allocation3 + $0x130] sm:$0xff]
  %v2097 = vld [vmem:[#allocation3 + $0x138] sm:$0xff]
  %v2098 = vld [vmem:[#allocation3 + $0x140] sm:$0xff]
  %v2099 = vld [vmem:[#allocation3 + $0x148] sm:$0xff]
  %v2100 = vld [vmem:[#allocation3 + $0x150] sm:$0xff]
  %v2101 = vld [vmem:[#allocation3 + $0x158] sm:$0xff]
  %v2102 = vld [vmem:[#allocation3 + $0x160] sm:$0xff]
  %v2103 = vld [vmem:[#allocation3 + $0x168] sm:$0xff]
  %v2104 = vld [vmem:[#allocation3 + $0x170] sm:$0xff]
  %v2105 = vld [vmem:[#allocation3 + $0x178] sm:$0xff]
  %v2106 = vld [vmem:[#allocation3 + $0x180] sm:$0xff]
  %v2107 = vld [vmem:[#allocation3 + $0x188] sm:$0xff]
  %v2108 = vld [vmem:[#allocation3 + $0x190] sm:$0xff]
  %v2109 = vld [vmem:[#allocation3 + $0x198] sm:$0xff]
  %v2110 = vld [vmem:[#allocation3 + $0x1a0] sm:$0xff]
  %v2111 = vld [vmem:[#allocation3 + $0x1a8] sm:$0xff]
  %v2112 = vld [vmem:[#allocation3 + $0x1b0] sm:$0xff]
  %v2113 = vld [vmem:[#allocation3 + $0x1b8] sm:$0xff]
  %v2114 = vld [vmem:[#allocation3 + $0x1c0] sm:$0xff]
  %v2115 = vld [vmem:[#allocation3 + $0x1c8] sm:$0xff]
  %v2116 = vld [vmem:[#allocation3 + $0x1d0] sm:$0xff]
  %v2117 = vld [vmem:[#allocation3 + $0x1d8] sm:$0xff]
  %v2118 = vld [vmem:[#allocation3 + $0x1e0] sm:$0xff]
  %v2119 = vld [vmem:[#allocation3 + $0x1e8] sm:$0xff]
  %v2120 = vld [vmem:[#allocation3 + $0x1f0] sm:$0xff]
  %v2121 = vld [vmem:[#allocation3 + $0x1f8] sm:$0xff]
  %2122 = vmatprep.subr.mxu0 %v2119
  %2123 = vmatpush1.msra.mxu0 %v2118
  %2124 = vmatprep.subr.mxu0 %v2115
  %2125 = vmatpush1.msra.mxu0 %v2114
  %2126 = vmatprep.subr.mxu0 %v2111
  %2127 = vmatpush1.msra.mxu0 %v2110
  %2128 = vmatprep.subr.mxu0 %v2107
  %2129 = vmatpush1.msra.mxu0 %v2106
  %2130 = vmatprep.subr.mxu0 %v2103
  %2131 = vmatpush1.msra.mxu0 %v2102
  %2132 = vmatprep.subr.mxu0 %v2099
  %2133 = vmatpush1.msra.mxu0 %v2098
  %2134 = vmatprep.subr.mxu0 %v2095
  %2135 = vmatpush1.msra.mxu0 %v2094
  %2136 = vmatprep.subr.mxu0 %v2091
  %2137 = vmatpush1.msra.mxu0 %v2090
  %2138 = vmatprep.subr.mxu0 %v2087
  %2139 = vmatpush1.msra.mxu0 %v2086
  %2140 = vmatprep.subr.mxu0 %v2083
  %2141 = vmatpush1.msra.mxu0 %v2082
  %2142 = vmatprep.subr.mxu0 %v2079
  %2143 = vmatpush1.msra.mxu0 %v2078
  %2144 = vmatprep.subr.mxu0 %v2075
  %2145 = vmatpush1.msra.mxu0 %v2074
  %2146 = vmatprep.subr.mxu0 %v2071
  %2147 = vmatpush1.msra.mxu0 %v2070
  %2148 = vmatprep.subr.mxu0 %v2067
  %2149 = vmatpush1.msra.mxu0 %v2066
  %2150 = vmatprep.subr.mxu0 %v2063
  %2151 = vmatpush1.msra.mxu0 %v2062
  %2152 = vmatprep.subr.mxu0 %v2059
  %2153 = vmatpush1.msra.mxu0 %v2058
  %2154 = vmatprep.subr.mxu0 0.0
  %2155 = vmatpush2.msra.mxu0 0.0
  %2156 = vmatprep.subr.mxu0 0.0
  %2157 = vmatpush2.msra.mxu0 0.0
  %2158 = vmatprep.subr.mxu0 0.0
  %2159 = vmatpush2.msra.mxu0 0.0
  %2160 = vmatprep.subr.mxu0 0.0
  %2161 = vmatpush2.msra.mxu0 0.0
  %2162 = vmatprep.subr.mxu0 0.0
  %2163 = vmatpush2.msra.mxu0 0.0
  %2164 = vmatprep.subr.mxu0 0.0
  %2165 = vmatpush2.msra.mxu0 0.0
  %2166 = vmatprep.subr.mxu0 0.0
  %2167 = vmatpush2.msra.mxu0 0.0
  %2168 = vmatprep.subr.mxu0 0.0
  %2169 = vmatpush2.msra.mxu0 0.0
  %2170 = vmatprep.subr.mxu0 0.0
  %2171 = vmatpush2.msra.mxu0 0.0
  %2172 = vmatprep.subr.mxu0 0.0
  %2173 = vmatpush2.msra.mxu0 0.0
  %2174 = vmatprep.subr.mxu0 0.0
  %2175 = vmatpush2.msra.mxu0 0.0
  %2176 = vmatprep.subr.mxu0 0.0
  %2177 = vmatpush2.msra.mxu0 0.0
  %2178 = vmatprep.subr.mxu0 0.0
  %2179 = vmatpush2.msra.mxu0 0.0
  %2180 = vmatprep.subr.mxu0 0.0
  %2181 = vmatpush2.msra.mxu0 0.0
  %2182 = vmatprep.subr.mxu0 0.0
  %2183 = vmatpush2.msra.mxu0 0.0
  %2184 = vmatprep.subr.mxu0 0.0
  %2185 = vmatpush2.msra.mxu0 0.0
  %2186 = vmatprep.mubr.f32.mxu0 0.0
  %2187 = vmatmul.mubr.f32.gmra.mxu0 %v2052
  %v2188 = vpop.f32.mrf.mxu0
  %v2189 = vadd.f32 0.0, %v2188
  %v2190 = vpop.f32.mrf.mxu0
  %v2191 = vadd.f32 0.0, %v2190
  %2192 = vdwg.mxu0
  %2193 = vmatprep.subr.mxu0 %v2121
  %2194 = vmatpush1.msra.mxu0 %v2120
  %2195 = vmatprep.subr.mxu0 %v2117
  %2196 = vmatpush1.msra.mxu0 %v2116
  %2197 = vmatprep.subr.mxu0 %v2113
  %2198 = vmatpush1.msra.mxu0 %v2112
  %2199 = vmatprep.subr.mxu0 %v2109
  %2200 = vmatpush1.msra.mxu0 %v2108
  %2201 = vmatprep.subr.mxu0 %v2105
  %2202 = vmatpush1.msra.mxu0 %v2104
  %2203 = vmatprep.subr.mxu0 %v2101
  %2204 = vmatpush1.msra.mxu0 %v2100
  %2205 = vmatprep.subr.mxu0 %v2097
  %2206 = vmatpush1.msra.mxu0 %v2096
  %2207 = vmatprep.subr.mxu0 %v2093
  %2208 = vmatpush1.msra.mxu0 %v2092
  %2209 = vmatprep.subr.mxu0 %v2089
  %2210 = vmatpush1.msra.mxu0 %v2088
  %2211 = vmatprep.subr.mxu0 %v2085
  %2212 = vmatpush1.msra.mxu0 %v2084
  %2213 = vmatprep.subr.mxu0 %v2081
  %2214 = vmatpush1.msra.mxu0 %v2080
  %2215 = vmatprep.subr.mxu0 %v2077
  %2216 = vmatpush1.msra.mxu0 %v2076
  %2217 = vmatprep.subr.mxu0 %v2073
  %2218 = vmatpush1.msra.mxu0 %v2072
  %2219 = vmatprep.subr.mxu0 %v2069
  %2220 = vmatpush1.msra.mxu0 %v2068
  %2221 = vmatprep.subr.mxu0 %v2065
  %2222 = vmatpush1.msra.mxu0 %v2064
  %2223 = vmatprep.subr.mxu0 %v2061
  %2224 = vmatpush1.msra.mxu0 %v2060
  %2225 = vmatprep.subr.mxu0 0.0
  %2226 = vmatpush2.msra.mxu0 0.0
  %2227 = vmatprep.subr.mxu0 0.0
  %2228 = vmatpush2.msra.mxu0 0.0
  %2229 = vmatprep.subr.mxu0 0.0
  %2230 = vmatpush2.msra.mxu0 0.0
  %2231 = vmatprep.subr.mxu0 0.0
  %2232 = vmatpush2.msra.mxu0 0.0
  %2233 = vmatprep.subr.mxu0 0.0
  %2234 = vmatpush2.msra.mxu0 0.0
  %2235 = vmatprep.subr.mxu0 0.0
  %2236 = vmatpush2.msra.mxu0 0.0
  %2237 = vmatprep.subr.mxu0 0.0
  %2238 = vmatpush2.msra.mxu0 0.0
  %2239 = vmatprep.subr.mxu0 0.0
  %2240 = vmatpush2.msra.mxu0 0.0
  %2241 = vmatprep.subr.mxu0 0.0
  %2242 = vmatpush2.msra.mxu0 0.0
  %2243 = vmatprep.subr.mxu0 0.0
  %2244 = vmatpush2.msra.mxu0 0.0
  %2245 = vmatprep.subr.mxu0 0.0
  %2246 = vmatpush2.msra.mxu0 0.0
  %2247 = vmatprep.subr.mxu0 0.0
  %2248 = vmatpush2.msra.mxu0 0.0
  %2249 = vmatprep.subr.mxu0 0.0
  %2250 = vmatpush2.msra.mxu0 0.0
  %2251 = vmatprep.subr.mxu0 0.0
  %2252 = vmatpush2.msra.mxu0 0.0
  %2253 = vmatprep.subr.mxu0 0.0
  %2254 = vmatpush2.msra.mxu0 0.0
  %2255 = vmatprep.subr.mxu0 0.0
  %2256 = vmatpush2.msra.mxu0 0.0
  %2257 = vmatprep.mubr.f32.mxu0 0.0
  %2258 = vmatmul.mubr.f32.gmra.mxu0 %v2052
  %v2259 = vpop.f32.mrf.mxu0
  %v2260 = vadd.f32 0.0, %v2259
  %v2261 = vpop.f32.mrf.mxu0
  %v2262 = vadd.f32 0.0, %v2261
  %2263 = vdwg.mxu0
  %v2264 = vadd.f32 %v2054, %v2189
  %v2265 = vadd.f32 %v2055, %v2191
  %v2266 = vadd.f32 %v2056, %v2260
  %v2267 = vadd.f32 %v2057, %v2262
  %v2268 = vxor.u32 %v2264, 2147483648
  %v2269 = vmul.f32 %v2268, 1.442695
  %v2270 = vpow.pop %v2269
  %v2271 = vadd.f32 %v2270, 1.0
  %v2272 = vrcp.pop %v2271
  %v2273 = vmul.f32 1.0, %v2272
  %v2274 = vxor.u32 %v2265, 2147483648
  %v2275 = vmul.f32 %v2274, 1.442695
  %v2276 = vpow.pop %v2275
  %v2277 = vadd.f32 %v2276, 1.0
  %v2278 = vrcp.pop %v2277
  %v2279 = vmul.f32 1.0, %v2278
  %v2280 = vtanh.pop %v2266
  %v2281 = vxor.u32 %v2267, 2147483648
  %v2282 = vmul.f32 %v2281, 1.442695
  %v2283 = vpow.pop %v2282
  %v2284 = vadd.f32 %v2283, 1.0
  %v2285 = vrcp.pop %v2284
  %v2286 = vmul.f32 1.0, %v2285
  %v2287 = vmul.f32 %v2279, %v2050
  %v2288 = vmul.f32 %v2273, %v2280
  %v2289 = vadd.f32 %v2287, %v2288
  %v2290 = vtanh.pop %v2289
  %v2291 = vmul.f32 %v2286, %v2290
  %2292 = vst [vmem:[%s4 + $0x30] sm:$0xff] %v2291
  %v2293 = vld [vmem:[#allocation5 + $0xe0] sm:$0xff]
  %v2294 = vld [vmem:[#allocation5 + $0xe8] sm:$0xff]
  %v2295 = vld [vmem:[#allocation5 + $0xf0] sm:$0xff]
  %v2296 = vld [vmem:[#allocation5 + $0xf8] sm:$0xff]
  %v2297 = vld [vmem:[#allocation3] sm:$0xff]
  %v2298 = vld [vmem:[#allocation3 + $0x8] sm:$0xff]
  %v2299 = vld [vmem:[#allocation3 + $0x10] sm:$0xff]
  %v2300 = vld [vmem:[#allocation3 + $0x18] sm:$0xff]
  %v2301 = vld [vmem:[#allocation3 + $0x20] sm:$0xff]
  %v2302 = vld [vmem:[#allocation3 + $0x28] sm:$0xff]
  %v2303 = vld [vmem:[#allocation3 + $0x30] sm:$0xff]
  %v2304 = vld [vmem:[#allocation3 + $0x38] sm:$0xff]
  %v2305 = vld [vmem:[#allocation3 + $0x40] sm:$0xff]
  %v2306 = vld [vmem:[#allocation3 + $0x48] sm:$0xff]
  %v2307 = vld [vmem:[#allocation3 + $0x50] sm:$0xff]
  %v2308 = vld [vmem:[#allocation3 + $0x58] sm:$0xff]
  %v2309 = vld [vmem:[#allocation3 + $0x60] sm:$0xff]
  %v2310 = vld [vmem:[#allocation3 + $0x68] sm:$0xff]
  %v2311 = vld [vmem:[#allocation3 + $0x70] sm:$0xff]
  %v2312 = vld [vmem:[#allocation3 + $0x78] sm:$0xff]
  %v2313 = vld [vmem:[#allocation3 + $0x80] sm:$0xff]
  %v2314 = vld [vmem:[#allocation3 + $0x88] sm:$0xff]
  %v2315 = vld [vmem:[#allocation3 + $0x90] sm:$0xff]
  %v2316 = vld [vmem:[#allocation3 + $0x98] sm:$0xff]
  %v2317 = vld [vmem:[#allocation3 + $0xa0] sm:$0xff]
  %v2318 = vld [vmem:[#allocation3 + $0xa8] sm:$0xff]
  %v2319 = vld [vmem:[#allocation3 + $0xb0] sm:$0xff]
  %v2320 = vld [vmem:[#allocation3 + $0xb8] sm:$0xff]
  %v2321 = vld [vmem:[#allocation3 + $0xc0] sm:$0xff]
  %v2322 = vld [vmem:[#allocation3 + $0xc8] sm:$0xff]
  %v2323 = vld [vmem:[#allocation3 + $0xd0] sm:$0xff]
  %v2324 = vld [vmem:[#allocation3 + $0xd8] sm:$0xff]
  %v2325 = vld [vmem:[#allocation3 + $0xe0] sm:$0xff]
  %v2326 = vld [vmem:[#allocation3 + $0xe8] sm:$0xff]
  %v2327 = vld [vmem:[#allocation3 + $0xf0] sm:$0xff]
  %v2328 = vld [vmem:[#allocation3 + $0xf8] sm:$0xff]
  %v2329 = vld [vmem:[#allocation3 + $0x100] sm:$0xff]
  %v2330 = vld [vmem:[#allocation3 + $0x108] sm:$0xff]
  %v2331 = vld [vmem:[#allocation3 + $0x110] sm:$0xff]
  %v2332 = vld [vmem:[#allocation3 + $0x118] sm:$0xff]
  %v2333 = vld [vmem:[#allocation3 + $0x120] sm:$0xff]
  %v2334 = vld [vmem:[#allocation3 + $0x128] sm:$0xff]
  %v2335 = vld [vmem:[#allocation3 + $0x130] sm:$0xff]
  %v2336 = vld [vmem:[#allocation3 + $0x138] sm:$0xff]
  %v2337 = vld [vmem:[#allocation3 + $0x140] sm:$0xff]
  %v2338 = vld [vmem:[#allocation3 + $0x148] sm:$0xff]
  %v2339 = vld [vmem:[#allocation3 + $0x150] sm:$0xff]
  %v2340 = vld [vmem:[#allocation3 + $0x158] sm:$0xff]
  %v2341 = vld [vmem:[#allocation3 + $0x160] sm:$0xff]
  %v2342 = vld [vmem:[#allocation3 + $0x168] sm:$0xff]
  %v2343 = vld [vmem:[#allocation3 + $0x170] sm:$0xff]
  %v2344 = vld [vmem:[#allocation3 + $0x178] sm:$0xff]
  %v2345 = vld [vmem:[#allocation3 + $0x180] sm:$0xff]
  %v2346 = vld [vmem:[#allocation3 + $0x188] sm:$0xff]
  %v2347 = vld [vmem:[#allocation3 + $0x190] sm:$0xff]
  %v2348 = vld [vmem:[#allocation3 + $0x198] sm:$0xff]
  %v2349 = vld [vmem:[#allocation3 + $0x1a0] sm:$0xff]
  %v2350 = vld [vmem:[#allocation3 + $0x1a8] sm:$0xff]
  %v2351 = vld [vmem:[#allocation3 + $0x1b0] sm:$0xff]
  %v2352 = vld [vmem:[#allocation3 + $0x1b8] sm:$0xff]
  %v2353 = vld [vmem:[#allocation3 + $0x1c0] sm:$0xff]
  %v2354 = vld [vmem:[#allocation3 + $0x1c8] sm:$0xff]
  %v2355 = vld [vmem:[#allocation3 + $0x1d0] sm:$0xff]
  %v2356 = vld [vmem:[#allocation3 + $0x1d8] sm:$0xff]
  %v2357 = vld [vmem:[#allocation3 + $0x1e0] sm:$0xff]
  %v2358 = vld [vmem:[#allocation3 + $0x1e8] sm:$0xff]
  %v2359 = vld [vmem:[#allocation3 + $0x1f0] sm:$0xff]
  %v2360 = vld [vmem:[#allocation3 + $0x1f8] sm:$0xff]
  %2361 = vmatprep.subr.mxu0 %v2358
  %2362 = vmatpush1.msra.mxu0 %v2357
  %2363 = vmatprep.subr.mxu0 %v2354
  %2364 = vmatpush1.msra.mxu0 %v2353
  %2365 = vmatprep.subr.mxu0 %v2350
  %2366 = vmatpush1.msra.mxu0 %v2349
  %2367 = vmatprep.subr.mxu0 %v2346
  %2368 = vmatpush1.msra.mxu0 %v2345
  %2369 = vmatprep.subr.mxu0 %v2342
  %2370 = vmatpush1.msra.mxu0 %v2341
  %2371 = vmatprep.subr.mxu0 %v2338
  %2372 = vmatpush1.msra.mxu0 %v2337
  %2373 = vmatprep.subr.mxu0 %v2334
  %2374 = vmatpush1.msra.mxu0 %v2333
  %2375 = vmatprep.subr.mxu0 %v2330
  %2376 = vmatpush1.msra.mxu0 %v2329
  %2377 = vmatprep.subr.mxu0 %v2326
  %2378 = vmatpush1.msra.mxu0 %v2325
  %2379 = vmatprep.subr.mxu0 %v2322
  %2380 = vmatpush1.msra.mxu0 %v2321
  %2381 = vmatprep.subr.mxu0 %v2318
  %2382 = vmatpush1.msra.mxu0 %v2317
  %2383 = vmatprep.subr.mxu0 %v2314
  %2384 = vmatpush1.msra.mxu0 %v2313
  %2385 = vmatprep.subr.mxu0 %v2310
  %2386 = vmatpush1.msra.mxu0 %v2309
  %2387 = vmatprep.subr.mxu0 %v2306
  %2388 = vmatpush1.msra.mxu0 %v2305
  %2389 = vmatprep.subr.mxu0 %v2302
  %2390 = vmatpush1.msra.mxu0 %v2301
  %2391 = vmatprep.subr.mxu0 %v2298
  %2392 = vmatpush1.msra.mxu0 %v2297
  %2393 = vmatprep.subr.mxu0 0.0
  %2394 = vmatpush2.msra.mxu0 0.0
  %2395 = vmatprep.subr.mxu0 0.0
  %2396 = vmatpush2.msra.mxu0 0.0
  %2397 = vmatprep.subr.mxu0 0.0
  %2398 = vmatpush2.msra.mxu0 0.0
  %2399 = vmatprep.subr.mxu0 0.0
  %2400 = vmatpush2.msra.mxu0 0.0
  %2401 = vmatprep.subr.mxu0 0.0
  %2402 = vmatpush2.msra.mxu0 0.0
  %2403 = vmatprep.subr.mxu0 0.0
  %2404 = vmatpush2.msra.mxu0 0.0
  %2405 = vmatprep.subr.mxu0 0.0
  %2406 = vmatpush2.msra.mxu0 0.0
  %2407 = vmatprep.subr.mxu0 0.0
  %2408 = vmatpush2.msra.mxu0 0.0
  %2409 = vmatprep.subr.mxu0 0.0
  %2410 = vmatpush2.msra.mxu0 0.0
  %2411 = vmatprep.subr.mxu0 0.0
  %2412 = vmatpush2.msra.mxu0 0.0
  %2413 = vmatprep.subr.mxu0 0.0
  %2414 = vmatpush2.msra.mxu0 0.0
  %2415 = vmatprep.subr.mxu0 0.0
  %2416 = vmatpush2.msra.mxu0 0.0
  %2417 = vmatprep.subr.mxu0 0.0
  %2418 = vmatpush2.msra.mxu0 0.0
  %2419 = vmatprep.subr.mxu0 0.0
  %2420 = vmatpush2.msra.mxu0 0.0
  %2421 = vmatprep.subr.mxu0 0.0
  %2422 = vmatpush2.msra.mxu0 0.0
  %2423 = vmatprep.subr.mxu0 0.0
  %2424 = vmatpush2.msra.mxu0 0.0
  %2425 = vmatprep.mubr.f32.mxu0 0.0
  %2426 = vmatmul.mubr.f32.gmra.mxu0 %v2291
  %v2427 = vpop.f32.mrf.mxu0
  %v2428 = vadd.f32 0.0, %v2427
  %v2429 = vpop.f32.mrf.mxu0
  %v2430 = vadd.f32 0.0, %v2429
  %2431 = vdwg.mxu0
  %2432 = vmatprep.subr.mxu0 %v2360
  %2433 = vmatpush1.msra.mxu0 %v2359
  %2434 = vmatprep.subr.mxu0 %v2356
  %2435 = vmatpush1.msra.mxu0 %v2355
  %2436 = vmatprep.subr.mxu0 %v2352
  %2437 = vmatpush1.msra.mxu0 %v2351
  %2438 = vmatprep.subr.mxu0 %v2348
  %2439 = vmatpush1.msra.mxu0 %v2347
  %2440 = vmatprep.subr.mxu0 %v2344
  %2441 = vmatpush1.msra.mxu0 %v2343
  %2442 = vmatprep.subr.mxu0 %v2340
  %2443 = vmatpush1.msra.mxu0 %v2339
  %2444 = vmatprep.subr.mxu0 %v2336
  %2445 = vmatpush1.msra.mxu0 %v2335
  %2446 = vmatprep.subr.mxu0 %v2332
  %2447 = vmatpush1.msra.mxu0 %v2331
  %2448 = vmatprep.subr.mxu0 %v2328
  %2449 = vmatpush1.msra.mxu0 %v2327
  %2450 = vmatprep.subr.mxu0 %v2324
  %2451 = vmatpush1.msra.mxu0 %v2323
  %2452 = vmatprep.subr.mxu0 %v2320
  %2453 = vmatpush1.msra.mxu0 %v2319
  %2454 = vmatprep.subr.mxu0 %v2316
  %2455 = vmatpush1.msra.mxu0 %v2315
  %2456 = vmatprep.subr.mxu0 %v2312
  %2457 = vmatpush1.msra.mxu0 %v2311
  %2458 = vmatprep.subr.mxu0 %v2308
  %2459 = vmatpush1.msra.mxu0 %v2307
  %2460 = vmatprep.subr.mxu0 %v2304
  %2461 = vmatpush1.msra.mxu0 %v2303
  %2462 = vmatprep.subr.mxu0 %v2300
  %2463 = vmatpush1.msra.mxu0 %v2299
  %2464 = vmatprep.subr.mxu0 0.0
  %2465 = vmatpush2.msra.mxu0 0.0
  %2466 = vmatprep.subr.mxu0 0.0
  %2467 = vmatpush2.msra.mxu0 0.0
  %2468 = vmatprep.subr.mxu0 0.0
  %2469 = vmatpush2.msra.mxu0 0.0
  %2470 = vmatprep.subr.mxu0 0.0
  %2471 = vmatpush2.msra.mxu0 0.0
  %2472 = vmatprep.subr.mxu0 0.0
  %2473 = vmatpush2.msra.mxu0 0.0
  %2474 = vmatprep.subr.mxu0 0.0
  %2475 = vmatpush2.msra.mxu0 0.0
  %2476 = vmatprep.subr.mxu0 0.0
  %2477 = vmatpush2.msra.mxu0 0.0
  %2478 = vmatprep.subr.mxu0 0.0
  %2479 = vmatpush2.msra.mxu0 0.0
  %2480 = vmatprep.subr.mxu0 0.0
  %2481 = vmatpush2.msra.mxu0 0.0
  %2482 = vmatprep.subr.mxu0 0.0
  %2483 = vmatpush2.msra.mxu0 0.0
  %2484 = vmatprep.subr.mxu0 0.0
  %2485 = vmatpush2.msra.mxu0 0.0
  %2486 = vmatprep.subr.mxu0 0.0
  %2487 = vmatpush2.msra.mxu0 0.0
  %2488 = vmatprep.subr.mxu0 0.0
  %2489 = vmatpush2.msra.mxu0 0.0
  %2490 = vmatprep.subr.mxu0 0.0
  %2491 = vmatpush2.msra.mxu0 0.0
  %2492 = vmatprep.subr.mxu0 0.0
  %2493 = vmatpush2.msra.mxu0 0.0
  %2494 = vmatprep.subr.mxu0 0.0
  %2495 = vmatpush2.msra.mxu0 0.0
  %2496 = vmatprep.mubr.f32.mxu0 0.0
  %2497 = vmatmul.mubr.f32.gmra.mxu0 %v2291
  %v2498 = vpop.f32.mrf.mxu0
  %v2499 = vadd.f32 0.0, %v2498
  %v2500 = vpop.f32.mrf.mxu0
  %v2501 = vadd.f32 0.0, %v2500
  %2502 = vdwg.mxu0
  %v2503 = vadd.f32 %v2293, %v2428
  %v2504 = vadd.f32 %v2294, %v2430
  %v2505 = vadd.f32 %v2295, %v2499
  %v2506 = vadd.f32 %v2296, %v2501
  %v2507 = vxor.u32 %v2503, 2147483648
  %v2508 = vmul.f32 %v2507, 1.442695
  %v2509 = vpow.pop %v2508
  %v2510 = vadd.f32 %v2509, 1.0
  %v2511 = vrcp.pop %v2510
  %v2512 = vmul.f32 1.0, %v2511
  %v2513 = vxor.u32 %v2504, 2147483648
  %v2514 = vmul.f32 %v2513, 1.442695
  %v2515 = vpow.pop %v2514
  %v2516 = vadd.f32 %v2515, 1.0
  %v2517 = vrcp.pop %v2516
  %v2518 = vmul.f32 1.0, %v2517
  %v2519 = vtanh.pop %v2505
  %v2520 = vxor.u32 %v2506, 2147483648
  %v2521 = vmul.f32 %v2520, 1.442695
  %v2522 = vpow.pop %v2521
  %v2523 = vadd.f32 %v2522, 1.0
  %v2524 = vrcp.pop %v2523
  %v2525 = vmul.f32 1.0, %v2524
  %v2526 = vmul.f32 %v2518, %v2289
  %v2527 = vmul.f32 %v2512, %v2519
  %v2528 = vadd.f32 %v2526, %v2527
  %v2529 = vtanh.pop %v2528
  %v2530 = vmul.f32 %v2525, %v2529
  %2531 = vst [vmem:[%s4 + $0x38] sm:$0xff] %v2530
  %2532 = vst [vmem:[#allocation6] sm:$0xff] %v2530
  %2533 = vst [vmem:[#allocation7] sm:$0xff] %v2528
  // Predicated region
  $region108: #{embedder_forward.3} parent=0 // pred_check
    _
  $region109: #{embedder_forward.3} parent=0 // pred_check_branch
    %2535 = sbr.rel (0) target = $region111
  $region110: #{embedder_forward.3} parent=0 // pred_region
    _
  $region111: #{embedder_forward.3} parent=0 // pred_fallthru
    _
  // Predicated region
  $region112: #{embedder_forward.3} parent=0 // pred_check
    _
  $region113: #{embedder_forward.3} parent=0 // pred_check_branch
    %2537 = sbr.rel (0) target = $region115
  $region114: #{embedder_forward.3} parent=0 // pred_region
    _
  $region115: #{embedder_forward.3} parent=0 // pred_fallthru
    _
  %2538 = vsyncmov [#allocation8]
  %s2539 = vpop.sfrf %2538
  %p2540 = scmp.eq.s32.totalorder %s2539, 0
  %p2541 = pneg %p2540
  %2543 = shalt.err (%p2541)
  %s2544 = scalar_lea.sflag [#allocation8], 1
  %2545 = vsyncmov %s2544
  %s2546 = vpop.sfrf %2545
  %p2547 = scmp.eq.s32.totalorder %s2546, 0
  %p2548 = pneg %p2547
  %2550 = shalt.err (%p2548)
  %s2551 = scalar_lea.sflag [#allocation8], 2
  %2552 = vsyncmov %s2551
  %s2553 = vpop.sfrf %2552
  %p2554 = scmp.eq.s32.totalorder %s2553, 0
  %p2555 = pneg %p2554
  %2557 = shalt.err (%p2555)

</llo_original>
